<compile_context>
chip_gen: v7x
topology: tpu7x:2x2x1
jax: 0.10.0
libtpu: 0.0.40
codegen_flags: <defaults>
</compile_context>

<pallas_src>
import jax
import jax.numpy as jnp
import numpy as np
from jax.experimental import pallas as pl
from jax.experimental.pallas import tpu as pltpu


# ----------------------------------------------------------------------------
# Pallas kernel: fused (gather + layer 1) + MLP + padded output head.
# ----------------------------------------------------------------------------
def _janossy_improper_kernel(idx_ref, as_ref, ab_ref, b1_ref,
                             w2_ref, b2_ref, wo_ref, bo_ref, out_ref):
    tile_n = idx_ref.shape[0]
    a_pad = as_ref.shape[0]
    cdt = as_ref.dtype                         # compute dtype (bf16 or f32)

    idx = idx_ref[...]                         # [tile_n, 4] int32
    iota = jax.lax.broadcasted_iota(jnp.int32, (tile_n, a_pad), 1)

    def eq(col):                               # boolean compare -> int32
        return (iota == idx[:, col:col + 1]).astype(jnp.int32)

    # Permutation sum needs only s = h0+h2+h3 and h1.  Build the one-hot
    # selectors in int32 and cast to the compute dtype exactly once each.
    oh_s = (eq(0) + eq(2) + eq(3)).astype(cdt)             # [tile_n, A_pad]
    oh_1 = eq(1).astype(cdt)                               # [tile_n, A_pad]

    # Gather + layer 1 fused: the tables are atom_h pre-multiplied by the
    # permutation-split W1 in the wrapper, so this is one long-contraction
    # MXU pass per operand (contraction = A_pad, not F=32).
    y = (jnp.dot(oh_s, as_ref[...], preferred_element_type=jnp.float32)
         + jnp.dot(oh_1, ab_ref[...], preferred_element_type=jnp.float32)
         + b1_ref[...])
    y = jnp.maximum(y, 0.0)

    # Layer 2
    y = jnp.dot(y.astype(cdt), w2_ref[...],
                preferred_element_type=jnp.float32) + b2_ref[...]
    y = jnp.maximum(y, 0.0)

    # f_out_n4_improper_to_k  (lane-dense, padded to 128 columns)
    out = jnp.dot(y.astype(cdt), wo_ref[...],
                  preferred_element_type=jnp.float32) + bo_ref[...]
    out_ref[...] = out.astype(out_ref.dtype)


# ----------------------------------------------------------------------------
# Wrapper
# ----------------------------------------------------------------------------
def janossy_pooling_improper(atom_h, improper_idx, params, *, tile_n=512,
                             compute_dtype=jnp.bfloat16):
    """Janossy improper pooling head.

    atom_h       : [num_atoms, F]  per-atom representations ('h' on n1 nodes)
    improper_idx : [N, 4]          the 4 member atoms of each n4_improper node
    params       : (W1 [4F,H], b1 [1,H], W2 [H,H], b2 [1,H], Wout [H,K], bo [1,K])
                   weights stored as [in, out] (torch W.T).
    """
    n = improper_idx.shape[0]
    a, f = atom_h.shape
    w1, b1, w2, b2, wo, bo = params
    h_mid = w1.shape[1]
    k = wo.shape[1]
    k_pad = 128                                   # lane-dense output width

    # Permutation-sum pre-split of W1 (removes the lane-axis concat) ...
    w1_s = w1[:f] + w1[2 * f:3 * f] + w1[3 * f:]
    w1_b = 3.0 * w1[f:2 * f]

    # ... folded straight into the atom table so gather and layer 1 become a
    # single matmul per operand.  Rows padded to a 128 multiple (unmasked lane
    # compares, aligned MXU contraction); padded rows are zero.
    a_pad = pl.cdiv(a, 128) * 128
    atab_s = jnp.zeros((a_pad, h_mid), jnp.float32).at[:a].set(atom_h @ w1_s)
    atab_b = jnp.zeros((a_pad, h_mid), jnp.float32).at[:a].set(atom_h @ w1_b)

    # Zero-pad the K=6 output head to 128 lanes (lane-dense stores).
    wo_p = jnp.zeros((h_mid, k_pad), jnp.float32).at[:, :k].set(wo)
    bo_p = jnp.zeros((1, k_pad), jnp.float32).at[:, :k].set(bo)

    # Pad N up to a tile multiple (padded rows gather atom 0; sliced off below).
    n_pad = pl.cdiv(n, tile_n) * tile_n
    idx = jnp.zeros((n_pad, 4), jnp.int32).at[:n].set(improper_idx.astype(jnp.int32))

    cdt = compute_dtype
    atab_s_c = atab_s.astype(cdt)
    atab_b_c = atab_b.astype(cdt)
    w2_c = w2.astype(cdt)
    wo_c = wo_p.astype(cdt)
    b1_f = b1.astype(jnp.float32)
    b2_f = b2.astype(jnp.float32)
    bo_f = bo_p.astype(jnp.float32)

    grid = (n_pad // tile_n,)
    full = lambda shape: pl.BlockSpec(shape, lambda i: (0, 0))
    # TODO(synk): for very large atom tables (A >~ few thousand) switch to a
    # manual DMA row gather (PrefetchScalarGridSpec(num_scalar_prefetch=1) with
    # idx in SMEM + make_async_copy) and single-buffer the grid-invariant
    # weight/table specs; unnecessary at these sizes (tables fit VMEM easily).

    out = pl.pallas_call(
        _janossy_improper_kernel,
        out_shape=jax.ShapeDtypeStruct((n_pad, k_pad), cdt),
        grid_spec=pltpu.PrefetchScalarGridSpec(
            num_scalar_prefetch=0,
            grid=grid,
            in_specs=[pl.BlockSpec((tile_n, 4), lambda i: (i, 0)),   # indices
                      full((a_pad, h_mid)),                          # As table
                      full((a_pad, h_mid)),                          # Ab table
                      full((1, h_mid)),                              # b1
                      full((h_mid, h_mid)), full((1, h_mid)),        # W2, b2
                      full((h_mid, k_pad)), full((1, k_pad))],       # Wout, bo
            out_specs=pl.BlockSpec((tile_n, k_pad), lambda i: (i, 0)),
        ),
        compiler_params=pltpu.CompilerParams(
            dimension_semantics=("parallel",)),
    )(idx, atab_s_c, atab_b_c, b1_f, w2_c, b2_f, wo_c, bo_f)

    return out[:n, :k].astype(jnp.float32)


# ----------------------------------------------------------------------------
# Plain-JAX reference (true f32 semantics of the torch module).
# ----------------------------------------------------------------------------
def _reference(atom_h, improper_idx, params):
    w1, b1, w2, b2, wo, bo = params
    h0 = atom_h[improper_idx[:, 0]]
    h1 = atom_h[improper_idx[:, 1]]
    h2 = atom_h[improper_idx[:, 2]]
    h3 = atom_h[improper_idx[:, 3]]
    x = (jnp.concatenate([h0, h1, h2, h3], axis=1)
         + jnp.concatenate([h2, h1, h3, h0], axis=1)
         + jnp.concatenate([h3, h1, h0, h2], axis=1))
    y = jnp.maximum(x @ w1 + b1, 0.0)
    y = jnp.maximum(y @ w2 + b2, 0.0)
    return y @ wo + bo


if __name__ == "__main__":
    # ---- module config (matches __init__ shape logic) -----------------------
    in_features = 32                       # per-atom representation width
    config = [32, "relu", 32, "relu"]      # _Sequential config
    mid_features = 32                      # last int in config
    out_k = 6                              # out_features={'k': 6}

    num_atoms = 300                        # padded to 384 inside the wrapper
    num_impropers = 1000                   # not a tile multiple -> exercises padding
    tile_n = 512                           # grid = 2 -> both v7x TCs busy

    key = jax.random.PRNGKey(0)
    keys = jax.random.split(key, 8)

    # Atom node representations ('h' on n1 nodes).
    atom_h = jax.random.normal(keys[0], (num_atoms, in_features), jnp.float32)
    # Improper node -> its 4 member atoms (the n1_as_i_in_n4_improper relations).
    improper_idx = jax.random.randint(keys[1], (num_impropers, 4), 0, num_atoms)
    # TODO(synk): general DGL heterograph bookkeeping (node/edge frame writes,
    # returning the mutated graph) is outside kernel scope; only the
    # n4_improper readout math is implemented.

    # Deterministic parameter init (stored as [in, out], i.e. torch W.T).
    def init_linear(kk, fan_in, fan_out):
        kw, kb = jax.random.split(kk)
        lim = 1.0 / np.sqrt(fan_in)
        w = jax.random.uniform(kw, (fan_in, fan_out), jnp.float32, -lim, lim)
        b = jax.random.uniform(kb, (1, fan_out), jnp.float32, -lim, lim)
        return w, b

    w1, b1 = init_linear(keys[2], 4 * in_features, 32)
    w2, b2 = init_linear(keys[3], 32, mid_features)
    wo, bo = init_linear(keys[4], mid_features, out_k)
    params = (w1, b1, w2, b2, wo, bo)

    ref = _reference(atom_h, improper_idx, params)

    # f32 compute path: near-exact check (only matmul-association differences
    # from folding layer 1 into the atom table).
    out_f32 = janossy_pooling_improper(atom_h, improper_idx, params,
                                       tile_n=tile_n,
                                       compute_dtype=jnp.float32)
    out_f32 = jax.block_until_ready(out_f32)
    np.testing.assert_allclose(np.asarray(out_f32), np.asarray(ref),
                               rtol=1e-4, atol=1e-4)

    # bf16 compute path (default): bf16 MXU inputs, f32 accumulation, bf16
    # writeback of the padded output block.
    out_bf16 = janossy_pooling_improper(atom_h, improper_idx, params,
                                        tile_n=tile_n,
                                        compute_dtype=jnp.bfloat16)
    out_bf16 = jax.block_until_ready(out_bf16)
    np.testing.assert_allclose(np.asarray(out_bf16), np.asarray(ref),
                               rtol=3e-2, atol=3e-2)

    print("KERNEL_OK")
</pallas_src>

<mosaic_0001>
module attributes {stable_mosaic.version = 11 : i64} {
  func.func @_janossy_improper_kernel(%arg0: i32, %arg1: memref<512x4xi32, #tpu.memory_space<vmem>>, %arg2: memref<384x32xf32, #tpu.memory_space<vmem>>, %arg3: memref<384x32xf32, #tpu.memory_space<vmem>>, %arg4: memref<1x32xf32, #tpu.memory_space<vmem>>, %arg5: memref<32x32xf32, #tpu.memory_space<vmem>>, %arg6: memref<1x32xf32, #tpu.memory_space<vmem>>, %arg7: memref<32x128xf32, #tpu.memory_space<vmem>>, %arg8: memref<1x128xf32, #tpu.memory_space<vmem>>, %arg9: memref<512x128xf32, #tpu.memory_space<vmem>>) attributes {dimension_semantics = [#tpu.dimension_semantics<parallel>], iteration_bounds = array<i64: 2>, scalar_prefetch = 0 : i64, scratch_operands = 0 : i64, tpu.core_type = #tpu.core_type<tc>, window_params = [{transform_indices = @transform_0, window_bounds = array<i64: 512, 4>}, {pipeline_mode = #tpu.pipeline_mode<synchronous>, transform_indices = @transform_1, window_bounds = array<i64: 384, 32>}, {pipeline_mode = #tpu.pipeline_mode<synchronous>, transform_indices = @transform_2, window_bounds = array<i64: 384, 32>}, {pipeline_mode = #tpu.pipeline_mode<synchronous>, transform_indices = @transform_3, window_bounds = array<i64: 1, 32>}, {pipeline_mode = #tpu.pipeline_mode<synchronous>, transform_indices = @transform_4, window_bounds = array<i64: 32, 32>}, {pipeline_mode = #tpu.pipeline_mode<synchronous>, transform_indices = @transform_5, window_bounds = array<i64: 1, 32>}, {pipeline_mode = #tpu.pipeline_mode<synchronous>, transform_indices = @transform_6, window_bounds = array<i64: 32, 128>}, {pipeline_mode = #tpu.pipeline_mode<synchronous>, transform_indices = @transform_7, window_bounds = array<i64: 1, 128>}, {transform_indices = @transform_8, window_bounds = array<i64: 512, 128>}]} {
    %c0 = arith.constant 0 : index
    %c0_0 = arith.constant 0 : index
    %0 = vector.load %arg1[%c0, %c0_0] : memref<512x4xi32, #tpu.memory_space<vmem>>, vector<512x4xi32>
    %1 = tpu.iota {dimensions = array<i32: 1>} : vector<512x384xi32>
    %2 = vector.extract_strided_slice %0 {offsets = [0, 0], sizes = [512, 1], strides = [1, 1]} : vector<512x4xi32> to vector<512x1xi32>
    %3 = vector.broadcast %2 : vector<512x1xi32> to vector<512x384xi32>
    %4 = arith.cmpi eq, %1, %3 : vector<512x384xi32>
    %5 = arith.extui %4 : vector<512x384xi1> to vector<512x384xi32>
    %6 = vector.extract_strided_slice %0 {offsets = [0, 2], sizes = [512, 1], strides = [1, 1]} : vector<512x4xi32> to vector<512x1xi32>
    %7 = vector.broadcast %6 : vector<512x1xi32> to vector<512x384xi32>
    %8 = arith.cmpi eq, %1, %7 : vector<512x384xi32>
    %9 = arith.extui %8 : vector<512x384xi1> to vector<512x384xi32>
    %10 = arith.addi %5, %9 : vector<512x384xi32>
    %11 = vector.extract_strided_slice %0 {offsets = [0, 3], sizes = [512, 1], strides = [1, 1]} : vector<512x4xi32> to vector<512x1xi32>
    %12 = vector.broadcast %11 : vector<512x1xi32> to vector<512x384xi32>
    %13 = arith.cmpi eq, %1, %12 : vector<512x384xi32>
    %14 = arith.extui %13 : vector<512x384xi1> to vector<512x384xi32>
    %15 = arith.addi %10, %14 : vector<512x384xi32>
    %16 = arith.sitofp %15 : vector<512x384xi32> to vector<512x384xf32>
    %17 = vector.extract_strided_slice %0 {offsets = [0, 1], sizes = [512, 1], strides = [1, 1]} : vector<512x4xi32> to vector<512x1xi32>
    %18 = vector.broadcast %17 : vector<512x1xi32> to vector<512x384xi32>
    %19 = arith.cmpi eq, %1, %18 : vector<512x384xi32>
    %20 = arith.extui %19 : vector<512x384xi1> to vector<512x384xi32>
    %21 = arith.sitofp %20 : vector<512x384xi32> to vector<512x384xf32>
    %c0_1 = arith.constant 0 : index
    %c0_2 = arith.constant 0 : index
    %22 = vector.load %arg2[%c0_1, %c0_2] : memref<384x32xf32, #tpu.memory_space<vmem>>, vector<384x32xf32>
    %cst = arith.constant dense<0.000000e+00> : vector<512x32xf32>
    %23 = tpu.matmul %16, %22, %cst {dimension_numbers = #tpu.dot_dimension_numbers<[1], [0], [0], [1], [0, 0, 1, 1], [], []>} : vector<512x384xf32>, vector<384x32xf32>, vector<512x32xf32> -> vector<512x32xf32>
    %c0_3 = arith.constant 0 : index
    %c0_4 = arith.constant 0 : index
    %24 = vector.load %arg3[%c0_3, %c0_4] : memref<384x32xf32, #tpu.memory_space<vmem>>, vector<384x32xf32>
    %cst_5 = arith.constant dense<0.000000e+00> : vector<512x32xf32>
    %25 = tpu.matmul %21, %24, %cst_5 {dimension_numbers = #tpu.dot_dimension_numbers<[1], [0], [0], [1], [0, 0, 1, 1], [], []>} : vector<512x384xf32>, vector<384x32xf32>, vector<512x32xf32> -> vector<512x32xf32>
    %26 = arith.addf %23, %25 : vector<512x32xf32>
    %c0_6 = arith.constant 0 : index
    %c0_7 = arith.constant 0 : index
    %27 = vector.load %arg4[%c0_6, %c0_7] : memref<1x32xf32, #tpu.memory_space<vmem>>, vector<1x32xf32>
    %28 = vector.broadcast %27 : vector<1x32xf32> to vector<512x32xf32>
    %29 = arith.addf %26, %28 : vector<512x32xf32>
    %cst_8 = arith.constant 0.000000e+00 : f32
    %30 = vector.broadcast %cst_8 : f32 to vector<512x32xf32>
    %31 = arith.maximumf %29, %30 : vector<512x32xf32>
    %c0_9 = arith.constant 0 : index
    %c0_10 = arith.constant 0 : index
    %32 = vector.load %arg5[%c0_9, %c0_10] : memref<32x32xf32, #tpu.memory_space<vmem>>, vector<32x32xf32>
    %cst_11 = arith.constant dense<0.000000e+00> : vector<512x32xf32>
    %33 = tpu.matmul %31, %32, %cst_11 {dimension_numbers = #tpu.dot_dimension_numbers<[1], [0], [0], [1], [0, 0, 1, 1], [], []>} : vector<512x32xf32>, vector<32x32xf32>, vector<512x32xf32> -> vector<512x32xf32>
    %c0_12 = arith.constant 0 : index
    %c0_13 = arith.constant 0 : index
    %34 = vector.load %arg6[%c0_12, %c0_13] : memref<1x32xf32, #tpu.memory_space<vmem>>, vector<1x32xf32>
    %35 = vector.broadcast %34 : vector<1x32xf32> to vector<512x32xf32>
    %36 = arith.addf %33, %35 : vector<512x32xf32>
    %cst_14 = arith.constant 0.000000e+00 : f32
    %37 = vector.broadcast %cst_14 : f32 to vector<512x32xf32>
    %38 = arith.maximumf %36, %37 : vector<512x32xf32>
    %c0_15 = arith.constant 0 : index
    %c0_16 = arith.constant 0 : index
    %39 = vector.load %arg7[%c0_15, %c0_16] : memref<32x128xf32, #tpu.memory_space<vmem>>, vector<32x128xf32>
    %cst_17 = arith.constant dense<0.000000e+00> : vector<512x128xf32>
    %40 = tpu.matmul %38, %39, %cst_17 {dimension_numbers = #tpu.dot_dimension_numbers<[1], [0], [0], [1], [0, 0, 1, 1], [], []>} : vector<512x32xf32>, vector<32x128xf32>, vector<512x128xf32> -> vector<512x128xf32>
    %c0_18 = arith.constant 0 : index
    %c0_19 = arith.constant 0 : index
    %41 = vector.load %arg8[%c0_18, %c0_19] : memref<1x128xf32, #tpu.memory_space<vmem>>, vector<1x128xf32>
    %42 = vector.broadcast %41 : vector<1x128xf32> to vector<512x128xf32>
    %43 = arith.addf %40, %42 : vector<512x128xf32>
    %c0_20 = arith.constant 0 : index
    %c0_21 = arith.constant 0 : index
    %44 = vector.load %arg9[%c0_20, %c0_21] : memref<512x128xf32, #tpu.memory_space<vmem>>, vector<512x128xf32>
    tpu.vector_store %arg9[%c0_20, %c0_21], %43 {strides = array<i32>} : memref<512x128xf32, #tpu.memory_space<vmem>>, vector<512x128xf32>,
    return
  }
  func.func @transform_0(%arg0: i32) -> (i32, i32) {
    %c0_i32 = arith.constant 0 : i32
    %c0_i32_0 = arith.constant 0 : i32
    return %arg0, %c0_i32 : i32, i32
  }
  func.func @transform_1(%arg0: i32) -> (i32, i32) {
    %c0_i32 = arith.constant 0 : i32
    %c0_i32_0 = arith.constant 0 : i32
    %c0_i32_1 = arith.constant 0 : i32
    return %c0_i32, %c0_i32_0 : i32, i32
  }
  func.func @transform_2(%arg0: i32) -> (i32, i32) {
    %c0_i32 = arith.constant 0 : i32
    %c0_i32_0 = arith.constant 0 : i32
    %c0_i32_1 = arith.constant 0 : i32
    return %c0_i32, %c0_i32_0 : i32, i32
  }
  func.func @transform_3(%arg0: i32) -> (i32, i32) {
    %c0_i32 = arith.constant 0 : i32
    %c0_i32_0 = arith.constant 0 : i32
    %c0_i32_1 = arith.constant 0 : i32
    return %c0_i32, %c0_i32_0 : i32, i32
  }
  func.func @transform_4(%arg0: i32) -> (i32, i32) {
    %c0_i32 = arith.constant 0 : i32
    %c0_i32_0 = arith.constant 0 : i32
    %c0_i32_1 = arith.constant 0 : i32
    return %c0_i32, %c0_i32_0 : i32, i32
  }
  func.func @transform_5(%arg0: i32) -> (i32, i32) {
    %c0_i32 = arith.constant 0 : i32
    %c0_i32_0 = arith.constant 0 : i32
    %c0_i32_1 = arith.constant 0 : i32
    return %c0_i32, %c0_i32_0 : i32, i32
  }
  func.func @transform_6(%arg0: i32) -> (i32, i32) {
    %c0_i32 = arith.constant 0 : i32
    %c0_i32_0 = arith.constant 0 : i32
    %c0_i32_1 = arith.constant 0 : i32
    return %c0_i32, %c0_i32_0 : i32, i32
  }
  func.func @transform_7(%arg0: i32) -> (i32, i32) {
    %c0_i32 = arith.constant 0 : i32
    %c0_i32_0 = arith.constant 0 : i32
    %c0_i32_1 = arith.constant 0 : i32
    return %c0_i32, %c0_i32_0 : i32, i32
  }
  func.func @transform_8(%arg0: i32) -> (i32, i32) {
    %c0_i32 = arith.constant 0 : i32
    %c0_i32_0 = arith.constant 0 : i32
    return %arg0, %c0_i32 : i32, i32
  }
}

</mosaic_0001>

<llo_original>
// kernel: tpu_custom_call.1
$region0: #{tpu_custom_call.1}
  #allocation0 [shape = 'u32[]', space=smem, size = 0x4, offset = 0x4, fixed_abs, tag = 'smem constant byte address 0x4 - core index']
  #allocation1 [shape = 'u32[144,128]{1,0:T(1,128)}', space=vmem, size = 0x12000, scoped, tag = 'internal scratch']
  %s0 = inlined_call_operand.vmem [shape: s32[1024,4], index: 0, kind: input, shape index: {}]
  %s1 = inlined_call_operand.vmem [shape: f32[384,32], index: 1, kind: input, shape index: {}]
  %s2 = inlined_call_operand.vmem [shape: f32[384,32], index: 2, kind: input, shape index: {}]
  %s3 = inlined_call_operand.vmem [shape: f32[1,32], index: 3, kind: input, shape index: {}]
  %s4 = inlined_call_operand.vmem [shape: f32[32,32], index: 4, kind: input, shape index: {}]
  %s5 = inlined_call_operand.vmem [shape: f32[1,32], index: 5, kind: input, shape index: {}]
  %s6 = inlined_call_operand.vmem [shape: f32[32,128], index: 6, kind: input, shape index: {}]
  %s7 = inlined_call_operand.vmem [shape: f32[1,128], index: 7, kind: input, shape index: {}]
  %s8 = inlined_call_operand.hbm [shape: f32[1024,128], index: 8, kind: output, shape index: {}]
  %s9 = sld [smem:[#allocation0]]
  $region65: #{tpu_custom_call.1} parent=0
    _
  %s11 = ssub.s32 1, %s9
  %s12 = scalar_select 0, %s11, %s9
  $region1: #{tpu_custom_call.1} parent=0
    #allocation2 [shape = 'u8[524288]{0}', space=vmem, size = 0x80000, scoped, tag = 'output window, operand 0']
    #allocation3 [shape = 's32[2]{0}', space=sflag, size = 0x8, scoped, tag = 'scoped memory for tpu_custom_call.1']
    %13 = vsyncpa [#allocation3], 0
    %s14 = scalar_lea.sflag [#allocation3], 1
    %15 = vsyncpa %s14, 0
    loop: start=0, step=1, limit=4
    $region2: #{tpu_custom_call.1} parent=1 // loop_pre_header
      _
    $region3: #{tpu_custom_call.1} parent=1 // loop_header
      %s17 = sphi 0, %s21
      %p18 = scmp.ge.s32.totalorder %s17, 4
      %s27 = sphi 0, %s29
      %s30 = sphi 0, %s27
      %s31 = sphi 0, %s30
      %s47 = sphi 0, %s31
      %s51 = sphi 0, %s51
      %s53 = sphi 0, %s51
      %s54 = sphi 0, %s53
      %s68 = sphi 0, %s54
      %s72 = sphi 0, %s72
      %s74 = sphi 0, %s72
      %s75 = sphi 0, %s74
      %s89 = sphi 0, %s75
      %s93 = sphi 0, %s93
      %s95 = sphi 0, %s93
      %s96 = sphi 0, %s95
      %s110 = sphi 0, %s96
      %s114 = sphi 0, %s114
      %s116 = sphi 0, %s114
      %s117 = sphi 0, %s116
      %s131 = sphi 0, %s117
      %s135 = sphi 0, %s135
      %s137 = sphi 0, %s135
      %s138 = sphi 0, %s137
      %s152 = sphi 0, %s138
      %s156 = sphi 0, %s156
      %s158 = sphi 0, %s156
      %s159 = sphi 0, %s158
      %s173 = sphi 0, %s159
      %s177 = sphi 0, %s177
      %s179 = sphi 0, %s177
      %s180 = sphi 0, %s179
      %s194 = sphi 0, %s180
      %s200 = sphi 0, %s202
      %s203 = sphi 0, %s200
      %s204 = sphi 0, %s203
      %s220 = sphi 0, %s204
    $region4: #{tpu_custom_call.1} parent=1 // loop_header_branch
      %20 = sbr.rel (%p18) target = $region8
    $region5: #{tpu_custom_call.1} parent=1 // loop_body
      %s22 = ssub.s32 %s17, 1
      %s23 = ssub.s32 %s17, 2
      %s24 = sadd.s32 %s17, 1
      %s25 = ssub.s32 %s17, %s24
      %p26 = scmp.eq.s32.totalorder %s25, 0
      %s28 = sadd.s32 %s27, 1
      %s29 = scalar_select %p26, %s27, %s28
      %p32 = pneg %p26
      %p33 = scmp.eq.s32.totalorder %s17, 1
      %p34 = por %p32, %p33
      %p35 = scmp.ne.s32.totalorder %s27, %s30
      %p36 = scmp.eq.s32.totalorder %s17, 0
      %p37 = por %p35, %p36
      %p38 = scmp.ne.s32.totalorder %s27, %s30
      %p39 = scmp.eq.s32.totalorder %s22, 1
      %p40 = por %p38, %p39
      %p41 = scmp.ne.s32.totalorder %s30, %s31
      %p42 = scmp.eq.s32.totalorder %s22, 0
      %p43 = por %p41, %p42
      %p44 = scmp.ne.s32.totalorder %s30, %s31
      %p45 = scmp.eq.s32.totalorder %s23, 1
      %p46 = por %p44, %p45
      %p48 = scmp.ne.s32.totalorder %s31, %s47
      %p49 = scmp.eq.s32.totalorder %s23, 0
      %p50 = por %p48, %p49
      %s52 = sadd.s32 %s51, 1
      %p55 = scmp.eq.s32.totalorder %s17, 1
      %p56 = scmp.ne.s32.totalorder %s51, %s53
      %p57 = scmp.eq.s32.totalorder %s17, 0
      %p58 = por %p56, %p57
      %p59 = scmp.ne.s32.totalorder %s51, %s53
      %p60 = scmp.eq.s32.totalorder %s22, 1
      %p61 = por %p59, %p60
      %p62 = scmp.ne.s32.totalorder %s53, %s54
      %p63 = scmp.eq.s32.totalorder %s22, 0
      %p64 = por %p62, %p63
      %p65 = scmp.ne.s32.totalorder %s53, %s54
      %p66 = scmp.eq.s32.totalorder %s23, 1
      %p67 = por %p65, %p66
      %p69 = scmp.ne.s32.totalorder %s54, %s68
      %p70 = scmp.eq.s32.totalorder %s23, 0
      %p71 = por %p69, %p70
      %s73 = sadd.s32 %s72, 1
      %p76 = scmp.eq.s32.totalorder %s17, 1
      %p77 = scmp.ne.s32.totalorder %s72, %s74
      %p78 = scmp.eq.s32.totalorder %s17, 0
      %p79 = por %p77, %p78
      %p80 = scmp.ne.s32.totalorder %s72, %s74
      %p81 = scmp.eq.s32.totalorder %s22, 1
      %p82 = por %p80, %p81
      %p83 = scmp.ne.s32.totalorder %s74, %s75
      %p84 = scmp.eq.s32.totalorder %s22, 0
      %p85 = por %p83, %p84
      %p86 = scmp.ne.s32.totalorder %s74, %s75
      %p87 = scmp.eq.s32.totalorder %s23, 1
      %p88 = por %p86, %p87
      %p90 = scmp.ne.s32.totalorder %s75, %s89
      %p91 = scmp.eq.s32.totalorder %s23, 0
      %p92 = por %p90, %p91
      %s94 = sadd.s32 %s93, 1
      %p97 = scmp.eq.s32.totalorder %s17, 1
      %p98 = scmp.ne.s32.totalorder %s93, %s95
      %p99 = scmp.eq.s32.totalorder %s17, 0
      %p100 = por %p98, %p99
      %p101 = scmp.ne.s32.totalorder %s93, %s95
      %p102 = scmp.eq.s32.totalorder %s22, 1
      %p103 = por %p101, %p102
      %p104 = scmp.ne.s32.totalorder %s95, %s96
      %p105 = scmp.eq.s32.totalorder %s22, 0
      %p106 = por %p104, %p105
      %p107 = scmp.ne.s32.totalorder %s95, %s96
      %p108 = scmp.eq.s32.totalorder %s23, 1
      %p109 = por %p107, %p108
      %p111 = scmp.ne.s32.totalorder %s96, %s110
      %p112 = scmp.eq.s32.totalorder %s23, 0
      %p113 = por %p111, %p112
      %s115 = sadd.s32 %s114, 1
      %p118 = scmp.eq.s32.totalorder %s17, 1
      %p119 = scmp.ne.s32.totalorder %s114, %s116
      %p120 = scmp.eq.s32.totalorder %s17, 0
      %p121 = por %p119, %p120
      %p122 = scmp.ne.s32.totalorder %s114, %s116
      %p123 = scmp.eq.s32.totalorder %s22, 1
      %p124 = por %p122, %p123
      %p125 = scmp.ne.s32.totalorder %s116, %s117
      %p126 = scmp.eq.s32.totalorder %s22, 0
      %p127 = por %p125, %p126
      %p128 = scmp.ne.s32.totalorder %s116, %s117
      %p129 = scmp.eq.s32.totalorder %s23, 1
      %p130 = por %p128, %p129
      %p132 = scmp.ne.s32.totalorder %s117, %s131
      %p133 = scmp.eq.s32.totalorder %s23, 0
      %p134 = por %p132, %p133
      %s136 = sadd.s32 %s135, 1
      %p139 = scmp.eq.s32.totalorder %s17, 1
      %p140 = scmp.ne.s32.totalorder %s135, %s137
      %p141 = scmp.eq.s32.totalorder %s17, 0
      %p142 = por %p140, %p141
      %p143 = scmp.ne.s32.totalorder %s135, %s137
      %p144 = scmp.eq.s32.totalorder %s22, 1
      %p145 = por %p143, %p144
      %p146 = scmp.ne.s32.totalorder %s137, %s138
      %p147 = scmp.eq.s32.totalorder %s22, 0
      %p148 = por %p146, %p147
      %p149 = scmp.ne.s32.totalorder %s137, %s138
      %p150 = scmp.eq.s32.totalorder %s23, 1
      %p151 = por %p149, %p150
      %p153 = scmp.ne.s32.totalorder %s138, %s152
      %p154 = scmp.eq.s32.totalorder %s23, 0
      %p155 = por %p153, %p154
      %s157 = sadd.s32 %s156, 1
      %p160 = scmp.eq.s32.totalorder %s17, 1
      %p161 = scmp.ne.s32.totalorder %s156, %s158
      %p162 = scmp.eq.s32.totalorder %s17, 0
      %p163 = por %p161, %p162
      %p164 = scmp.ne.s32.totalorder %s156, %s158
      %p165 = scmp.eq.s32.totalorder %s22, 1
      %p166 = por %p164, %p165
      %p167 = scmp.ne.s32.totalorder %s158, %s159
      %p168 = scmp.eq.s32.totalorder %s22, 0
      %p169 = por %p167, %p168
      %p170 = scmp.ne.s32.totalorder %s158, %s159
      %p171 = scmp.eq.s32.totalorder %s23, 1
      %p172 = por %p170, %p171
      %p174 = scmp.ne.s32.totalorder %s159, %s173
      %p175 = scmp.eq.s32.totalorder %s23, 0
      %p176 = por %p174, %p175
      %s178 = sadd.s32 %s177, 1
      %p181 = scmp.eq.s32.totalorder %s17, 1
      %p182 = scmp.ne.s32.totalorder %s177, %s179
      %p183 = scmp.eq.s32.totalorder %s17, 0
      %p184 = por %p182, %p183
      %p185 = scmp.ne.s32.totalorder %s177, %s179
      %p186 = scmp.eq.s32.totalorder %s22, 1
      %p187 = por %p185, %p186
      %p188 = scmp.ne.s32.totalorder %s179, %s180
      %p189 = scmp.eq.s32.totalorder %s22, 0
      %p190 = por %p188, %p189
      %p191 = scmp.ne.s32.totalorder %s179, %s180
      %p192 = scmp.eq.s32.totalorder %s23, 1
      %p193 = por %p191, %p192
      %p195 = scmp.ne.s32.totalorder %s180, %s194
      %p196 = scmp.eq.s32.totalorder %s23, 0
      %p197 = por %p195, %p196
      %s198 = ssub.s32 %s17, %s24
      %p199 = scmp.eq.s32.totalorder %s198, 0
      %s201 = sadd.s32 %s200, 1
      %s202 = scalar_select %p199, %s200, %s201
      %p205 = pneg %p199
      %p206 = scmp.eq.s32.totalorder %s17, 1
      %p207 = por %p205, %p206
      %p208 = scmp.ne.s32.totalorder %s200, %s203
      %p209 = scmp.eq.s32.totalorder %s17, 0
      %p210 = por %p208, %p209
      %p211 = scmp.ne.s32.totalorder %s200, %s203
      %p212 = scmp.eq.s32.totalorder %s22, 1
      %p213 = por %p211, %p212
      %p214 = scmp.ne.s32.totalorder %s203, %s204
      %p215 = scmp.eq.s32.totalorder %s22, 0
      %p216 = por %p214, %p215
      %p217 = scmp.ne.s32.totalorder %s203, %s204
      %p218 = scmp.eq.s32.totalorder %s23, 1
      %p219 = por %p217, %p218
      %p221 = scmp.ne.s32.totalorder %s204, %s220
      %p222 = scmp.eq.s32.totalorder %s23, 0
      %p223 = por %p221, %p222
      %p224 = scmp.le.s32.totalorder 1, %s17
      %p225 = scmp.lt.s32.totalorder %s17, 3
      %p226 = pnand %p224, %p225
      %p227 = pneg %p226
      // Predicated region
      $region9: #{tpu_custom_call.1} parent=5 // pred_check
        _
      $region10: #{tpu_custom_call.1} parent=5 // pred_check_branch
        %229 = sbr.rel (%p226) target = $region12
      $region11: #{tpu_custom_call.1} parent=5 // pred_region
        %s230 = ssub.s32 %s17, 1
        // Predicated region
        $region13: #{tpu_custom_call.1} parent=11 // pred_check
          %p231 = pneg %p64
        $region14: #{tpu_custom_call.1} parent=11 // pred_check_branch
          %233 = sbr.rel (%p231) target = $region16
        $region15: #{tpu_custom_call.1} parent=11 // pred_region
          _
        $region16: #{tpu_custom_call.1} parent=11 // pred_fallthru
          _
        // Predicated region
        $region17: #{tpu_custom_call.1} parent=11 // pred_check
          %p234 = pneg %p85
        $region18: #{tpu_custom_call.1} parent=11 // pred_check_branch
          %236 = sbr.rel (%p234) target = $region20
        $region19: #{tpu_custom_call.1} parent=11 // pred_region
          _
        $region20: #{tpu_custom_call.1} parent=11 // pred_fallthru
          _
        // Predicated region
        $region21: #{tpu_custom_call.1} parent=11 // pred_check
          %p237 = pneg %p106
        $region22: #{tpu_custom_call.1} parent=11 // pred_check_branch
          %239 = sbr.rel (%p237) target = $region24
        $region23: #{tpu_custom_call.1} parent=11 // pred_region
          _
        $region24: #{tpu_custom_call.1} parent=11 // pred_fallthru
          _
        // Predicated region
        $region25: #{tpu_custom_call.1} parent=11 // pred_check
          %p240 = pneg %p127
        $region26: #{tpu_custom_call.1} parent=11 // pred_check_branch
          %242 = sbr.rel (%p240) target = $region28
        $region27: #{tpu_custom_call.1} parent=11 // pred_region
          _
        $region28: #{tpu_custom_call.1} parent=11 // pred_fallthru
          _
        // Predicated region
        $region29: #{tpu_custom_call.1} parent=11 // pred_check
          %p243 = pneg %p148
        $region30: #{tpu_custom_call.1} parent=11 // pred_check_branch
          %245 = sbr.rel (%p243) target = $region32
        $region31: #{tpu_custom_call.1} parent=11 // pred_region
          _
        $region32: #{tpu_custom_call.1} parent=11 // pred_fallthru
          _
        // Predicated region
        $region33: #{tpu_custom_call.1} parent=11 // pred_check
          %p246 = pneg %p169
        $region34: #{tpu_custom_call.1} parent=11 // pred_check_branch
          %248 = sbr.rel (%p246) target = $region36
        $region35: #{tpu_custom_call.1} parent=11 // pred_region
          _
        $region36: #{tpu_custom_call.1} parent=11 // pred_fallthru
          _
        // Predicated region
        $region37: #{tpu_custom_call.1} parent=11 // pred_check
          %p249 = pneg %p190
        $region38: #{tpu_custom_call.1} parent=11 // pred_check_branch
          %251 = sbr.rel (%p249) target = $region40
        $region39: #{tpu_custom_call.1} parent=11 // pred_region
          _
        $region40: #{tpu_custom_call.1} parent=11 // pred_fallthru
          _
      $region12: #{tpu_custom_call.1} parent=5 // pred_fallthru
        _
      %p252 = scmp.lt.s32.totalorder %s17, 2
      // Predicated region
      $region41: #{tpu_custom_call.1} parent=5 // pred_check
        %p253 = pneg %p252
      $region42: #{tpu_custom_call.1} parent=5 // pred_check_branch
        %255 = sbr.rel (%p253) target = $region44
      $region43: #{tpu_custom_call.1} parent=5 // pred_region
        // Predicated region
        $region45: #{tpu_custom_call.1} parent=43 // pred_check
          %p256 = pneg %p37
        $region46: #{tpu_custom_call.1} parent=43 // pred_check_branch
          %258 = sbr.rel (%p256) target = $region48
        $region47: #{tpu_custom_call.1} parent=43 // pred_region
          %s259 = smul.u32 64, %s17
          %p260 = scmp.lt.s32.totalorder %s259, 127
          %s261 = scalar_select %p260, %s259, 127
          %s262 = smul.addr %s261, 8
          %s263 = scalar_lea.vmem %s0, %s262
          %s264 = smul.u32 64, %s17
        $region48: #{tpu_custom_call.1} parent=43 // pred_fallthru
          _
      $region44: #{tpu_custom_call.1} parent=5 // pred_fallthru
        _
      %p265 = scmp.le.s32.totalorder 1, %s17
      %p266 = scmp.lt.s32.totalorder %s17, 3
      %p267 = pnand %p265, %p266
      %p268 = pneg %p267
      // Predicated region
      $region49: #{tpu_custom_call.1} parent=5 // pred_check
        _
      $region50: #{tpu_custom_call.1} parent=5 // pred_check_branch
        %270 = sbr.rel (%p267) target = $region52
      $region51: #{tpu_custom_call.1} parent=5 // pred_region
        %s271 = ssub.s32 %s17, 1
        %s272 = smul.u32 64, %s22
        %p273 = scmp.lt.s32.totalorder %s272, 127
        %s274 = scalar_select %p273, %s272, 127
        %s275 = smul.addr %s274, 8
        %s276 = scalar_lea.vmem %s0, %s275
        %p277 = pneg %p43
        %p278 = pneg %p40
        %p279 = pneg %p64
        %p280 = pneg %p61
        %p281 = pneg %p85
        %p282 = pneg %p82
        %p283 = pneg %p106
        %p284 = pneg %p103
        %p285 = pneg %p127
        %p286 = pneg %p124
        %p287 = pneg %p148
        %p288 = pneg %p145
        %p289 = pneg %p169
        %p290 = pneg %p166
        %p291 = pneg %p190
        %p292 = pneg %p187
        %p293 = pneg %p216
        %p294 = pneg %p213
        %s295 = sand.u32 %s203, 1
        %s296 = scalar_lea.sflag [#allocation3], %s295
        %s297 = sand.u32 %s203, 1
        %s298 = smul.addr %s297, 512
        %s299 = scalar_lea.vmem [#allocation2], %s298
        %s300 = smul.u32 64, %s22
        %p301 = scmp.lt.s32.totalorder %s300, 127
        %s302 = scalar_select %p301, %s300, 127
        %s303 = smul.addr %s302, 8
        %s304 = scalar_lea.vmem %s0, %s303
        %s305 = smul.u32 64, %s22
        %s306 = smul.u32 64, %s22
        %v307 = vld [vmem:[%s304] sm:$0xff]
        %v308 = vld [vmem:[%s304 + $0x8] sm:$0xff]
        %v309 = vld [vmem:[%s304 + $0x10] sm:$0xff]
        %v310 = vld [vmem:[%s304 + $0x18] sm:$0xff]
        %v311 = vld [vmem:[%s304 + $0x20] sm:$0xff]
        %v312 = vld [vmem:[%s304 + $0x28] sm:$0xff]
        %v313 = vld [vmem:[%s304 + $0x30] sm:$0xff]
        %v314 = vld [vmem:[%s304 + $0x38] sm:$0xff]
        %v315 = vld [vmem:[%s304 + $0x40] sm:$0xff]
        %v316 = vld [vmem:[%s304 + $0x48] sm:$0xff]
        %v317 = vld [vmem:[%s304 + $0x50] sm:$0xff]
        %v318 = vld [vmem:[%s304 + $0x58] sm:$0xff]
        %v319 = vld [vmem:[%s304 + $0x60] sm:$0xff]
        %v320 = vld [vmem:[%s304 + $0x68] sm:$0xff]
        %v321 = vld [vmem:[%s304 + $0x70] sm:$0xff]
        %v322 = vld [vmem:[%s304 + $0x78] sm:$0xff]
        %v323 = vld [vmem:[%s304 + $0x80] sm:$0xff]
        %v324 = vld [vmem:[%s304 + $0x88] sm:$0xff]
        %v325 = vld [vmem:[%s304 + $0x90] sm:$0xff]
        %v326 = vld [vmem:[%s304 + $0x98] sm:$0xff]
        %v327 = vld [vmem:[%s304 + $0xa0] sm:$0xff]
        %v328 = vld [vmem:[%s304 + $0xa8] sm:$0xff]
        %v329 = vld [vmem:[%s304 + $0xb0] sm:$0xff]
        %v330 = vld [vmem:[%s304 + $0xb8] sm:$0xff]
        %v331 = vld [vmem:[%s304 + $0xc0] sm:$0xff]
        %v332 = vld [vmem:[%s304 + $0xc8] sm:$0xff]
        %v333 = vld [vmem:[%s304 + $0xd0] sm:$0xff]
        %v334 = vld [vmem:[%s304 + $0xd8] sm:$0xff]
        %v335 = vld [vmem:[%s304 + $0xe0] sm:$0xff]
        %v336 = vld [vmem:[%s304 + $0xe8] sm:$0xff]
        %v337 = vld [vmem:[%s304 + $0xf0] sm:$0xff]
        %v338 = vld [vmem:[%s304 + $0xf8] sm:$0xff]
        %v339 = vld [vmem:[%s304 + $0x100] sm:$0xff]
        %v340 = vld [vmem:[%s304 + $0x108] sm:$0xff]
        %v341 = vld [vmem:[%s304 + $0x110] sm:$0xff]
        %v342 = vld [vmem:[%s304 + $0x118] sm:$0xff]
        %v343 = vld [vmem:[%s304 + $0x120] sm:$0xff]
        %v344 = vld [vmem:[%s304 + $0x128] sm:$0xff]
        %v345 = vld [vmem:[%s304 + $0x130] sm:$0xff]
        %v346 = vld [vmem:[%s304 + $0x138] sm:$0xff]
        %v347 = vld [vmem:[%s304 + $0x140] sm:$0xff]
        %v348 = vld [vmem:[%s304 + $0x148] sm:$0xff]
        %v349 = vld [vmem:[%s304 + $0x150] sm:$0xff]
        %v350 = vld [vmem:[%s304 + $0x158] sm:$0xff]
        %v351 = vld [vmem:[%s304 + $0x160] sm:$0xff]
        %v352 = vld [vmem:[%s304 + $0x168] sm:$0xff]
        %v353 = vld [vmem:[%s304 + $0x170] sm:$0xff]
        %v354 = vld [vmem:[%s304 + $0x178] sm:$0xff]
        %v355 = vld [vmem:[%s304 + $0x180] sm:$0xff]
        %v356 = vld [vmem:[%s304 + $0x188] sm:$0xff]
        %v357 = vld [vmem:[%s304 + $0x190] sm:$0xff]
        %v358 = vld [vmem:[%s304 + $0x198] sm:$0xff]
        %v359 = vld [vmem:[%s304 + $0x1a0] sm:$0xff]
        %v360 = vld [vmem:[%s304 + $0x1a8] sm:$0xff]
        %v361 = vld [vmem:[%s304 + $0x1b0] sm:$0xff]
        %v362 = vld [vmem:[%s304 + $0x1b8] sm:$0xff]
        %v363 = vld [vmem:[%s304 + $0x1c0] sm:$0xff]
        %v364 = vld [vmem:[%s304 + $0x1c8] sm:$0xff]
        %v365 = vld [vmem:[%s304 + $0x1d0] sm:$0xff]
        %v366 = vld [vmem:[%s304 + $0x1d8] sm:$0xff]
        %v367 = vld [vmem:[%s304 + $0x1e0] sm:$0xff]
        %v368 = vld [vmem:[%s304 + $0x1e8] sm:$0xff]
        %v369 = vld [vmem:[%s304 + $0x1f0] sm:$0xff]
        %v370 = vld [vmem:[%s304 + $0x1f8] sm:$0xff]
        %v371 = vlaneseq
        %v372 = vand.u32 %v371, 127
        %v373 = vadd.s32 %v372, 128
        %v374 = vadd.s32 %v372, 256
        %375 = vset.pattern.permute.xlu0 0
        %376 = vperm.xlu0 %375, %v307
        %v377 = vpop.permute.xlu0 %376
        %378 = vset.pattern.permute.xlu0 0
        %379 = vperm.xlu0 %378, %v308
        %v380 = vpop.permute.xlu0 %379
        %381 = vset.pattern.permute.xlu0 0
        %382 = vperm.xlu0 %381, %v309
        %v383 = vpop.permute.xlu0 %382
        %384 = vset.pattern.permute.xlu0 0
        %385 = vperm.xlu0 %384, %v310
        %v386 = vpop.permute.xlu0 %385
        %387 = vset.pattern.permute.xlu0 0
        %388 = vperm.xlu0 %387, %v311
        %v389 = vpop.permute.xlu0 %388
        %390 = vset.pattern.permute.xlu0 0
        %391 = vperm.xlu0 %390, %v312
        %v392 = vpop.permute.xlu0 %391
        %393 = vset.pattern.permute.xlu0 0
        %394 = vperm.xlu0 %393, %v313
        %v395 = vpop.permute.xlu0 %394
        %396 = vset.pattern.permute.xlu0 0
        %397 = vperm.xlu0 %396, %v314
        %v398 = vpop.permute.xlu0 %397
        %399 = vset.pattern.permute.xlu0 0
        %400 = vperm.xlu0 %399, %v315
        %v401 = vpop.permute.xlu0 %400
        %402 = vset.pattern.permute.xlu0 0
        %403 = vperm.xlu0 %402, %v316
        %v404 = vpop.permute.xlu0 %403
        %405 = vset.pattern.permute.xlu0 0
        %406 = vperm.xlu0 %405, %v317
        %v407 = vpop.permute.xlu0 %406
        %408 = vset.pattern.permute.xlu0 0
        %409 = vperm.xlu0 %408, %v318
        %v410 = vpop.permute.xlu0 %409
        %411 = vset.pattern.permute.xlu0 0
        %412 = vperm.xlu0 %411, %v319
        %v413 = vpop.permute.xlu0 %412
        %414 = vset.pattern.permute.xlu0 0
        %415 = vperm.xlu0 %414, %v320
        %v416 = vpop.permute.xlu0 %415
        %417 = vset.pattern.permute.xlu0 0
        %418 = vperm.xlu0 %417, %v321
        %v419 = vpop.permute.xlu0 %418
        %420 = vset.pattern.permute.xlu0 0
        %421 = vperm.xlu0 %420, %v322
        %v422 = vpop.permute.xlu0 %421
        %423 = vset.pattern.permute.xlu0 0
        %424 = vperm.xlu0 %423, %v323
        %v425 = vpop.permute.xlu0 %424
        %426 = vset.pattern.permute.xlu0 0
        %427 = vperm.xlu0 %426, %v324
        %v428 = vpop.permute.xlu0 %427
        %429 = vset.pattern.permute.xlu0 0
        %430 = vperm.xlu0 %429, %v325
        %v431 = vpop.permute.xlu0 %430
        %432 = vset.pattern.permute.xlu0 0
        %433 = vperm.xlu0 %432, %v326
        %v434 = vpop.permute.xlu0 %433
        %435 = vset.pattern.permute.xlu0 0
        %436 = vperm.xlu0 %435, %v327
        %v437 = vpop.permute.xlu0 %436
        %438 = vset.pattern.permute.xlu0 0
        %439 = vperm.xlu0 %438, %v328
        %v440 = vpop.permute.xlu0 %439
        %441 = vset.pattern.permute.xlu0 0
        %442 = vperm.xlu0 %441, %v329
        %v443 = vpop.permute.xlu0 %442
        %444 = vset.pattern.permute.xlu0 0
        %445 = vperm.xlu0 %444, %v330
        %v446 = vpop.permute.xlu0 %445
        %447 = vset.pattern.permute.xlu0 0
        %448 = vperm.xlu0 %447, %v331
        %v449 = vpop.permute.xlu0 %448
        %450 = vset.pattern.permute.xlu0 0
        %451 = vperm.xlu0 %450, %v332
        %v452 = vpop.permute.xlu0 %451
        %453 = vset.pattern.permute.xlu0 0
        %454 = vperm.xlu0 %453, %v333
        %v455 = vpop.permute.xlu0 %454
        %456 = vset.pattern.permute.xlu0 0
        %457 = vperm.xlu0 %456, %v334
        %v458 = vpop.permute.xlu0 %457
        %459 = vset.pattern.permute.xlu0 0
        %460 = vperm.xlu0 %459, %v335
        %v461 = vpop.permute.xlu0 %460
        %462 = vset.pattern.permute.xlu0 0
        %463 = vperm.xlu0 %462, %v336
        %v464 = vpop.permute.xlu0 %463
        %465 = vset.pattern.permute.xlu0 0
        %466 = vperm.xlu0 %465, %v337
        %v467 = vpop.permute.xlu0 %466
        %468 = vset.pattern.permute.xlu0 0
        %469 = vperm.xlu0 %468, %v338
        %v470 = vpop.permute.xlu0 %469
        %471 = vset.pattern.permute.xlu0 0
        %472 = vperm.xlu0 %471, %v339
        %v473 = vpop.permute.xlu0 %472
        %474 = vset.pattern.permute.xlu0 0
        %475 = vperm.xlu0 %474, %v340
        %v476 = vpop.permute.xlu0 %475
        %477 = vset.pattern.permute.xlu0 0
        %478 = vperm.xlu0 %477, %v341
        %v479 = vpop.permute.xlu0 %478
        %480 = vset.pattern.permute.xlu0 0
        %481 = vperm.xlu0 %480, %v342
        %v482 = vpop.permute.xlu0 %481
        %483 = vset.pattern.permute.xlu0 0
        %484 = vperm.xlu0 %483, %v343
        %v485 = vpop.permute.xlu0 %484
        %486 = vset.pattern.permute.xlu0 0
        %487 = vperm.xlu0 %486, %v344
        %v488 = vpop.permute.xlu0 %487
        %489 = vset.pattern.permute.xlu0 0
        %490 = vperm.xlu0 %489, %v345
        %v491 = vpop.permute.xlu0 %490
        %492 = vset.pattern.permute.xlu0 0
        %493 = vperm.xlu0 %492, %v346
        %v494 = vpop.permute.xlu0 %493
        %495 = vset.pattern.permute.xlu0 0
        %496 = vperm.xlu0 %495, %v347
        %v497 = vpop.permute.xlu0 %496
        %498 = vset.pattern.permute.xlu0 0
        %499 = vperm.xlu0 %498, %v348
        %v500 = vpop.permute.xlu0 %499
        %501 = vset.pattern.permute.xlu0 0
        %502 = vperm.xlu0 %501, %v349
        %v503 = vpop.permute.xlu0 %502
        %504 = vset.pattern.permute.xlu0 0
        %505 = vperm.xlu0 %504, %v350
        %v506 = vpop.permute.xlu0 %505
        %507 = vset.pattern.permute.xlu0 0
        %508 = vperm.xlu0 %507, %v351
        %v509 = vpop.permute.xlu0 %508
        %510 = vset.pattern.permute.xlu0 0
        %511 = vperm.xlu0 %510, %v352
        %v512 = vpop.permute.xlu0 %511
        %513 = vset.pattern.permute.xlu0 0
        %514 = vperm.xlu0 %513, %v353
        %v515 = vpop.permute.xlu0 %514
        %516 = vset.pattern.permute.xlu0 0
        %517 = vperm.xlu0 %516, %v354
        %v518 = vpop.permute.xlu0 %517
        %519 = vset.pattern.permute.xlu0 0
        %520 = vperm.xlu0 %519, %v355
        %v521 = vpop.permute.xlu0 %520
        %522 = vset.pattern.permute.xlu0 0
        %523 = vperm.xlu0 %522, %v356
        %v524 = vpop.permute.xlu0 %523
        %525 = vset.pattern.permute.xlu0 0
        %526 = vperm.xlu0 %525, %v357
        %v527 = vpop.permute.xlu0 %526
        %528 = vset.pattern.permute.xlu0 0
        %529 = vperm.xlu0 %528, %v358
        %v530 = vpop.permute.xlu0 %529
        %531 = vset.pattern.permute.xlu0 0
        %532 = vperm.xlu0 %531, %v359
        %v533 = vpop.permute.xlu0 %532
        %534 = vset.pattern.permute.xlu0 0
        %535 = vperm.xlu0 %534, %v360
        %v536 = vpop.permute.xlu0 %535
        %537 = vset.pattern.permute.xlu0 0
        %538 = vperm.xlu0 %537, %v361
        %v539 = vpop.permute.xlu0 %538
        %540 = vset.pattern.permute.xlu0 0
        %541 = vperm.xlu0 %540, %v362
        %v542 = vpop.permute.xlu0 %541
        %543 = vset.pattern.permute.xlu0 0
        %544 = vperm.xlu0 %543, %v363
        %v545 = vpop.permute.xlu0 %544
        %546 = vset.pattern.permute.xlu0 0
        %547 = vperm.xlu0 %546, %v364
        %v548 = vpop.permute.xlu0 %547
        %549 = vset.pattern.permute.xlu0 0
        %550 = vperm.xlu0 %549, %v365
        %v551 = vpop.permute.xlu0 %550
        %552 = vset.pattern.permute.xlu0 0
        %553 = vperm.xlu0 %552, %v366
        %v554 = vpop.permute.xlu0 %553
        %555 = vset.pattern.permute.xlu0 0
        %556 = vperm.xlu0 %555, %v367
        %v557 = vpop.permute.xlu0 %556
        %558 = vset.pattern.permute.xlu0 0
        %559 = vperm.xlu0 %558, %v368
        %v560 = vpop.permute.xlu0 %559
        %561 = vset.pattern.permute.xlu0 0
        %562 = vperm.xlu0 %561, %v369
        %v563 = vpop.permute.xlu0 %562
        %564 = vset.pattern.permute.xlu0 0
        %565 = vperm.xlu0 %564, %v370
        %v566 = vpop.permute.xlu0 %565
        %vm567 = vcmp.eq.s32.totalorder %v372, %v377
        %vm568 = vcmp.eq.s32.totalorder %v373, %v377
        %vm569 = vcmp.eq.s32.totalorder %v374, %v377
        %vm570 = vcmp.eq.s32.totalorder %v372, %v380
        %vm571 = vcmp.eq.s32.totalorder %v373, %v380
        %vm572 = vcmp.eq.s32.totalorder %v374, %v380
        %vm573 = vcmp.eq.s32.totalorder %v372, %v383
        %vm574 = vcmp.eq.s32.totalorder %v373, %v383
        %vm575 = vcmp.eq.s32.totalorder %v374, %v383
        %vm576 = vcmp.eq.s32.totalorder %v372, %v386
        %vm577 = vcmp.eq.s32.totalorder %v373, %v386
        %vm578 = vcmp.eq.s32.totalorder %v374, %v386
        %vm579 = vcmp.eq.s32.totalorder %v372, %v389
        %vm580 = vcmp.eq.s32.totalorder %v373, %v389
        %vm581 = vcmp.eq.s32.totalorder %v374, %v389
        %vm582 = vcmp.eq.s32.totalorder %v372, %v392
        %vm583 = vcmp.eq.s32.totalorder %v373, %v392
        %vm584 = vcmp.eq.s32.totalorder %v374, %v392
        %vm585 = vcmp.eq.s32.totalorder %v372, %v395
        %vm586 = vcmp.eq.s32.totalorder %v373, %v395
        %vm587 = vcmp.eq.s32.totalorder %v374, %v395
        %vm588 = vcmp.eq.s32.totalorder %v372, %v398
        %vm589 = vcmp.eq.s32.totalorder %v373, %v398
        %vm590 = vcmp.eq.s32.totalorder %v374, %v398
        %vm591 = vcmp.eq.s32.totalorder %v372, %v401
        %vm592 = vcmp.eq.s32.totalorder %v373, %v401
        %vm593 = vcmp.eq.s32.totalorder %v374, %v401
        %vm594 = vcmp.eq.s32.totalorder %v372, %v404
        %vm595 = vcmp.eq.s32.totalorder %v373, %v404
        %vm596 = vcmp.eq.s32.totalorder %v374, %v404
        %vm597 = vcmp.eq.s32.totalorder %v372, %v407
        %vm598 = vcmp.eq.s32.totalorder %v373, %v407
        %vm599 = vcmp.eq.s32.totalorder %v374, %v407
        %vm600 = vcmp.eq.s32.totalorder %v372, %v410
        %vm601 = vcmp.eq.s32.totalorder %v373, %v410
        %vm602 = vcmp.eq.s32.totalorder %v374, %v410
        %vm603 = vcmp.eq.s32.totalorder %v372, %v413
        %vm604 = vcmp.eq.s32.totalorder %v373, %v413
        %vm605 = vcmp.eq.s32.totalorder %v374, %v413
        %vm606 = vcmp.eq.s32.totalorder %v372, %v416
        %vm607 = vcmp.eq.s32.totalorder %v373, %v416
        %vm608 = vcmp.eq.s32.totalorder %v374, %v416
        %vm609 = vcmp.eq.s32.totalorder %v372, %v419
        %vm610 = vcmp.eq.s32.totalorder %v373, %v419
        %vm611 = vcmp.eq.s32.totalorder %v374, %v419
        %vm612 = vcmp.eq.s32.totalorder %v372, %v422
        %vm613 = vcmp.eq.s32.totalorder %v373, %v422
        %vm614 = vcmp.eq.s32.totalorder %v374, %v422
        %vm615 = vcmp.eq.s32.totalorder %v372, %v425
        %vm616 = vcmp.eq.s32.totalorder %v373, %v425
        %vm617 = vcmp.eq.s32.totalorder %v374, %v425
        %vm618 = vcmp.eq.s32.totalorder %v372, %v428
        %vm619 = vcmp.eq.s32.totalorder %v373, %v428
        %vm620 = vcmp.eq.s32.totalorder %v374, %v428
        %vm621 = vcmp.eq.s32.totalorder %v372, %v431
        %vm622 = vcmp.eq.s32.totalorder %v373, %v431
        %vm623 = vcmp.eq.s32.totalorder %v374, %v431
        %vm624 = vcmp.eq.s32.totalorder %v372, %v434
        %vm625 = vcmp.eq.s32.totalorder %v373, %v434
        %vm626 = vcmp.eq.s32.totalorder %v374, %v434
        %vm627 = vcmp.eq.s32.totalorder %v372, %v437
        %vm628 = vcmp.eq.s32.totalorder %v373, %v437
        %vm629 = vcmp.eq.s32.totalorder %v374, %v437
        %vm630 = vcmp.eq.s32.totalorder %v372, %v440
        %vm631 = vcmp.eq.s32.totalorder %v373, %v440
        %vm632 = vcmp.eq.s32.totalorder %v374, %v440
        %vm633 = vcmp.eq.s32.totalorder %v372, %v443
        %vm634 = vcmp.eq.s32.totalorder %v373, %v443
        %vm635 = vcmp.eq.s32.totalorder %v374, %v443
        %vm636 = vcmp.eq.s32.totalorder %v372, %v446
        %vm637 = vcmp.eq.s32.totalorder %v373, %v446
        %vm638 = vcmp.eq.s32.totalorder %v374, %v446
        %vm639 = vcmp.eq.s32.totalorder %v372, %v449
        %vm640 = vcmp.eq.s32.totalorder %v373, %v449
        %vm641 = vcmp.eq.s32.totalorder %v374, %v449
        %vm642 = vcmp.eq.s32.totalorder %v372, %v452
        %vm643 = vcmp.eq.s32.totalorder %v373, %v452
        %vm644 = vcmp.eq.s32.totalorder %v374, %v452
        %vm645 = vcmp.eq.s32.totalorder %v372, %v455
        %vm646 = vcmp.eq.s32.totalorder %v373, %v455
        %vm647 = vcmp.eq.s32.totalorder %v374, %v455
        %vm648 = vcmp.eq.s32.totalorder %v372, %v458
        %vm649 = vcmp.eq.s32.totalorder %v373, %v458
        %vm650 = vcmp.eq.s32.totalorder %v374, %v458
        %vm651 = vcmp.eq.s32.totalorder %v372, %v461
        %vm652 = vcmp.eq.s32.totalorder %v373, %v461
        %vm653 = vcmp.eq.s32.totalorder %v374, %v461
        %vm654 = vcmp.eq.s32.totalorder %v372, %v464
        %vm655 = vcmp.eq.s32.totalorder %v373, %v464
        %vm656 = vcmp.eq.s32.totalorder %v374, %v464
        %vm657 = vcmp.eq.s32.totalorder %v372, %v467
        %vm658 = vcmp.eq.s32.totalorder %v373, %v467
        %vm659 = vcmp.eq.s32.totalorder %v374, %v467
        %vm660 = vcmp.eq.s32.totalorder %v372, %v470
        %vm661 = vcmp.eq.s32.totalorder %v373, %v470
        %vm662 = vcmp.eq.s32.totalorder %v374, %v470
        %vm663 = vcmp.eq.s32.totalorder %v372, %v473
        %vm664 = vcmp.eq.s32.totalorder %v373, %v473
        %vm665 = vcmp.eq.s32.totalorder %v374, %v473
        %vm666 = vcmp.eq.s32.totalorder %v372, %v476
        %vm667 = vcmp.eq.s32.totalorder %v373, %v476
        %vm668 = vcmp.eq.s32.totalorder %v374, %v476
        %vm669 = vcmp.eq.s32.totalorder %v372, %v479
        %vm670 = vcmp.eq.s32.totalorder %v373, %v479
        %vm671 = vcmp.eq.s32.totalorder %v374, %v479
        %vm672 = vcmp.eq.s32.totalorder %v372, %v482
        %vm673 = vcmp.eq.s32.totalorder %v373, %v482
        %vm674 = vcmp.eq.s32.totalorder %v374, %v482
        %vm675 = vcmp.eq.s32.totalorder %v372, %v485
        %vm676 = vcmp.eq.s32.totalorder %v373, %v485
        %vm677 = vcmp.eq.s32.totalorder %v374, %v485
        %vm678 = vcmp.eq.s32.totalorder %v372, %v488
        %vm679 = vcmp.eq.s32.totalorder %v373, %v488
        %vm680 = vcmp.eq.s32.totalorder %v374, %v488
        %vm681 = vcmp.eq.s32.totalorder %v372, %v491
        %vm682 = vcmp.eq.s32.totalorder %v373, %v491
        %vm683 = vcmp.eq.s32.totalorder %v374, %v491
        %vm684 = vcmp.eq.s32.totalorder %v372, %v494
        %vm685 = vcmp.eq.s32.totalorder %v373, %v494
        %vm686 = vcmp.eq.s32.totalorder %v374, %v494
        %vm687 = vcmp.eq.s32.totalorder %v372, %v497
        %vm688 = vcmp.eq.s32.totalorder %v373, %v497
        %vm689 = vcmp.eq.s32.totalorder %v374, %v497
        %vm690 = vcmp.eq.s32.totalorder %v372, %v500
        %vm691 = vcmp.eq.s32.totalorder %v373, %v500
        %vm692 = vcmp.eq.s32.totalorder %v374, %v500
        %vm693 = vcmp.eq.s32.totalorder %v372, %v503
        %vm694 = vcmp.eq.s32.totalorder %v373, %v503
        %vm695 = vcmp.eq.s32.totalorder %v374, %v503
        %vm696 = vcmp.eq.s32.totalorder %v372, %v506
        %vm697 = vcmp.eq.s32.totalorder %v373, %v506
        %vm698 = vcmp.eq.s32.totalorder %v374, %v506
        %vm699 = vcmp.eq.s32.totalorder %v372, %v509
        %vm700 = vcmp.eq.s32.totalorder %v373, %v509
        %vm701 = vcmp.eq.s32.totalorder %v374, %v509
        %vm702 = vcmp.eq.s32.totalorder %v372, %v512
        %vm703 = vcmp.eq.s32.totalorder %v373, %v512
        %vm704 = vcmp.eq.s32.totalorder %v374, %v512
        %vm705 = vcmp.eq.s32.totalorder %v372, %v515
        %vm706 = vcmp.eq.s32.totalorder %v373, %v515
        %vm707 = vcmp.eq.s32.totalorder %v374, %v515
        %vm708 = vcmp.eq.s32.totalorder %v372, %v518
        %vm709 = vcmp.eq.s32.totalorder %v373, %v518
        %vm710 = vcmp.eq.s32.totalorder %v374, %v518
        %vm711 = vcmp.eq.s32.totalorder %v372, %v521
        %vm712 = vcmp.eq.s32.totalorder %v373, %v521
        %vm713 = vcmp.eq.s32.totalorder %v374, %v521
        %vm714 = vcmp.eq.s32.totalorder %v372, %v524
        %vm715 = vcmp.eq.s32.totalorder %v373, %v524
        %vm716 = vcmp.eq.s32.totalorder %v374, %v524
        %vm717 = vcmp.eq.s32.totalorder %v372, %v527
        %vm718 = vcmp.eq.s32.totalorder %v373, %v527
        %vm719 = vcmp.eq.s32.totalorder %v374, %v527
        %vm720 = vcmp.eq.s32.totalorder %v372, %v530
        %vm721 = vcmp.eq.s32.totalorder %v373, %v530
        %vm722 = vcmp.eq.s32.totalorder %v374, %v530
        %vm723 = vcmp.eq.s32.totalorder %v372, %v533
        %vm724 = vcmp.eq.s32.totalorder %v373, %v533
        %vm725 = vcmp.eq.s32.totalorder %v374, %v533
        %vm726 = vcmp.eq.s32.totalorder %v372, %v536
        %vm727 = vcmp.eq.s32.totalorder %v373, %v536
        %vm728 = vcmp.eq.s32.totalorder %v374, %v536
        %vm729 = vcmp.eq.s32.totalorder %v372, %v539
        %vm730 = vcmp.eq.s32.totalorder %v373, %v539
        %vm731 = vcmp.eq.s32.totalorder %v374, %v539
        %vm732 = vcmp.eq.s32.totalorder %v372, %v542
        %vm733 = vcmp.eq.s32.totalorder %v373, %v542
        %vm734 = vcmp.eq.s32.totalorder %v374, %v542
        %vm735 = vcmp.eq.s32.totalorder %v372, %v545
        %vm736 = vcmp.eq.s32.totalorder %v373, %v545
        %vm737 = vcmp.eq.s32.totalorder %v374, %v545
        %vm738 = vcmp.eq.s32.totalorder %v372, %v548
        %vm739 = vcmp.eq.s32.totalorder %v373, %v548
        %vm740 = vcmp.eq.s32.totalorder %v374, %v548
        %vm741 = vcmp.eq.s32.totalorder %v372, %v551
        %vm742 = vcmp.eq.s32.totalorder %v373, %v551
        %vm743 = vcmp.eq.s32.totalorder %v374, %v551
        %vm744 = vcmp.eq.s32.totalorder %v372, %v554
        %vm745 = vcmp.eq.s32.totalorder %v373, %v554
        %vm746 = vcmp.eq.s32.totalorder %v374, %v554
        %vm747 = vcmp.eq.s32.totalorder %v372, %v557
        %vm748 = vcmp.eq.s32.totalorder %v373, %v557
        %vm749 = vcmp.eq.s32.totalorder %v374, %v557
        %vm750 = vcmp.eq.s32.totalorder %v372, %v560
        %vm751 = vcmp.eq.s32.totalorder %v373, %v560
        %vm752 = vcmp.eq.s32.totalorder %v374, %v560
        %vm753 = vcmp.eq.s32.totalorder %v372, %v563
        %vm754 = vcmp.eq.s32.totalorder %v373, %v563
        %vm755 = vcmp.eq.s32.totalorder %v374, %v563
        %vm756 = vcmp.eq.s32.totalorder %v372, %v566
        %vm757 = vcmp.eq.s32.totalorder %v373, %v566
        %vm758 = vcmp.eq.s32.totalorder %v374, %v566
        %v759 = vsel %vm567, 1, 0
        %v760 = vsel %vm568, 1, 0
        %v761 = vsel %vm569, 1, 0
        %v762 = vsel %vm570, 1, 0
        %v763 = vsel %vm571, 1, 0
        %v764 = vsel %vm572, 1, 0
        %v765 = vsel %vm573, 1, 0
        %v766 = vsel %vm574, 1, 0
        %v767 = vsel %vm575, 1, 0
        %v768 = vsel %vm576, 1, 0
        %v769 = vsel %vm577, 1, 0
        %v770 = vsel %vm578, 1, 0
        %v771 = vsel %vm579, 1, 0
        %v772 = vsel %vm580, 1, 0
        %v773 = vsel %vm581, 1, 0
        %v774 = vsel %vm582, 1, 0
        %v775 = vsel %vm583, 1, 0
        %v776 = vsel %vm584, 1, 0
        %v777 = vsel %vm585, 1, 0
        %v778 = vsel %vm586, 1, 0
        %v779 = vsel %vm587, 1, 0
        %v780 = vsel %vm588, 1, 0
        %v781 = vsel %vm589, 1, 0
        %v782 = vsel %vm590, 1, 0
        %v783 = vsel %vm591, 1, 0
        %v784 = vsel %vm592, 1, 0
        %v785 = vsel %vm593, 1, 0
        %v786 = vsel %vm594, 1, 0
        %v787 = vsel %vm595, 1, 0
        %v788 = vsel %vm596, 1, 0
        %v789 = vsel %vm597, 1, 0
        %v790 = vsel %vm598, 1, 0
        %v791 = vsel %vm599, 1, 0
        %v792 = vsel %vm600, 1, 0
        %v793 = vsel %vm601, 1, 0
        %v794 = vsel %vm602, 1, 0
        %v795 = vsel %vm603, 1, 0
        %v796 = vsel %vm604, 1, 0
        %v797 = vsel %vm605, 1, 0
        %v798 = vsel %vm606, 1, 0
        %v799 = vsel %vm607, 1, 0
        %v800 = vsel %vm608, 1, 0
        %v801 = vsel %vm609, 1, 0
        %v802 = vsel %vm610, 1, 0
        %v803 = vsel %vm611, 1, 0
        %v804 = vsel %vm612, 1, 0
        %v805 = vsel %vm613, 1, 0
        %v806 = vsel %vm614, 1, 0
        %v807 = vsel %vm615, 1, 0
        %v808 = vsel %vm616, 1, 0
        %v809 = vsel %vm617, 1, 0
        %v810 = vsel %vm618, 1, 0
        %v811 = vsel %vm619, 1, 0
        %v812 = vsel %vm620, 1, 0
        %v813 = vsel %vm621, 1, 0
        %v814 = vsel %vm622, 1, 0
        %v815 = vsel %vm623, 1, 0
        %v816 = vsel %vm624, 1, 0
        %v817 = vsel %vm625, 1, 0
        %v818 = vsel %vm626, 1, 0
        %v819 = vsel %vm627, 1, 0
        %v820 = vsel %vm628, 1, 0
        %v821 = vsel %vm629, 1, 0
        %v822 = vsel %vm630, 1, 0
        %v823 = vsel %vm631, 1, 0
        %v824 = vsel %vm632, 1, 0
        %v825 = vsel %vm633, 1, 0
        %v826 = vsel %vm634, 1, 0
        %v827 = vsel %vm635, 1, 0
        %v828 = vsel %vm636, 1, 0
        %v829 = vsel %vm637, 1, 0
        %v830 = vsel %vm638, 1, 0
        %v831 = vsel %vm639, 1, 0
        %v832 = vsel %vm640, 1, 0
        %v833 = vsel %vm641, 1, 0
        %v834 = vsel %vm642, 1, 0
        %v835 = vsel %vm643, 1, 0
        %v836 = vsel %vm644, 1, 0
        %v837 = vsel %vm645, 1, 0
        %v838 = vsel %vm646, 1, 0
        %v839 = vsel %vm647, 1, 0
        %v840 = vsel %vm648, 1, 0
        %v841 = vsel %vm649, 1, 0
        %v842 = vsel %vm650, 1, 0
        %v843 = vsel %vm651, 1, 0
        %v844 = vsel %vm652, 1, 0
        %v845 = vsel %vm653, 1, 0
        %v846 = vsel %vm654, 1, 0
        %v847 = vsel %vm655, 1, 0
        %v848 = vsel %vm656, 1, 0
        %v849 = vsel %vm657, 1, 0
        %v850 = vsel %vm658, 1, 0
        %v851 = vsel %vm659, 1, 0
        %v852 = vsel %vm660, 1, 0
        %v853 = vsel %vm661, 1, 0
        %v854 = vsel %vm662, 1, 0
        %v855 = vsel %vm663, 1, 0
        %v856 = vsel %vm664, 1, 0
        %v857 = vsel %vm665, 1, 0
        %v858 = vsel %vm666, 1, 0
        %v859 = vsel %vm667, 1, 0
        %v860 = vsel %vm668, 1, 0
        %v861 = vsel %vm669, 1, 0
        %v862 = vsel %vm670, 1, 0
        %v863 = vsel %vm671, 1, 0
        %v864 = vsel %vm672, 1, 0
        %v865 = vsel %vm673, 1, 0
        %v866 = vsel %vm674, 1, 0
        %v867 = vsel %vm675, 1, 0
        %v868 = vsel %vm676, 1, 0
        %v869 = vsel %vm677, 1, 0
        %v870 = vsel %vm678, 1, 0
        %v871 = vsel %vm679, 1, 0
        %v872 = vsel %vm680, 1, 0
        %v873 = vsel %vm681, 1, 0
        %v874 = vsel %vm682, 1, 0
        %v875 = vsel %vm683, 1, 0
        %v876 = vsel %vm684, 1, 0
        %v877 = vsel %vm685, 1, 0
        %v878 = vsel %vm686, 1, 0
        %v879 = vsel %vm687, 1, 0
        %v880 = vsel %vm688, 1, 0
        %v881 = vsel %vm689, 1, 0
        %v882 = vsel %vm690, 1, 0
        %v883 = vsel %vm691, 1, 0
        %v884 = vsel %vm692, 1, 0
        %v885 = vsel %vm693, 1, 0
        %v886 = vsel %vm694, 1, 0
        %v887 = vsel %vm695, 1, 0
        %v888 = vsel %vm696, 1, 0
        %v889 = vsel %vm697, 1, 0
        %v890 = vsel %vm698, 1, 0
        %v891 = vsel %vm699, 1, 0
        %v892 = vsel %vm700, 1, 0
        %v893 = vsel %vm701, 1, 0
        %v894 = vsel %vm702, 1, 0
        %v895 = vsel %vm703, 1, 0
        %v896 = vsel %vm704, 1, 0
        %v897 = vsel %vm705, 1, 0
        %v898 = vsel %vm706, 1, 0
        %v899 = vsel %vm707, 1, 0
        %v900 = vsel %vm708, 1, 0
        %v901 = vsel %vm709, 1, 0
        %v902 = vsel %vm710, 1, 0
        %v903 = vsel %vm711, 1, 0
        %v904 = vsel %vm712, 1, 0
        %v905 = vsel %vm713, 1, 0
        %v906 = vsel %vm714, 1, 0
        %v907 = vsel %vm715, 1, 0
        %v908 = vsel %vm716, 1, 0
        %v909 = vsel %vm717, 1, 0
        %v910 = vsel %vm718, 1, 0
        %v911 = vsel %vm719, 1, 0
        %v912 = vsel %vm720, 1, 0
        %v913 = vsel %vm721, 1, 0
        %v914 = vsel %vm722, 1, 0
        %v915 = vsel %vm723, 1, 0
        %v916 = vsel %vm724, 1, 0
        %v917 = vsel %vm725, 1, 0
        %v918 = vsel %vm726, 1, 0
        %v919 = vsel %vm727, 1, 0
        %v920 = vsel %vm728, 1, 0
        %v921 = vsel %vm729, 1, 0
        %v922 = vsel %vm730, 1, 0
        %v923 = vsel %vm731, 1, 0
        %v924 = vsel %vm732, 1, 0
        %v925 = vsel %vm733, 1, 0
        %v926 = vsel %vm734, 1, 0
        %v927 = vsel %vm735, 1, 0
        %v928 = vsel %vm736, 1, 0
        %v929 = vsel %vm737, 1, 0
        %v930 = vsel %vm738, 1, 0
        %v931 = vsel %vm739, 1, 0
        %v932 = vsel %vm740, 1, 0
        %v933 = vsel %vm741, 1, 0
        %v934 = vsel %vm742, 1, 0
        %v935 = vsel %vm743, 1, 0
        %v936 = vsel %vm744, 1, 0
        %v937 = vsel %vm745, 1, 0
        %v938 = vsel %vm746, 1, 0
        %v939 = vsel %vm747, 1, 0
        %v940 = vsel %vm748, 1, 0
        %v941 = vsel %vm749, 1, 0
        %v942 = vsel %vm750, 1, 0
        %v943 = vsel %vm751, 1, 0
        %v944 = vsel %vm752, 1, 0
        %v945 = vsel %vm753, 1, 0
        %v946 = vsel %vm754, 1, 0
        %v947 = vsel %vm755, 1, 0
        %v948 = vsel %vm756, 1, 0
        %v949 = vsel %vm757, 1, 0
        %v950 = vsel %vm758, 1, 0
        %951 = vset.pattern.permute.xlu0 2
        %952 = vperm.xlu0 %951, %v307
        %v953 = vpop.permute.xlu0 %952
        %954 = vset.pattern.permute.xlu0 2
        %955 = vperm.xlu0 %954, %v308
        %v956 = vpop.permute.xlu0 %955
        %957 = vset.pattern.permute.xlu0 2
        %958 = vperm.xlu0 %957, %v309
        %v959 = vpop.permute.xlu0 %958
        %960 = vset.pattern.permute.xlu0 2
        %961 = vperm.xlu0 %960, %v310
        %v962 = vpop.permute.xlu0 %961
        %963 = vset.pattern.permute.xlu0 2
        %964 = vperm.xlu0 %963, %v311
        %v965 = vpop.permute.xlu0 %964
        %966 = vset.pattern.permute.xlu0 2
        %967 = vperm.xlu0 %966, %v312
        %v968 = vpop.permute.xlu0 %967
        %969 = vset.pattern.permute.xlu0 2
        %970 = vperm.xlu0 %969, %v313
        %v971 = vpop.permute.xlu0 %970
        %972 = vset.pattern.permute.xlu0 2
        %973 = vperm.xlu0 %972, %v314
        %v974 = vpop.permute.xlu0 %973
        %975 = vset.pattern.permute.xlu0 2
        %976 = vperm.xlu0 %975, %v315
        %v977 = vpop.permute.xlu0 %976
        %978 = vset.pattern.permute.xlu0 2
        %979 = vperm.xlu0 %978, %v316
        %v980 = vpop.permute.xlu0 %979
        %981 = vset.pattern.permute.xlu0 2
        %982 = vperm.xlu0 %981, %v317
        %v983 = vpop.permute.xlu0 %982
        %984 = vset.pattern.permute.xlu0 2
        %985 = vperm.xlu0 %984, %v318
        %v986 = vpop.permute.xlu0 %985
        %987 = vset.pattern.permute.xlu0 2
        %988 = vperm.xlu0 %987, %v319
        %v989 = vpop.permute.xlu0 %988
        %990 = vset.pattern.permute.xlu0 2
        %991 = vperm.xlu0 %990, %v320
        %v992 = vpop.permute.xlu0 %991
        %993 = vset.pattern.permute.xlu0 2
        %994 = vperm.xlu0 %993, %v321
        %v995 = vpop.permute.xlu0 %994
        %996 = vset.pattern.permute.xlu0 2
        %997 = vperm.xlu0 %996, %v322
        %v998 = vpop.permute.xlu0 %997
        %999 = vset.pattern.permute.xlu0 2
        %1000 = vperm.xlu0 %999, %v323
        %v1001 = vpop.permute.xlu0 %1000
        %1002 = vset.pattern.permute.xlu0 2
        %1003 = vperm.xlu0 %1002, %v324
        %v1004 = vpop.permute.xlu0 %1003
        %1005 = vset.pattern.permute.xlu0 2
        %1006 = vperm.xlu0 %1005, %v325
        %v1007 = vpop.permute.xlu0 %1006
        %1008 = vset.pattern.permute.xlu0 2
        %1009 = vperm.xlu0 %1008, %v326
        %v1010 = vpop.permute.xlu0 %1009
        %1011 = vset.pattern.permute.xlu0 2
        %1012 = vperm.xlu0 %1011, %v327
        %v1013 = vpop.permute.xlu0 %1012
        %1014 = vset.pattern.permute.xlu0 2
        %1015 = vperm.xlu0 %1014, %v328
        %v1016 = vpop.permute.xlu0 %1015
        %1017 = vset.pattern.permute.xlu0 2
        %1018 = vperm.xlu0 %1017, %v329
        %v1019 = vpop.permute.xlu0 %1018
        %1020 = vset.pattern.permute.xlu0 2
        %1021 = vperm.xlu0 %1020, %v330
        %v1022 = vpop.permute.xlu0 %1021
        %1023 = vset.pattern.permute.xlu0 2
        %1024 = vperm.xlu0 %1023, %v331
        %v1025 = vpop.permute.xlu0 %1024
        %1026 = vset.pattern.permute.xlu0 2
        %1027 = vperm.xlu0 %1026, %v332
        %v1028 = vpop.permute.xlu0 %1027
        %1029 = vset.pattern.permute.xlu0 2
        %1030 = vperm.xlu0 %1029, %v333
        %v1031 = vpop.permute.xlu0 %1030
        %1032 = vset.pattern.permute.xlu0 2
        %1033 = vperm.xlu0 %1032, %v334
        %v1034 = vpop.permute.xlu0 %1033
        %1035 = vset.pattern.permute.xlu0 2
        %1036 = vperm.xlu0 %1035, %v335
        %v1037 = vpop.permute.xlu0 %1036
        %1038 = vset.pattern.permute.xlu0 2
        %1039 = vperm.xlu0 %1038, %v336
        %v1040 = vpop.permute.xlu0 %1039
        %1041 = vset.pattern.permute.xlu0 2
        %1042 = vperm.xlu0 %1041, %v337
        %v1043 = vpop.permute.xlu0 %1042
        %1044 = vset.pattern.permute.xlu0 2
        %1045 = vperm.xlu0 %1044, %v338
        %v1046 = vpop.permute.xlu0 %1045
        %1047 = vset.pattern.permute.xlu0 2
        %1048 = vperm.xlu0 %1047, %v339
        %v1049 = vpop.permute.xlu0 %1048
        %1050 = vset.pattern.permute.xlu0 2
        %1051 = vperm.xlu0 %1050, %v340
        %v1052 = vpop.permute.xlu0 %1051
        %1053 = vset.pattern.permute.xlu0 2
        %1054 = vperm.xlu0 %1053, %v341
        %v1055 = vpop.permute.xlu0 %1054
        %1056 = vset.pattern.permute.xlu0 2
        %1057 = vperm.xlu0 %1056, %v342
        %v1058 = vpop.permute.xlu0 %1057
        %1059 = vset.pattern.permute.xlu0 2
        %1060 = vperm.xlu0 %1059, %v343
        %v1061 = vpop.permute.xlu0 %1060
        %1062 = vset.pattern.permute.xlu0 2
        %1063 = vperm.xlu0 %1062, %v344
        %v1064 = vpop.permute.xlu0 %1063
        %1065 = vset.pattern.permute.xlu0 2
        %1066 = vperm.xlu0 %1065, %v345
        %v1067 = vpop.permute.xlu0 %1066
        %1068 = vset.pattern.permute.xlu0 2
        %1069 = vperm.xlu0 %1068, %v346
        %v1070 = vpop.permute.xlu0 %1069
        %1071 = vset.pattern.permute.xlu0 2
        %1072 = vperm.xlu0 %1071, %v347
        %v1073 = vpop.permute.xlu0 %1072
        %1074 = vset.pattern.permute.xlu0 2
        %1075 = vperm.xlu0 %1074, %v348
        %v1076 = vpop.permute.xlu0 %1075
        %1077 = vset.pattern.permute.xlu0 2
        %1078 = vperm.xlu0 %1077, %v349
        %v1079 = vpop.permute.xlu0 %1078
        %1080 = vset.pattern.permute.xlu0 2
        %1081 = vperm.xlu0 %1080, %v350
        %v1082 = vpop.permute.xlu0 %1081
        %1083 = vset.pattern.permute.xlu0 2
        %1084 = vperm.xlu0 %1083, %v351
        %v1085 = vpop.permute.xlu0 %1084
        %1086 = vset.pattern.permute.xlu0 2
        %1087 = vperm.xlu0 %1086, %v352
        %v1088 = vpop.permute.xlu0 %1087
        %1089 = vset.pattern.permute.xlu0 2
        %1090 = vperm.xlu0 %1089, %v353
        %v1091 = vpop.permute.xlu0 %1090
        %1092 = vset.pattern.permute.xlu0 2
        %1093 = vperm.xlu0 %1092, %v354
        %v1094 = vpop.permute.xlu0 %1093
        %1095 = vset.pattern.permute.xlu0 2
        %1096 = vperm.xlu0 %1095, %v355
        %v1097 = vpop.permute.xlu0 %1096
        %1098 = vset.pattern.permute.xlu0 2
        %1099 = vperm.xlu0 %1098, %v356
        %v1100 = vpop.permute.xlu0 %1099
        %1101 = vset.pattern.permute.xlu0 2
        %1102 = vperm.xlu0 %1101, %v357
        %v1103 = vpop.permute.xlu0 %1102
        %1104 = vset.pattern.permute.xlu0 2
        %1105 = vperm.xlu0 %1104, %v358
        %v1106 = vpop.permute.xlu0 %1105
        %1107 = vset.pattern.permute.xlu0 2
        %1108 = vperm.xlu0 %1107, %v359
        %v1109 = vpop.permute.xlu0 %1108
        %1110 = vset.pattern.permute.xlu0 2
        %1111 = vperm.xlu0 %1110, %v360
        %v1112 = vpop.permute.xlu0 %1111
        %1113 = vset.pattern.permute.xlu0 2
        %1114 = vperm.xlu0 %1113, %v361
        %v1115 = vpop.permute.xlu0 %1114
        %1116 = vset.pattern.permute.xlu0 2
        %1117 = vperm.xlu0 %1116, %v362
        %v1118 = vpop.permute.xlu0 %1117
        %1119 = vset.pattern.permute.xlu0 2
        %1120 = vperm.xlu0 %1119, %v363
        %v1121 = vpop.permute.xlu0 %1120
        %1122 = vset.pattern.permute.xlu0 2
        %1123 = vperm.xlu0 %1122, %v364
        %v1124 = vpop.permute.xlu0 %1123
        %1125 = vset.pattern.permute.xlu0 2
        %1126 = vperm.xlu0 %1125, %v365
        %v1127 = vpop.permute.xlu0 %1126
        %1128 = vset.pattern.permute.xlu0 2
        %1129 = vperm.xlu0 %1128, %v366
        %v1130 = vpop.permute.xlu0 %1129
        %1131 = vset.pattern.permute.xlu0 2
        %1132 = vperm.xlu0 %1131, %v367
        %v1133 = vpop.permute.xlu0 %1132
        %1134 = vset.pattern.permute.xlu0 2
        %1135 = vperm.xlu0 %1134, %v368
        %v1136 = vpop.permute.xlu0 %1135
        %1137 = vset.pattern.permute.xlu0 2
        %1138 = vperm.xlu0 %1137, %v369
        %v1139 = vpop.permute.xlu0 %1138
        %1140 = vset.pattern.permute.xlu0 2
        %1141 = vperm.xlu0 %1140, %v370
        %v1142 = vpop.permute.xlu0 %1141
        %vm1143 = vcmp.eq.s32.totalorder %v372, %v953
        %vm1144 = vcmp.eq.s32.totalorder %v373, %v953
        %vm1145 = vcmp.eq.s32.totalorder %v374, %v953
        %vm1146 = vcmp.eq.s32.totalorder %v372, %v956
        %vm1147 = vcmp.eq.s32.totalorder %v373, %v956
        %vm1148 = vcmp.eq.s32.totalorder %v374, %v956
        %vm1149 = vcmp.eq.s32.totalorder %v372, %v959
        %vm1150 = vcmp.eq.s32.totalorder %v373, %v959
        %vm1151 = vcmp.eq.s32.totalorder %v374, %v959
        %vm1152 = vcmp.eq.s32.totalorder %v372, %v962
        %vm1153 = vcmp.eq.s32.totalorder %v373, %v962
        %vm1154 = vcmp.eq.s32.totalorder %v374, %v962
        %vm1155 = vcmp.eq.s32.totalorder %v372, %v965
        %vm1156 = vcmp.eq.s32.totalorder %v373, %v965
        %vm1157 = vcmp.eq.s32.totalorder %v374, %v965
        %vm1158 = vcmp.eq.s32.totalorder %v372, %v968
        %vm1159 = vcmp.eq.s32.totalorder %v373, %v968
        %vm1160 = vcmp.eq.s32.totalorder %v374, %v968
        %vm1161 = vcmp.eq.s32.totalorder %v372, %v971
        %vm1162 = vcmp.eq.s32.totalorder %v373, %v971
        %vm1163 = vcmp.eq.s32.totalorder %v374, %v971
        %vm1164 = vcmp.eq.s32.totalorder %v372, %v974
        %vm1165 = vcmp.eq.s32.totalorder %v373, %v974
        %vm1166 = vcmp.eq.s32.totalorder %v374, %v974
        %vm1167 = vcmp.eq.s32.totalorder %v372, %v977
        %vm1168 = vcmp.eq.s32.totalorder %v373, %v977
        %vm1169 = vcmp.eq.s32.totalorder %v374, %v977
        %vm1170 = vcmp.eq.s32.totalorder %v372, %v980
        %vm1171 = vcmp.eq.s32.totalorder %v373, %v980
        %vm1172 = vcmp.eq.s32.totalorder %v374, %v980
        %vm1173 = vcmp.eq.s32.totalorder %v372, %v983
        %vm1174 = vcmp.eq.s32.totalorder %v373, %v983
        %vm1175 = vcmp.eq.s32.totalorder %v374, %v983
        %vm1176 = vcmp.eq.s32.totalorder %v372, %v986
        %vm1177 = vcmp.eq.s32.totalorder %v373, %v986
        %vm1178 = vcmp.eq.s32.totalorder %v374, %v986
        %vm1179 = vcmp.eq.s32.totalorder %v372, %v989
        %vm1180 = vcmp.eq.s32.totalorder %v373, %v989
        %vm1181 = vcmp.eq.s32.totalorder %v374, %v989
        %vm1182 = vcmp.eq.s32.totalorder %v372, %v992
        %vm1183 = vcmp.eq.s32.totalorder %v373, %v992
        %vm1184 = vcmp.eq.s32.totalorder %v374, %v992
        %vm1185 = vcmp.eq.s32.totalorder %v372, %v995
        %vm1186 = vcmp.eq.s32.totalorder %v373, %v995
        %vm1187 = vcmp.eq.s32.totalorder %v374, %v995
        %vm1188 = vcmp.eq.s32.totalorder %v372, %v998
        %vm1189 = vcmp.eq.s32.totalorder %v373, %v998
        %vm1190 = vcmp.eq.s32.totalorder %v374, %v998
        %vm1191 = vcmp.eq.s32.totalorder %v372, %v1001
        %vm1192 = vcmp.eq.s32.totalorder %v373, %v1001
        %vm1193 = vcmp.eq.s32.totalorder %v374, %v1001
        %vm1194 = vcmp.eq.s32.totalorder %v372, %v1004
        %vm1195 = vcmp.eq.s32.totalorder %v373, %v1004
        %vm1196 = vcmp.eq.s32.totalorder %v374, %v1004
        %vm1197 = vcmp.eq.s32.totalorder %v372, %v1007
        %vm1198 = vcmp.eq.s32.totalorder %v373, %v1007
        %vm1199 = vcmp.eq.s32.totalorder %v374, %v1007
        %vm1200 = vcmp.eq.s32.totalorder %v372, %v1010
        %vm1201 = vcmp.eq.s32.totalorder %v373, %v1010
        %vm1202 = vcmp.eq.s32.totalorder %v374, %v1010
        %vm1203 = vcmp.eq.s32.totalorder %v372, %v1013
        %vm1204 = vcmp.eq.s32.totalorder %v373, %v1013
        %vm1205 = vcmp.eq.s32.totalorder %v374, %v1013
        %vm1206 = vcmp.eq.s32.totalorder %v372, %v1016
        %vm1207 = vcmp.eq.s32.totalorder %v373, %v1016
        %vm1208 = vcmp.eq.s32.totalorder %v374, %v1016
        %vm1209 = vcmp.eq.s32.totalorder %v372, %v1019
        %vm1210 = vcmp.eq.s32.totalorder %v373, %v1019
        %vm1211 = vcmp.eq.s32.totalorder %v374, %v1019
        %vm1212 = vcmp.eq.s32.totalorder %v372, %v1022
        %vm1213 = vcmp.eq.s32.totalorder %v373, %v1022
        %vm1214 = vcmp.eq.s32.totalorder %v374, %v1022
        %vm1215 = vcmp.eq.s32.totalorder %v372, %v1025
        %vm1216 = vcmp.eq.s32.totalorder %v373, %v1025
        %vm1217 = vcmp.eq.s32.totalorder %v374, %v1025
        %vm1218 = vcmp.eq.s32.totalorder %v372, %v1028
        %vm1219 = vcmp.eq.s32.totalorder %v373, %v1028
        %vm1220 = vcmp.eq.s32.totalorder %v374, %v1028
        %vm1221 = vcmp.eq.s32.totalorder %v372, %v1031
        %vm1222 = vcmp.eq.s32.totalorder %v373, %v1031
        %vm1223 = vcmp.eq.s32.totalorder %v374, %v1031
        %vm1224 = vcmp.eq.s32.totalorder %v372, %v1034
        %vm1225 = vcmp.eq.s32.totalorder %v373, %v1034
        %vm1226 = vcmp.eq.s32.totalorder %v374, %v1034
        %vm1227 = vcmp.eq.s32.totalorder %v372, %v1037
        %vm1228 = vcmp.eq.s32.totalorder %v373, %v1037
        %vm1229 = vcmp.eq.s32.totalorder %v374, %v1037
        %vm1230 = vcmp.eq.s32.totalorder %v372, %v1040
        %vm1231 = vcmp.eq.s32.totalorder %v373, %v1040
        %vm1232 = vcmp.eq.s32.totalorder %v374, %v1040
        %vm1233 = vcmp.eq.s32.totalorder %v372, %v1043
        %vm1234 = vcmp.eq.s32.totalorder %v373, %v1043
        %vm1235 = vcmp.eq.s32.totalorder %v374, %v1043
        %vm1236 = vcmp.eq.s32.totalorder %v372, %v1046
        %vm1237 = vcmp.eq.s32.totalorder %v373, %v1046
        %vm1238 = vcmp.eq.s32.totalorder %v374, %v1046
        %vm1239 = vcmp.eq.s32.totalorder %v372, %v1049
        %vm1240 = vcmp.eq.s32.totalorder %v373, %v1049
        %vm1241 = vcmp.eq.s32.totalorder %v374, %v1049
        %vm1242 = vcmp.eq.s32.totalorder %v372, %v1052
        %vm1243 = vcmp.eq.s32.totalorder %v373, %v1052
        %vm1244 = vcmp.eq.s32.totalorder %v374, %v1052
        %vm1245 = vcmp.eq.s32.totalorder %v372, %v1055
        %vm1246 = vcmp.eq.s32.totalorder %v373, %v1055
        %vm1247 = vcmp.eq.s32.totalorder %v374, %v1055
        %vm1248 = vcmp.eq.s32.totalorder %v372, %v1058
        %vm1249 = vcmp.eq.s32.totalorder %v373, %v1058
        %vm1250 = vcmp.eq.s32.totalorder %v374, %v1058
        %vm1251 = vcmp.eq.s32.totalorder %v372, %v1061
        %vm1252 = vcmp.eq.s32.totalorder %v373, %v1061
        %vm1253 = vcmp.eq.s32.totalorder %v374, %v1061
        %vm1254 = vcmp.eq.s32.totalorder %v372, %v1064
        %vm1255 = vcmp.eq.s32.totalorder %v373, %v1064
        %vm1256 = vcmp.eq.s32.totalorder %v374, %v1064
        %vm1257 = vcmp.eq.s32.totalorder %v372, %v1067
        %vm1258 = vcmp.eq.s32.totalorder %v373, %v1067
        %vm1259 = vcmp.eq.s32.totalorder %v374, %v1067
        %vm1260 = vcmp.eq.s32.totalorder %v372, %v1070
        %vm1261 = vcmp.eq.s32.totalorder %v373, %v1070
        %vm1262 = vcmp.eq.s32.totalorder %v374, %v1070
        %vm1263 = vcmp.eq.s32.totalorder %v372, %v1073
        %vm1264 = vcmp.eq.s32.totalorder %v373, %v1073
        %vm1265 = vcmp.eq.s32.totalorder %v374, %v1073
        %vm1266 = vcmp.eq.s32.totalorder %v372, %v1076
        %vm1267 = vcmp.eq.s32.totalorder %v373, %v1076
        %vm1268 = vcmp.eq.s32.totalorder %v374, %v1076
        %vm1269 = vcmp.eq.s32.totalorder %v372, %v1079
        %vm1270 = vcmp.eq.s32.totalorder %v373, %v1079
        %vm1271 = vcmp.eq.s32.totalorder %v374, %v1079
        %vm1272 = vcmp.eq.s32.totalorder %v372, %v1082
        %vm1273 = vcmp.eq.s32.totalorder %v373, %v1082
        %vm1274 = vcmp.eq.s32.totalorder %v374, %v1082
        %vm1275 = vcmp.eq.s32.totalorder %v372, %v1085
        %vm1276 = vcmp.eq.s32.totalorder %v373, %v1085
        %vm1277 = vcmp.eq.s32.totalorder %v374, %v1085
        %vm1278 = vcmp.eq.s32.totalorder %v372, %v1088
        %vm1279 = vcmp.eq.s32.totalorder %v373, %v1088
        %vm1280 = vcmp.eq.s32.totalorder %v374, %v1088
        %vm1281 = vcmp.eq.s32.totalorder %v372, %v1091
        %vm1282 = vcmp.eq.s32.totalorder %v373, %v1091
        %vm1283 = vcmp.eq.s32.totalorder %v374, %v1091
        %vm1284 = vcmp.eq.s32.totalorder %v372, %v1094
        %vm1285 = vcmp.eq.s32.totalorder %v373, %v1094
        %vm1286 = vcmp.eq.s32.totalorder %v374, %v1094
        %vm1287 = vcmp.eq.s32.totalorder %v372, %v1097
        %vm1288 = vcmp.eq.s32.totalorder %v373, %v1097
        %vm1289 = vcmp.eq.s32.totalorder %v374, %v1097
        %vm1290 = vcmp.eq.s32.totalorder %v372, %v1100
        %vm1291 = vcmp.eq.s32.totalorder %v373, %v1100
        %vm1292 = vcmp.eq.s32.totalorder %v374, %v1100
        %vm1293 = vcmp.eq.s32.totalorder %v372, %v1103
        %vm1294 = vcmp.eq.s32.totalorder %v373, %v1103
        %vm1295 = vcmp.eq.s32.totalorder %v374, %v1103
        %vm1296 = vcmp.eq.s32.totalorder %v372, %v1106
        %vm1297 = vcmp.eq.s32.totalorder %v373, %v1106
        %vm1298 = vcmp.eq.s32.totalorder %v374, %v1106
        %vm1299 = vcmp.eq.s32.totalorder %v372, %v1109
        %vm1300 = vcmp.eq.s32.totalorder %v373, %v1109
        %vm1301 = vcmp.eq.s32.totalorder %v374, %v1109
        %vm1302 = vcmp.eq.s32.totalorder %v372, %v1112
        %vm1303 = vcmp.eq.s32.totalorder %v373, %v1112
        %vm1304 = vcmp.eq.s32.totalorder %v374, %v1112
        %vm1305 = vcmp.eq.s32.totalorder %v372, %v1115
        %vm1306 = vcmp.eq.s32.totalorder %v373, %v1115
        %vm1307 = vcmp.eq.s32.totalorder %v374, %v1115
        %vm1308 = vcmp.eq.s32.totalorder %v372, %v1118
        %vm1309 = vcmp.eq.s32.totalorder %v373, %v1118
        %vm1310 = vcmp.eq.s32.totalorder %v374, %v1118
        %vm1311 = vcmp.eq.s32.totalorder %v372, %v1121
        %vm1312 = vcmp.eq.s32.totalorder %v373, %v1121
        %vm1313 = vcmp.eq.s32.totalorder %v374, %v1121
        %vm1314 = vcmp.eq.s32.totalorder %v372, %v1124
        %vm1315 = vcmp.eq.s32.totalorder %v373, %v1124
        %vm1316 = vcmp.eq.s32.totalorder %v374, %v1124
        %vm1317 = vcmp.eq.s32.totalorder %v372, %v1127
        %vm1318 = vcmp.eq.s32.totalorder %v373, %v1127
        %vm1319 = vcmp.eq.s32.totalorder %v374, %v1127
        %vm1320 = vcmp.eq.s32.totalorder %v372, %v1130
        %vm1321 = vcmp.eq.s32.totalorder %v373, %v1130
        %vm1322 = vcmp.eq.s32.totalorder %v374, %v1130
        %vm1323 = vcmp.eq.s32.totalorder %v372, %v1133
        %vm1324 = vcmp.eq.s32.totalorder %v373, %v1133
        %vm1325 = vcmp.eq.s32.totalorder %v374, %v1133
        %vm1326 = vcmp.eq.s32.totalorder %v372, %v1136
        %vm1327 = vcmp.eq.s32.totalorder %v373, %v1136
        %vm1328 = vcmp.eq.s32.totalorder %v374, %v1136
        %vm1329 = vcmp.eq.s32.totalorder %v372, %v1139
        %vm1330 = vcmp.eq.s32.totalorder %v373, %v1139
        %vm1331 = vcmp.eq.s32.totalorder %v374, %v1139
        %vm1332 = vcmp.eq.s32.totalorder %v372, %v1142
        %vm1333 = vcmp.eq.s32.totalorder %v373, %v1142
        %vm1334 = vcmp.eq.s32.totalorder %v374, %v1142
        %v1335 = vsel %vm1143, 1, 0
        %v1336 = vsel %vm1144, 1, 0
        %v1337 = vsel %vm1145, 1, 0
        %v1338 = vsel %vm1146, 1, 0
        %v1339 = vsel %vm1147, 1, 0
        %v1340 = vsel %vm1148, 1, 0
        %v1341 = vsel %vm1149, 1, 0
        %v1342 = vsel %vm1150, 1, 0
        %v1343 = vsel %vm1151, 1, 0
        %v1344 = vsel %vm1152, 1, 0
        %v1345 = vsel %vm1153, 1, 0
        %v1346 = vsel %vm1154, 1, 0
        %v1347 = vsel %vm1155, 1, 0
        %v1348 = vsel %vm1156, 1, 0
        %v1349 = vsel %vm1157, 1, 0
        %v1350 = vsel %vm1158, 1, 0
        %v1351 = vsel %vm1159, 1, 0
        %v1352 = vsel %vm1160, 1, 0
        %v1353 = vsel %vm1161, 1, 0
        %v1354 = vsel %vm1162, 1, 0
        %v1355 = vsel %vm1163, 1, 0
        %v1356 = vsel %vm1164, 1, 0
        %v1357 = vsel %vm1165, 1, 0
        %v1358 = vsel %vm1166, 1, 0
        %v1359 = vsel %vm1167, 1, 0
        %v1360 = vsel %vm1168, 1, 0
        %v1361 = vsel %vm1169, 1, 0
        %v1362 = vsel %vm1170, 1, 0
        %v1363 = vsel %vm1171, 1, 0
        %v1364 = vsel %vm1172, 1, 0
        %v1365 = vsel %vm1173, 1, 0
        %v1366 = vsel %vm1174, 1, 0
        %v1367 = vsel %vm1175, 1, 0
        %v1368 = vsel %vm1176, 1, 0
        %v1369 = vsel %vm1177, 1, 0
        %v1370 = vsel %vm1178, 1, 0
        %v1371 = vsel %vm1179, 1, 0
        %v1372 = vsel %vm1180, 1, 0
        %v1373 = vsel %vm1181, 1, 0
        %v1374 = vsel %vm1182, 1, 0
        %v1375 = vsel %vm1183, 1, 0
        %v1376 = vsel %vm1184, 1, 0
        %v1377 = vsel %vm1185, 1, 0
        %v1378 = vsel %vm1186, 1, 0
        %v1379 = vsel %vm1187, 1, 0
        %v1380 = vsel %vm1188, 1, 0
        %v1381 = vsel %vm1189, 1, 0
        %v1382 = vsel %vm1190, 1, 0
        %v1383 = vsel %vm1191, 1, 0
        %v1384 = vsel %vm1192, 1, 0
        %v1385 = vsel %vm1193, 1, 0
        %v1386 = vsel %vm1194, 1, 0
        %v1387 = vsel %vm1195, 1, 0
        %v1388 = vsel %vm1196, 1, 0
        %v1389 = vsel %vm1197, 1, 0
        %v1390 = vsel %vm1198, 1, 0
        %v1391 = vsel %vm1199, 1, 0
        %v1392 = vsel %vm1200, 1, 0
        %v1393 = vsel %vm1201, 1, 0
        %v1394 = vsel %vm1202, 1, 0
        %v1395 = vsel %vm1203, 1, 0
        %v1396 = vsel %vm1204, 1, 0
        %v1397 = vsel %vm1205, 1, 0
        %v1398 = vsel %vm1206, 1, 0
        %v1399 = vsel %vm1207, 1, 0
        %v1400 = vsel %vm1208, 1, 0
        %v1401 = vsel %vm1209, 1, 0
        %v1402 = vsel %vm1210, 1, 0
        %v1403 = vsel %vm1211, 1, 0
        %v1404 = vsel %vm1212, 1, 0
        %v1405 = vsel %vm1213, 1, 0
        %v1406 = vsel %vm1214, 1, 0
        %v1407 = vsel %vm1215, 1, 0
        %v1408 = vsel %vm1216, 1, 0
        %v1409 = vsel %vm1217, 1, 0
        %v1410 = vsel %vm1218, 1, 0
        %v1411 = vsel %vm1219, 1, 0
        %v1412 = vsel %vm1220, 1, 0
        %v1413 = vsel %vm1221, 1, 0
        %v1414 = vsel %vm1222, 1, 0
        %v1415 = vsel %vm1223, 1, 0
        %v1416 = vsel %vm1224, 1, 0
        %v1417 = vsel %vm1225, 1, 0
        %v1418 = vsel %vm1226, 1, 0
        %v1419 = vsel %vm1227, 1, 0
        %v1420 = vsel %vm1228, 1, 0
        %v1421 = vsel %vm1229, 1, 0
        %v1422 = vsel %vm1230, 1, 0
        %v1423 = vsel %vm1231, 1, 0
        %v1424 = vsel %vm1232, 1, 0
        %v1425 = vsel %vm1233, 1, 0
        %v1426 = vsel %vm1234, 1, 0
        %v1427 = vsel %vm1235, 1, 0
        %v1428 = vsel %vm1236, 1, 0
        %v1429 = vsel %vm1237, 1, 0
        %v1430 = vsel %vm1238, 1, 0
        %v1431 = vsel %vm1239, 1, 0
        %v1432 = vsel %vm1240, 1, 0
        %v1433 = vsel %vm1241, 1, 0
        %v1434 = vsel %vm1242, 1, 0
        %v1435 = vsel %vm1243, 1, 0
        %v1436 = vsel %vm1244, 1, 0
        %v1437 = vsel %vm1245, 1, 0
        %v1438 = vsel %vm1246, 1, 0
        %v1439 = vsel %vm1247, 1, 0
        %v1440 = vsel %vm1248, 1, 0
        %v1441 = vsel %vm1249, 1, 0
        %v1442 = vsel %vm1250, 1, 0
        %v1443 = vsel %vm1251, 1, 0
        %v1444 = vsel %vm1252, 1, 0
        %v1445 = vsel %vm1253, 1, 0
        %v1446 = vsel %vm1254, 1, 0
        %v1447 = vsel %vm1255, 1, 0
        %v1448 = vsel %vm1256, 1, 0
        %v1449 = vsel %vm1257, 1, 0
        %v1450 = vsel %vm1258, 1, 0
        %v1451 = vsel %vm1259, 1, 0
        %v1452 = vsel %vm1260, 1, 0
        %v1453 = vsel %vm1261, 1, 0
        %v1454 = vsel %vm1262, 1, 0
        %v1455 = vsel %vm1263, 1, 0
        %v1456 = vsel %vm1264, 1, 0
        %v1457 = vsel %vm1265, 1, 0
        %v1458 = vsel %vm1266, 1, 0
        %v1459 = vsel %vm1267, 1, 0
        %v1460 = vsel %vm1268, 1, 0
        %v1461 = vsel %vm1269, 1, 0
        %v1462 = vsel %vm1270, 1, 0
        %v1463 = vsel %vm1271, 1, 0
        %v1464 = vsel %vm1272, 1, 0
        %v1465 = vsel %vm1273, 1, 0
        %v1466 = vsel %vm1274, 1, 0
        %v1467 = vsel %vm1275, 1, 0
        %v1468 = vsel %vm1276, 1, 0
        %v1469 = vsel %vm1277, 1, 0
        %v1470 = vsel %vm1278, 1, 0
        %v1471 = vsel %vm1279, 1, 0
        %v1472 = vsel %vm1280, 1, 0
        %v1473 = vsel %vm1281, 1, 0
        %v1474 = vsel %vm1282, 1, 0
        %v1475 = vsel %vm1283, 1, 0
        %v1476 = vsel %vm1284, 1, 0
        %v1477 = vsel %vm1285, 1, 0
        %v1478 = vsel %vm1286, 1, 0
        %v1479 = vsel %vm1287, 1, 0
        %v1480 = vsel %vm1288, 1, 0
        %v1481 = vsel %vm1289, 1, 0
        %v1482 = vsel %vm1290, 1, 0
        %v1483 = vsel %vm1291, 1, 0
        %v1484 = vsel %vm1292, 1, 0
        %v1485 = vsel %vm1293, 1, 0
        %v1486 = vsel %vm1294, 1, 0
        %v1487 = vsel %vm1295, 1, 0
        %v1488 = vsel %vm1296, 1, 0
        %v1489 = vsel %vm1297, 1, 0
        %v1490 = vsel %vm1298, 1, 0
        %v1491 = vsel %vm1299, 1, 0
        %v1492 = vsel %vm1300, 1, 0
        %v1493 = vsel %vm1301, 1, 0
        %v1494 = vsel %vm1302, 1, 0
        %v1495 = vsel %vm1303, 1, 0
        %v1496 = vsel %vm1304, 1, 0
        %v1497 = vsel %vm1305, 1, 0
        %v1498 = vsel %vm1306, 1, 0
        %v1499 = vsel %vm1307, 1, 0
        %v1500 = vsel %vm1308, 1, 0
        %v1501 = vsel %vm1309, 1, 0
        %v1502 = vsel %vm1310, 1, 0
        %v1503 = vsel %vm1311, 1, 0
        %v1504 = vsel %vm1312, 1, 0
        %v1505 = vsel %vm1313, 1, 0
        %v1506 = vsel %vm1314, 1, 0
        %v1507 = vsel %vm1315, 1, 0
        %v1508 = vsel %vm1316, 1, 0
        %v1509 = vsel %vm1317, 1, 0
        %v1510 = vsel %vm1318, 1, 0
        %v1511 = vsel %vm1319, 1, 0
        %v1512 = vsel %vm1320, 1, 0
        %v1513 = vsel %vm1321, 1, 0
        %v1514 = vsel %vm1322, 1, 0
        %v1515 = vsel %vm1323, 1, 0
        %v1516 = vsel %vm1324, 1, 0
        %v1517 = vsel %vm1325, 1, 0
        %v1518 = vsel %vm1326, 1, 0
        %v1519 = vsel %vm1327, 1, 0
        %v1520 = vsel %vm1328, 1, 0
        %v1521 = vsel %vm1329, 1, 0
        %v1522 = vsel %vm1330, 1, 0
        %v1523 = vsel %vm1331, 1, 0
        %v1524 = vsel %vm1332, 1, 0
        %v1525 = vsel %vm1333, 1, 0
        %v1526 = vsel %vm1334, 1, 0
        %v1527 = vadd.s32 %v759, %v1335
        %v1528 = vadd.s32 %v760, %v1336
        %v1529 = vadd.s32 %v761, %v1337
        %v1530 = vadd.s32 %v762, %v1338
        %v1531 = vadd.s32 %v763, %v1339
        %v1532 = vadd.s32 %v764, %v1340
        %v1533 = vadd.s32 %v765, %v1341
        %v1534 = vadd.s32 %v766, %v1342
        %v1535 = vadd.s32 %v767, %v1343
        %v1536 = vadd.s32 %v768, %v1344
        %v1537 = vadd.s32 %v769, %v1345
        %v1538 = vadd.s32 %v770, %v1346
        %v1539 = vadd.s32 %v771, %v1347
        %v1540 = vadd.s32 %v772, %v1348
        %v1541 = vadd.s32 %v773, %v1349
        %v1542 = vadd.s32 %v774, %v1350
        %v1543 = vadd.s32 %v775, %v1351
        %v1544 = vadd.s32 %v776, %v1352
        %v1545 = vadd.s32 %v777, %v1353
        %v1546 = vadd.s32 %v778, %v1354
        %v1547 = vadd.s32 %v779, %v1355
        %v1548 = vadd.s32 %v780, %v1356
        %v1549 = vadd.s32 %v781, %v1357
        %v1550 = vadd.s32 %v782, %v1358
        %v1551 = vadd.s32 %v783, %v1359
        %v1552 = vadd.s32 %v784, %v1360
        %v1553 = vadd.s32 %v785, %v1361
        %v1554 = vadd.s32 %v786, %v1362
        %v1555 = vadd.s32 %v787, %v1363
        %v1556 = vadd.s32 %v788, %v1364
        %v1557 = vadd.s32 %v789, %v1365
        %v1558 = vadd.s32 %v790, %v1366
        %v1559 = vadd.s32 %v791, %v1367
        %v1560 = vadd.s32 %v792, %v1368
        %v1561 = vadd.s32 %v793, %v1369
        %v1562 = vadd.s32 %v794, %v1370
        %v1563 = vadd.s32 %v795, %v1371
        %v1564 = vadd.s32 %v796, %v1372
        %v1565 = vadd.s32 %v797, %v1373
        %v1566 = vadd.s32 %v798, %v1374
        %v1567 = vadd.s32 %v799, %v1375
        %v1568 = vadd.s32 %v800, %v1376
        %v1569 = vadd.s32 %v801, %v1377
        %v1570 = vadd.s32 %v802, %v1378
        %v1571 = vadd.s32 %v803, %v1379
        %v1572 = vadd.s32 %v804, %v1380
        %v1573 = vadd.s32 %v805, %v1381
        %v1574 = vadd.s32 %v806, %v1382
        %v1575 = vadd.s32 %v807, %v1383
        %v1576 = vadd.s32 %v808, %v1384
        %v1577 = vadd.s32 %v809, %v1385
        %v1578 = vadd.s32 %v810, %v1386
        %v1579 = vadd.s32 %v811, %v1387
        %v1580 = vadd.s32 %v812, %v1388
        %v1581 = vadd.s32 %v813, %v1389
        %v1582 = vadd.s32 %v814, %v1390
        %v1583 = vadd.s32 %v815, %v1391
        %v1584 = vadd.s32 %v816, %v1392
        %v1585 = vadd.s32 %v817, %v1393
        %v1586 = vadd.s32 %v818, %v1394
        %v1587 = vadd.s32 %v819, %v1395
        %v1588 = vadd.s32 %v820, %v1396
        %v1589 = vadd.s32 %v821, %v1397
        %v1590 = vadd.s32 %v822, %v1398
        %v1591 = vadd.s32 %v823, %v1399
        %v1592 = vadd.s32 %v824, %v1400
        %v1593 = vadd.s32 %v825, %v1401
        %v1594 = vadd.s32 %v826, %v1402
        %v1595 = vadd.s32 %v827, %v1403
        %v1596 = vadd.s32 %v828, %v1404
        %v1597 = vadd.s32 %v829, %v1405
        %v1598 = vadd.s32 %v830, %v1406
        %v1599 = vadd.s32 %v831, %v1407
        %v1600 = vadd.s32 %v832, %v1408
        %v1601 = vadd.s32 %v833, %v1409
        %v1602 = vadd.s32 %v834, %v1410
        %v1603 = vadd.s32 %v835, %v1411
        %v1604 = vadd.s32 %v836, %v1412
        %v1605 = vadd.s32 %v837, %v1413
        %v1606 = vadd.s32 %v838, %v1414
        %v1607 = vadd.s32 %v839, %v1415
        %v1608 = vadd.s32 %v840, %v1416
        %v1609 = vadd.s32 %v841, %v1417
        %v1610 = vadd.s32 %v842, %v1418
        %v1611 = vadd.s32 %v843, %v1419
        %v1612 = vadd.s32 %v844, %v1420
        %v1613 = vadd.s32 %v845, %v1421
        %v1614 = vadd.s32 %v846, %v1422
        %v1615 = vadd.s32 %v847, %v1423
        %v1616 = vadd.s32 %v848, %v1424
        %v1617 = vadd.s32 %v849, %v1425
        %v1618 = vadd.s32 %v850, %v1426
        %v1619 = vadd.s32 %v851, %v1427
        %v1620 = vadd.s32 %v852, %v1428
        %v1621 = vadd.s32 %v853, %v1429
        %v1622 = vadd.s32 %v854, %v1430
        %v1623 = vadd.s32 %v855, %v1431
        %v1624 = vadd.s32 %v856, %v1432
        %v1625 = vadd.s32 %v857, %v1433
        %v1626 = vadd.s32 %v858, %v1434
        %v1627 = vadd.s32 %v859, %v1435
        %v1628 = vadd.s32 %v860, %v1436
        %v1629 = vadd.s32 %v861, %v1437
        %v1630 = vadd.s32 %v862, %v1438
        %v1631 = vadd.s32 %v863, %v1439
        %v1632 = vadd.s32 %v864, %v1440
        %v1633 = vadd.s32 %v865, %v1441
        %v1634 = vadd.s32 %v866, %v1442
        %v1635 = vadd.s32 %v867, %v1443
        %v1636 = vadd.s32 %v868, %v1444
        %v1637 = vadd.s32 %v869, %v1445
        %v1638 = vadd.s32 %v870, %v1446
        %v1639 = vadd.s32 %v871, %v1447
        %v1640 = vadd.s32 %v872, %v1448
        %v1641 = vadd.s32 %v873, %v1449
        %v1642 = vadd.s32 %v874, %v1450
        %v1643 = vadd.s32 %v875, %v1451
        %v1644 = vadd.s32 %v876, %v1452
        %v1645 = vadd.s32 %v877, %v1453
        %v1646 = vadd.s32 %v878, %v1454
        %v1647 = vadd.s32 %v879, %v1455
        %v1648 = vadd.s32 %v880, %v1456
        %v1649 = vadd.s32 %v881, %v1457
        %v1650 = vadd.s32 %v882, %v1458
        %v1651 = vadd.s32 %v883, %v1459
        %v1652 = vadd.s32 %v884, %v1460
        %v1653 = vadd.s32 %v885, %v1461
        %v1654 = vadd.s32 %v886, %v1462
        %v1655 = vadd.s32 %v887, %v1463
        %v1656 = vadd.s32 %v888, %v1464
        %v1657 = vadd.s32 %v889, %v1465
        %v1658 = vadd.s32 %v890, %v1466
        %v1659 = vadd.s32 %v891, %v1467
        %v1660 = vadd.s32 %v892, %v1468
        %v1661 = vadd.s32 %v893, %v1469
        %v1662 = vadd.s32 %v894, %v1470
        %v1663 = vadd.s32 %v895, %v1471
        %v1664 = vadd.s32 %v896, %v1472
        %v1665 = vadd.s32 %v897, %v1473
        %v1666 = vadd.s32 %v898, %v1474
        %v1667 = vadd.s32 %v899, %v1475
        %v1668 = vadd.s32 %v900, %v1476
        %v1669 = vadd.s32 %v901, %v1477
        %v1670 = vadd.s32 %v902, %v1478
        %v1671 = vadd.s32 %v903, %v1479
        %v1672 = vadd.s32 %v904, %v1480
        %v1673 = vadd.s32 %v905, %v1481
        %v1674 = vadd.s32 %v906, %v1482
        %v1675 = vadd.s32 %v907, %v1483
        %v1676 = vadd.s32 %v908, %v1484
        %v1677 = vadd.s32 %v909, %v1485
        %v1678 = vadd.s32 %v910, %v1486
        %v1679 = vadd.s32 %v911, %v1487
        %v1680 = vadd.s32 %v912, %v1488
        %v1681 = vadd.s32 %v913, %v1489
        %v1682 = vadd.s32 %v914, %v1490
        %v1683 = vadd.s32 %v915, %v1491
        %v1684 = vadd.s32 %v916, %v1492
        %v1685 = vadd.s32 %v917, %v1493
        %v1686 = vadd.s32 %v918, %v1494
        %v1687 = vadd.s32 %v919, %v1495
        %v1688 = vadd.s32 %v920, %v1496
        %v1689 = vadd.s32 %v921, %v1497
        %v1690 = vadd.s32 %v922, %v1498
        %v1691 = vadd.s32 %v923, %v1499
        %v1692 = vadd.s32 %v924, %v1500
        %v1693 = vadd.s32 %v925, %v1501
        %v1694 = vadd.s32 %v926, %v1502
        %v1695 = vadd.s32 %v927, %v1503
        %v1696 = vadd.s32 %v928, %v1504
        %v1697 = vadd.s32 %v929, %v1505
        %v1698 = vadd.s32 %v930, %v1506
        %v1699 = vadd.s32 %v931, %v1507
        %v1700 = vadd.s32 %v932, %v1508
        %v1701 = vadd.s32 %v933, %v1509
        %v1702 = vadd.s32 %v934, %v1510
        %v1703 = vadd.s32 %v935, %v1511
        %v1704 = vadd.s32 %v936, %v1512
        %v1705 = vadd.s32 %v937, %v1513
        %v1706 = vadd.s32 %v938, %v1514
        %v1707 = vadd.s32 %v939, %v1515
        %v1708 = vadd.s32 %v940, %v1516
        %v1709 = vadd.s32 %v941, %v1517
        %v1710 = vadd.s32 %v942, %v1518
        %v1711 = vadd.s32 %v943, %v1519
        %v1712 = vadd.s32 %v944, %v1520
        %v1713 = vadd.s32 %v945, %v1521
        %v1714 = vadd.s32 %v946, %v1522
        %v1715 = vadd.s32 %v947, %v1523
        %v1716 = vadd.s32 %v948, %v1524
        %v1717 = vadd.s32 %v949, %v1525
        %v1718 = vadd.s32 %v950, %v1526
        %1719 = vset.pattern.permute.xlu0 3
        %1720 = vperm.xlu0 %1719, %v307
        %v1721 = vpop.permute.xlu0 %1720
        %1722 = vset.pattern.permute.xlu0 3
        %1723 = vperm.xlu0 %1722, %v308
        %v1724 = vpop.permute.xlu0 %1723
        %1725 = vset.pattern.permute.xlu0 3
        %1726 = vperm.xlu0 %1725, %v309
        %v1727 = vpop.permute.xlu0 %1726
        %1728 = vset.pattern.permute.xlu0 3
        %1729 = vperm.xlu0 %1728, %v310
        %v1730 = vpop.permute.xlu0 %1729
        %1731 = vset.pattern.permute.xlu0 3
        %1732 = vperm.xlu0 %1731, %v311
        %v1733 = vpop.permute.xlu0 %1732
        %1734 = vset.pattern.permute.xlu0 3
        %1735 = vperm.xlu0 %1734, %v312
        %v1736 = vpop.permute.xlu0 %1735
        %1737 = vset.pattern.permute.xlu0 3
        %1738 = vperm.xlu0 %1737, %v313
        %v1739 = vpop.permute.xlu0 %1738
        %1740 = vset.pattern.permute.xlu0 3
        %1741 = vperm.xlu0 %1740, %v314
        %v1742 = vpop.permute.xlu0 %1741
        %1743 = vset.pattern.permute.xlu0 3
        %1744 = vperm.xlu0 %1743, %v315
        %v1745 = vpop.permute.xlu0 %1744
        %1746 = vset.pattern.permute.xlu0 3
        %1747 = vperm.xlu0 %1746, %v316
        %v1748 = vpop.permute.xlu0 %1747
        %1749 = vset.pattern.permute.xlu0 3
        %1750 = vperm.xlu0 %1749, %v317
        %v1751 = vpop.permute.xlu0 %1750
        %1752 = vset.pattern.permute.xlu0 3
        %1753 = vperm.xlu0 %1752, %v318
        %v1754 = vpop.permute.xlu0 %1753
        %1755 = vset.pattern.permute.xlu0 3
        %1756 = vperm.xlu0 %1755, %v319
        %v1757 = vpop.permute.xlu0 %1756
        %1758 = vset.pattern.permute.xlu0 3
        %1759 = vperm.xlu0 %1758, %v320
        %v1760 = vpop.permute.xlu0 %1759
        %1761 = vset.pattern.permute.xlu0 3
        %1762 = vperm.xlu0 %1761, %v321
        %v1763 = vpop.permute.xlu0 %1762
        %1764 = vset.pattern.permute.xlu0 3
        %1765 = vperm.xlu0 %1764, %v322
        %v1766 = vpop.permute.xlu0 %1765
        %1767 = vset.pattern.permute.xlu0 3
        %1768 = vperm.xlu0 %1767, %v323
        %v1769 = vpop.permute.xlu0 %1768
        %1770 = vset.pattern.permute.xlu0 3
        %1771 = vperm.xlu0 %1770, %v324
        %v1772 = vpop.permute.xlu0 %1771
        %1773 = vset.pattern.permute.xlu0 3
        %1774 = vperm.xlu0 %1773, %v325
        %v1775 = vpop.permute.xlu0 %1774
        %1776 = vset.pattern.permute.xlu0 3
        %1777 = vperm.xlu0 %1776, %v326
        %v1778 = vpop.permute.xlu0 %1777
        %1779 = vset.pattern.permute.xlu0 3
        %1780 = vperm.xlu0 %1779, %v327
        %v1781 = vpop.permute.xlu0 %1780
        %1782 = vset.pattern.permute.xlu0 3
        %1783 = vperm.xlu0 %1782, %v328
        %v1784 = vpop.permute.xlu0 %1783
        %1785 = vset.pattern.permute.xlu0 3
        %1786 = vperm.xlu0 %1785, %v329
        %v1787 = vpop.permute.xlu0 %1786
        %1788 = vset.pattern.permute.xlu0 3
        %1789 = vperm.xlu0 %1788, %v330
        %v1790 = vpop.permute.xlu0 %1789
        %1791 = vset.pattern.permute.xlu0 3
        %1792 = vperm.xlu0 %1791, %v331
        %v1793 = vpop.permute.xlu0 %1792
        %1794 = vset.pattern.permute.xlu0 3
        %1795 = vperm.xlu0 %1794, %v332
        %v1796 = vpop.permute.xlu0 %1795
        %1797 = vset.pattern.permute.xlu0 3
        %1798 = vperm.xlu0 %1797, %v333
        %v1799 = vpop.permute.xlu0 %1798
        %1800 = vset.pattern.permute.xlu0 3
        %1801 = vperm.xlu0 %1800, %v334
        %v1802 = vpop.permute.xlu0 %1801
        %1803 = vset.pattern.permute.xlu0 3
        %1804 = vperm.xlu0 %1803, %v335
        %v1805 = vpop.permute.xlu0 %1804
        %1806 = vset.pattern.permute.xlu0 3
        %1807 = vperm.xlu0 %1806, %v336
        %v1808 = vpop.permute.xlu0 %1807
        %1809 = vset.pattern.permute.xlu0 3
        %1810 = vperm.xlu0 %1809, %v337
        %v1811 = vpop.permute.xlu0 %1810
        %1812 = vset.pattern.permute.xlu0 3
        %1813 = vperm.xlu0 %1812, %v338
        %v1814 = vpop.permute.xlu0 %1813
        %1815 = vset.pattern.permute.xlu0 3
        %1816 = vperm.xlu0 %1815, %v339
        %v1817 = vpop.permute.xlu0 %1816
        %1818 = vset.pattern.permute.xlu0 3
        %1819 = vperm.xlu0 %1818, %v340
        %v1820 = vpop.permute.xlu0 %1819
        %1821 = vset.pattern.permute.xlu0 3
        %1822 = vperm.xlu0 %1821, %v341
        %v1823 = vpop.permute.xlu0 %1822
        %1824 = vset.pattern.permute.xlu0 3
        %1825 = vperm.xlu0 %1824, %v342
        %v1826 = vpop.permute.xlu0 %1825
        %1827 = vset.pattern.permute.xlu0 3
        %1828 = vperm.xlu0 %1827, %v343
        %v1829 = vpop.permute.xlu0 %1828
        %1830 = vset.pattern.permute.xlu0 3
        %1831 = vperm.xlu0 %1830, %v344
        %v1832 = vpop.permute.xlu0 %1831
        %1833 = vset.pattern.permute.xlu0 3
        %1834 = vperm.xlu0 %1833, %v345
        %v1835 = vpop.permute.xlu0 %1834
        %1836 = vset.pattern.permute.xlu0 3
        %1837 = vperm.xlu0 %1836, %v346
        %v1838 = vpop.permute.xlu0 %1837
        %1839 = vset.pattern.permute.xlu0 3
        %1840 = vperm.xlu0 %1839, %v347
        %v1841 = vpop.permute.xlu0 %1840
        %1842 = vset.pattern.permute.xlu0 3
        %1843 = vperm.xlu0 %1842, %v348
        %v1844 = vpop.permute.xlu0 %1843
        %1845 = vset.pattern.permute.xlu0 3
        %1846 = vperm.xlu0 %1845, %v349
        %v1847 = vpop.permute.xlu0 %1846
        %1848 = vset.pattern.permute.xlu0 3
        %1849 = vperm.xlu0 %1848, %v350
        %v1850 = vpop.permute.xlu0 %1849
        %1851 = vset.pattern.permute.xlu0 3
        %1852 = vperm.xlu0 %1851, %v351
        %v1853 = vpop.permute.xlu0 %1852
        %1854 = vset.pattern.permute.xlu0 3
        %1855 = vperm.xlu0 %1854, %v352
        %v1856 = vpop.permute.xlu0 %1855
        %1857 = vset.pattern.permute.xlu0 3
        %1858 = vperm.xlu0 %1857, %v353
        %v1859 = vpop.permute.xlu0 %1858
        %1860 = vset.pattern.permute.xlu0 3
        %1861 = vperm.xlu0 %1860, %v354
        %v1862 = vpop.permute.xlu0 %1861
        %1863 = vset.pattern.permute.xlu0 3
        %1864 = vperm.xlu0 %1863, %v355
        %v1865 = vpop.permute.xlu0 %1864
        %1866 = vset.pattern.permute.xlu0 3
        %1867 = vperm.xlu0 %1866, %v356
        %v1868 = vpop.permute.xlu0 %1867
        %1869 = vset.pattern.permute.xlu0 3
        %1870 = vperm.xlu0 %1869, %v357
        %v1871 = vpop.permute.xlu0 %1870
        %1872 = vset.pattern.permute.xlu0 3
        %1873 = vperm.xlu0 %1872, %v358
        %v1874 = vpop.permute.xlu0 %1873
        %1875 = vset.pattern.permute.xlu0 3
        %1876 = vperm.xlu0 %1875, %v359
        %v1877 = vpop.permute.xlu0 %1876
        %1878 = vset.pattern.permute.xlu0 3
        %1879 = vperm.xlu0 %1878, %v360
        %v1880 = vpop.permute.xlu0 %1879
        %1881 = vset.pattern.permute.xlu0 3
        %1882 = vperm.xlu0 %1881, %v361
        %v1883 = vpop.permute.xlu0 %1882
        %1884 = vset.pattern.permute.xlu0 3
        %1885 = vperm.xlu0 %1884, %v362
        %v1886 = vpop.permute.xlu0 %1885
        %1887 = vset.pattern.permute.xlu0 3
        %1888 = vperm.xlu0 %1887, %v363
        %v1889 = vpop.permute.xlu0 %1888
        %1890 = vset.pattern.permute.xlu0 3
        %1891 = vperm.xlu0 %1890, %v364
        %v1892 = vpop.permute.xlu0 %1891
        %1893 = vset.pattern.permute.xlu0 3
        %1894 = vperm.xlu0 %1893, %v365
        %v1895 = vpop.permute.xlu0 %1894
        %1896 = vset.pattern.permute.xlu0 3
        %1897 = vperm.xlu0 %1896, %v366
        %v1898 = vpop.permute.xlu0 %1897
        %1899 = vset.pattern.permute.xlu0 3
        %1900 = vperm.xlu0 %1899, %v367
        %v1901 = vpop.permute.xlu0 %1900
        %1902 = vset.pattern.permute.xlu0 3
        %1903 = vperm.xlu0 %1902, %v368
        %v1904 = vpop.permute.xlu0 %1903
        %1905 = vset.pattern.permute.xlu0 3
        %1906 = vperm.xlu0 %1905, %v369
        %v1907 = vpop.permute.xlu0 %1906
        %1908 = vset.pattern.permute.xlu0 3
        %1909 = vperm.xlu0 %1908, %v370
        %v1910 = vpop.permute.xlu0 %1909
        %vm1911 = vcmp.eq.s32.totalorder %v372, %v1721
        %vm1912 = vcmp.eq.s32.totalorder %v373, %v1721
        %vm1913 = vcmp.eq.s32.totalorder %v374, %v1721
        %vm1914 = vcmp.eq.s32.totalorder %v372, %v1724
        %vm1915 = vcmp.eq.s32.totalorder %v373, %v1724
        %vm1916 = vcmp.eq.s32.totalorder %v374, %v1724
        %vm1917 = vcmp.eq.s32.totalorder %v372, %v1727
        %vm1918 = vcmp.eq.s32.totalorder %v373, %v1727
        %vm1919 = vcmp.eq.s32.totalorder %v374, %v1727
        %vm1920 = vcmp.eq.s32.totalorder %v372, %v1730
        %vm1921 = vcmp.eq.s32.totalorder %v373, %v1730
        %vm1922 = vcmp.eq.s32.totalorder %v374, %v1730
        %vm1923 = vcmp.eq.s32.totalorder %v372, %v1733
        %vm1924 = vcmp.eq.s32.totalorder %v373, %v1733
        %vm1925 = vcmp.eq.s32.totalorder %v374, %v1733
        %vm1926 = vcmp.eq.s32.totalorder %v372, %v1736
        %vm1927 = vcmp.eq.s32.totalorder %v373, %v1736
        %vm1928 = vcmp.eq.s32.totalorder %v374, %v1736
        %vm1929 = vcmp.eq.s32.totalorder %v372, %v1739
        %vm1930 = vcmp.eq.s32.totalorder %v373, %v1739
        %vm1931 = vcmp.eq.s32.totalorder %v374, %v1739
        %vm1932 = vcmp.eq.s32.totalorder %v372, %v1742
        %vm1933 = vcmp.eq.s32.totalorder %v373, %v1742
        %vm1934 = vcmp.eq.s32.totalorder %v374, %v1742
        %vm1935 = vcmp.eq.s32.totalorder %v372, %v1745
        %vm1936 = vcmp.eq.s32.totalorder %v373, %v1745
        %vm1937 = vcmp.eq.s32.totalorder %v374, %v1745
        %vm1938 = vcmp.eq.s32.totalorder %v372, %v1748
        %vm1939 = vcmp.eq.s32.totalorder %v373, %v1748
        %vm1940 = vcmp.eq.s32.totalorder %v374, %v1748
        %vm1941 = vcmp.eq.s32.totalorder %v372, %v1751
        %vm1942 = vcmp.eq.s32.totalorder %v373, %v1751
        %vm1943 = vcmp.eq.s32.totalorder %v374, %v1751
        %vm1944 = vcmp.eq.s32.totalorder %v372, %v1754
        %vm1945 = vcmp.eq.s32.totalorder %v373, %v1754
        %vm1946 = vcmp.eq.s32.totalorder %v374, %v1754
        %vm1947 = vcmp.eq.s32.totalorder %v372, %v1757
        %vm1948 = vcmp.eq.s32.totalorder %v373, %v1757
        %vm1949 = vcmp.eq.s32.totalorder %v374, %v1757
        %vm1950 = vcmp.eq.s32.totalorder %v372, %v1760
        %vm1951 = vcmp.eq.s32.totalorder %v373, %v1760
        %vm1952 = vcmp.eq.s32.totalorder %v374, %v1760
        %vm1953 = vcmp.eq.s32.totalorder %v372, %v1763
        %vm1954 = vcmp.eq.s32.totalorder %v373, %v1763
        %vm1955 = vcmp.eq.s32.totalorder %v374, %v1763
        %vm1956 = vcmp.eq.s32.totalorder %v372, %v1766
        %vm1957 = vcmp.eq.s32.totalorder %v373, %v1766
        %vm1958 = vcmp.eq.s32.totalorder %v374, %v1766
        %vm1959 = vcmp.eq.s32.totalorder %v372, %v1769
        %vm1960 = vcmp.eq.s32.totalorder %v373, %v1769
        %vm1961 = vcmp.eq.s32.totalorder %v374, %v1769
        %vm1962 = vcmp.eq.s32.totalorder %v372, %v1772
        %vm1963 = vcmp.eq.s32.totalorder %v373, %v1772
        %vm1964 = vcmp.eq.s32.totalorder %v374, %v1772
        %vm1965 = vcmp.eq.s32.totalorder %v372, %v1775
        %vm1966 = vcmp.eq.s32.totalorder %v373, %v1775
        %vm1967 = vcmp.eq.s32.totalorder %v374, %v1775
        %vm1968 = vcmp.eq.s32.totalorder %v372, %v1778
        %vm1969 = vcmp.eq.s32.totalorder %v373, %v1778
        %vm1970 = vcmp.eq.s32.totalorder %v374, %v1778
        %vm1971 = vcmp.eq.s32.totalorder %v372, %v1781
        %vm1972 = vcmp.eq.s32.totalorder %v373, %v1781
        %vm1973 = vcmp.eq.s32.totalorder %v374, %v1781
        %vm1974 = vcmp.eq.s32.totalorder %v372, %v1784
        %vm1975 = vcmp.eq.s32.totalorder %v373, %v1784
        %vm1976 = vcmp.eq.s32.totalorder %v374, %v1784
        %vm1977 = vcmp.eq.s32.totalorder %v372, %v1787
        %vm1978 = vcmp.eq.s32.totalorder %v373, %v1787
        %vm1979 = vcmp.eq.s32.totalorder %v374, %v1787
        %vm1980 = vcmp.eq.s32.totalorder %v372, %v1790
        %vm1981 = vcmp.eq.s32.totalorder %v373, %v1790
        %vm1982 = vcmp.eq.s32.totalorder %v374, %v1790
        %vm1983 = vcmp.eq.s32.totalorder %v372, %v1793
        %vm1984 = vcmp.eq.s32.totalorder %v373, %v1793
        %vm1985 = vcmp.eq.s32.totalorder %v374, %v1793
        %vm1986 = vcmp.eq.s32.totalorder %v372, %v1796
        %vm1987 = vcmp.eq.s32.totalorder %v373, %v1796
        %vm1988 = vcmp.eq.s32.totalorder %v374, %v1796
        %vm1989 = vcmp.eq.s32.totalorder %v372, %v1799
        %vm1990 = vcmp.eq.s32.totalorder %v373, %v1799
        %vm1991 = vcmp.eq.s32.totalorder %v374, %v1799
        %vm1992 = vcmp.eq.s32.totalorder %v372, %v1802
        %vm1993 = vcmp.eq.s32.totalorder %v373, %v1802
        %vm1994 = vcmp.eq.s32.totalorder %v374, %v1802
        %vm1995 = vcmp.eq.s32.totalorder %v372, %v1805
        %vm1996 = vcmp.eq.s32.totalorder %v373, %v1805
        %vm1997 = vcmp.eq.s32.totalorder %v374, %v1805
        %vm1998 = vcmp.eq.s32.totalorder %v372, %v1808
        %vm1999 = vcmp.eq.s32.totalorder %v373, %v1808
        %vm2000 = vcmp.eq.s32.totalorder %v374, %v1808
        %vm2001 = vcmp.eq.s32.totalorder %v372, %v1811
        %vm2002 = vcmp.eq.s32.totalorder %v373, %v1811
        %vm2003 = vcmp.eq.s32.totalorder %v374, %v1811
        %vm2004 = vcmp.eq.s32.totalorder %v372, %v1814
        %vm2005 = vcmp.eq.s32.totalorder %v373, %v1814
        %vm2006 = vcmp.eq.s32.totalorder %v374, %v1814
        %vm2007 = vcmp.eq.s32.totalorder %v372, %v1817
        %vm2008 = vcmp.eq.s32.totalorder %v373, %v1817
        %vm2009 = vcmp.eq.s32.totalorder %v374, %v1817
        %vm2010 = vcmp.eq.s32.totalorder %v372, %v1820
        %vm2011 = vcmp.eq.s32.totalorder %v373, %v1820
        %vm2012 = vcmp.eq.s32.totalorder %v374, %v1820
        %vm2013 = vcmp.eq.s32.totalorder %v372, %v1823
        %vm2014 = vcmp.eq.s32.totalorder %v373, %v1823
        %vm2015 = vcmp.eq.s32.totalorder %v374, %v1823
        %vm2016 = vcmp.eq.s32.totalorder %v372, %v1826
        %vm2017 = vcmp.eq.s32.totalorder %v373, %v1826
        %vm2018 = vcmp.eq.s32.totalorder %v374, %v1826
        %vm2019 = vcmp.eq.s32.totalorder %v372, %v1829
        %vm2020 = vcmp.eq.s32.totalorder %v373, %v1829
        %vm2021 = vcmp.eq.s32.totalorder %v374, %v1829
        %vm2022 = vcmp.eq.s32.totalorder %v372, %v1832
        %vm2023 = vcmp.eq.s32.totalorder %v373, %v1832
        %vm2024 = vcmp.eq.s32.totalorder %v374, %v1832
        %vm2025 = vcmp.eq.s32.totalorder %v372, %v1835
        %vm2026 = vcmp.eq.s32.totalorder %v373, %v1835
        %vm2027 = vcmp.eq.s32.totalorder %v374, %v1835
        %vm2028 = vcmp.eq.s32.totalorder %v372, %v1838
        %vm2029 = vcmp.eq.s32.totalorder %v373, %v1838
        %vm2030 = vcmp.eq.s32.totalorder %v374, %v1838
        %vm2031 = vcmp.eq.s32.totalorder %v372, %v1841
        %vm2032 = vcmp.eq.s32.totalorder %v373, %v1841
        %vm2033 = vcmp.eq.s32.totalorder %v374, %v1841
        %vm2034 = vcmp.eq.s32.totalorder %v372, %v1844
        %vm2035 = vcmp.eq.s32.totalorder %v373, %v1844
        %vm2036 = vcmp.eq.s32.totalorder %v374, %v1844
        %vm2037 = vcmp.eq.s32.totalorder %v372, %v1847
        %vm2038 = vcmp.eq.s32.totalorder %v373, %v1847
        %vm2039 = vcmp.eq.s32.totalorder %v374, %v1847
        %vm2040 = vcmp.eq.s32.totalorder %v372, %v1850
        %vm2041 = vcmp.eq.s32.totalorder %v373, %v1850
        %vm2042 = vcmp.eq.s32.totalorder %v374, %v1850
        %vm2043 = vcmp.eq.s32.totalorder %v372, %v1853
        %vm2044 = vcmp.eq.s32.totalorder %v373, %v1853
        %vm2045 = vcmp.eq.s32.totalorder %v374, %v1853
        %vm2046 = vcmp.eq.s32.totalorder %v372, %v1856
        %vm2047 = vcmp.eq.s32.totalorder %v373, %v1856
        %vm2048 = vcmp.eq.s32.totalorder %v374, %v1856
        %vm2049 = vcmp.eq.s32.totalorder %v372, %v1859
        %vm2050 = vcmp.eq.s32.totalorder %v373, %v1859
        %vm2051 = vcmp.eq.s32.totalorder %v374, %v1859
        %vm2052 = vcmp.eq.s32.totalorder %v372, %v1862
        %vm2053 = vcmp.eq.s32.totalorder %v373, %v1862
        %vm2054 = vcmp.eq.s32.totalorder %v374, %v1862
        %vm2055 = vcmp.eq.s32.totalorder %v372, %v1865
        %vm2056 = vcmp.eq.s32.totalorder %v373, %v1865
        %vm2057 = vcmp.eq.s32.totalorder %v374, %v1865
        %vm2058 = vcmp.eq.s32.totalorder %v372, %v1868
        %vm2059 = vcmp.eq.s32.totalorder %v373, %v1868
        %vm2060 = vcmp.eq.s32.totalorder %v374, %v1868
        %vm2061 = vcmp.eq.s32.totalorder %v372, %v1871
        %vm2062 = vcmp.eq.s32.totalorder %v373, %v1871
        %vm2063 = vcmp.eq.s32.totalorder %v374, %v1871
        %vm2064 = vcmp.eq.s32.totalorder %v372, %v1874
        %vm2065 = vcmp.eq.s32.totalorder %v373, %v1874
        %vm2066 = vcmp.eq.s32.totalorder %v374, %v1874
        %vm2067 = vcmp.eq.s32.totalorder %v372, %v1877
        %vm2068 = vcmp.eq.s32.totalorder %v373, %v1877
        %vm2069 = vcmp.eq.s32.totalorder %v374, %v1877
        %vm2070 = vcmp.eq.s32.totalorder %v372, %v1880
        %vm2071 = vcmp.eq.s32.totalorder %v373, %v1880
        %vm2072 = vcmp.eq.s32.totalorder %v374, %v1880
        %vm2073 = vcmp.eq.s32.totalorder %v372, %v1883
        %vm2074 = vcmp.eq.s32.totalorder %v373, %v1883
        %vm2075 = vcmp.eq.s32.totalorder %v374, %v1883
        %vm2076 = vcmp.eq.s32.totalorder %v372, %v1886
        %vm2077 = vcmp.eq.s32.totalorder %v373, %v1886
        %vm2078 = vcmp.eq.s32.totalorder %v374, %v1886
        %vm2079 = vcmp.eq.s32.totalorder %v372, %v1889
        %vm2080 = vcmp.eq.s32.totalorder %v373, %v1889
        %vm2081 = vcmp.eq.s32.totalorder %v374, %v1889
        %vm2082 = vcmp.eq.s32.totalorder %v372, %v1892
        %vm2083 = vcmp.eq.s32.totalorder %v373, %v1892
        %vm2084 = vcmp.eq.s32.totalorder %v374, %v1892
        %vm2085 = vcmp.eq.s32.totalorder %v372, %v1895
        %vm2086 = vcmp.eq.s32.totalorder %v373, %v1895
        %vm2087 = vcmp.eq.s32.totalorder %v374, %v1895
        %vm2088 = vcmp.eq.s32.totalorder %v372, %v1898
        %vm2089 = vcmp.eq.s32.totalorder %v373, %v1898
        %vm2090 = vcmp.eq.s32.totalorder %v374, %v1898
        %vm2091 = vcmp.eq.s32.totalorder %v372, %v1901
        %vm2092 = vcmp.eq.s32.totalorder %v373, %v1901
        %vm2093 = vcmp.eq.s32.totalorder %v374, %v1901
        %vm2094 = vcmp.eq.s32.totalorder %v372, %v1904
        %vm2095 = vcmp.eq.s32.totalorder %v373, %v1904
        %vm2096 = vcmp.eq.s32.totalorder %v374, %v1904
        %vm2097 = vcmp.eq.s32.totalorder %v372, %v1907
        %vm2098 = vcmp.eq.s32.totalorder %v373, %v1907
        %vm2099 = vcmp.eq.s32.totalorder %v374, %v1907
        %vm2100 = vcmp.eq.s32.totalorder %v372, %v1910
        %vm2101 = vcmp.eq.s32.totalorder %v373, %v1910
        %vm2102 = vcmp.eq.s32.totalorder %v374, %v1910
        %v2103 = vsel %vm1911, 1, 0
        %v2104 = vsel %vm1912, 1, 0
        %v2105 = vsel %vm1913, 1, 0
        %v2106 = vsel %vm1914, 1, 0
        %v2107 = vsel %vm1915, 1, 0
        %v2108 = vsel %vm1916, 1, 0
        %v2109 = vsel %vm1917, 1, 0
        %v2110 = vsel %vm1918, 1, 0
        %v2111 = vsel %vm1919, 1, 0
        %v2112 = vsel %vm1920, 1, 0
        %v2113 = vsel %vm1921, 1, 0
        %v2114 = vsel %vm1922, 1, 0
        %v2115 = vsel %vm1923, 1, 0
        %v2116 = vsel %vm1924, 1, 0
        %v2117 = vsel %vm1925, 1, 0
        %v2118 = vsel %vm1926, 1, 0
        %v2119 = vsel %vm1927, 1, 0
        %v2120 = vsel %vm1928, 1, 0
        %v2121 = vsel %vm1929, 1, 0
        %v2122 = vsel %vm1930, 1, 0
        %v2123 = vsel %vm1931, 1, 0
        %v2124 = vsel %vm1932, 1, 0
        %v2125 = vsel %vm1933, 1, 0
        %v2126 = vsel %vm1934, 1, 0
        %v2127 = vsel %vm1935, 1, 0
        %v2128 = vsel %vm1936, 1, 0
        %v2129 = vsel %vm1937, 1, 0
        %v2130 = vsel %vm1938, 1, 0
        %v2131 = vsel %vm1939, 1, 0
        %v2132 = vsel %vm1940, 1, 0
        %v2133 = vsel %vm1941, 1, 0
        %v2134 = vsel %vm1942, 1, 0
        %v2135 = vsel %vm1943, 1, 0
        %v2136 = vsel %vm1944, 1, 0
        %v2137 = vsel %vm1945, 1, 0
        %v2138 = vsel %vm1946, 1, 0
        %v2139 = vsel %vm1947, 1, 0
        %v2140 = vsel %vm1948, 1, 0
        %v2141 = vsel %vm1949, 1, 0
        %v2142 = vsel %vm1950, 1, 0
        %v2143 = vsel %vm1951, 1, 0
        %v2144 = vsel %vm1952, 1, 0
        %v2145 = vsel %vm1953, 1, 0
        %v2146 = vsel %vm1954, 1, 0
        %v2147 = vsel %vm1955, 1, 0
        %v2148 = vsel %vm1956, 1, 0
        %v2149 = vsel %vm1957, 1, 0
        %v2150 = vsel %vm1958, 1, 0
        %v2151 = vsel %vm1959, 1, 0
        %v2152 = vsel %vm1960, 1, 0
        %v2153 = vsel %vm1961, 1, 0
        %v2154 = vsel %vm1962, 1, 0
        %v2155 = vsel %vm1963, 1, 0
        %v2156 = vsel %vm1964, 1, 0
        %v2157 = vsel %vm1965, 1, 0
        %v2158 = vsel %vm1966, 1, 0
        %v2159 = vsel %vm1967, 1, 0
        %v2160 = vsel %vm1968, 1, 0
        %v2161 = vsel %vm1969, 1, 0
        %v2162 = vsel %vm1970, 1, 0
        %v2163 = vsel %vm1971, 1, 0
        %v2164 = vsel %vm1972, 1, 0
        %v2165 = vsel %vm1973, 1, 0
        %v2166 = vsel %vm1974, 1, 0
        %v2167 = vsel %vm1975, 1, 0
        %v2168 = vsel %vm1976, 1, 0
        %v2169 = vsel %vm1977, 1, 0
        %v2170 = vsel %vm1978, 1, 0
        %v2171 = vsel %vm1979, 1, 0
        %v2172 = vsel %vm1980, 1, 0
        %v2173 = vsel %vm1981, 1, 0
        %v2174 = vsel %vm1982, 1, 0
        %v2175 = vsel %vm1983, 1, 0
        %v2176 = vsel %vm1984, 1, 0
        %v2177 = vsel %vm1985, 1, 0
        %v2178 = vsel %vm1986, 1, 0
        %v2179 = vsel %vm1987, 1, 0
        %v2180 = vsel %vm1988, 1, 0
        %v2181 = vsel %vm1989, 1, 0
        %v2182 = vsel %vm1990, 1, 0
        %v2183 = vsel %vm1991, 1, 0
        %v2184 = vsel %vm1992, 1, 0
        %v2185 = vsel %vm1993, 1, 0
        %v2186 = vsel %vm1994, 1, 0
        %v2187 = vsel %vm1995, 1, 0
        %v2188 = vsel %vm1996, 1, 0
        %v2189 = vsel %vm1997, 1, 0
        %v2190 = vsel %vm1998, 1, 0
        %v2191 = vsel %vm1999, 1, 0
        %v2192 = vsel %vm2000, 1, 0
        %v2193 = vsel %vm2001, 1, 0
        %v2194 = vsel %vm2002, 1, 0
        %v2195 = vsel %vm2003, 1, 0
        %v2196 = vsel %vm2004, 1, 0
        %v2197 = vsel %vm2005, 1, 0
        %v2198 = vsel %vm2006, 1, 0
        %v2199 = vsel %vm2007, 1, 0
        %v2200 = vsel %vm2008, 1, 0
        %v2201 = vsel %vm2009, 1, 0
        %v2202 = vsel %vm2010, 1, 0
        %v2203 = vsel %vm2011, 1, 0
        %v2204 = vsel %vm2012, 1, 0
        %v2205 = vsel %vm2013, 1, 0
        %v2206 = vsel %vm2014, 1, 0
        %v2207 = vsel %vm2015, 1, 0
        %v2208 = vsel %vm2016, 1, 0
        %v2209 = vsel %vm2017, 1, 0
        %v2210 = vsel %vm2018, 1, 0
        %v2211 = vsel %vm2019, 1, 0
        %v2212 = vsel %vm2020, 1, 0
        %v2213 = vsel %vm2021, 1, 0
        %v2214 = vsel %vm2022, 1, 0
        %v2215 = vsel %vm2023, 1, 0
        %v2216 = vsel %vm2024, 1, 0
        %v2217 = vsel %vm2025, 1, 0
        %v2218 = vsel %vm2026, 1, 0
        %v2219 = vsel %vm2027, 1, 0
        %v2220 = vsel %vm2028, 1, 0
        %v2221 = vsel %vm2029, 1, 0
        %v2222 = vsel %vm2030, 1, 0
        %v2223 = vsel %vm2031, 1, 0
        %v2224 = vsel %vm2032, 1, 0
        %v2225 = vsel %vm2033, 1, 0
        %v2226 = vsel %vm2034, 1, 0
        %v2227 = vsel %vm2035, 1, 0
        %v2228 = vsel %vm2036, 1, 0
        %v2229 = vsel %vm2037, 1, 0
        %v2230 = vsel %vm2038, 1, 0
        %v2231 = vsel %vm2039, 1, 0
        %v2232 = vsel %vm2040, 1, 0
        %v2233 = vsel %vm2041, 1, 0
        %v2234 = vsel %vm2042, 1, 0
        %v2235 = vsel %vm2043, 1, 0
        %v2236 = vsel %vm2044, 1, 0
        %v2237 = vsel %vm2045, 1, 0
        %v2238 = vsel %vm2046, 1, 0
        %v2239 = vsel %vm2047, 1, 0
        %v2240 = vsel %vm2048, 1, 0
        %v2241 = vsel %vm2049, 1, 0
        %v2242 = vsel %vm2050, 1, 0
        %v2243 = vsel %vm2051, 1, 0
        %v2244 = vsel %vm2052, 1, 0
        %v2245 = vsel %vm2053, 1, 0
        %v2246 = vsel %vm2054, 1, 0
        %v2247 = vsel %vm2055, 1, 0
        %v2248 = vsel %vm2056, 1, 0
        %v2249 = vsel %vm2057, 1, 0
        %v2250 = vsel %vm2058, 1, 0
        %v2251 = vsel %vm2059, 1, 0
        %v2252 = vsel %vm2060, 1, 0
        %v2253 = vsel %vm2061, 1, 0
        %v2254 = vsel %vm2062, 1, 0
        %v2255 = vsel %vm2063, 1, 0
        %v2256 = vsel %vm2064, 1, 0
        %v2257 = vsel %vm2065, 1, 0
        %v2258 = vsel %vm2066, 1, 0
        %v2259 = vsel %vm2067, 1, 0
        %v2260 = vsel %vm2068, 1, 0
        %v2261 = vsel %vm2069, 1, 0
        %v2262 = vsel %vm2070, 1, 0
        %v2263 = vsel %vm2071, 1, 0
        %v2264 = vsel %vm2072, 1, 0
        %v2265 = vsel %vm2073, 1, 0
        %v2266 = vsel %vm2074, 1, 0
        %v2267 = vsel %vm2075, 1, 0
        %v2268 = vsel %vm2076, 1, 0
        %v2269 = vsel %vm2077, 1, 0
        %v2270 = vsel %vm2078, 1, 0
        %v2271 = vsel %vm2079, 1, 0
        %v2272 = vsel %vm2080, 1, 0
        %v2273 = vsel %vm2081, 1, 0
        %v2274 = vsel %vm2082, 1, 0
        %v2275 = vsel %vm2083, 1, 0
        %v2276 = vsel %vm2084, 1, 0
        %v2277 = vsel %vm2085, 1, 0
        %v2278 = vsel %vm2086, 1, 0
        %v2279 = vsel %vm2087, 1, 0
        %v2280 = vsel %vm2088, 1, 0
        %v2281 = vsel %vm2089, 1, 0
        %v2282 = vsel %vm2090, 1, 0
        %v2283 = vsel %vm2091, 1, 0
        %v2284 = vsel %vm2092, 1, 0
        %v2285 = vsel %vm2093, 1, 0
        %v2286 = vsel %vm2094, 1, 0
        %v2287 = vsel %vm2095, 1, 0
        %v2288 = vsel %vm2096, 1, 0
        %v2289 = vsel %vm2097, 1, 0
        %v2290 = vsel %vm2098, 1, 0
        %v2291 = vsel %vm2099, 1, 0
        %v2292 = vsel %vm2100, 1, 0
        %v2293 = vsel %vm2101, 1, 0
        %v2294 = vsel %vm2102, 1, 0
        %v2295 = vadd.s32 %v1527, %v2103
        %v2296 = vadd.s32 %v1528, %v2104
        %v2297 = vadd.s32 %v1529, %v2105
        %v2298 = vadd.s32 %v1530, %v2106
        %v2299 = vadd.s32 %v1531, %v2107
        %v2300 = vadd.s32 %v1532, %v2108
        %v2301 = vadd.s32 %v1533, %v2109
        %v2302 = vadd.s32 %v1534, %v2110
        %v2303 = vadd.s32 %v1535, %v2111
        %v2304 = vadd.s32 %v1536, %v2112
        %v2305 = vadd.s32 %v1537, %v2113
        %v2306 = vadd.s32 %v1538, %v2114
        %v2307 = vadd.s32 %v1539, %v2115
        %v2308 = vadd.s32 %v1540, %v2116
        %v2309 = vadd.s32 %v1541, %v2117
        %v2310 = vadd.s32 %v1542, %v2118
        %v2311 = vadd.s32 %v1543, %v2119
        %v2312 = vadd.s32 %v1544, %v2120
        %v2313 = vadd.s32 %v1545, %v2121
        %v2314 = vadd.s32 %v1546, %v2122
        %v2315 = vadd.s32 %v1547, %v2123
        %v2316 = vadd.s32 %v1548, %v2124
        %v2317 = vadd.s32 %v1549, %v2125
        %v2318 = vadd.s32 %v1550, %v2126
        %v2319 = vadd.s32 %v1551, %v2127
        %v2320 = vadd.s32 %v1552, %v2128
        %v2321 = vadd.s32 %v1553, %v2129
        %v2322 = vadd.s32 %v1554, %v2130
        %v2323 = vadd.s32 %v1555, %v2131
        %v2324 = vadd.s32 %v1556, %v2132
        %v2325 = vadd.s32 %v1557, %v2133
        %v2326 = vadd.s32 %v1558, %v2134
        %v2327 = vadd.s32 %v1559, %v2135
        %v2328 = vadd.s32 %v1560, %v2136
        %v2329 = vadd.s32 %v1561, %v2137
        %v2330 = vadd.s32 %v1562, %v2138
        %v2331 = vadd.s32 %v1563, %v2139
        %v2332 = vadd.s32 %v1564, %v2140
        %v2333 = vadd.s32 %v1565, %v2141
        %v2334 = vadd.s32 %v1566, %v2142
        %v2335 = vadd.s32 %v1567, %v2143
        %v2336 = vadd.s32 %v1568, %v2144
        %v2337 = vadd.s32 %v1569, %v2145
        %v2338 = vadd.s32 %v1570, %v2146
        %v2339 = vadd.s32 %v1571, %v2147
        %v2340 = vadd.s32 %v1572, %v2148
        %v2341 = vadd.s32 %v1573, %v2149
        %v2342 = vadd.s32 %v1574, %v2150
        %v2343 = vadd.s32 %v1575, %v2151
        %v2344 = vadd.s32 %v1576, %v2152
        %v2345 = vadd.s32 %v1577, %v2153
        %v2346 = vadd.s32 %v1578, %v2154
        %v2347 = vadd.s32 %v1579, %v2155
        %v2348 = vadd.s32 %v1580, %v2156
        %v2349 = vadd.s32 %v1581, %v2157
        %v2350 = vadd.s32 %v1582, %v2158
        %v2351 = vadd.s32 %v1583, %v2159
        %v2352 = vadd.s32 %v1584, %v2160
        %v2353 = vadd.s32 %v1585, %v2161
        %v2354 = vadd.s32 %v1586, %v2162
        %v2355 = vadd.s32 %v1587, %v2163
        %v2356 = vadd.s32 %v1588, %v2164
        %v2357 = vadd.s32 %v1589, %v2165
        %v2358 = vadd.s32 %v1590, %v2166
        %v2359 = vadd.s32 %v1591, %v2167
        %v2360 = vadd.s32 %v1592, %v2168
        %v2361 = vadd.s32 %v1593, %v2169
        %v2362 = vadd.s32 %v1594, %v2170
        %v2363 = vadd.s32 %v1595, %v2171
        %v2364 = vadd.s32 %v1596, %v2172
        %v2365 = vadd.s32 %v1597, %v2173
        %v2366 = vadd.s32 %v1598, %v2174
        %v2367 = vadd.s32 %v1599, %v2175
        %v2368 = vadd.s32 %v1600, %v2176
        %v2369 = vadd.s32 %v1601, %v2177
        %v2370 = vadd.s32 %v1602, %v2178
        %v2371 = vadd.s32 %v1603, %v2179
        %v2372 = vadd.s32 %v1604, %v2180
        %v2373 = vadd.s32 %v1605, %v2181
        %v2374 = vadd.s32 %v1606, %v2182
        %v2375 = vadd.s32 %v1607, %v2183
        %v2376 = vadd.s32 %v1608, %v2184
        %v2377 = vadd.s32 %v1609, %v2185
        %v2378 = vadd.s32 %v1610, %v2186
        %v2379 = vadd.s32 %v1611, %v2187
        %v2380 = vadd.s32 %v1612, %v2188
        %v2381 = vadd.s32 %v1613, %v2189
        %v2382 = vadd.s32 %v1614, %v2190
        %v2383 = vadd.s32 %v1615, %v2191
        %v2384 = vadd.s32 %v1616, %v2192
        %v2385 = vadd.s32 %v1617, %v2193
        %v2386 = vadd.s32 %v1618, %v2194
        %v2387 = vadd.s32 %v1619, %v2195
        %v2388 = vadd.s32 %v1620, %v2196
        %v2389 = vadd.s32 %v1621, %v2197
        %v2390 = vadd.s32 %v1622, %v2198
        %v2391 = vadd.s32 %v1623, %v2199
        %v2392 = vadd.s32 %v1624, %v2200
        %v2393 = vadd.s32 %v1625, %v2201
        %v2394 = vadd.s32 %v1626, %v2202
        %v2395 = vadd.s32 %v1627, %v2203
        %v2396 = vadd.s32 %v1628, %v2204
        %v2397 = vadd.s32 %v1629, %v2205
        %v2398 = vadd.s32 %v1630, %v2206
        %v2399 = vadd.s32 %v1631, %v2207
        %v2400 = vadd.s32 %v1632, %v2208
        %v2401 = vadd.s32 %v1633, %v2209
        %v2402 = vadd.s32 %v1634, %v2210
        %v2403 = vadd.s32 %v1635, %v2211
        %v2404 = vadd.s32 %v1636, %v2212
        %v2405 = vadd.s32 %v1637, %v2213
        %v2406 = vadd.s32 %v1638, %v2214
        %v2407 = vadd.s32 %v1639, %v2215
        %v2408 = vadd.s32 %v1640, %v2216
        %v2409 = vadd.s32 %v1641, %v2217
        %v2410 = vadd.s32 %v1642, %v2218
        %v2411 = vadd.s32 %v1643, %v2219
        %v2412 = vadd.s32 %v1644, %v2220
        %v2413 = vadd.s32 %v1645, %v2221
        %v2414 = vadd.s32 %v1646, %v2222
        %v2415 = vadd.s32 %v1647, %v2223
        %v2416 = vadd.s32 %v1648, %v2224
        %v2417 = vadd.s32 %v1649, %v2225
        %v2418 = vadd.s32 %v1650, %v2226
        %v2419 = vadd.s32 %v1651, %v2227
        %v2420 = vadd.s32 %v1652, %v2228
        %v2421 = vadd.s32 %v1653, %v2229
        %v2422 = vadd.s32 %v1654, %v2230
        %v2423 = vadd.s32 %v1655, %v2231
        %v2424 = vadd.s32 %v1656, %v2232
        %v2425 = vadd.s32 %v1657, %v2233
        %v2426 = vadd.s32 %v1658, %v2234
        %v2427 = vadd.s32 %v1659, %v2235
        %v2428 = vadd.s32 %v1660, %v2236
        %v2429 = vadd.s32 %v1661, %v2237
        %v2430 = vadd.s32 %v1662, %v2238
        %v2431 = vadd.s32 %v1663, %v2239
        %v2432 = vadd.s32 %v1664, %v2240
        %v2433 = vadd.s32 %v1665, %v2241
        %v2434 = vadd.s32 %v1666, %v2242
        %v2435 = vadd.s32 %v1667, %v2243
        %v2436 = vadd.s32 %v1668, %v2244
        %v2437 = vadd.s32 %v1669, %v2245
        %v2438 = vadd.s32 %v1670, %v2246
        %v2439 = vadd.s32 %v1671, %v2247
        %v2440 = vadd.s32 %v1672, %v2248
        %v2441 = vadd.s32 %v1673, %v2249
        %v2442 = vadd.s32 %v1674, %v2250
        %v2443 = vadd.s32 %v1675, %v2251
        %v2444 = vadd.s32 %v1676, %v2252
        %v2445 = vadd.s32 %v1677, %v2253
        %v2446 = vadd.s32 %v1678, %v2254
        %v2447 = vadd.s32 %v1679, %v2255
        %v2448 = vadd.s32 %v1680, %v2256
        %v2449 = vadd.s32 %v1681, %v2257
        %v2450 = vadd.s32 %v1682, %v2258
        %v2451 = vadd.s32 %v1683, %v2259
        %v2452 = vadd.s32 %v1684, %v2260
        %v2453 = vadd.s32 %v1685, %v2261
        %v2454 = vadd.s32 %v1686, %v2262
        %v2455 = vadd.s32 %v1687, %v2263
        %v2456 = vadd.s32 %v1688, %v2264
        %v2457 = vadd.s32 %v1689, %v2265
        %v2458 = vadd.s32 %v1690, %v2266
        %v2459 = vadd.s32 %v1691, %v2267
        %v2460 = vadd.s32 %v1692, %v2268
        %v2461 = vadd.s32 %v1693, %v2269
        %v2462 = vadd.s32 %v1694, %v2270
        %v2463 = vadd.s32 %v1695, %v2271
        %v2464 = vadd.s32 %v1696, %v2272
        %v2465 = vadd.s32 %v1697, %v2273
        %v2466 = vadd.s32 %v1698, %v2274
        %v2467 = vadd.s32 %v1699, %v2275
        %v2468 = vadd.s32 %v1700, %v2276
        %v2469 = vadd.s32 %v1701, %v2277
        %v2470 = vadd.s32 %v1702, %v2278
        %v2471 = vadd.s32 %v1703, %v2279
        %v2472 = vadd.s32 %v1704, %v2280
        %v2473 = vadd.s32 %v1705, %v2281
        %v2474 = vadd.s32 %v1706, %v2282
        %v2475 = vadd.s32 %v1707, %v2283
        %v2476 = vadd.s32 %v1708, %v2284
        %v2477 = vadd.s32 %v1709, %v2285
        %v2478 = vadd.s32 %v1710, %v2286
        %v2479 = vadd.s32 %v1711, %v2287
        %v2480 = vadd.s32 %v1712, %v2288
        %v2481 = vadd.s32 %v1713, %v2289
        %v2482 = vadd.s32 %v1714, %v2290
        %v2483 = vadd.s32 %v1715, %v2291
        %v2484 = vadd.s32 %v1716, %v2292
        %v2485 = vadd.s32 %v1717, %v2293
        %v2486 = vadd.s32 %v1718, %v2294
        %v2487 = vcvt.s32.f32 %v2295
        %v2488 = vcvt.s32.f32 %v2296
        %v2489 = vcvt.s32.f32 %v2297
        %v2490 = vcvt.s32.f32 %v2298
        %v2491 = vcvt.s32.f32 %v2299
        %v2492 = vcvt.s32.f32 %v2300
        %v2493 = vcvt.s32.f32 %v2301
        %v2494 = vcvt.s32.f32 %v2302
        %v2495 = vcvt.s32.f32 %v2303
        %v2496 = vcvt.s32.f32 %v2304
        %v2497 = vcvt.s32.f32 %v2305
        %v2498 = vcvt.s32.f32 %v2306
        %v2499 = vcvt.s32.f32 %v2307
        %v2500 = vcvt.s32.f32 %v2308
        %v2501 = vcvt.s32.f32 %v2309
        %v2502 = vcvt.s32.f32 %v2310
        %v2503 = vcvt.s32.f32 %v2311
        %v2504 = vcvt.s32.f32 %v2312
        %v2505 = vcvt.s32.f32 %v2313
        %v2506 = vcvt.s32.f32 %v2314
        %v2507 = vcvt.s32.f32 %v2315
        %v2508 = vcvt.s32.f32 %v2316
        %v2509 = vcvt.s32.f32 %v2317
        %v2510 = vcvt.s32.f32 %v2318
        %v2511 = vcvt.s32.f32 %v2319
        %v2512 = vcvt.s32.f32 %v2320
        %v2513 = vcvt.s32.f32 %v2321
        %v2514 = vcvt.s32.f32 %v2322
        %v2515 = vcvt.s32.f32 %v2323
        %v2516 = vcvt.s32.f32 %v2324
        %v2517 = vcvt.s32.f32 %v2325
        %v2518 = vcvt.s32.f32 %v2326
        %v2519 = vcvt.s32.f32 %v2327
        %v2520 = vcvt.s32.f32 %v2328
        %v2521 = vcvt.s32.f32 %v2329
        %v2522 = vcvt.s32.f32 %v2330
        %v2523 = vcvt.s32.f32 %v2331
        %v2524 = vcvt.s32.f32 %v2332
        %v2525 = vcvt.s32.f32 %v2333
        %v2526 = vcvt.s32.f32 %v2334
        %v2527 = vcvt.s32.f32 %v2335
        %v2528 = vcvt.s32.f32 %v2336
        %v2529 = vcvt.s32.f32 %v2337
        %v2530 = vcvt.s32.f32 %v2338
        %v2531 = vcvt.s32.f32 %v2339
        %v2532 = vcvt.s32.f32 %v2340
        %v2533 = vcvt.s32.f32 %v2341
        %v2534 = vcvt.s32.f32 %v2342
        %v2535 = vcvt.s32.f32 %v2343
        %v2536 = vcvt.s32.f32 %v2344
        %v2537 = vcvt.s32.f32 %v2345
        %v2538 = vcvt.s32.f32 %v2346
        %v2539 = vcvt.s32.f32 %v2347
        %v2540 = vcvt.s32.f32 %v2348
        %v2541 = vcvt.s32.f32 %v2349
        %v2542 = vcvt.s32.f32 %v2350
        %v2543 = vcvt.s32.f32 %v2351
        %v2544 = vcvt.s32.f32 %v2352
        %v2545 = vcvt.s32.f32 %v2353
        %v2546 = vcvt.s32.f32 %v2354
        %v2547 = vcvt.s32.f32 %v2355
        %v2548 = vcvt.s32.f32 %v2356
        %v2549 = vcvt.s32.f32 %v2357
        %v2550 = vcvt.s32.f32 %v2358
        %v2551 = vcvt.s32.f32 %v2359
        %v2552 = vcvt.s32.f32 %v2360
        %v2553 = vcvt.s32.f32 %v2361
        %v2554 = vcvt.s32.f32 %v2362
        %v2555 = vcvt.s32.f32 %v2363
        %v2556 = vcvt.s32.f32 %v2364
        %v2557 = vcvt.s32.f32 %v2365
        %v2558 = vcvt.s32.f32 %v2366
        %v2559 = vcvt.s32.f32 %v2367
        %v2560 = vcvt.s32.f32 %v2368
        %v2561 = vcvt.s32.f32 %v2369
        %v2562 = vcvt.s32.f32 %v2370
        %v2563 = vcvt.s32.f32 %v2371
        %v2564 = vcvt.s32.f32 %v2372
        %v2565 = vcvt.s32.f32 %v2373
        %v2566 = vcvt.s32.f32 %v2374
        %v2567 = vcvt.s32.f32 %v2375
        %v2568 = vcvt.s32.f32 %v2376
        %v2569 = vcvt.s32.f32 %v2377
        %v2570 = vcvt.s32.f32 %v2378
        %v2571 = vcvt.s32.f32 %v2379
        %v2572 = vcvt.s32.f32 %v2380
        %v2573 = vcvt.s32.f32 %v2381
        %v2574 = vcvt.s32.f32 %v2382
        %v2575 = vcvt.s32.f32 %v2383
        %v2576 = vcvt.s32.f32 %v2384
        %v2577 = vcvt.s32.f32 %v2385
        %v2578 = vcvt.s32.f32 %v2386
        %v2579 = vcvt.s32.f32 %v2387
        %v2580 = vcvt.s32.f32 %v2388
        %v2581 = vcvt.s32.f32 %v2389
        %v2582 = vcvt.s32.f32 %v2390
        %v2583 = vcvt.s32.f32 %v2391
        %v2584 = vcvt.s32.f32 %v2392
        %v2585 = vcvt.s32.f32 %v2393
        %v2586 = vcvt.s32.f32 %v2394
        %v2587 = vcvt.s32.f32 %v2395
        %v2588 = vcvt.s32.f32 %v2396
        %v2589 = vcvt.s32.f32 %v2397
        %v2590 = vcvt.s32.f32 %v2398
        %v2591 = vcvt.s32.f32 %v2399
        %v2592 = vcvt.s32.f32 %v2400
        %v2593 = vcvt.s32.f32 %v2401
        %v2594 = vcvt.s32.f32 %v2402
        %v2595 = vcvt.s32.f32 %v2403
        %v2596 = vcvt.s32.f32 %v2404
        %v2597 = vcvt.s32.f32 %v2405
        %v2598 = vcvt.s32.f32 %v2406
        %v2599 = vcvt.s32.f32 %v2407
        %v2600 = vcvt.s32.f32 %v2408
        %v2601 = vcvt.s32.f32 %v2409
        %v2602 = vcvt.s32.f32 %v2410
        %v2603 = vcvt.s32.f32 %v2411
        %v2604 = vcvt.s32.f32 %v2412
        %v2605 = vcvt.s32.f32 %v2413
        %v2606 = vcvt.s32.f32 %v2414
        %v2607 = vcvt.s32.f32 %v2415
        %v2608 = vcvt.s32.f32 %v2416
        %v2609 = vcvt.s32.f32 %v2417
        %v2610 = vcvt.s32.f32 %v2418
        %v2611 = vcvt.s32.f32 %v2419
        %v2612 = vcvt.s32.f32 %v2420
        %v2613 = vcvt.s32.f32 %v2421
        %v2614 = vcvt.s32.f32 %v2422
        %v2615 = vcvt.s32.f32 %v2423
        %v2616 = vcvt.s32.f32 %v2424
        %v2617 = vcvt.s32.f32 %v2425
        %v2618 = vcvt.s32.f32 %v2426
        %v2619 = vcvt.s32.f32 %v2427
        %v2620 = vcvt.s32.f32 %v2428
        %v2621 = vcvt.s32.f32 %v2429
        %v2622 = vcvt.s32.f32 %v2430
        %v2623 = vcvt.s32.f32 %v2431
        %v2624 = vcvt.s32.f32 %v2432
        %v2625 = vcvt.s32.f32 %v2433
        %v2626 = vcvt.s32.f32 %v2434
        %v2627 = vcvt.s32.f32 %v2435
        %v2628 = vcvt.s32.f32 %v2436
        %v2629 = vcvt.s32.f32 %v2437
        %v2630 = vcvt.s32.f32 %v2438
        %v2631 = vcvt.s32.f32 %v2439
        %v2632 = vcvt.s32.f32 %v2440
        %v2633 = vcvt.s32.f32 %v2441
        %v2634 = vcvt.s32.f32 %v2442
        %v2635 = vcvt.s32.f32 %v2443
        %v2636 = vcvt.s32.f32 %v2444
        %v2637 = vcvt.s32.f32 %v2445
        %v2638 = vcvt.s32.f32 %v2446
        %v2639 = vcvt.s32.f32 %v2447
        %v2640 = vcvt.s32.f32 %v2448
        %v2641 = vcvt.s32.f32 %v2449
        %v2642 = vcvt.s32.f32 %v2450
        %v2643 = vcvt.s32.f32 %v2451
        %v2644 = vcvt.s32.f32 %v2452
        %v2645 = vcvt.s32.f32 %v2453
        %v2646 = vcvt.s32.f32 %v2454
        %v2647 = vcvt.s32.f32 %v2455
        %v2648 = vcvt.s32.f32 %v2456
        %v2649 = vcvt.s32.f32 %v2457
        %v2650 = vcvt.s32.f32 %v2458
        %v2651 = vcvt.s32.f32 %v2459
        %v2652 = vcvt.s32.f32 %v2460
        %v2653 = vcvt.s32.f32 %v2461
        %v2654 = vcvt.s32.f32 %v2462
        %v2655 = vcvt.s32.f32 %v2463
        %v2656 = vcvt.s32.f32 %v2464
        %v2657 = vcvt.s32.f32 %v2465
        %v2658 = vcvt.s32.f32 %v2466
        %v2659 = vcvt.s32.f32 %v2467
        %v2660 = vcvt.s32.f32 %v2468
        %v2661 = vcvt.s32.f32 %v2469
        %v2662 = vcvt.s32.f32 %v2470
        %v2663 = vcvt.s32.f32 %v2471
        %v2664 = vcvt.s32.f32 %v2472
        %v2665 = vcvt.s32.f32 %v2473
        %v2666 = vcvt.s32.f32 %v2474
        %v2667 = vcvt.s32.f32 %v2475
        %v2668 = vcvt.s32.f32 %v2476
        %v2669 = vcvt.s32.f32 %v2477
        %v2670 = vcvt.s32.f32 %v2478
        %v2671 = vcvt.s32.f32 %v2479
        %v2672 = vcvt.s32.f32 %v2480
        %v2673 = vcvt.s32.f32 %v2481
        %v2674 = vcvt.s32.f32 %v2482
        %v2675 = vcvt.s32.f32 %v2483
        %v2676 = vcvt.s32.f32 %v2484
        %v2677 = vcvt.s32.f32 %v2485
        %v2678 = vcvt.s32.f32 %v2486
        %2679 = vset.pattern.permute.xlu0 1
        %2680 = vperm.xlu0 %2679, %v307
        %v2681 = vpop.permute.xlu0 %2680
        %2682 = vset.pattern.permute.xlu0 1
        %2683 = vperm.xlu0 %2682, %v308
        %v2684 = vpop.permute.xlu0 %2683
        %2685 = vset.pattern.permute.xlu0 1
        %2686 = vperm.xlu0 %2685, %v309
        %v2687 = vpop.permute.xlu0 %2686
        %2688 = vset.pattern.permute.xlu0 1
        %2689 = vperm.xlu0 %2688, %v310
        %v2690 = vpop.permute.xlu0 %2689
        %2691 = vset.pattern.permute.xlu0 1
        %2692 = vperm.xlu0 %2691, %v311
        %v2693 = vpop.permute.xlu0 %2692
        %2694 = vset.pattern.permute.xlu0 1
        %2695 = vperm.xlu0 %2694, %v312
        %v2696 = vpop.permute.xlu0 %2695
        %2697 = vset.pattern.permute.xlu0 1
        %2698 = vperm.xlu0 %2697, %v313
        %v2699 = vpop.permute.xlu0 %2698
        %2700 = vset.pattern.permute.xlu0 1
        %2701 = vperm.xlu0 %2700, %v314
        %v2702 = vpop.permute.xlu0 %2701
        %2703 = vset.pattern.permute.xlu0 1
        %2704 = vperm.xlu0 %2703, %v315
        %v2705 = vpop.permute.xlu0 %2704
        %2706 = vset.pattern.permute.xlu0 1
        %2707 = vperm.xlu0 %2706, %v316
        %v2708 = vpop.permute.xlu0 %2707
        %2709 = vset.pattern.permute.xlu0 1
        %2710 = vperm.xlu0 %2709, %v317
        %v2711 = vpop.permute.xlu0 %2710
        %2712 = vset.pattern.permute.xlu0 1
        %2713 = vperm.xlu0 %2712, %v318
        %v2714 = vpop.permute.xlu0 %2713
        %2715 = vset.pattern.permute.xlu0 1
        %2716 = vperm.xlu0 %2715, %v319
        %v2717 = vpop.permute.xlu0 %2716
        %2718 = vset.pattern.permute.xlu0 1
        %2719 = vperm.xlu0 %2718, %v320
        %v2720 = vpop.permute.xlu0 %2719
        %2721 = vset.pattern.permute.xlu0 1
        %2722 = vperm.xlu0 %2721, %v321
        %v2723 = vpop.permute.xlu0 %2722
        %2724 = vset.pattern.permute.xlu0 1
        %2725 = vperm.xlu0 %2724, %v322
        %v2726 = vpop.permute.xlu0 %2725
        %2727 = vset.pattern.permute.xlu0 1
        %2728 = vperm.xlu0 %2727, %v323
        %v2729 = vpop.permute.xlu0 %2728
        %2730 = vset.pattern.permute.xlu0 1
        %2731 = vperm.xlu0 %2730, %v324
        %v2732 = vpop.permute.xlu0 %2731
        %2733 = vset.pattern.permute.xlu0 1
        %2734 = vperm.xlu0 %2733, %v325
        %v2735 = vpop.permute.xlu0 %2734
        %2736 = vset.pattern.permute.xlu0 1
        %2737 = vperm.xlu0 %2736, %v326
        %v2738 = vpop.permute.xlu0 %2737
        %2739 = vset.pattern.permute.xlu0 1
        %2740 = vperm.xlu0 %2739, %v327
        %v2741 = vpop.permute.xlu0 %2740
        %2742 = vset.pattern.permute.xlu0 1
        %2743 = vperm.xlu0 %2742, %v328
        %v2744 = vpop.permute.xlu0 %2743
        %2745 = vset.pattern.permute.xlu0 1
        %2746 = vperm.xlu0 %2745, %v329
        %v2747 = vpop.permute.xlu0 %2746
        %2748 = vset.pattern.permute.xlu0 1
        %2749 = vperm.xlu0 %2748, %v330
        %v2750 = vpop.permute.xlu0 %2749
        %2751 = vset.pattern.permute.xlu0 1
        %2752 = vperm.xlu0 %2751, %v331
        %v2753 = vpop.permute.xlu0 %2752
        %2754 = vset.pattern.permute.xlu0 1
        %2755 = vperm.xlu0 %2754, %v332
        %v2756 = vpop.permute.xlu0 %2755
        %2757 = vset.pattern.permute.xlu0 1
        %2758 = vperm.xlu0 %2757, %v333
        %v2759 = vpop.permute.xlu0 %2758
        %2760 = vset.pattern.permute.xlu0 1
        %2761 = vperm.xlu0 %2760, %v334
        %v2762 = vpop.permute.xlu0 %2761
        %2763 = vset.pattern.permute.xlu0 1
        %2764 = vperm.xlu0 %2763, %v335
        %v2765 = vpop.permute.xlu0 %2764
        %2766 = vset.pattern.permute.xlu0 1
        %2767 = vperm.xlu0 %2766, %v336
        %v2768 = vpop.permute.xlu0 %2767
        %2769 = vset.pattern.permute.xlu0 1
        %2770 = vperm.xlu0 %2769, %v337
        %v2771 = vpop.permute.xlu0 %2770
        %2772 = vset.pattern.permute.xlu0 1
        %2773 = vperm.xlu0 %2772, %v338
        %v2774 = vpop.permute.xlu0 %2773
        %2775 = vset.pattern.permute.xlu0 1
        %2776 = vperm.xlu0 %2775, %v339
        %v2777 = vpop.permute.xlu0 %2776
        %2778 = vset.pattern.permute.xlu0 1
        %2779 = vperm.xlu0 %2778, %v340
        %v2780 = vpop.permute.xlu0 %2779
        %2781 = vset.pattern.permute.xlu0 1
        %2782 = vperm.xlu0 %2781, %v341
        %v2783 = vpop.permute.xlu0 %2782
        %2784 = vset.pattern.permute.xlu0 1
        %2785 = vperm.xlu0 %2784, %v342
        %v2786 = vpop.permute.xlu0 %2785
        %2787 = vset.pattern.permute.xlu0 1
        %2788 = vperm.xlu0 %2787, %v343
        %v2789 = vpop.permute.xlu0 %2788
        %2790 = vset.pattern.permute.xlu0 1
        %2791 = vperm.xlu0 %2790, %v344
        %v2792 = vpop.permute.xlu0 %2791
        %2793 = vset.pattern.permute.xlu0 1
        %2794 = vperm.xlu0 %2793, %v345
        %v2795 = vpop.permute.xlu0 %2794
        %2796 = vset.pattern.permute.xlu0 1
        %2797 = vperm.xlu0 %2796, %v346
        %v2798 = vpop.permute.xlu0 %2797
        %2799 = vset.pattern.permute.xlu0 1
        %2800 = vperm.xlu0 %2799, %v347
        %v2801 = vpop.permute.xlu0 %2800
        %2802 = vset.pattern.permute.xlu0 1
        %2803 = vperm.xlu0 %2802, %v348
        %v2804 = vpop.permute.xlu0 %2803
        %2805 = vset.pattern.permute.xlu0 1
        %2806 = vperm.xlu0 %2805, %v349
        %v2807 = vpop.permute.xlu0 %2806
        %2808 = vset.pattern.permute.xlu0 1
        %2809 = vperm.xlu0 %2808, %v350
        %v2810 = vpop.permute.xlu0 %2809
        %2811 = vset.pattern.permute.xlu0 1
        %2812 = vperm.xlu0 %2811, %v351
        %v2813 = vpop.permute.xlu0 %2812
        %2814 = vset.pattern.permute.xlu0 1
        %2815 = vperm.xlu0 %2814, %v352
        %v2816 = vpop.permute.xlu0 %2815
        %2817 = vset.pattern.permute.xlu0 1
        %2818 = vperm.xlu0 %2817, %v353
        %v2819 = vpop.permute.xlu0 %2818
        %2820 = vset.pattern.permute.xlu0 1
        %2821 = vperm.xlu0 %2820, %v354
        %v2822 = vpop.permute.xlu0 %2821
        %2823 = vset.pattern.permute.xlu0 1
        %2824 = vperm.xlu0 %2823, %v355
        %v2825 = vpop.permute.xlu0 %2824
        %2826 = vset.pattern.permute.xlu0 1
        %2827 = vperm.xlu0 %2826, %v356
        %v2828 = vpop.permute.xlu0 %2827
        %2829 = vset.pattern.permute.xlu0 1
        %2830 = vperm.xlu0 %2829, %v357
        %v2831 = vpop.permute.xlu0 %2830
        %2832 = vset.pattern.permute.xlu0 1
        %2833 = vperm.xlu0 %2832, %v358
        %v2834 = vpop.permute.xlu0 %2833
        %2835 = vset.pattern.permute.xlu0 1
        %2836 = vperm.xlu0 %2835, %v359
        %v2837 = vpop.permute.xlu0 %2836
        %2838 = vset.pattern.permute.xlu0 1
        %2839 = vperm.xlu0 %2838, %v360
        %v2840 = vpop.permute.xlu0 %2839
        %2841 = vset.pattern.permute.xlu0 1
        %2842 = vperm.xlu0 %2841, %v361
        %v2843 = vpop.permute.xlu0 %2842
        %2844 = vset.pattern.permute.xlu0 1
        %2845 = vperm.xlu0 %2844, %v362
        %v2846 = vpop.permute.xlu0 %2845
        %2847 = vset.pattern.permute.xlu0 1
        %2848 = vperm.xlu0 %2847, %v363
        %v2849 = vpop.permute.xlu0 %2848
        %2850 = vset.pattern.permute.xlu0 1
        %2851 = vperm.xlu0 %2850, %v364
        %v2852 = vpop.permute.xlu0 %2851
        %2853 = vset.pattern.permute.xlu0 1
        %2854 = vperm.xlu0 %2853, %v365
        %v2855 = vpop.permute.xlu0 %2854
        %2856 = vset.pattern.permute.xlu0 1
        %2857 = vperm.xlu0 %2856, %v366
        %v2858 = vpop.permute.xlu0 %2857
        %2859 = vset.pattern.permute.xlu0 1
        %2860 = vperm.xlu0 %2859, %v367
        %v2861 = vpop.permute.xlu0 %2860
        %2862 = vset.pattern.permute.xlu0 1
        %2863 = vperm.xlu0 %2862, %v368
        %v2864 = vpop.permute.xlu0 %2863
        %2865 = vset.pattern.permute.xlu0 1
        %2866 = vperm.xlu0 %2865, %v369
        %v2867 = vpop.permute.xlu0 %2866
        %2868 = vset.pattern.permute.xlu0 1
        %2869 = vperm.xlu0 %2868, %v370
        %v2870 = vpop.permute.xlu0 %2869
        %vm2871 = vcmp.eq.s32.totalorder %v372, %v2681
        %vm2872 = vcmp.eq.s32.totalorder %v373, %v2681
        %vm2873 = vcmp.eq.s32.totalorder %v374, %v2681
        %vm2874 = vcmp.eq.s32.totalorder %v372, %v2684
        %vm2875 = vcmp.eq.s32.totalorder %v373, %v2684
        %vm2876 = vcmp.eq.s32.totalorder %v374, %v2684
        %vm2877 = vcmp.eq.s32.totalorder %v372, %v2687
        %vm2878 = vcmp.eq.s32.totalorder %v373, %v2687
        %vm2879 = vcmp.eq.s32.totalorder %v374, %v2687
        %vm2880 = vcmp.eq.s32.totalorder %v372, %v2690
        %vm2881 = vcmp.eq.s32.totalorder %v373, %v2690
        %vm2882 = vcmp.eq.s32.totalorder %v374, %v2690
        %vm2883 = vcmp.eq.s32.totalorder %v372, %v2693
        %vm2884 = vcmp.eq.s32.totalorder %v373, %v2693
        %vm2885 = vcmp.eq.s32.totalorder %v374, %v2693
        %vm2886 = vcmp.eq.s32.totalorder %v372, %v2696
        %vm2887 = vcmp.eq.s32.totalorder %v373, %v2696
        %vm2888 = vcmp.eq.s32.totalorder %v374, %v2696
        %vm2889 = vcmp.eq.s32.totalorder %v372, %v2699
        %vm2890 = vcmp.eq.s32.totalorder %v373, %v2699
        %vm2891 = vcmp.eq.s32.totalorder %v374, %v2699
        %vm2892 = vcmp.eq.s32.totalorder %v372, %v2702
        %vm2893 = vcmp.eq.s32.totalorder %v373, %v2702
        %vm2894 = vcmp.eq.s32.totalorder %v374, %v2702
        %vm2895 = vcmp.eq.s32.totalorder %v372, %v2705
        %vm2896 = vcmp.eq.s32.totalorder %v373, %v2705
        %vm2897 = vcmp.eq.s32.totalorder %v374, %v2705
        %vm2898 = vcmp.eq.s32.totalorder %v372, %v2708
        %vm2899 = vcmp.eq.s32.totalorder %v373, %v2708
        %vm2900 = vcmp.eq.s32.totalorder %v374, %v2708
        %vm2901 = vcmp.eq.s32.totalorder %v372, %v2711
        %vm2902 = vcmp.eq.s32.totalorder %v373, %v2711
        %vm2903 = vcmp.eq.s32.totalorder %v374, %v2711
        %vm2904 = vcmp.eq.s32.totalorder %v372, %v2714
        %vm2905 = vcmp.eq.s32.totalorder %v373, %v2714
        %vm2906 = vcmp.eq.s32.totalorder %v374, %v2714
        %vm2907 = vcmp.eq.s32.totalorder %v372, %v2717
        %vm2908 = vcmp.eq.s32.totalorder %v373, %v2717
        %vm2909 = vcmp.eq.s32.totalorder %v374, %v2717
        %vm2910 = vcmp.eq.s32.totalorder %v372, %v2720
        %vm2911 = vcmp.eq.s32.totalorder %v373, %v2720
        %vm2912 = vcmp.eq.s32.totalorder %v374, %v2720
        %vm2913 = vcmp.eq.s32.totalorder %v372, %v2723
        %vm2914 = vcmp.eq.s32.totalorder %v373, %v2723
        %vm2915 = vcmp.eq.s32.totalorder %v374, %v2723
        %vm2916 = vcmp.eq.s32.totalorder %v372, %v2726
        %vm2917 = vcmp.eq.s32.totalorder %v373, %v2726
        %vm2918 = vcmp.eq.s32.totalorder %v374, %v2726
        %vm2919 = vcmp.eq.s32.totalorder %v372, %v2729
        %vm2920 = vcmp.eq.s32.totalorder %v373, %v2729
        %vm2921 = vcmp.eq.s32.totalorder %v374, %v2729
        %vm2922 = vcmp.eq.s32.totalorder %v372, %v2732
        %vm2923 = vcmp.eq.s32.totalorder %v373, %v2732
        %vm2924 = vcmp.eq.s32.totalorder %v374, %v2732
        %vm2925 = vcmp.eq.s32.totalorder %v372, %v2735
        %vm2926 = vcmp.eq.s32.totalorder %v373, %v2735
        %vm2927 = vcmp.eq.s32.totalorder %v374, %v2735
        %vm2928 = vcmp.eq.s32.totalorder %v372, %v2738
        %vm2929 = vcmp.eq.s32.totalorder %v373, %v2738
        %vm2930 = vcmp.eq.s32.totalorder %v374, %v2738
        %vm2931 = vcmp.eq.s32.totalorder %v372, %v2741
        %vm2932 = vcmp.eq.s32.totalorder %v373, %v2741
        %vm2933 = vcmp.eq.s32.totalorder %v374, %v2741
        %vm2934 = vcmp.eq.s32.totalorder %v372, %v2744
        %vm2935 = vcmp.eq.s32.totalorder %v373, %v2744
        %vm2936 = vcmp.eq.s32.totalorder %v374, %v2744
        %vm2937 = vcmp.eq.s32.totalorder %v372, %v2747
        %vm2938 = vcmp.eq.s32.totalorder %v373, %v2747
        %vm2939 = vcmp.eq.s32.totalorder %v374, %v2747
        %vm2940 = vcmp.eq.s32.totalorder %v372, %v2750
        %vm2941 = vcmp.eq.s32.totalorder %v373, %v2750
        %vm2942 = vcmp.eq.s32.totalorder %v374, %v2750
        %vm2943 = vcmp.eq.s32.totalorder %v372, %v2753
        %vm2944 = vcmp.eq.s32.totalorder %v373, %v2753
        %vm2945 = vcmp.eq.s32.totalorder %v374, %v2753
        %vm2946 = vcmp.eq.s32.totalorder %v372, %v2756
        %vm2947 = vcmp.eq.s32.totalorder %v373, %v2756
        %vm2948 = vcmp.eq.s32.totalorder %v374, %v2756
        %vm2949 = vcmp.eq.s32.totalorder %v372, %v2759
        %vm2950 = vcmp.eq.s32.totalorder %v373, %v2759
        %vm2951 = vcmp.eq.s32.totalorder %v374, %v2759
        %vm2952 = vcmp.eq.s32.totalorder %v372, %v2762
        %vm2953 = vcmp.eq.s32.totalorder %v373, %v2762
        %vm2954 = vcmp.eq.s32.totalorder %v374, %v2762
        %vm2955 = vcmp.eq.s32.totalorder %v372, %v2765
        %vm2956 = vcmp.eq.s32.totalorder %v373, %v2765
        %vm2957 = vcmp.eq.s32.totalorder %v374, %v2765
        %vm2958 = vcmp.eq.s32.totalorder %v372, %v2768
        %vm2959 = vcmp.eq.s32.totalorder %v373, %v2768
        %vm2960 = vcmp.eq.s32.totalorder %v374, %v2768
        %vm2961 = vcmp.eq.s32.totalorder %v372, %v2771
        %vm2962 = vcmp.eq.s32.totalorder %v373, %v2771
        %vm2963 = vcmp.eq.s32.totalorder %v374, %v2771
        %vm2964 = vcmp.eq.s32.totalorder %v372, %v2774
        %vm2965 = vcmp.eq.s32.totalorder %v373, %v2774
        %vm2966 = vcmp.eq.s32.totalorder %v374, %v2774
        %vm2967 = vcmp.eq.s32.totalorder %v372, %v2777
        %vm2968 = vcmp.eq.s32.totalorder %v373, %v2777
        %vm2969 = vcmp.eq.s32.totalorder %v374, %v2777
        %vm2970 = vcmp.eq.s32.totalorder %v372, %v2780
        %vm2971 = vcmp.eq.s32.totalorder %v373, %v2780
        %vm2972 = vcmp.eq.s32.totalorder %v374, %v2780
        %vm2973 = vcmp.eq.s32.totalorder %v372, %v2783
        %vm2974 = vcmp.eq.s32.totalorder %v373, %v2783
        %vm2975 = vcmp.eq.s32.totalorder %v374, %v2783
        %vm2976 = vcmp.eq.s32.totalorder %v372, %v2786
        %vm2977 = vcmp.eq.s32.totalorder %v373, %v2786
        %vm2978 = vcmp.eq.s32.totalorder %v374, %v2786
        %vm2979 = vcmp.eq.s32.totalorder %v372, %v2789
        %vm2980 = vcmp.eq.s32.totalorder %v373, %v2789
        %vm2981 = vcmp.eq.s32.totalorder %v374, %v2789
        %vm2982 = vcmp.eq.s32.totalorder %v372, %v2792
        %vm2983 = vcmp.eq.s32.totalorder %v373, %v2792
        %vm2984 = vcmp.eq.s32.totalorder %v374, %v2792
        %vm2985 = vcmp.eq.s32.totalorder %v372, %v2795
        %vm2986 = vcmp.eq.s32.totalorder %v373, %v2795
        %vm2987 = vcmp.eq.s32.totalorder %v374, %v2795
        %vm2988 = vcmp.eq.s32.totalorder %v372, %v2798
        %vm2989 = vcmp.eq.s32.totalorder %v373, %v2798
        %vm2990 = vcmp.eq.s32.totalorder %v374, %v2798
        %vm2991 = vcmp.eq.s32.totalorder %v372, %v2801
        %vm2992 = vcmp.eq.s32.totalorder %v373, %v2801
        %vm2993 = vcmp.eq.s32.totalorder %v374, %v2801
        %vm2994 = vcmp.eq.s32.totalorder %v372, %v2804
        %vm2995 = vcmp.eq.s32.totalorder %v373, %v2804
        %vm2996 = vcmp.eq.s32.totalorder %v374, %v2804
        %vm2997 = vcmp.eq.s32.totalorder %v372, %v2807
        %vm2998 = vcmp.eq.s32.totalorder %v373, %v2807
        %vm2999 = vcmp.eq.s32.totalorder %v374, %v2807
        %vm3000 = vcmp.eq.s32.totalorder %v372, %v2810
        %vm3001 = vcmp.eq.s32.totalorder %v373, %v2810
        %vm3002 = vcmp.eq.s32.totalorder %v374, %v2810
        %vm3003 = vcmp.eq.s32.totalorder %v372, %v2813
        %vm3004 = vcmp.eq.s32.totalorder %v373, %v2813
        %vm3005 = vcmp.eq.s32.totalorder %v374, %v2813
        %vm3006 = vcmp.eq.s32.totalorder %v372, %v2816
        %vm3007 = vcmp.eq.s32.totalorder %v373, %v2816
        %vm3008 = vcmp.eq.s32.totalorder %v374, %v2816
        %vm3009 = vcmp.eq.s32.totalorder %v372, %v2819
        %vm3010 = vcmp.eq.s32.totalorder %v373, %v2819
        %vm3011 = vcmp.eq.s32.totalorder %v374, %v2819
        %vm3012 = vcmp.eq.s32.totalorder %v372, %v2822
        %vm3013 = vcmp.eq.s32.totalorder %v373, %v2822
        %vm3014 = vcmp.eq.s32.totalorder %v374, %v2822
        %vm3015 = vcmp.eq.s32.totalorder %v372, %v2825
        %vm3016 = vcmp.eq.s32.totalorder %v373, %v2825
        %vm3017 = vcmp.eq.s32.totalorder %v374, %v2825
        %vm3018 = vcmp.eq.s32.totalorder %v372, %v2828
        %vm3019 = vcmp.eq.s32.totalorder %v373, %v2828
        %vm3020 = vcmp.eq.s32.totalorder %v374, %v2828
        %vm3021 = vcmp.eq.s32.totalorder %v372, %v2831
        %vm3022 = vcmp.eq.s32.totalorder %v373, %v2831
        %vm3023 = vcmp.eq.s32.totalorder %v374, %v2831
        %vm3024 = vcmp.eq.s32.totalorder %v372, %v2834
        %vm3025 = vcmp.eq.s32.totalorder %v373, %v2834
        %vm3026 = vcmp.eq.s32.totalorder %v374, %v2834
        %vm3027 = vcmp.eq.s32.totalorder %v372, %v2837
        %vm3028 = vcmp.eq.s32.totalorder %v373, %v2837
        %vm3029 = vcmp.eq.s32.totalorder %v374, %v2837
        %vm3030 = vcmp.eq.s32.totalorder %v372, %v2840
        %vm3031 = vcmp.eq.s32.totalorder %v373, %v2840
        %vm3032 = vcmp.eq.s32.totalorder %v374, %v2840
        %vm3033 = vcmp.eq.s32.totalorder %v372, %v2843
        %vm3034 = vcmp.eq.s32.totalorder %v373, %v2843
        %vm3035 = vcmp.eq.s32.totalorder %v374, %v2843
        %vm3036 = vcmp.eq.s32.totalorder %v372, %v2846
        %vm3037 = vcmp.eq.s32.totalorder %v373, %v2846
        %vm3038 = vcmp.eq.s32.totalorder %v374, %v2846
        %vm3039 = vcmp.eq.s32.totalorder %v372, %v2849
        %vm3040 = vcmp.eq.s32.totalorder %v373, %v2849
        %vm3041 = vcmp.eq.s32.totalorder %v374, %v2849
        %vm3042 = vcmp.eq.s32.totalorder %v372, %v2852
        %vm3043 = vcmp.eq.s32.totalorder %v373, %v2852
        %vm3044 = vcmp.eq.s32.totalorder %v374, %v2852
        %vm3045 = vcmp.eq.s32.totalorder %v372, %v2855
        %vm3046 = vcmp.eq.s32.totalorder %v373, %v2855
        %vm3047 = vcmp.eq.s32.totalorder %v374, %v2855
        %vm3048 = vcmp.eq.s32.totalorder %v372, %v2858
        %vm3049 = vcmp.eq.s32.totalorder %v373, %v2858
        %vm3050 = vcmp.eq.s32.totalorder %v374, %v2858
        %vm3051 = vcmp.eq.s32.totalorder %v372, %v2861
        %vm3052 = vcmp.eq.s32.totalorder %v373, %v2861
        %vm3053 = vcmp.eq.s32.totalorder %v374, %v2861
        %vm3054 = vcmp.eq.s32.totalorder %v372, %v2864
        %vm3055 = vcmp.eq.s32.totalorder %v373, %v2864
        %vm3056 = vcmp.eq.s32.totalorder %v374, %v2864
        %vm3057 = vcmp.eq.s32.totalorder %v372, %v2867
        %vm3058 = vcmp.eq.s32.totalorder %v373, %v2867
        %vm3059 = vcmp.eq.s32.totalorder %v374, %v2867
        %vm3060 = vcmp.eq.s32.totalorder %v372, %v2870
        %vm3061 = vcmp.eq.s32.totalorder %v373, %v2870
        %vm3062 = vcmp.eq.s32.totalorder %v374, %v2870
        %v3063 = vsel %vm2871, 1, 0
        %v3064 = vsel %vm2872, 1, 0
        %v3065 = vsel %vm2873, 1, 0
        %v3066 = vsel %vm2874, 1, 0
        %v3067 = vsel %vm2875, 1, 0
        %v3068 = vsel %vm2876, 1, 0
        %v3069 = vsel %vm2877, 1, 0
        %v3070 = vsel %vm2878, 1, 0
        %v3071 = vsel %vm2879, 1, 0
        %v3072 = vsel %vm2880, 1, 0
        %v3073 = vsel %vm2881, 1, 0
        %v3074 = vsel %vm2882, 1, 0
        %v3075 = vsel %vm2883, 1, 0
        %v3076 = vsel %vm2884, 1, 0
        %v3077 = vsel %vm2885, 1, 0
        %v3078 = vsel %vm2886, 1, 0
        %v3079 = vsel %vm2887, 1, 0
        %v3080 = vsel %vm2888, 1, 0
        %v3081 = vsel %vm2889, 1, 0
        %v3082 = vsel %vm2890, 1, 0
        %v3083 = vsel %vm2891, 1, 0
        %v3084 = vsel %vm2892, 1, 0
        %v3085 = vsel %vm2893, 1, 0
        %v3086 = vsel %vm2894, 1, 0
        %v3087 = vsel %vm2895, 1, 0
        %v3088 = vsel %vm2896, 1, 0
        %v3089 = vsel %vm2897, 1, 0
        %v3090 = vsel %vm2898, 1, 0
        %v3091 = vsel %vm2899, 1, 0
        %v3092 = vsel %vm2900, 1, 0
        %v3093 = vsel %vm2901, 1, 0
        %v3094 = vsel %vm2902, 1, 0
        %v3095 = vsel %vm2903, 1, 0
        %v3096 = vsel %vm2904, 1, 0
        %v3097 = vsel %vm2905, 1, 0
        %v3098 = vsel %vm2906, 1, 0
        %v3099 = vsel %vm2907, 1, 0
        %v3100 = vsel %vm2908, 1, 0
        %v3101 = vsel %vm2909, 1, 0
        %v3102 = vsel %vm2910, 1, 0
        %v3103 = vsel %vm2911, 1, 0
        %v3104 = vsel %vm2912, 1, 0
        %v3105 = vsel %vm2913, 1, 0
        %v3106 = vsel %vm2914, 1, 0
        %v3107 = vsel %vm2915, 1, 0
        %v3108 = vsel %vm2916, 1, 0
        %v3109 = vsel %vm2917, 1, 0
        %v3110 = vsel %vm2918, 1, 0
        %v3111 = vsel %vm2919, 1, 0
        %v3112 = vsel %vm2920, 1, 0
        %v3113 = vsel %vm2921, 1, 0
        %v3114 = vsel %vm2922, 1, 0
        %v3115 = vsel %vm2923, 1, 0
        %v3116 = vsel %vm2924, 1, 0
        %v3117 = vsel %vm2925, 1, 0
        %v3118 = vsel %vm2926, 1, 0
        %v3119 = vsel %vm2927, 1, 0
        %v3120 = vsel %vm2928, 1, 0
        %v3121 = vsel %vm2929, 1, 0
        %v3122 = vsel %vm2930, 1, 0
        %v3123 = vsel %vm2931, 1, 0
        %v3124 = vsel %vm2932, 1, 0
        %v3125 = vsel %vm2933, 1, 0
        %v3126 = vsel %vm2934, 1, 0
        %v3127 = vsel %vm2935, 1, 0
        %v3128 = vsel %vm2936, 1, 0
        %v3129 = vsel %vm2937, 1, 0
        %v3130 = vsel %vm2938, 1, 0
        %v3131 = vsel %vm2939, 1, 0
        %v3132 = vsel %vm2940, 1, 0
        %v3133 = vsel %vm2941, 1, 0
        %v3134 = vsel %vm2942, 1, 0
        %v3135 = vsel %vm2943, 1, 0
        %v3136 = vsel %vm2944, 1, 0
        %v3137 = vsel %vm2945, 1, 0
        %v3138 = vsel %vm2946, 1, 0
        %v3139 = vsel %vm2947, 1, 0
        %v3140 = vsel %vm2948, 1, 0
        %v3141 = vsel %vm2949, 1, 0
        %v3142 = vsel %vm2950, 1, 0
        %v3143 = vsel %vm2951, 1, 0
        %v3144 = vsel %vm2952, 1, 0
        %v3145 = vsel %vm2953, 1, 0
        %v3146 = vsel %vm2954, 1, 0
        %v3147 = vsel %vm2955, 1, 0
        %v3148 = vsel %vm2956, 1, 0
        %v3149 = vsel %vm2957, 1, 0
        %v3150 = vsel %vm2958, 1, 0
        %v3151 = vsel %vm2959, 1, 0
        %v3152 = vsel %vm2960, 1, 0
        %v3153 = vsel %vm2961, 1, 0
        %v3154 = vsel %vm2962, 1, 0
        %v3155 = vsel %vm2963, 1, 0
        %v3156 = vsel %vm2964, 1, 0
        %v3157 = vsel %vm2965, 1, 0
        %v3158 = vsel %vm2966, 1, 0
        %v3159 = vsel %vm2967, 1, 0
        %v3160 = vsel %vm2968, 1, 0
        %v3161 = vsel %vm2969, 1, 0
        %v3162 = vsel %vm2970, 1, 0
        %v3163 = vsel %vm2971, 1, 0
        %v3164 = vsel %vm2972, 1, 0
        %v3165 = vsel %vm2973, 1, 0
        %v3166 = vsel %vm2974, 1, 0
        %v3167 = vsel %vm2975, 1, 0
        %v3168 = vsel %vm2976, 1, 0
        %v3169 = vsel %vm2977, 1, 0
        %v3170 = vsel %vm2978, 1, 0
        %v3171 = vsel %vm2979, 1, 0
        %v3172 = vsel %vm2980, 1, 0
        %v3173 = vsel %vm2981, 1, 0
        %v3174 = vsel %vm2982, 1, 0
        %v3175 = vsel %vm2983, 1, 0
        %v3176 = vsel %vm2984, 1, 0
        %v3177 = vsel %vm2985, 1, 0
        %v3178 = vsel %vm2986, 1, 0
        %v3179 = vsel %vm2987, 1, 0
        %v3180 = vsel %vm2988, 1, 0
        %v3181 = vsel %vm2989, 1, 0
        %v3182 = vsel %vm2990, 1, 0
        %v3183 = vsel %vm2991, 1, 0
        %v3184 = vsel %vm2992, 1, 0
        %v3185 = vsel %vm2993, 1, 0
        %v3186 = vsel %vm2994, 1, 0
        %v3187 = vsel %vm2995, 1, 0
        %v3188 = vsel %vm2996, 1, 0
        %v3189 = vsel %vm2997, 1, 0
        %v3190 = vsel %vm2998, 1, 0
        %v3191 = vsel %vm2999, 1, 0
        %v3192 = vsel %vm3000, 1, 0
        %v3193 = vsel %vm3001, 1, 0
        %v3194 = vsel %vm3002, 1, 0
        %v3195 = vsel %vm3003, 1, 0
        %v3196 = vsel %vm3004, 1, 0
        %v3197 = vsel %vm3005, 1, 0
        %v3198 = vsel %vm3006, 1, 0
        %v3199 = vsel %vm3007, 1, 0
        %v3200 = vsel %vm3008, 1, 0
        %v3201 = vsel %vm3009, 1, 0
        %v3202 = vsel %vm3010, 1, 0
        %v3203 = vsel %vm3011, 1, 0
        %v3204 = vsel %vm3012, 1, 0
        %v3205 = vsel %vm3013, 1, 0
        %v3206 = vsel %vm3014, 1, 0
        %v3207 = vsel %vm3015, 1, 0
        %v3208 = vsel %vm3016, 1, 0
        %v3209 = vsel %vm3017, 1, 0
        %v3210 = vsel %vm3018, 1, 0
        %v3211 = vsel %vm3019, 1, 0
        %v3212 = vsel %vm3020, 1, 0
        %v3213 = vsel %vm3021, 1, 0
        %v3214 = vsel %vm3022, 1, 0
        %v3215 = vsel %vm3023, 1, 0
        %v3216 = vsel %vm3024, 1, 0
        %v3217 = vsel %vm3025, 1, 0
        %v3218 = vsel %vm3026, 1, 0
        %v3219 = vsel %vm3027, 1, 0
        %v3220 = vsel %vm3028, 1, 0
        %v3221 = vsel %vm3029, 1, 0
        %v3222 = vsel %vm3030, 1, 0
        %v3223 = vsel %vm3031, 1, 0
        %v3224 = vsel %vm3032, 1, 0
        %v3225 = vsel %vm3033, 1, 0
        %v3226 = vsel %vm3034, 1, 0
        %v3227 = vsel %vm3035, 1, 0
        %v3228 = vsel %vm3036, 1, 0
        %v3229 = vsel %vm3037, 1, 0
        %v3230 = vsel %vm3038, 1, 0
        %v3231 = vsel %vm3039, 1, 0
        %v3232 = vsel %vm3040, 1, 0
        %v3233 = vsel %vm3041, 1, 0
        %v3234 = vsel %vm3042, 1, 0
        %v3235 = vsel %vm3043, 1, 0
        %v3236 = vsel %vm3044, 1, 0
        %v3237 = vsel %vm3045, 1, 0
        %v3238 = vsel %vm3046, 1, 0
        %v3239 = vsel %vm3047, 1, 0
        %v3240 = vsel %vm3048, 1, 0
        %v3241 = vsel %vm3049, 1, 0
        %v3242 = vsel %vm3050, 1, 0
        %v3243 = vsel %vm3051, 1, 0
        %v3244 = vsel %vm3052, 1, 0
        %v3245 = vsel %vm3053, 1, 0
        %v3246 = vsel %vm3054, 1, 0
        %v3247 = vsel %vm3055, 1, 0
        %v3248 = vsel %vm3056, 1, 0
        %v3249 = vsel %vm3057, 1, 0
        %v3250 = vsel %vm3058, 1, 0
        %v3251 = vsel %vm3059, 1, 0
        %v3252 = vsel %vm3060, 1, 0
        %v3253 = vsel %vm3061, 1, 0
        %v3254 = vsel %vm3062, 1, 0
        %v3255 = vcvt.s32.f32 %v3063
        %v3256 = vcvt.s32.f32 %v3064
        %v3257 = vcvt.s32.f32 %v3065
        %v3258 = vcvt.s32.f32 %v3066
        %v3259 = vcvt.s32.f32 %v3067
        %v3260 = vcvt.s32.f32 %v3068
        %v3261 = vcvt.s32.f32 %v3069
        %v3262 = vcvt.s32.f32 %v3070
        %v3263 = vcvt.s32.f32 %v3071
        %v3264 = vcvt.s32.f32 %v3072
        %v3265 = vcvt.s32.f32 %v3073
        %v3266 = vcvt.s32.f32 %v3074
        %v3267 = vcvt.s32.f32 %v3075
        %v3268 = vcvt.s32.f32 %v3076
        %v3269 = vcvt.s32.f32 %v3077
        %v3270 = vcvt.s32.f32 %v3078
        %v3271 = vcvt.s32.f32 %v3079
        %v3272 = vcvt.s32.f32 %v3080
        %v3273 = vcvt.s32.f32 %v3081
        %v3274 = vcvt.s32.f32 %v3082
        %v3275 = vcvt.s32.f32 %v3083
        %v3276 = vcvt.s32.f32 %v3084
        %v3277 = vcvt.s32.f32 %v3085
        %v3278 = vcvt.s32.f32 %v3086
        %v3279 = vcvt.s32.f32 %v3087
        %v3280 = vcvt.s32.f32 %v3088
        %v3281 = vcvt.s32.f32 %v3089
        %v3282 = vcvt.s32.f32 %v3090
        %v3283 = vcvt.s32.f32 %v3091
        %v3284 = vcvt.s32.f32 %v3092
        %v3285 = vcvt.s32.f32 %v3093
        %v3286 = vcvt.s32.f32 %v3094
        %v3287 = vcvt.s32.f32 %v3095
        %v3288 = vcvt.s32.f32 %v3096
        %v3289 = vcvt.s32.f32 %v3097
        %v3290 = vcvt.s32.f32 %v3098
        %v3291 = vcvt.s32.f32 %v3099
        %v3292 = vcvt.s32.f32 %v3100
        %v3293 = vcvt.s32.f32 %v3101
        %v3294 = vcvt.s32.f32 %v3102
        %v3295 = vcvt.s32.f32 %v3103
        %v3296 = vcvt.s32.f32 %v3104
        %v3297 = vcvt.s32.f32 %v3105
        %v3298 = vcvt.s32.f32 %v3106
        %v3299 = vcvt.s32.f32 %v3107
        %v3300 = vcvt.s32.f32 %v3108
        %v3301 = vcvt.s32.f32 %v3109
        %v3302 = vcvt.s32.f32 %v3110
        %v3303 = vcvt.s32.f32 %v3111
        %v3304 = vcvt.s32.f32 %v3112
        %v3305 = vcvt.s32.f32 %v3113
        %v3306 = vcvt.s32.f32 %v3114
        %v3307 = vcvt.s32.f32 %v3115
        %v3308 = vcvt.s32.f32 %v3116
        %v3309 = vcvt.s32.f32 %v3117
        %v3310 = vcvt.s32.f32 %v3118
        %v3311 = vcvt.s32.f32 %v3119
        %v3312 = vcvt.s32.f32 %v3120
        %v3313 = vcvt.s32.f32 %v3121
        %v3314 = vcvt.s32.f32 %v3122
        %v3315 = vcvt.s32.f32 %v3123
        %v3316 = vcvt.s32.f32 %v3124
        %v3317 = vcvt.s32.f32 %v3125
        %v3318 = vcvt.s32.f32 %v3126
        %v3319 = vcvt.s32.f32 %v3127
        %v3320 = vcvt.s32.f32 %v3128
        %v3321 = vcvt.s32.f32 %v3129
        %v3322 = vcvt.s32.f32 %v3130
        %v3323 = vcvt.s32.f32 %v3131
        %v3324 = vcvt.s32.f32 %v3132
        %v3325 = vcvt.s32.f32 %v3133
        %v3326 = vcvt.s32.f32 %v3134
        %v3327 = vcvt.s32.f32 %v3135
        %v3328 = vcvt.s32.f32 %v3136
        %v3329 = vcvt.s32.f32 %v3137
        %v3330 = vcvt.s32.f32 %v3138
        %v3331 = vcvt.s32.f32 %v3139
        %v3332 = vcvt.s32.f32 %v3140
        %v3333 = vcvt.s32.f32 %v3141
        %v3334 = vcvt.s32.f32 %v3142
        %v3335 = vcvt.s32.f32 %v3143
        %v3336 = vcvt.s32.f32 %v3144
        %v3337 = vcvt.s32.f32 %v3145
        %v3338 = vcvt.s32.f32 %v3146
        %v3339 = vcvt.s32.f32 %v3147
        %v3340 = vcvt.s32.f32 %v3148
        %v3341 = vcvt.s32.f32 %v3149
        %v3342 = vcvt.s32.f32 %v3150
        %v3343 = vcvt.s32.f32 %v3151
        %v3344 = vcvt.s32.f32 %v3152
        %v3345 = vcvt.s32.f32 %v3153
        %v3346 = vcvt.s32.f32 %v3154
        %v3347 = vcvt.s32.f32 %v3155
        %v3348 = vcvt.s32.f32 %v3156
        %v3349 = vcvt.s32.f32 %v3157
        %v3350 = vcvt.s32.f32 %v3158
        %v3351 = vcvt.s32.f32 %v3159
        %v3352 = vcvt.s32.f32 %v3160
        %v3353 = vcvt.s32.f32 %v3161
        %v3354 = vcvt.s32.f32 %v3162
        %v3355 = vcvt.s32.f32 %v3163
        %v3356 = vcvt.s32.f32 %v3164
        %v3357 = vcvt.s32.f32 %v3165
        %v3358 = vcvt.s32.f32 %v3166
        %v3359 = vcvt.s32.f32 %v3167
        %v3360 = vcvt.s32.f32 %v3168
        %v3361 = vcvt.s32.f32 %v3169
        %v3362 = vcvt.s32.f32 %v3170
        %v3363 = vcvt.s32.f32 %v3171
        %v3364 = vcvt.s32.f32 %v3172
        %v3365 = vcvt.s32.f32 %v3173
        %v3366 = vcvt.s32.f32 %v3174
        %v3367 = vcvt.s32.f32 %v3175
        %v3368 = vcvt.s32.f32 %v3176
        %v3369 = vcvt.s32.f32 %v3177
        %v3370 = vcvt.s32.f32 %v3178
        %v3371 = vcvt.s32.f32 %v3179
        %v3372 = vcvt.s32.f32 %v3180
        %v3373 = vcvt.s32.f32 %v3181
        %v3374 = vcvt.s32.f32 %v3182
        %v3375 = vcvt.s32.f32 %v3183
        %v3376 = vcvt.s32.f32 %v3184
        %v3377 = vcvt.s32.f32 %v3185
        %v3378 = vcvt.s32.f32 %v3186
        %v3379 = vcvt.s32.f32 %v3187
        %v3380 = vcvt.s32.f32 %v3188
        %v3381 = vcvt.s32.f32 %v3189
        %v3382 = vcvt.s32.f32 %v3190
        %v3383 = vcvt.s32.f32 %v3191
        %v3384 = vcvt.s32.f32 %v3192
        %v3385 = vcvt.s32.f32 %v3193
        %v3386 = vcvt.s32.f32 %v3194
        %v3387 = vcvt.s32.f32 %v3195
        %v3388 = vcvt.s32.f32 %v3196
        %v3389 = vcvt.s32.f32 %v3197
        %v3390 = vcvt.s32.f32 %v3198
        %v3391 = vcvt.s32.f32 %v3199
        %v3392 = vcvt.s32.f32 %v3200
        %v3393 = vcvt.s32.f32 %v3201
        %v3394 = vcvt.s32.f32 %v3202
        %v3395 = vcvt.s32.f32 %v3203
        %v3396 = vcvt.s32.f32 %v3204
        %v3397 = vcvt.s32.f32 %v3205
        %v3398 = vcvt.s32.f32 %v3206
        %v3399 = vcvt.s32.f32 %v3207
        %v3400 = vcvt.s32.f32 %v3208
        %v3401 = vcvt.s32.f32 %v3209
        %v3402 = vcvt.s32.f32 %v3210
        %v3403 = vcvt.s32.f32 %v3211
        %v3404 = vcvt.s32.f32 %v3212
        %v3405 = vcvt.s32.f32 %v3213
        %v3406 = vcvt.s32.f32 %v3214
        %v3407 = vcvt.s32.f32 %v3215
        %v3408 = vcvt.s32.f32 %v3216
        %v3409 = vcvt.s32.f32 %v3217
        %v3410 = vcvt.s32.f32 %v3218
        %v3411 = vcvt.s32.f32 %v3219
        %v3412 = vcvt.s32.f32 %v3220
        %v3413 = vcvt.s32.f32 %v3221
        %v3414 = vcvt.s32.f32 %v3222
        %v3415 = vcvt.s32.f32 %v3223
        %v3416 = vcvt.s32.f32 %v3224
        %v3417 = vcvt.s32.f32 %v3225
        %v3418 = vcvt.s32.f32 %v3226
        %v3419 = vcvt.s32.f32 %v3227
        %v3420 = vcvt.s32.f32 %v3228
        %v3421 = vcvt.s32.f32 %v3229
        %v3422 = vcvt.s32.f32 %v3230
        %v3423 = vcvt.s32.f32 %v3231
        %v3424 = vcvt.s32.f32 %v3232
        %v3425 = vcvt.s32.f32 %v3233
        %v3426 = vcvt.s32.f32 %v3234
        %v3427 = vcvt.s32.f32 %v3235
        %v3428 = vcvt.s32.f32 %v3236
        %v3429 = vcvt.s32.f32 %v3237
        %v3430 = vcvt.s32.f32 %v3238
        %v3431 = vcvt.s32.f32 %v3239
        %v3432 = vcvt.s32.f32 %v3240
        %v3433 = vcvt.s32.f32 %v3241
        %v3434 = vcvt.s32.f32 %v3242
        %v3435 = vcvt.s32.f32 %v3243
        %v3436 = vcvt.s32.f32 %v3244
        %v3437 = vcvt.s32.f32 %v3245
        %v3438 = vcvt.s32.f32 %v3246
        %v3439 = vcvt.s32.f32 %v3247
        %v3440 = vcvt.s32.f32 %v3248
        %v3441 = vcvt.s32.f32 %v3249
        %v3442 = vcvt.s32.f32 %v3250
        %v3443 = vcvt.s32.f32 %v3251
        %v3444 = vcvt.s32.f32 %v3252
        %v3445 = vcvt.s32.f32 %v3253
        %v3446 = vcvt.s32.f32 %v3254
        %v3447 = vld [vmem:[%s1] sm:$0xff]
        %v3448 = vld [vmem:[%s1 + $0x8] sm:$0xff]
        %v3449 = vld [vmem:[%s1 + $0x10] sm:$0xff]
        %v3450 = vld [vmem:[%s1 + $0x18] sm:$0xff]
        %v3451 = vld [vmem:[%s1 + $0x20] sm:$0xff]
        %v3452 = vld [vmem:[%s1 + $0x28] sm:$0xff]
        %v3453 = vld [vmem:[%s1 + $0x30] sm:$0xff]
        %v3454 = vld [vmem:[%s1 + $0x38] sm:$0xff]
        %v3455 = vld [vmem:[%s1 + $0x40] sm:$0xff]
        %v3456 = vld [vmem:[%s1 + $0x48] sm:$0xff]
        %v3457 = vld [vmem:[%s1 + $0x50] sm:$0xff]
        %v3458 = vld [vmem:[%s1 + $0x58] sm:$0xff]
        %v3459 = vld [vmem:[%s1 + $0x60] sm:$0xff]
        %v3460 = vld [vmem:[%s1 + $0x68] sm:$0xff]
        %v3461 = vld [vmem:[%s1 + $0x70] sm:$0xff]
        %v3462 = vld [vmem:[%s1 + $0x78] sm:$0xff]
        %v3463 = vld [vmem:[%s1 + $0x80] sm:$0xff]
        %v3464 = vld [vmem:[%s1 + $0x88] sm:$0xff]
        %v3465 = vld [vmem:[%s1 + $0x90] sm:$0xff]
        %v3466 = vld [vmem:[%s1 + $0x98] sm:$0xff]
        %v3467 = vld [vmem:[%s1 + $0xa0] sm:$0xff]
        %v3468 = vld [vmem:[%s1 + $0xa8] sm:$0xff]
        %v3469 = vld [vmem:[%s1 + $0xb0] sm:$0xff]
        %v3470 = vld [vmem:[%s1 + $0xb8] sm:$0xff]
        %v3471 = vld [vmem:[%s1 + $0xc0] sm:$0xff]
        %v3472 = vld [vmem:[%s1 + $0xc8] sm:$0xff]
        %v3473 = vld [vmem:[%s1 + $0xd0] sm:$0xff]
        %v3474 = vld [vmem:[%s1 + $0xd8] sm:$0xff]
        %v3475 = vld [vmem:[%s1 + $0xe0] sm:$0xff]
        %v3476 = vld [vmem:[%s1 + $0xe8] sm:$0xff]
        %v3477 = vld [vmem:[%s1 + $0xf0] sm:$0xff]
        %v3478 = vld [vmem:[%s1 + $0xf8] sm:$0xff]
        %v3479 = vld [vmem:[%s1 + $0x100] sm:$0xff]
        %v3480 = vld [vmem:[%s1 + $0x108] sm:$0xff]
        %v3481 = vld [vmem:[%s1 + $0x110] sm:$0xff]
        %v3482 = vld [vmem:[%s1 + $0x118] sm:$0xff]
        %v3483 = vld [vmem:[%s1 + $0x120] sm:$0xff]
        %v3484 = vld [vmem:[%s1 + $0x128] sm:$0xff]
        %v3485 = vld [vmem:[%s1 + $0x130] sm:$0xff]
        %v3486 = vld [vmem:[%s1 + $0x138] sm:$0xff]
        %v3487 = vld [vmem:[%s1 + $0x140] sm:$0xff]
        %v3488 = vld [vmem:[%s1 + $0x148] sm:$0xff]
        %v3489 = vld [vmem:[%s1 + $0x150] sm:$0xff]
        %v3490 = vld [vmem:[%s1 + $0x158] sm:$0xff]
        %v3491 = vld [vmem:[%s1 + $0x160] sm:$0xff]
        %v3492 = vld [vmem:[%s1 + $0x168] sm:$0xff]
        %v3493 = vld [vmem:[%s1 + $0x170] sm:$0xff]
        %v3494 = vld [vmem:[%s1 + $0x178] sm:$0xff]
        %v3495 = vld [vmem:[%s2] sm:$0xff]
        %v3496 = vld [vmem:[%s2 + $0x8] sm:$0xff]
        %v3497 = vld [vmem:[%s2 + $0x10] sm:$0xff]
        %v3498 = vld [vmem:[%s2 + $0x18] sm:$0xff]
        %v3499 = vld [vmem:[%s2 + $0x20] sm:$0xff]
        %v3500 = vld [vmem:[%s2 + $0x28] sm:$0xff]
        %v3501 = vld [vmem:[%s2 + $0x30] sm:$0xff]
        %v3502 = vld [vmem:[%s2 + $0x38] sm:$0xff]
        %v3503 = vld [vmem:[%s2 + $0x40] sm:$0xff]
        %v3504 = vld [vmem:[%s2 + $0x48] sm:$0xff]
        %v3505 = vld [vmem:[%s2 + $0x50] sm:$0xff]
        %v3506 = vld [vmem:[%s2 + $0x58] sm:$0xff]
        %v3507 = vld [vmem:[%s2 + $0x60] sm:$0xff]
        %v3508 = vld [vmem:[%s2 + $0x68] sm:$0xff]
        %v3509 = vld [vmem:[%s2 + $0x70] sm:$0xff]
        %v3510 = vld [vmem:[%s2 + $0x78] sm:$0xff]
        %v3511 = vld [vmem:[%s2 + $0x80] sm:$0xff]
        %v3512 = vld [vmem:[%s2 + $0x88] sm:$0xff]
        %v3513 = vld [vmem:[%s2 + $0x90] sm:$0xff]
        %v3514 = vld [vmem:[%s2 + $0x98] sm:$0xff]
        %v3515 = vld [vmem:[%s2 + $0xa0] sm:$0xff]
        %v3516 = vld [vmem:[%s2 + $0xa8] sm:$0xff]
        %v3517 = vld [vmem:[%s2 + $0xb0] sm:$0xff]
        %v3518 = vld [vmem:[%s2 + $0xb8] sm:$0xff]
        %v3519 = vld [vmem:[%s2 + $0xc0] sm:$0xff]
        %v3520 = vld [vmem:[%s2 + $0xc8] sm:$0xff]
        %v3521 = vld [vmem:[%s2 + $0xd0] sm:$0xff]
        %v3522 = vld [vmem:[%s2 + $0xd8] sm:$0xff]
        %v3523 = vld [vmem:[%s2 + $0xe0] sm:$0xff]
        %v3524 = vld [vmem:[%s2 + $0xe8] sm:$0xff]
        %v3525 = vld [vmem:[%s2 + $0xf0] sm:$0xff]
        %v3526 = vld [vmem:[%s2 + $0xf8] sm:$0xff]
        %v3527 = vld [vmem:[%s2 + $0x100] sm:$0xff]
        %v3528 = vld [vmem:[%s2 + $0x108] sm:$0xff]
        %v3529 = vld [vmem:[%s2 + $0x110] sm:$0xff]
        %v3530 = vld [vmem:[%s2 + $0x118] sm:$0xff]
        %v3531 = vld [vmem:[%s2 + $0x120] sm:$0xff]
        %v3532 = vld [vmem:[%s2 + $0x128] sm:$0xff]
        %v3533 = vld [vmem:[%s2 + $0x130] sm:$0xff]
        %v3534 = vld [vmem:[%s2 + $0x138] sm:$0xff]
        %v3535 = vld [vmem:[%s2 + $0x140] sm:$0xff]
        %v3536 = vld [vmem:[%s2 + $0x148] sm:$0xff]
        %v3537 = vld [vmem:[%s2 + $0x150] sm:$0xff]
        %v3538 = vld [vmem:[%s2 + $0x158] sm:$0xff]
        %v3539 = vld [vmem:[%s2 + $0x160] sm:$0xff]
        %v3540 = vld [vmem:[%s2 + $0x168] sm:$0xff]
        %v3541 = vld [vmem:[%s2 + $0x170] sm:$0xff]
        %v3542 = vld [vmem:[%s2 + $0x178] sm:$0xff]
        %3543 = vmatprep.subr.mxu0 0.0
        %3544 = vmatpush1.msra.mxu0 %v3495
        %3545 = vmatprep.subr.mxu0 0.0
        %3546 = vmatpush1.msra.mxu0 %v3496
        %3547 = vmatprep.subr.mxu0 0.0
        %3548 = vmatpush1.msra.mxu0 %v3497
        %3549 = vmatprep.subr.mxu0 0.0
        %3550 = vmatpush1.msra.mxu0 %v3498
        %3551 = vmatprep.subr.mxu0 0.0
        %3552 = vmatpush1.msra.mxu0 %v3499
        %3553 = vmatprep.subr.mxu0 0.0
        %3554 = vmatpush1.msra.mxu0 %v3500
        %3555 = vmatprep.subr.mxu0 0.0
        %3556 = vmatpush1.msra.mxu0 %v3501
        %3557 = vmatprep.subr.mxu0 0.0
        %3558 = vmatpush1.msra.mxu0 %v3502
        %3559 = vmatprep.subr.mxu0 0.0
        %3560 = vmatpush1.msra.mxu0 %v3503
        %3561 = vmatprep.subr.mxu0 0.0
        %3562 = vmatpush1.msra.mxu0 %v3504
        %3563 = vmatprep.subr.mxu0 0.0
        %3564 = vmatpush1.msra.mxu0 %v3505
        %3565 = vmatprep.subr.mxu0 0.0
        %3566 = vmatpush1.msra.mxu0 %v3506
        %3567 = vmatprep.subr.mxu0 0.0
        %3568 = vmatpush1.msra.mxu0 %v3507
        %3569 = vmatprep.subr.mxu0 0.0
        %3570 = vmatpush1.msra.mxu0 %v3508
        %3571 = vmatprep.subr.mxu0 0.0
        %3572 = vmatpush1.msra.mxu0 %v3509
        %3573 = vmatprep.subr.mxu0 0.0
        %3574 = vmatpush1.msra.mxu0 %v3510
        %3575 = vmatprep.subr.mxu0 0.0
        %3576 = vmatpush1.msra.mxu0 %v3511
        %3577 = vmatprep.subr.mxu0 0.0
        %3578 = vmatpush1.msra.mxu0 %v3512
        %3579 = vmatprep.subr.mxu0 0.0
        %3580 = vmatpush1.msra.mxu0 %v3513
        %3581 = vmatprep.subr.mxu0 0.0
        %3582 = vmatpush1.msra.mxu0 %v3514
        %3583 = vmatprep.subr.mxu0 0.0
        %3584 = vmatpush1.msra.mxu0 %v3515
        %3585 = vmatprep.subr.mxu0 0.0
        %3586 = vmatpush1.msra.mxu0 %v3516
        %3587 = vmatprep.subr.mxu0 0.0
        %3588 = vmatpush1.msra.mxu0 %v3517
        %3589 = vmatprep.subr.mxu0 0.0
        %3590 = vmatpush1.msra.mxu0 %v3518
        %3591 = vmatprep.subr.mxu0 0.0
        %3592 = vmatpush1.msra.mxu0 %v3519
        %3593 = vmatprep.subr.mxu0 0.0
        %3594 = vmatpush1.msra.mxu0 %v3520
        %3595 = vmatprep.subr.mxu0 0.0
        %3596 = vmatpush1.msra.mxu0 %v3521
        %3597 = vmatprep.subr.mxu0 0.0
        %3598 = vmatpush1.msra.mxu0 %v3522
        %3599 = vmatprep.subr.mxu0 0.0
        %3600 = vmatpush1.msra.mxu0 %v3523
        %3601 = vmatprep.subr.mxu0 0.0
        %3602 = vmatpush1.msra.mxu0 %v3524
        %3603 = vmatprep.subr.mxu0 0.0
        %3604 = vmatpush1.msra.mxu0 %v3525
        %3605 = vmatprep.subr.mxu0 0.0
        %3606 = vmatpush1.msra.mxu0 %v3526
        %3607 = vmatprep.mubr.f32.mxu0 %v3256
        %3608 = vmatmul.mubr.f32.gmra.mrb[0].mxu0 %v3255
        %v3609 = vpop.f32.mrb[0].mxu0
        %v3610 = vadd.f32 0.0, %v3609
        %v3611 = vpop.f32.mrb[0].mxu0
        %3612 = vmatprep.mubr.f32.mxu0 %v3259
        %3613 = vmatmul.mubr.f32.gmra.mrb[0].mxu0 %v3258
        %v3614 = vpop.f32.mrb[0].mxu0
        %v3615 = vadd.f32 0.0, %v3614
        %v3616 = vpop.f32.mrb[0].mxu0
        %3617 = vmatprep.mubr.f32.mxu0 %v3262
        %3618 = vmatmul.mubr.f32.gmra.mrb[0].mxu0 %v3261
        %v3619 = vpop.f32.mrb[0].mxu0
        %v3620 = vadd.f32 0.0, %v3619
        %v3621 = vpop.f32.mrb[0].mxu0
        %3622 = vmatprep.mubr.f32.mxu0 %v3265
        %3623 = vmatmul.mubr.f32.gmra.mrb[0].mxu0 %v3264
        %v3624 = vpop.f32.mrb[0].mxu0
        %v3625 = vadd.f32 0.0, %v3624
        %v3626 = vpop.f32.mrb[0].mxu0
        %3627 = vmatprep.mubr.f32.mxu0 %v3268
        %3628 = vmatmul.mubr.f32.gmra.mrb[0].mxu0 %v3267
        %v3629 = vpop.f32.mrb[0].mxu0
        %v3630 = vadd.f32 0.0, %v3629
        %v3631 = vpop.f32.mrb[0].mxu0
        %3632 = vmatprep.mubr.f32.mxu0 %v3271
        %3633 = vmatmul.mubr.f32.gmra.mrb[0].mxu0 %v3270
        %v3634 = vpop.f32.mrb[0].mxu0
        %v3635 = vadd.f32 0.0, %v3634
        %v3636 = vpop.f32.mrb[0].mxu0
        %3637 = vmatprep.mubr.f32.mxu0 %v3274
        %3638 = vmatmul.mubr.f32.gmra.mrb[0].mxu0 %v3273
        %v3639 = vpop.f32.mrb[0].mxu0
        %v3640 = vadd.f32 0.0, %v3639
        %v3641 = vpop.f32.mrb[0].mxu0
        %3642 = vmatprep.mubr.f32.mxu0 %v3277
        %3643 = vmatmul.mubr.f32.gmra.mrb[0].mxu0 %v3276
        %v3644 = vpop.f32.mrb[0].mxu0
        %v3645 = vadd.f32 0.0, %v3644
        %v3646 = vpop.f32.mrb[0].mxu0
        %3647 = vmatprep.mubr.f32.mxu0 %v3280
        %3648 = vmatmul.mubr.f32.gmra.mrb[0].mxu0 %v3279
        %v3649 = vpop.f32.mrb[0].mxu0
        %v3650 = vadd.f32 0.0, %v3649
        %v3651 = vpop.f32.mrb[0].mxu0
        %3652 = vmatprep.mubr.f32.mxu0 %v3283
        %3653 = vmatmul.mubr.f32.gmra.mrb[0].mxu0 %v3282
        %v3654 = vpop.f32.mrb[0].mxu0
        %v3655 = vadd.f32 0.0, %v3654
        %v3656 = vpop.f32.mrb[0].mxu0
        %3657 = vmatprep.mubr.f32.mxu0 %v3286
        %3658 = vmatmul.mubr.f32.gmra.mrb[0].mxu0 %v3285
        %v3659 = vpop.f32.mrb[0].mxu0
        %v3660 = vadd.f32 0.0, %v3659
        %v3661 = vpop.f32.mrb[0].mxu0
        %3662 = vmatprep.mubr.f32.mxu0 %v3289
        %3663 = vmatmul.mubr.f32.gmra.mrb[0].mxu0 %v3288
        %v3664 = vpop.f32.mrb[0].mxu0
        %v3665 = vadd.f32 0.0, %v3664
        %v3666 = vpop.f32.mrb[0].mxu0
        %3667 = vmatprep.mubr.f32.mxu0 %v3292
        %3668 = vmatmul.mubr.f32.gmra.mrb[0].mxu0 %v3291
        %v3669 = vpop.f32.mrb[0].mxu0
        %v3670 = vadd.f32 0.0, %v3669
        %v3671 = vpop.f32.mrb[0].mxu0
        %3672 = vmatprep.mubr.f32.mxu0 %v3295
        %3673 = vmatmul.mubr.f32.gmra.mrb[0].mxu0 %v3294
        %v3674 = vpop.f32.mrb[0].mxu0
        %v3675 = vadd.f32 0.0, %v3674
        %v3676 = vpop.f32.mrb[0].mxu0
        %3677 = vmatprep.mubr.f32.mxu0 %v3298
        %3678 = vmatmul.mubr.f32.gmra.mrb[0].mxu0 %v3297
        %v3679 = vpop.f32.mrb[0].mxu0
        %v3680 = vadd.f32 0.0, %v3679
        %v3681 = vpop.f32.mrb[0].mxu0
        %3682 = vmatprep.mubr.f32.mxu0 %v3301
        %3683 = vmatmul.mubr.f32.gmra.mrb[0].mxu0 %v3300
        %v3684 = vpop.f32.mrb[0].mxu0
        %v3685 = vadd.f32 0.0, %v3684
        %v3686 = vpop.f32.mrb[0].mxu0
        %3687 = vmatprep.mubr.f32.mxu0 %v3304
        %3688 = vmatmul.mubr.f32.gmra.mrb[0].mxu0 %v3303
        %v3689 = vpop.f32.mrb[0].mxu0
        %v3690 = vadd.f32 0.0, %v3689
        %v3691 = vpop.f32.mrb[0].mxu0
        %3692 = vmatprep.mubr.f32.mxu0 %v3307
        %3693 = vmatmul.mubr.f32.gmra.mrb[0].mxu0 %v3306
        %v3694 = vpop.f32.mrb[0].mxu0
        %v3695 = vadd.f32 0.0, %v3694
        %v3696 = vpop.f32.mrb[0].mxu0
        %3697 = vmatprep.mubr.f32.mxu0 %v3310
        %3698 = vmatmul.mubr.f32.gmra.mrb[0].mxu0 %v3309
        %v3699 = vpop.f32.mrb[0].mxu0
        %v3700 = vadd.f32 0.0, %v3699
        %v3701 = vpop.f32.mrb[0].mxu0
        %3702 = vmatprep.mubr.f32.mxu0 %v3313
        %3703 = vmatmul.mubr.f32.gmra.mrb[0].mxu0 %v3312
        %v3704 = vpop.f32.mrb[0].mxu0
        %v3705 = vadd.f32 0.0, %v3704
        %v3706 = vpop.f32.mrb[0].mxu0
        %3707 = vmatprep.mubr.f32.mxu0 %v3316
        %3708 = vmatmul.mubr.f32.gmra.mrb[0].mxu0 %v3315
        %v3709 = vpop.f32.mrb[0].mxu0
        %v3710 = vadd.f32 0.0, %v3709
        %v3711 = vpop.f32.mrb[0].mxu0
        %3712 = vmatprep.mubr.f32.mxu0 %v3319
        %3713 = vmatmul.mubr.f32.gmra.mrb[0].mxu0 %v3318
        %v3714 = vpop.f32.mrb[0].mxu0
        %v3715 = vadd.f32 0.0, %v3714
        %v3716 = vpop.f32.mrb[0].mxu0
        %3717 = vmatprep.mubr.f32.mxu0 %v3322
        %3718 = vmatmul.mubr.f32.gmra.mrb[0].mxu0 %v3321
        %v3719 = vpop.f32.mrb[0].mxu0
        %v3720 = vadd.f32 0.0, %v3719
        %v3721 = vpop.f32.mrb[0].mxu0
        %3722 = vmatprep.mubr.f32.mxu0 %v3325
        %3723 = vmatmul.mubr.f32.gmra.mrb[0].mxu0 %v3324
        %v3724 = vpop.f32.mrb[0].mxu0
        %v3725 = vadd.f32 0.0, %v3724
        %v3726 = vpop.f32.mrb[0].mxu0
        %3727 = vmatprep.mubr.f32.mxu0 %v3328
        %3728 = vmatmul.mubr.f32.gmra.mrb[0].mxu0 %v3327
        %v3729 = vpop.f32.mrb[0].mxu0
        %v3730 = vadd.f32 0.0, %v3729
        %v3731 = vpop.f32.mrb[0].mxu0
        %3732 = vmatprep.mubr.f32.mxu0 %v3331
        %3733 = vmatmul.mubr.f32.gmra.mrb[0].mxu0 %v3330
        %v3734 = vpop.f32.mrb[0].mxu0
        %v3735 = vadd.f32 0.0, %v3734
        %v3736 = vpop.f32.mrb[0].mxu0
        %3737 = vmatprep.mubr.f32.mxu0 %v3334
        %3738 = vmatmul.mubr.f32.gmra.mrb[0].mxu0 %v3333
        %v3739 = vpop.f32.mrb[0].mxu0
        %v3740 = vadd.f32 0.0, %v3739
        %v3741 = vpop.f32.mrb[0].mxu0
        %3742 = vmatprep.mubr.f32.mxu0 %v3337
        %3743 = vmatmul.mubr.f32.gmra.mrb[0].mxu0 %v3336
        %v3744 = vpop.f32.mrb[0].mxu0
        %v3745 = vadd.f32 0.0, %v3744
        %v3746 = vpop.f32.mrb[0].mxu0
        %3747 = vmatprep.mubr.f32.mxu0 %v3340
        %3748 = vmatmul.mubr.f32.gmra.mrb[0].mxu0 %v3339
        %v3749 = vpop.f32.mrb[0].mxu0
        %v3750 = vadd.f32 0.0, %v3749
        %v3751 = vpop.f32.mrb[0].mxu0
        %3752 = vmatprep.mubr.f32.mxu0 %v3343
        %3753 = vmatmul.mubr.f32.gmra.mrb[0].mxu0 %v3342
        %v3754 = vpop.f32.mrb[0].mxu0
        %v3755 = vadd.f32 0.0, %v3754
        %v3756 = vpop.f32.mrb[0].mxu0
        %3757 = vmatprep.mubr.f32.mxu0 %v3346
        %3758 = vmatmul.mubr.f32.gmra.mrb[0].mxu0 %v3345
        %v3759 = vpop.f32.mrb[0].mxu0
        %v3760 = vadd.f32 0.0, %v3759
        %v3761 = vpop.f32.mrb[0].mxu0
        %3762 = vmatprep.mubr.f32.mxu0 %v3349
        %3763 = vmatmul.mubr.f32.gmra.mrb[0].mxu0 %v3348
        %v3764 = vpop.f32.mrb[0].mxu0
        %v3765 = vadd.f32 0.0, %v3764
        %v3766 = vpop.f32.mrb[0].mxu0
        %3767 = vmatprep.mubr.f32.mxu0 %v3352
        %3768 = vmatmul.mubr.f32.gmra.mrb[0].mxu0 %v3351
        %v3769 = vpop.f32.mrb[0].mxu0
        %v3770 = vadd.f32 0.0, %v3769
        %v3771 = vpop.f32.mrb[0].mxu0
        %3772 = vmatprep.mubr.f32.mxu0 %v3355
        %3773 = vmatmul.mubr.f32.gmra.mrb[0].mxu0 %v3354
        %v3774 = vpop.f32.mrb[0].mxu0
        %v3775 = vadd.f32 0.0, %v3774
        %v3776 = vpop.f32.mrb[0].mxu0
        %3777 = vmatprep.mubr.f32.mxu0 %v3358
        %3778 = vmatmul.mubr.f32.gmra.mrb[0].mxu0 %v3357
        %v3779 = vpop.f32.mrb[0].mxu0
        %v3780 = vadd.f32 0.0, %v3779
        %v3781 = vpop.f32.mrb[0].mxu0
        %3782 = vmatprep.mubr.f32.mxu0 %v3361
        %3783 = vmatmul.mubr.f32.gmra.mrb[0].mxu0 %v3360
        %v3784 = vpop.f32.mrb[0].mxu0
        %v3785 = vadd.f32 0.0, %v3784
        %v3786 = vpop.f32.mrb[0].mxu0
        %3787 = vmatprep.mubr.f32.mxu0 %v3364
        %3788 = vmatmul.mubr.f32.gmra.mrb[0].mxu0 %v3363
        %v3789 = vpop.f32.mrb[0].mxu0
        %v3790 = vadd.f32 0.0, %v3789
        %v3791 = vpop.f32.mrb[0].mxu0
        %3792 = vmatprep.mubr.f32.mxu0 %v3367
        %3793 = vmatmul.mubr.f32.gmra.mrb[0].mxu0 %v3366
        %v3794 = vpop.f32.mrb[0].mxu0
        %v3795 = vadd.f32 0.0, %v3794
        %v3796 = vpop.f32.mrb[0].mxu0
        %3797 = vmatprep.mubr.f32.mxu0 %v3370
        %3798 = vmatmul.mubr.f32.gmra.mrb[0].mxu0 %v3369
        %v3799 = vpop.f32.mrb[0].mxu0
        %v3800 = vadd.f32 0.0, %v3799
        %v3801 = vpop.f32.mrb[0].mxu0
        %3802 = vmatprep.mubr.f32.mxu0 %v3373
        %3803 = vmatmul.mubr.f32.gmra.mrb[0].mxu0 %v3372
        %v3804 = vpop.f32.mrb[0].mxu0
        %v3805 = vadd.f32 0.0, %v3804
        %v3806 = vpop.f32.mrb[0].mxu0
        %3807 = vmatprep.mubr.f32.mxu0 %v3376
        %3808 = vmatmul.mubr.f32.gmra.mrb[0].mxu0 %v3375
        %v3809 = vpop.f32.mrb[0].mxu0
        %v3810 = vadd.f32 0.0, %v3809
        %v3811 = vpop.f32.mrb[0].mxu0
        %3812 = vmatprep.mubr.f32.mxu0 %v3379
        %3813 = vmatmul.mubr.f32.gmra.mrb[0].mxu0 %v3378
        %v3814 = vpop.f32.mrb[0].mxu0
        %v3815 = vadd.f32 0.0, %v3814
        %v3816 = vpop.f32.mrb[0].mxu0
        %3817 = vmatprep.mubr.f32.mxu0 %v3382
        %3818 = vmatmul.mubr.f32.gmra.mrb[0].mxu0 %v3381
        %v3819 = vpop.f32.mrb[0].mxu0
        %v3820 = vadd.f32 0.0, %v3819
        %v3821 = vpop.f32.mrb[0].mxu0
        %3822 = vmatprep.mubr.f32.mxu0 %v3385
        %3823 = vmatmul.mubr.f32.gmra.mrb[0].mxu0 %v3384
        %v3824 = vpop.f32.mrb[0].mxu0
        %v3825 = vadd.f32 0.0, %v3824
        %v3826 = vpop.f32.mrb[0].mxu0
        %3827 = vmatprep.mubr.f32.mxu0 %v3388
        %3828 = vmatmul.mubr.f32.gmra.mrb[0].mxu0 %v3387
        %v3829 = vpop.f32.mrb[0].mxu0
        %v3830 = vadd.f32 0.0, %v3829
        %v3831 = vpop.f32.mrb[0].mxu0
        %3832 = vmatprep.mubr.f32.mxu0 %v3391
        %3833 = vmatmul.mubr.f32.gmra.mrb[0].mxu0 %v3390
        %v3834 = vpop.f32.mrb[0].mxu0
        %v3835 = vadd.f32 0.0, %v3834
        %v3836 = vpop.f32.mrb[0].mxu0
        %3837 = vmatprep.mubr.f32.mxu0 %v3394
        %3838 = vmatmul.mubr.f32.gmra.mrb[0].mxu0 %v3393
        %v3839 = vpop.f32.mrb[0].mxu0
        %v3840 = vadd.f32 0.0, %v3839
        %v3841 = vpop.f32.mrb[0].mxu0
        %3842 = vmatprep.mubr.f32.mxu0 %v3397
        %3843 = vmatmul.mubr.f32.gmra.mrb[0].mxu0 %v3396
        %v3844 = vpop.f32.mrb[0].mxu0
        %v3845 = vadd.f32 0.0, %v3844
        %v3846 = vpop.f32.mrb[0].mxu0
        %3847 = vmatprep.mubr.f32.mxu0 %v3400
        %3848 = vmatmul.mubr.f32.gmra.mrb[0].mxu0 %v3399
        %v3849 = vpop.f32.mrb[0].mxu0
        %v3850 = vadd.f32 0.0, %v3849
        %v3851 = vpop.f32.mrb[0].mxu0
        %3852 = vmatprep.mubr.f32.mxu0 %v3403
        %3853 = vmatmul.mubr.f32.gmra.mrb[0].mxu0 %v3402
        %v3854 = vpop.f32.mrb[0].mxu0
        %v3855 = vadd.f32 0.0, %v3854
        %v3856 = vpop.f32.mrb[0].mxu0
        %3857 = vmatprep.mubr.f32.mxu0 %v3406
        %3858 = vmatmul.mubr.f32.gmra.mrb[0].mxu0 %v3405
        %v3859 = vpop.f32.mrb[0].mxu0
        %v3860 = vadd.f32 0.0, %v3859
        %v3861 = vpop.f32.mrb[0].mxu0
        %3862 = vmatprep.mubr.f32.mxu0 %v3409
        %3863 = vmatmul.mubr.f32.gmra.mrb[0].mxu0 %v3408
        %v3864 = vpop.f32.mrb[0].mxu0
        %v3865 = vadd.f32 0.0, %v3864
        %v3866 = vpop.f32.mrb[0].mxu0
        %3867 = vmatprep.mubr.f32.mxu0 %v3412
        %3868 = vmatmul.mubr.f32.gmra.mrb[0].mxu0 %v3411
        %v3869 = vpop.f32.mrb[0].mxu0
        %v3870 = vadd.f32 0.0, %v3869
        %v3871 = vpop.f32.mrb[0].mxu0
        %3872 = vmatprep.mubr.f32.mxu0 %v3415
        %3873 = vmatmul.mubr.f32.gmra.mrb[0].mxu0 %v3414
        %v3874 = vpop.f32.mrb[0].mxu0
        %v3875 = vadd.f32 0.0, %v3874
        %v3876 = vpop.f32.mrb[0].mxu0
        %3877 = vmatprep.mubr.f32.mxu0 %v3418
        %3878 = vmatmul.mubr.f32.gmra.mrb[0].mxu0 %v3417
        %v3879 = vpop.f32.mrb[0].mxu0
        %v3880 = vadd.f32 0.0, %v3879
        %v3881 = vpop.f32.mrb[0].mxu0
        %3882 = vmatprep.mubr.f32.mxu0 %v3421
        %3883 = vmatmul.mubr.f32.gmra.mrb[0].mxu0 %v3420
        %v3884 = vpop.f32.mrb[0].mxu0
        %v3885 = vadd.f32 0.0, %v3884
        %v3886 = vpop.f32.mrb[0].mxu0
        %3887 = vmatprep.mubr.f32.mxu0 %v3424
        %3888 = vmatmul.mubr.f32.gmra.mrb[0].mxu0 %v3423
        %v3889 = vpop.f32.mrb[0].mxu0
        %v3890 = vadd.f32 0.0, %v3889
        %v3891 = vpop.f32.mrb[0].mxu0
        %3892 = vmatprep.mubr.f32.mxu0 %v3427
        %3893 = vmatmul.mubr.f32.gmra.mrb[0].mxu0 %v3426
        %v3894 = vpop.f32.mrb[0].mxu0
        %v3895 = vadd.f32 0.0, %v3894
        %v3896 = vpop.f32.mrb[0].mxu0
        %3897 = vmatprep.mubr.f32.mxu0 %v3430
        %3898 = vmatmul.mubr.f32.gmra.mrb[0].mxu0 %v3429
        %v3899 = vpop.f32.mrb[0].mxu0
        %v3900 = vadd.f32 0.0, %v3899
        %v3901 = vpop.f32.mrb[0].mxu0
        %3902 = vmatprep.mubr.f32.mxu0 %v3433
        %3903 = vmatmul.mubr.f32.gmra.mrb[0].mxu0 %v3432
        %v3904 = vpop.f32.mrb[0].mxu0
        %v3905 = vadd.f32 0.0, %v3904
        %v3906 = vpop.f32.mrb[0].mxu0
        %3907 = vmatprep.mubr.f32.mxu0 %v3436
        %3908 = vmatmul.mubr.f32.gmra.mrb[0].mxu0 %v3435
        %v3909 = vpop.f32.mrb[0].mxu0
        %v3910 = vadd.f32 0.0, %v3909
        %v3911 = vpop.f32.mrb[0].mxu0
        %3912 = vmatprep.mubr.f32.mxu0 %v3439
        %3913 = vmatmul.mubr.f32.gmra.mrb[0].mxu0 %v3438
        %v3914 = vpop.f32.mrb[0].mxu0
        %v3915 = vadd.f32 0.0, %v3914
        %v3916 = vpop.f32.mrb[0].mxu0
        %3917 = vmatprep.mubr.f32.mxu0 %v3442
        %3918 = vmatmul.mubr.f32.gmra.mrb[0].mxu0 %v3441
        %v3919 = vpop.f32.mrb[0].mxu0
        %v3920 = vadd.f32 0.0, %v3919
        %v3921 = vpop.f32.mrb[0].mxu0
        %3922 = vmatprep.mubr.f32.mxu0 %v3445
        %3923 = vmatmul.mubr.f32.gmra.mrb[0].mxu0 %v3444
        %v3924 = vpop.f32.mrb[0].mxu0
        %v3925 = vadd.f32 0.0, %v3924
        %v3926 = vpop.f32.mrb[0].mxu0
        %3927 = vdwg.mxu0
        %3928 = vmatprep.subr.mxu0 0.0
        %3929 = vmatpush1.msra.mxu0 %v3527
        %3930 = vmatprep.subr.mxu0 0.0
        %3931 = vmatpush1.msra.mxu0 %v3528
        %3932 = vmatprep.subr.mxu0 0.0
        %3933 = vmatpush1.msra.mxu0 %v3529
        %3934 = vmatprep.subr.mxu0 0.0
        %3935 = vmatpush1.msra.mxu0 %v3530
        %3936 = vmatprep.subr.mxu0 0.0
        %3937 = vmatpush1.msra.mxu0 %v3531
        %3938 = vmatprep.subr.mxu0 0.0
        %3939 = vmatpush1.msra.mxu0 %v3532
        %3940 = vmatprep.subr.mxu0 0.0
        %3941 = vmatpush1.msra.mxu0 %v3533
        %3942 = vmatprep.subr.mxu0 0.0
        %3943 = vmatpush1.msra.mxu0 %v3534
        %3944 = vmatprep.subr.mxu0 0.0
        %3945 = vmatpush1.msra.mxu0 %v3535
        %3946 = vmatprep.subr.mxu0 0.0
        %3947 = vmatpush1.msra.mxu0 %v3536
        %3948 = vmatprep.subr.mxu0 0.0
        %3949 = vmatpush1.msra.mxu0 %v3537
        %3950 = vmatprep.subr.mxu0 0.0
        %3951 = vmatpush1.msra.mxu0 %v3538
        %3952 = vmatprep.subr.mxu0 0.0
        %3953 = vmatpush1.msra.mxu0 %v3539
        %3954 = vmatprep.subr.mxu0 0.0
        %3955 = vmatpush1.msra.mxu0 %v3540
        %3956 = vmatprep.subr.mxu0 0.0
        %3957 = vmatpush1.msra.mxu0 %v3541
        %3958 = vmatprep.subr.mxu0 0.0
        %3959 = vmatpush1.msra.mxu0 %v3542
        %3960 = vmatprep.subr.mxu0 0.0
        %3961 = vmatpush1.msra.mxu0 0.0
        %3962 = vmatprep.subr.mxu0 0.0
        %3963 = vmatpush1.msra.mxu0 0.0
        %3964 = vmatprep.subr.mxu0 0.0
        %3965 = vmatpush1.msra.mxu0 0.0
        %3966 = vmatprep.subr.mxu0 0.0
        %3967 = vmatpush1.msra.mxu0 0.0
        %3968 = vmatprep.subr.mxu0 0.0
        %3969 = vmatpush1.msra.mxu0 0.0
        %3970 = vmatprep.subr.mxu0 0.0
        %3971 = vmatpush1.msra.mxu0 0.0
        %3972 = vmatprep.subr.mxu0 0.0
        %3973 = vmatpush1.msra.mxu0 0.0
        %3974 = vmatprep.subr.mxu0 0.0
        %3975 = vmatpush1.msra.mxu0 0.0
        %3976 = vmatprep.subr.mxu0 0.0
        %3977 = vmatpush1.msra.mxu0 0.0
        %3978 = vmatprep.subr.mxu0 0.0
        %3979 = vmatpush1.msra.mxu0 0.0
        %3980 = vmatprep.subr.mxu0 0.0
        %3981 = vmatpush1.msra.mxu0 0.0
        %3982 = vmatprep.subr.mxu0 0.0
        %3983 = vmatpush1.msra.mxu0 0.0
        %3984 = vmatprep.subr.mxu0 0.0
        %3985 = vmatpush1.msra.mxu0 0.0
        %3986 = vmatprep.subr.mxu0 0.0
        %3987 = vmatpush1.msra.mxu0 0.0
        %3988 = vmatprep.subr.mxu0 0.0
        %3989 = vmatpush1.msra.mxu0 0.0
        %3990 = vmatprep.subr.mxu0 0.0
        %3991 = vmatpush1.msra.mxu0 0.0
        %3992 = vmatprep.mubr.f32.mxu0 0.0
        %3993 = vmatmul.mubr.f32.gmra.mrb[0].mxu0 %v3257
        %v3994 = vpop.f32.mrb[0].mxu0
        %v3995 = vadd.f32 %v3610, %v3994
        %v3996 = vpop.f32.mrb[0].mxu0
        %3997 = vmatprep.mubr.f32.mxu0 0.0
        %3998 = vmatmul.mubr.f32.gmra.mrb[0].mxu0 %v3260
        %v3999 = vpop.f32.mrb[0].mxu0
        %v4000 = vadd.f32 %v3615, %v3999
        %v4001 = vpop.f32.mrb[0].mxu0
        %4002 = vmatprep.mubr.f32.mxu0 0.0
        %4003 = vmatmul.mubr.f32.gmra.mrb[0].mxu0 %v3263
        %v4004 = vpop.f32.mrb[0].mxu0
        %v4005 = vadd.f32 %v3620, %v4004
        %v4006 = vpop.f32.mrb[0].mxu0
        %4007 = vmatprep.mubr.f32.mxu0 0.0
        %4008 = vmatmul.mubr.f32.gmra.mrb[0].mxu0 %v3266
        %v4009 = vpop.f32.mrb[0].mxu0
        %v4010 = vadd.f32 %v3625, %v4009
        %v4011 = vpop.f32.mrb[0].mxu0
        %4012 = vmatprep.mubr.f32.mxu0 0.0
        %4013 = vmatmul.mubr.f32.gmra.mrb[0].mxu0 %v3269
        %v4014 = vpop.f32.mrb[0].mxu0
        %v4015 = vadd.f32 %v3630, %v4014
        %v4016 = vpop.f32.mrb[0].mxu0
        %4017 = vmatprep.mubr.f32.mxu0 0.0
        %4018 = vmatmul.mubr.f32.gmra.mrb[0].mxu0 %v3272
        %v4019 = vpop.f32.mrb[0].mxu0
        %v4020 = vadd.f32 %v3635, %v4019
        %v4021 = vpop.f32.mrb[0].mxu0
        %4022 = vmatprep.mubr.f32.mxu0 0.0
        %4023 = vmatmul.mubr.f32.gmra.mrb[0].mxu0 %v3275
        %v4024 = vpop.f32.mrb[0].mxu0
        %v4025 = vadd.f32 %v3640, %v4024
        %v4026 = vpop.f32.mrb[0].mxu0
        %4027 = vmatprep.mubr.f32.mxu0 0.0
        %4028 = vmatmul.mubr.f32.gmra.mrb[0].mxu0 %v3278
        %v4029 = vpop.f32.mrb[0].mxu0
        %v4030 = vadd.f32 %v3645, %v4029
        %v4031 = vpop.f32.mrb[0].mxu0
        %4032 = vmatprep.mubr.f32.mxu0 0.0
        %4033 = vmatmul.mubr.f32.gmra.mrb[0].mxu0 %v3281
        %v4034 = vpop.f32.mrb[0].mxu0
        %v4035 = vadd.f32 %v3650, %v4034
        %v4036 = vpop.f32.mrb[0].mxu0
        %4037 = vmatprep.mubr.f32.mxu0 0.0
        %4038 = vmatmul.mubr.f32.gmra.mrb[0].mxu0 %v3284
        %v4039 = vpop.f32.mrb[0].mxu0
        %v4040 = vadd.f32 %v3655, %v4039
        %v4041 = vpop.f32.mrb[0].mxu0
        %4042 = vmatprep.mubr.f32.mxu0 0.0
        %4043 = vmatmul.mubr.f32.gmra.mrb[0].mxu0 %v3287
        %v4044 = vpop.f32.mrb[0].mxu0
        %v4045 = vadd.f32 %v3660, %v4044
        %v4046 = vpop.f32.mrb[0].mxu0
        %4047 = vmatprep.mubr.f32.mxu0 0.0
        %4048 = vmatmul.mubr.f32.gmra.mrb[0].mxu0 %v3290
        %v4049 = vpop.f32.mrb[0].mxu0
        %v4050 = vadd.f32 %v3665, %v4049
        %v4051 = vpop.f32.mrb[0].mxu0
        %4052 = vmatprep.mubr.f32.mxu0 0.0
        %4053 = vmatmul.mubr.f32.gmra.mrb[0].mxu0 %v3293
        %v4054 = vpop.f32.mrb[0].mxu0
        %v4055 = vadd.f32 %v3670, %v4054
        %v4056 = vpop.f32.mrb[0].mxu0
        %4057 = vmatprep.mubr.f32.mxu0 0.0
        %4058 = vmatmul.mubr.f32.gmra.mrb[0].mxu0 %v3296
        %v4059 = vpop.f32.mrb[0].mxu0
        %v4060 = vadd.f32 %v3675, %v4059
        %v4061 = vpop.f32.mrb[0].mxu0
        %4062 = vmatprep.mubr.f32.mxu0 0.0
        %4063 = vmatmul.mubr.f32.gmra.mrb[0].mxu0 %v3299
        %v4064 = vpop.f32.mrb[0].mxu0
        %v4065 = vadd.f32 %v3680, %v4064
        %v4066 = vpop.f32.mrb[0].mxu0
        %4067 = vmatprep.mubr.f32.mxu0 0.0
        %4068 = vmatmul.mubr.f32.gmra.mrb[0].mxu0 %v3302
        %v4069 = vpop.f32.mrb[0].mxu0
        %v4070 = vadd.f32 %v3685, %v4069
        %v4071 = vpop.f32.mrb[0].mxu0
        %4072 = vmatprep.mubr.f32.mxu0 0.0
        %4073 = vmatmul.mubr.f32.gmra.mrb[0].mxu0 %v3305
        %v4074 = vpop.f32.mrb[0].mxu0
        %v4075 = vadd.f32 %v3690, %v4074
        %v4076 = vpop.f32.mrb[0].mxu0
        %4077 = vmatprep.mubr.f32.mxu0 0.0
        %4078 = vmatmul.mubr.f32.gmra.mrb[0].mxu0 %v3308
        %v4079 = vpop.f32.mrb[0].mxu0
        %v4080 = vadd.f32 %v3695, %v4079
        %v4081 = vpop.f32.mrb[0].mxu0
        %4082 = vmatprep.mubr.f32.mxu0 0.0
        %4083 = vmatmul.mubr.f32.gmra.mrb[0].mxu0 %v3311
        %v4084 = vpop.f32.mrb[0].mxu0
        %v4085 = vadd.f32 %v3700, %v4084
        %v4086 = vpop.f32.mrb[0].mxu0
        %4087 = vmatprep.mubr.f32.mxu0 0.0
        %4088 = vmatmul.mubr.f32.gmra.mrb[0].mxu0 %v3314
        %v4089 = vpop.f32.mrb[0].mxu0
        %v4090 = vadd.f32 %v3705, %v4089
        %v4091 = vpop.f32.mrb[0].mxu0
        %4092 = vmatprep.mubr.f32.mxu0 0.0
        %4093 = vmatmul.mubr.f32.gmra.mrb[0].mxu0 %v3317
        %v4094 = vpop.f32.mrb[0].mxu0
        %v4095 = vadd.f32 %v3710, %v4094
        %v4096 = vpop.f32.mrb[0].mxu0
        %4097 = vmatprep.mubr.f32.mxu0 0.0
        %4098 = vmatmul.mubr.f32.gmra.mrb[0].mxu0 %v3320
        %v4099 = vpop.f32.mrb[0].mxu0
        %v4100 = vadd.f32 %v3715, %v4099
        %v4101 = vpop.f32.mrb[0].mxu0
        %4102 = vmatprep.mubr.f32.mxu0 0.0
        %4103 = vmatmul.mubr.f32.gmra.mrb[0].mxu0 %v3323
        %v4104 = vpop.f32.mrb[0].mxu0
        %v4105 = vadd.f32 %v3720, %v4104
        %v4106 = vpop.f32.mrb[0].mxu0
        %4107 = vmatprep.mubr.f32.mxu0 0.0
        %4108 = vmatmul.mubr.f32.gmra.mrb[0].mxu0 %v3326
        %v4109 = vpop.f32.mrb[0].mxu0
        %v4110 = vadd.f32 %v3725, %v4109
        %v4111 = vpop.f32.mrb[0].mxu0
        %4112 = vmatprep.mubr.f32.mxu0 0.0
        %4113 = vmatmul.mubr.f32.gmra.mrb[0].mxu0 %v3329
        %v4114 = vpop.f32.mrb[0].mxu0
        %v4115 = vadd.f32 %v3730, %v4114
        %v4116 = vpop.f32.mrb[0].mxu0
        %4117 = vmatprep.mubr.f32.mxu0 0.0
        %4118 = vmatmul.mubr.f32.gmra.mrb[0].mxu0 %v3332
        %v4119 = vpop.f32.mrb[0].mxu0
        %v4120 = vadd.f32 %v3735, %v4119
        %v4121 = vpop.f32.mrb[0].mxu0
        %4122 = vmatprep.mubr.f32.mxu0 0.0
        %4123 = vmatmul.mubr.f32.gmra.mrb[0].mxu0 %v3335
        %v4124 = vpop.f32.mrb[0].mxu0
        %v4125 = vadd.f32 %v3740, %v4124
        %v4126 = vpop.f32.mrb[0].mxu0
        %4127 = vmatprep.mubr.f32.mxu0 0.0
        %4128 = vmatmul.mubr.f32.gmra.mrb[0].mxu0 %v3338
        %v4129 = vpop.f32.mrb[0].mxu0
        %v4130 = vadd.f32 %v3745, %v4129
        %v4131 = vpop.f32.mrb[0].mxu0
        %4132 = vmatprep.mubr.f32.mxu0 0.0
        %4133 = vmatmul.mubr.f32.gmra.mrb[0].mxu0 %v3341
        %v4134 = vpop.f32.mrb[0].mxu0
        %v4135 = vadd.f32 %v3750, %v4134
        %v4136 = vpop.f32.mrb[0].mxu0
        %4137 = vmatprep.mubr.f32.mxu0 0.0
        %4138 = vmatmul.mubr.f32.gmra.mrb[0].mxu0 %v3344
        %v4139 = vpop.f32.mrb[0].mxu0
        %v4140 = vadd.f32 %v3755, %v4139
        %v4141 = vpop.f32.mrb[0].mxu0
        %4142 = vmatprep.mubr.f32.mxu0 0.0
        %4143 = vmatmul.mubr.f32.gmra.mrb[0].mxu0 %v3347
        %v4144 = vpop.f32.mrb[0].mxu0
        %v4145 = vadd.f32 %v3760, %v4144
        %v4146 = vpop.f32.mrb[0].mxu0
        %4147 = vmatprep.mubr.f32.mxu0 0.0
        %4148 = vmatmul.mubr.f32.gmra.mrb[0].mxu0 %v3350
        %v4149 = vpop.f32.mrb[0].mxu0
        %v4150 = vadd.f32 %v3765, %v4149
        %v4151 = vpop.f32.mrb[0].mxu0
        %4152 = vmatprep.mubr.f32.mxu0 0.0
        %4153 = vmatmul.mubr.f32.gmra.mrb[0].mxu0 %v3353
        %v4154 = vpop.f32.mrb[0].mxu0
        %v4155 = vadd.f32 %v3770, %v4154
        %v4156 = vpop.f32.mrb[0].mxu0
        %4157 = vmatprep.mubr.f32.mxu0 0.0
        %4158 = vmatmul.mubr.f32.gmra.mrb[0].mxu0 %v3356
        %v4159 = vpop.f32.mrb[0].mxu0
        %v4160 = vadd.f32 %v3775, %v4159
        %v4161 = vpop.f32.mrb[0].mxu0
        %4162 = vmatprep.mubr.f32.mxu0 0.0
        %4163 = vmatmul.mubr.f32.gmra.mrb[0].mxu0 %v3359
        %v4164 = vpop.f32.mrb[0].mxu0
        %v4165 = vadd.f32 %v3780, %v4164
        %v4166 = vpop.f32.mrb[0].mxu0
        %4167 = vmatprep.mubr.f32.mxu0 0.0
        %4168 = vmatmul.mubr.f32.gmra.mrb[0].mxu0 %v3362
        %v4169 = vpop.f32.mrb[0].mxu0
        %v4170 = vadd.f32 %v3785, %v4169
        %v4171 = vpop.f32.mrb[0].mxu0
        %4172 = vmatprep.mubr.f32.mxu0 0.0
        %4173 = vmatmul.mubr.f32.gmra.mrb[0].mxu0 %v3365
        %v4174 = vpop.f32.mrb[0].mxu0
        %v4175 = vadd.f32 %v3790, %v4174
        %v4176 = vpop.f32.mrb[0].mxu0
        %4177 = vmatprep.mubr.f32.mxu0 0.0
        %4178 = vmatmul.mubr.f32.gmra.mrb[0].mxu0 %v3368
        %v4179 = vpop.f32.mrb[0].mxu0
        %v4180 = vadd.f32 %v3795, %v4179
        %v4181 = vpop.f32.mrb[0].mxu0
        %4182 = vmatprep.mubr.f32.mxu0 0.0
        %4183 = vmatmul.mubr.f32.gmra.mrb[0].mxu0 %v3371
        %v4184 = vpop.f32.mrb[0].mxu0
        %v4185 = vadd.f32 %v3800, %v4184
        %v4186 = vpop.f32.mrb[0].mxu0
        %4187 = vmatprep.mubr.f32.mxu0 0.0
        %4188 = vmatmul.mubr.f32.gmra.mrb[0].mxu0 %v3374
        %v4189 = vpop.f32.mrb[0].mxu0
        %v4190 = vadd.f32 %v3805, %v4189
        %v4191 = vpop.f32.mrb[0].mxu0
        %4192 = vmatprep.mubr.f32.mxu0 0.0
        %4193 = vmatmul.mubr.f32.gmra.mrb[0].mxu0 %v3377
        %v4194 = vpop.f32.mrb[0].mxu0
        %v4195 = vadd.f32 %v3810, %v4194
        %v4196 = vpop.f32.mrb[0].mxu0
        %4197 = vmatprep.mubr.f32.mxu0 0.0
        %4198 = vmatmul.mubr.f32.gmra.mrb[0].mxu0 %v3380
        %v4199 = vpop.f32.mrb[0].mxu0
        %v4200 = vadd.f32 %v3815, %v4199
        %v4201 = vpop.f32.mrb[0].mxu0
        %4202 = vmatprep.mubr.f32.mxu0 0.0
        %4203 = vmatmul.mubr.f32.gmra.mrb[0].mxu0 %v3383
        %v4204 = vpop.f32.mrb[0].mxu0
        %v4205 = vadd.f32 %v3820, %v4204
        %v4206 = vpop.f32.mrb[0].mxu0
        %4207 = vmatprep.mubr.f32.mxu0 0.0
        %4208 = vmatmul.mubr.f32.gmra.mrb[0].mxu0 %v3386
        %v4209 = vpop.f32.mrb[0].mxu0
        %v4210 = vadd.f32 %v3825, %v4209
        %v4211 = vpop.f32.mrb[0].mxu0
        %4212 = vmatprep.mubr.f32.mxu0 0.0
        %4213 = vmatmul.mubr.f32.gmra.mrb[0].mxu0 %v3389
        %v4214 = vpop.f32.mrb[0].mxu0
        %v4215 = vadd.f32 %v3830, %v4214
        %v4216 = vpop.f32.mrb[0].mxu0
        %4217 = vmatprep.mubr.f32.mxu0 0.0
        %4218 = vmatmul.mubr.f32.gmra.mrb[0].mxu0 %v3392
        %v4219 = vpop.f32.mrb[0].mxu0
        %v4220 = vadd.f32 %v3835, %v4219
        %v4221 = vpop.f32.mrb[0].mxu0
        %4222 = vmatprep.mubr.f32.mxu0 0.0
        %4223 = vmatmul.mubr.f32.gmra.mrb[0].mxu0 %v3395
        %v4224 = vpop.f32.mrb[0].mxu0
        %v4225 = vadd.f32 %v3840, %v4224
        %v4226 = vpop.f32.mrb[0].mxu0
        %4227 = vmatprep.mubr.f32.mxu0 0.0
        %4228 = vmatmul.mubr.f32.gmra.mrb[0].mxu0 %v3398
        %v4229 = vpop.f32.mrb[0].mxu0
        %v4230 = vadd.f32 %v3845, %v4229
        %v4231 = vpop.f32.mrb[0].mxu0
        %4232 = vmatprep.mubr.f32.mxu0 0.0
        %4233 = vmatmul.mubr.f32.gmra.mrb[0].mxu0 %v3401
        %v4234 = vpop.f32.mrb[0].mxu0
        %v4235 = vadd.f32 %v3850, %v4234
        %v4236 = vpop.f32.mrb[0].mxu0
        %4237 = vmatprep.mubr.f32.mxu0 0.0
        %4238 = vmatmul.mubr.f32.gmra.mrb[0].mxu0 %v3404
        %v4239 = vpop.f32.mrb[0].mxu0
        %v4240 = vadd.f32 %v3855, %v4239
        %v4241 = vpop.f32.mrb[0].mxu0
        %4242 = vmatprep.mubr.f32.mxu0 0.0
        %4243 = vmatmul.mubr.f32.gmra.mrb[0].mxu0 %v3407
        %v4244 = vpop.f32.mrb[0].mxu0
        %v4245 = vadd.f32 %v3860, %v4244
        %v4246 = vpop.f32.mrb[0].mxu0
        %4247 = vmatprep.mubr.f32.mxu0 0.0
        %4248 = vmatmul.mubr.f32.gmra.mrb[0].mxu0 %v3410
        %v4249 = vpop.f32.mrb[0].mxu0
        %v4250 = vadd.f32 %v3865, %v4249
        %v4251 = vpop.f32.mrb[0].mxu0
        %4252 = vmatprep.mubr.f32.mxu0 0.0
        %4253 = vmatmul.mubr.f32.gmra.mrb[0].mxu0 %v3413
        %v4254 = vpop.f32.mrb[0].mxu0
        %v4255 = vadd.f32 %v3870, %v4254
        %v4256 = vpop.f32.mrb[0].mxu0
        %4257 = vmatprep.mubr.f32.mxu0 0.0
        %4258 = vmatmul.mubr.f32.gmra.mrb[0].mxu0 %v3416
        %v4259 = vpop.f32.mrb[0].mxu0
        %v4260 = vadd.f32 %v3875, %v4259
        %v4261 = vpop.f32.mrb[0].mxu0
        %4262 = vmatprep.mubr.f32.mxu0 0.0
        %4263 = vmatmul.mubr.f32.gmra.mrb[0].mxu0 %v3419
        %v4264 = vpop.f32.mrb[0].mxu0
        %v4265 = vadd.f32 %v3880, %v4264
        %v4266 = vpop.f32.mrb[0].mxu0
        %4267 = vmatprep.mubr.f32.mxu0 0.0
        %4268 = vmatmul.mubr.f32.gmra.mrb[0].mxu0 %v3422
        %v4269 = vpop.f32.mrb[0].mxu0
        %v4270 = vadd.f32 %v3885, %v4269
        %v4271 = vpop.f32.mrb[0].mxu0
        %4272 = vmatprep.mubr.f32.mxu0 0.0
        %4273 = vmatmul.mubr.f32.gmra.mrb[0].mxu0 %v3425
        %v4274 = vpop.f32.mrb[0].mxu0
        %v4275 = vadd.f32 %v3890, %v4274
        %v4276 = vpop.f32.mrb[0].mxu0
        %4277 = vmatprep.mubr.f32.mxu0 0.0
        %4278 = vmatmul.mubr.f32.gmra.mrb[0].mxu0 %v3428
        %v4279 = vpop.f32.mrb[0].mxu0
        %v4280 = vadd.f32 %v3895, %v4279
        %v4281 = vpop.f32.mrb[0].mxu0
        %4282 = vmatprep.mubr.f32.mxu0 0.0
        %4283 = vmatmul.mubr.f32.gmra.mrb[0].mxu0 %v3431
        %v4284 = vpop.f32.mrb[0].mxu0
        %v4285 = vadd.f32 %v3900, %v4284
        %v4286 = vpop.f32.mrb[0].mxu0
        %4287 = vmatprep.mubr.f32.mxu0 0.0
        %4288 = vmatmul.mubr.f32.gmra.mrb[0].mxu0 %v3434
        %v4289 = vpop.f32.mrb[0].mxu0
        %v4290 = vadd.f32 %v3905, %v4289
        %v4291 = vpop.f32.mrb[0].mxu0
        %4292 = vmatprep.mubr.f32.mxu0 0.0
        %4293 = vmatmul.mubr.f32.gmra.mrb[0].mxu0 %v3437
        %v4294 = vpop.f32.mrb[0].mxu0
        %v4295 = vadd.f32 %v3910, %v4294
        %v4296 = vpop.f32.mrb[0].mxu0
        %4297 = vmatprep.mubr.f32.mxu0 0.0
        %4298 = vmatmul.mubr.f32.gmra.mrb[0].mxu0 %v3440
        %v4299 = vpop.f32.mrb[0].mxu0
        %v4300 = vadd.f32 %v3915, %v4299
        %v4301 = vpop.f32.mrb[0].mxu0
        %4302 = vmatprep.mubr.f32.mxu0 0.0
        %4303 = vmatmul.mubr.f32.gmra.mrb[0].mxu0 %v3443
        %v4304 = vpop.f32.mrb[0].mxu0
        %v4305 = vadd.f32 %v3920, %v4304
        %v4306 = vpop.f32.mrb[0].mxu0
        %4307 = vmatprep.mubr.f32.mxu0 0.0
        %4308 = vmatmul.mubr.f32.gmra.mrb[0].mxu0 %v3446
        %v4309 = vpop.f32.mrb[0].mxu0
        %v4310 = vadd.f32 %v3925, %v4309
        %v4311 = vpop.f32.mrb[0].mxu0
        %4312 = vdwg.mxu0
        %4313 = vmatprep.subr.mxu0 0.0
        %4314 = vmatpush1.msra.mxu0 %v3447
        %4315 = vmatprep.subr.mxu0 0.0
        %4316 = vmatpush1.msra.mxu0 %v3448
        %4317 = vmatprep.subr.mxu0 0.0
        %4318 = vmatpush1.msra.mxu0 %v3449
        %4319 = vmatprep.subr.mxu0 0.0
        %4320 = vmatpush1.msra.mxu0 %v3450
        %4321 = vmatprep.subr.mxu0 0.0
        %4322 = vmatpush1.msra.mxu0 %v3451
        %4323 = vmatprep.subr.mxu0 0.0
        %4324 = vmatpush1.msra.mxu0 %v3452
        %4325 = vmatprep.subr.mxu0 0.0
        %4326 = vmatpush1.msra.mxu0 %v3453
        %4327 = vmatprep.subr.mxu0 0.0
        %4328 = vmatpush1.msra.mxu0 %v3454
        %4329 = vmatprep.subr.mxu0 0.0
        %4330 = vmatpush1.msra.mxu0 %v3455
        %4331 = vmatprep.subr.mxu0 0.0
        %4332 = vmatpush1.msra.mxu0 %v3456
        %4333 = vmatprep.subr.mxu0 0.0
        %4334 = vmatpush1.msra.mxu0 %v3457
        %4335 = vmatprep.subr.mxu0 0.0
        %4336 = vmatpush1.msra.mxu0 %v3458
        %4337 = vmatprep.subr.mxu0 0.0
        %4338 = vmatpush1.msra.mxu0 %v3459
        %4339 = vmatprep.subr.mxu0 0.0
        %4340 = vmatpush1.msra.mxu0 %v3460
        %4341 = vmatprep.subr.mxu0 0.0
        %4342 = vmatpush1.msra.mxu0 %v3461
        %4343 = vmatprep.subr.mxu0 0.0
        %4344 = vmatpush1.msra.mxu0 %v3462
        %4345 = vmatprep.subr.mxu0 0.0
        %4346 = vmatpush1.msra.mxu0 %v3463
        %4347 = vmatprep.subr.mxu0 0.0
        %4348 = vmatpush1.msra.mxu0 %v3464
        %4349 = vmatprep.subr.mxu0 0.0
        %4350 = vmatpush1.msra.mxu0 %v3465
        %4351 = vmatprep.subr.mxu0 0.0
        %4352 = vmatpush1.msra.mxu0 %v3466
        %4353 = vmatprep.subr.mxu0 0.0
        %4354 = vmatpush1.msra.mxu0 %v3467
        %4355 = vmatprep.subr.mxu0 0.0
        %4356 = vmatpush1.msra.mxu0 %v3468
        %4357 = vmatprep.subr.mxu0 0.0
        %4358 = vmatpush1.msra.mxu0 %v3469
        %4359 = vmatprep.subr.mxu0 0.0
        %4360 = vmatpush1.msra.mxu0 %v3470
        %4361 = vmatprep.subr.mxu0 0.0
        %4362 = vmatpush1.msra.mxu0 %v3471
        %4363 = vmatprep.subr.mxu0 0.0
        %4364 = vmatpush1.msra.mxu0 %v3472
        %4365 = vmatprep.subr.mxu0 0.0
        %4366 = vmatpush1.msra.mxu0 %v3473
        %4367 = vmatprep.subr.mxu0 0.0
        %4368 = vmatpush1.msra.mxu0 %v3474
        %4369 = vmatprep.subr.mxu0 0.0
        %4370 = vmatpush1.msra.mxu0 %v3475
        %4371 = vmatprep.subr.mxu0 0.0
        %4372 = vmatpush1.msra.mxu0 %v3476
        %4373 = vmatprep.subr.mxu0 0.0
        %4374 = vmatpush1.msra.mxu0 %v3477
        %4375 = vmatprep.subr.mxu0 0.0
        %4376 = vmatpush1.msra.mxu0 %v3478
        %4377 = vmatprep.mubr.f32.mxu0 %v2488
        %4378 = vmatmul.mubr.f32.gmra.mrb[0].mxu0 %v2487
        %v4379 = vpop.f32.mrb[0].mxu0
        %v4380 = vadd.f32 %v3995, %v4379
        %v4381 = vpop.f32.mrb[0].mxu0
        %4382 = vmatprep.mubr.f32.mxu0 %v2491
        %4383 = vmatmul.mubr.f32.gmra.mrb[0].mxu0 %v2490
        %v4384 = vpop.f32.mrb[0].mxu0
        %v4385 = vadd.f32 %v4000, %v4384
        %v4386 = vpop.f32.mrb[0].mxu0
        %4387 = vmatprep.mubr.f32.mxu0 %v2494
        %4388 = vmatmul.mubr.f32.gmra.mrb[0].mxu0 %v2493
        %v4389 = vpop.f32.mrb[0].mxu0
        %v4390 = vadd.f32 %v4005, %v4389
        %v4391 = vpop.f32.mrb[0].mxu0
        %4392 = vmatprep.mubr.f32.mxu0 %v2497
        %4393 = vmatmul.mubr.f32.gmra.mrb[0].mxu0 %v2496
        %v4394 = vpop.f32.mrb[0].mxu0
        %v4395 = vadd.f32 %v4010, %v4394
        %v4396 = vpop.f32.mrb[0].mxu0
        %4397 = vmatprep.mubr.f32.mxu0 %v2500
        %4398 = vmatmul.mubr.f32.gmra.mrb[0].mxu0 %v2499
        %v4399 = vpop.f32.mrb[0].mxu0
        %v4400 = vadd.f32 %v4015, %v4399
        %v4401 = vpop.f32.mrb[0].mxu0
        %4402 = vmatprep.mubr.f32.mxu0 %v2503
        %4403 = vmatmul.mubr.f32.gmra.mrb[0].mxu0 %v2502
        %v4404 = vpop.f32.mrb[0].mxu0
        %v4405 = vadd.f32 %v4020, %v4404
        %v4406 = vpop.f32.mrb[0].mxu0
        %4407 = vmatprep.mubr.f32.mxu0 %v2506
        %4408 = vmatmul.mubr.f32.gmra.mrb[0].mxu0 %v2505
        %v4409 = vpop.f32.mrb[0].mxu0
        %v4410 = vadd.f32 %v4025, %v4409
        %v4411 = vpop.f32.mrb[0].mxu0
        %4412 = vmatprep.mubr.f32.mxu0 %v2509
        %4413 = vmatmul.mubr.f32.gmra.mrb[0].mxu0 %v2508
        %v4414 = vpop.f32.mrb[0].mxu0
        %v4415 = vadd.f32 %v4030, %v4414
        %v4416 = vpop.f32.mrb[0].mxu0
        %4417 = vmatprep.mubr.f32.mxu0 %v2512
        %4418 = vmatmul.mubr.f32.gmra.mrb[0].mxu0 %v2511
        %v4419 = vpop.f32.mrb[0].mxu0
        %v4420 = vadd.f32 %v4035, %v4419
        %v4421 = vpop.f32.mrb[0].mxu0
        %4422 = vmatprep.mubr.f32.mxu0 %v2515
        %4423 = vmatmul.mubr.f32.gmra.mrb[0].mxu0 %v2514
        %v4424 = vpop.f32.mrb[0].mxu0
        %v4425 = vadd.f32 %v4040, %v4424
        %v4426 = vpop.f32.mrb[0].mxu0
        %4427 = vmatprep.mubr.f32.mxu0 %v2518
        %4428 = vmatmul.mubr.f32.gmra.mrb[0].mxu0 %v2517
        %v4429 = vpop.f32.mrb[0].mxu0
        %v4430 = vadd.f32 %v4045, %v4429
        %v4431 = vpop.f32.mrb[0].mxu0
        %4432 = vmatprep.mubr.f32.mxu0 %v2521
        %4433 = vmatmul.mubr.f32.gmra.mrb[0].mxu0 %v2520
        %v4434 = vpop.f32.mrb[0].mxu0
        %v4435 = vadd.f32 %v4050, %v4434
        %v4436 = vpop.f32.mrb[0].mxu0
        %4437 = vmatprep.mubr.f32.mxu0 %v2524
        %4438 = vmatmul.mubr.f32.gmra.mrb[0].mxu0 %v2523
        %v4439 = vpop.f32.mrb[0].mxu0
        %v4440 = vadd.f32 %v4055, %v4439
        %v4441 = vpop.f32.mrb[0].mxu0
        %4442 = vmatprep.mubr.f32.mxu0 %v2527
        %4443 = vmatmul.mubr.f32.gmra.mrb[0].mxu0 %v2526
        %v4444 = vpop.f32.mrb[0].mxu0
        %v4445 = vadd.f32 %v4060, %v4444
        %v4446 = vpop.f32.mrb[0].mxu0
        %4447 = vmatprep.mubr.f32.mxu0 %v2530
        %4448 = vmatmul.mubr.f32.gmra.mrb[0].mxu0 %v2529
        %v4449 = vpop.f32.mrb[0].mxu0
        %v4450 = vadd.f32 %v4065, %v4449
        %v4451 = vpop.f32.mrb[0].mxu0
        %4452 = vmatprep.mubr.f32.mxu0 %v2533
        %4453 = vmatmul.mubr.f32.gmra.mrb[0].mxu0 %v2532
        %v4454 = vpop.f32.mrb[0].mxu0
        %v4455 = vadd.f32 %v4070, %v4454
        %v4456 = vpop.f32.mrb[0].mxu0
        %4457 = vmatprep.mubr.f32.mxu0 %v2536
        %4458 = vmatmul.mubr.f32.gmra.mrb[0].mxu0 %v2535
        %v4459 = vpop.f32.mrb[0].mxu0
        %v4460 = vadd.f32 %v4075, %v4459
        %v4461 = vpop.f32.mrb[0].mxu0
        %4462 = vmatprep.mubr.f32.mxu0 %v2539
        %4463 = vmatmul.mubr.f32.gmra.mrb[0].mxu0 %v2538
        %v4464 = vpop.f32.mrb[0].mxu0
        %v4465 = vadd.f32 %v4080, %v4464
        %v4466 = vpop.f32.mrb[0].mxu0
        %4467 = vmatprep.mubr.f32.mxu0 %v2542
        %4468 = vmatmul.mubr.f32.gmra.mrb[0].mxu0 %v2541
        %v4469 = vpop.f32.mrb[0].mxu0
        %v4470 = vadd.f32 %v4085, %v4469
        %v4471 = vpop.f32.mrb[0].mxu0
        %4472 = vmatprep.mubr.f32.mxu0 %v2545
        %4473 = vmatmul.mubr.f32.gmra.mrb[0].mxu0 %v2544
        %v4474 = vpop.f32.mrb[0].mxu0
        %v4475 = vadd.f32 %v4090, %v4474
        %v4476 = vpop.f32.mrb[0].mxu0
        %4477 = vmatprep.mubr.f32.mxu0 %v2548
        %4478 = vmatmul.mubr.f32.gmra.mrb[0].mxu0 %v2547
        %v4479 = vpop.f32.mrb[0].mxu0
        %v4480 = vadd.f32 %v4095, %v4479
        %v4481 = vpop.f32.mrb[0].mxu0
        %4482 = vmatprep.mubr.f32.mxu0 %v2551
        %4483 = vmatmul.mubr.f32.gmra.mrb[0].mxu0 %v2550
        %v4484 = vpop.f32.mrb[0].mxu0
        %v4485 = vadd.f32 %v4100, %v4484
        %v4486 = vpop.f32.mrb[0].mxu0
        %4487 = vmatprep.mubr.f32.mxu0 %v2554
        %4488 = vmatmul.mubr.f32.gmra.mrb[0].mxu0 %v2553
        %v4489 = vpop.f32.mrb[0].mxu0
        %v4490 = vadd.f32 %v4105, %v4489
        %v4491 = vpop.f32.mrb[0].mxu0
        %4492 = vmatprep.mubr.f32.mxu0 %v2557
        %4493 = vmatmul.mubr.f32.gmra.mrb[0].mxu0 %v2556
        %v4494 = vpop.f32.mrb[0].mxu0
        %v4495 = vadd.f32 %v4110, %v4494
        %v4496 = vpop.f32.mrb[0].mxu0
        %4497 = vmatprep.mubr.f32.mxu0 %v2560
        %4498 = vmatmul.mubr.f32.gmra.mrb[0].mxu0 %v2559
        %v4499 = vpop.f32.mrb[0].mxu0
        %v4500 = vadd.f32 %v4115, %v4499
        %v4501 = vpop.f32.mrb[0].mxu0
        %4502 = vmatprep.mubr.f32.mxu0 %v2563
        %4503 = vmatmul.mubr.f32.gmra.mrb[0].mxu0 %v2562
        %v4504 = vpop.f32.mrb[0].mxu0
        %v4505 = vadd.f32 %v4120, %v4504
        %v4506 = vpop.f32.mrb[0].mxu0
        %4507 = vmatprep.mubr.f32.mxu0 %v2566
        %4508 = vmatmul.mubr.f32.gmra.mrb[0].mxu0 %v2565
        %v4509 = vpop.f32.mrb[0].mxu0
        %v4510 = vadd.f32 %v4125, %v4509
        %v4511 = vpop.f32.mrb[0].mxu0
        %4512 = vmatprep.mubr.f32.mxu0 %v2569
        %4513 = vmatmul.mubr.f32.gmra.mrb[0].mxu0 %v2568
        %v4514 = vpop.f32.mrb[0].mxu0
        %v4515 = vadd.f32 %v4130, %v4514
        %v4516 = vpop.f32.mrb[0].mxu0
        %4517 = vmatprep.mubr.f32.mxu0 %v2572
        %4518 = vmatmul.mubr.f32.gmra.mrb[0].mxu0 %v2571
        %v4519 = vpop.f32.mrb[0].mxu0
        %v4520 = vadd.f32 %v4135, %v4519
        %v4521 = vpop.f32.mrb[0].mxu0
        %4522 = vmatprep.mubr.f32.mxu0 %v2575
        %4523 = vmatmul.mubr.f32.gmra.mrb[0].mxu0 %v2574
        %v4524 = vpop.f32.mrb[0].mxu0
        %v4525 = vadd.f32 %v4140, %v4524
        %v4526 = vpop.f32.mrb[0].mxu0
        %4527 = vmatprep.mubr.f32.mxu0 %v2578
        %4528 = vmatmul.mubr.f32.gmra.mrb[0].mxu0 %v2577
        %v4529 = vpop.f32.mrb[0].mxu0
        %v4530 = vadd.f32 %v4145, %v4529
        %v4531 = vpop.f32.mrb[0].mxu0
        %4532 = vmatprep.mubr.f32.mxu0 %v2581
        %4533 = vmatmul.mubr.f32.gmra.mrb[0].mxu0 %v2580
        %v4534 = vpop.f32.mrb[0].mxu0
        %v4535 = vadd.f32 %v4150, %v4534
        %v4536 = vpop.f32.mrb[0].mxu0
        %4537 = vmatprep.mubr.f32.mxu0 %v2584
        %4538 = vmatmul.mubr.f32.gmra.mrb[0].mxu0 %v2583
        %v4539 = vpop.f32.mrb[0].mxu0
        %v4540 = vadd.f32 %v4155, %v4539
        %v4541 = vpop.f32.mrb[0].mxu0
        %4542 = vmatprep.mubr.f32.mxu0 %v2587
        %4543 = vmatmul.mubr.f32.gmra.mrb[0].mxu0 %v2586
        %v4544 = vpop.f32.mrb[0].mxu0
        %v4545 = vadd.f32 %v4160, %v4544
        %v4546 = vpop.f32.mrb[0].mxu0
        %4547 = vmatprep.mubr.f32.mxu0 %v2590
        %4548 = vmatmul.mubr.f32.gmra.mrb[0].mxu0 %v2589
        %v4549 = vpop.f32.mrb[0].mxu0
        %v4550 = vadd.f32 %v4165, %v4549
        %v4551 = vpop.f32.mrb[0].mxu0
        %4552 = vmatprep.mubr.f32.mxu0 %v2593
        %4553 = vmatmul.mubr.f32.gmra.mrb[0].mxu0 %v2592
        %v4554 = vpop.f32.mrb[0].mxu0
        %v4555 = vadd.f32 %v4170, %v4554
        %v4556 = vpop.f32.mrb[0].mxu0
        %4557 = vmatprep.mubr.f32.mxu0 %v2596
        %4558 = vmatmul.mubr.f32.gmra.mrb[0].mxu0 %v2595
        %v4559 = vpop.f32.mrb[0].mxu0
        %v4560 = vadd.f32 %v4175, %v4559
        %v4561 = vpop.f32.mrb[0].mxu0
        %4562 = vmatprep.mubr.f32.mxu0 %v2599
        %4563 = vmatmul.mubr.f32.gmra.mrb[0].mxu0 %v2598
        %v4564 = vpop.f32.mrb[0].mxu0
        %v4565 = vadd.f32 %v4180, %v4564
        %v4566 = vpop.f32.mrb[0].mxu0
        %4567 = vmatprep.mubr.f32.mxu0 %v2602
        %4568 = vmatmul.mubr.f32.gmra.mrb[0].mxu0 %v2601
        %v4569 = vpop.f32.mrb[0].mxu0
        %v4570 = vadd.f32 %v4185, %v4569
        %v4571 = vpop.f32.mrb[0].mxu0
        %4572 = vmatprep.mubr.f32.mxu0 %v2605
        %4573 = vmatmul.mubr.f32.gmra.mrb[0].mxu0 %v2604
        %v4574 = vpop.f32.mrb[0].mxu0
        %v4575 = vadd.f32 %v4190, %v4574
        %v4576 = vpop.f32.mrb[0].mxu0
        %4577 = vmatprep.mubr.f32.mxu0 %v2608
        %4578 = vmatmul.mubr.f32.gmra.mrb[0].mxu0 %v2607
        %v4579 = vpop.f32.mrb[0].mxu0
        %v4580 = vadd.f32 %v4195, %v4579
        %v4581 = vpop.f32.mrb[0].mxu0
        %4582 = vmatprep.mubr.f32.mxu0 %v2611
        %4583 = vmatmul.mubr.f32.gmra.mrb[0].mxu0 %v2610
        %v4584 = vpop.f32.mrb[0].mxu0
        %v4585 = vadd.f32 %v4200, %v4584
        %v4586 = vpop.f32.mrb[0].mxu0
        %4587 = vmatprep.mubr.f32.mxu0 %v2614
        %4588 = vmatmul.mubr.f32.gmra.mrb[0].mxu0 %v2613
        %v4589 = vpop.f32.mrb[0].mxu0
        %v4590 = vadd.f32 %v4205, %v4589
        %v4591 = vpop.f32.mrb[0].mxu0
        %4592 = vmatprep.mubr.f32.mxu0 %v2617
        %4593 = vmatmul.mubr.f32.gmra.mrb[0].mxu0 %v2616
        %v4594 = vpop.f32.mrb[0].mxu0
        %v4595 = vadd.f32 %v4210, %v4594
        %v4596 = vpop.f32.mrb[0].mxu0
        %4597 = vmatprep.mubr.f32.mxu0 %v2620
        %4598 = vmatmul.mubr.f32.gmra.mrb[0].mxu0 %v2619
        %v4599 = vpop.f32.mrb[0].mxu0
        %v4600 = vadd.f32 %v4215, %v4599
        %v4601 = vpop.f32.mrb[0].mxu0
        %4602 = vmatprep.mubr.f32.mxu0 %v2623
        %4603 = vmatmul.mubr.f32.gmra.mrb[0].mxu0 %v2622
        %v4604 = vpop.f32.mrb[0].mxu0
        %v4605 = vadd.f32 %v4220, %v4604
        %v4606 = vpop.f32.mrb[0].mxu0
        %4607 = vmatprep.mubr.f32.mxu0 %v2626
        %4608 = vmatmul.mubr.f32.gmra.mrb[0].mxu0 %v2625
        %v4609 = vpop.f32.mrb[0].mxu0
        %v4610 = vadd.f32 %v4225, %v4609
        %v4611 = vpop.f32.mrb[0].mxu0
        %4612 = vmatprep.mubr.f32.mxu0 %v2629
        %4613 = vmatmul.mubr.f32.gmra.mrb[0].mxu0 %v2628
        %v4614 = vpop.f32.mrb[0].mxu0
        %v4615 = vadd.f32 %v4230, %v4614
        %v4616 = vpop.f32.mrb[0].mxu0
        %4617 = vmatprep.mubr.f32.mxu0 %v2632
        %4618 = vmatmul.mubr.f32.gmra.mrb[0].mxu0 %v2631
        %v4619 = vpop.f32.mrb[0].mxu0
        %v4620 = vadd.f32 %v4235, %v4619
        %v4621 = vpop.f32.mrb[0].mxu0
        %4622 = vmatprep.mubr.f32.mxu0 %v2635
        %4623 = vmatmul.mubr.f32.gmra.mrb[0].mxu0 %v2634
        %v4624 = vpop.f32.mrb[0].mxu0
        %v4625 = vadd.f32 %v4240, %v4624
        %v4626 = vpop.f32.mrb[0].mxu0
        %4627 = vmatprep.mubr.f32.mxu0 %v2638
        %4628 = vmatmul.mubr.f32.gmra.mrb[0].mxu0 %v2637
        %v4629 = vpop.f32.mrb[0].mxu0
        %v4630 = vadd.f32 %v4245, %v4629
        %v4631 = vpop.f32.mrb[0].mxu0
        %4632 = vmatprep.mubr.f32.mxu0 %v2641
        %4633 = vmatmul.mubr.f32.gmra.mrb[0].mxu0 %v2640
        %v4634 = vpop.f32.mrb[0].mxu0
        %v4635 = vadd.f32 %v4250, %v4634
        %v4636 = vpop.f32.mrb[0].mxu0
        %4637 = vmatprep.mubr.f32.mxu0 %v2644
        %4638 = vmatmul.mubr.f32.gmra.mrb[0].mxu0 %v2643
        %v4639 = vpop.f32.mrb[0].mxu0
        %v4640 = vadd.f32 %v4255, %v4639
        %v4641 = vpop.f32.mrb[0].mxu0
        %4642 = vmatprep.mubr.f32.mxu0 %v2647
        %4643 = vmatmul.mubr.f32.gmra.mrb[0].mxu0 %v2646
        %v4644 = vpop.f32.mrb[0].mxu0
        %v4645 = vadd.f32 %v4260, %v4644
        %v4646 = vpop.f32.mrb[0].mxu0
        %4647 = vmatprep.mubr.f32.mxu0 %v2650
        %4648 = vmatmul.mubr.f32.gmra.mrb[0].mxu0 %v2649
        %v4649 = vpop.f32.mrb[0].mxu0
        %v4650 = vadd.f32 %v4265, %v4649
        %v4651 = vpop.f32.mrb[0].mxu0
        %4652 = vmatprep.mubr.f32.mxu0 %v2653
        %4653 = vmatmul.mubr.f32.gmra.mrb[0].mxu0 %v2652
        %v4654 = vpop.f32.mrb[0].mxu0
        %v4655 = vadd.f32 %v4270, %v4654
        %v4656 = vpop.f32.mrb[0].mxu0
        %4657 = vmatprep.mubr.f32.mxu0 %v2656
        %4658 = vmatmul.mubr.f32.gmra.mrb[0].mxu0 %v2655
        %v4659 = vpop.f32.mrb[0].mxu0
        %v4660 = vadd.f32 %v4275, %v4659
        %v4661 = vpop.f32.mrb[0].mxu0
        %4662 = vmatprep.mubr.f32.mxu0 %v2659
        %4663 = vmatmul.mubr.f32.gmra.mrb[0].mxu0 %v2658
        %v4664 = vpop.f32.mrb[0].mxu0
        %v4665 = vadd.f32 %v4280, %v4664
        %v4666 = vpop.f32.mrb[0].mxu0
        %4667 = vmatprep.mubr.f32.mxu0 %v2662
        %4668 = vmatmul.mubr.f32.gmra.mrb[0].mxu0 %v2661
        %v4669 = vpop.f32.mrb[0].mxu0
        %v4670 = vadd.f32 %v4285, %v4669
        %v4671 = vpop.f32.mrb[0].mxu0
        %4672 = vmatprep.mubr.f32.mxu0 %v2665
        %4673 = vmatmul.mubr.f32.gmra.mrb[0].mxu0 %v2664
        %v4674 = vpop.f32.mrb[0].mxu0
        %v4675 = vadd.f32 %v4290, %v4674
        %v4676 = vpop.f32.mrb[0].mxu0
        %4677 = vmatprep.mubr.f32.mxu0 %v2668
        %4678 = vmatmul.mubr.f32.gmra.mrb[0].mxu0 %v2667
        %v4679 = vpop.f32.mrb[0].mxu0
        %v4680 = vadd.f32 %v4295, %v4679
        %v4681 = vpop.f32.mrb[0].mxu0
        %4682 = vmatprep.mubr.f32.mxu0 %v2671
        %4683 = vmatmul.mubr.f32.gmra.mrb[0].mxu0 %v2670
        %v4684 = vpop.f32.mrb[0].mxu0
        %v4685 = vadd.f32 %v4300, %v4684
        %v4686 = vpop.f32.mrb[0].mxu0
        %4687 = vmatprep.mubr.f32.mxu0 %v2674
        %4688 = vmatmul.mubr.f32.gmra.mrb[0].mxu0 %v2673
        %v4689 = vpop.f32.mrb[0].mxu0
        %v4690 = vadd.f32 %v4305, %v4689
        %v4691 = vpop.f32.mrb[0].mxu0
        %4692 = vmatprep.mubr.f32.mxu0 %v2677
        %4693 = vmatmul.mubr.f32.gmra.mrb[0].mxu0 %v2676
        %v4694 = vpop.f32.mrb[0].mxu0
        %v4695 = vadd.f32 %v4310, %v4694
        %v4696 = vpop.f32.mrb[0].mxu0
        %4697 = vdwg.mxu0
        %4698 = vmatprep.subr.mxu0 0.0
        %4699 = vmatpush1.msra.mxu0 %v3479
        %4700 = vmatprep.subr.mxu0 0.0
        %4701 = vmatpush1.msra.mxu0 %v3480
        %4702 = vmatprep.subr.mxu0 0.0
        %4703 = vmatpush1.msra.mxu0 %v3481
        %4704 = vmatprep.subr.mxu0 0.0
        %4705 = vmatpush1.msra.mxu0 %v3482
        %4706 = vmatprep.subr.mxu0 0.0
        %4707 = vmatpush1.msra.mxu0 %v3483
        %4708 = vmatprep.subr.mxu0 0.0
        %4709 = vmatpush1.msra.mxu0 %v3484
        %4710 = vmatprep.subr.mxu0 0.0
        %4711 = vmatpush1.msra.mxu0 %v3485
        %4712 = vmatprep.subr.mxu0 0.0
        %4713 = vmatpush1.msra.mxu0 %v3486
        %4714 = vmatprep.subr.mxu0 0.0
        %4715 = vmatpush1.msra.mxu0 %v3487
        %4716 = vmatprep.subr.mxu0 0.0
        %4717 = vmatpush1.msra.mxu0 %v3488
        %4718 = vmatprep.subr.mxu0 0.0
        %4719 = vmatpush1.msra.mxu0 %v3489
        %4720 = vmatprep.subr.mxu0 0.0
        %4721 = vmatpush1.msra.mxu0 %v3490
        %4722 = vmatprep.subr.mxu0 0.0
        %4723 = vmatpush1.msra.mxu0 %v3491
        %4724 = vmatprep.subr.mxu0 0.0
        %4725 = vmatpush1.msra.mxu0 %v3492
        %4726 = vmatprep.subr.mxu0 0.0
        %4727 = vmatpush1.msra.mxu0 %v3493
        %4728 = vmatprep.subr.mxu0 0.0
        %4729 = vmatpush1.msra.mxu0 %v3494
        %4730 = vmatprep.subr.mxu0 0.0
        %4731 = vmatpush1.msra.mxu0 0.0
        %4732 = vmatprep.subr.mxu0 0.0
        %4733 = vmatpush1.msra.mxu0 0.0
        %4734 = vmatprep.subr.mxu0 0.0
        %4735 = vmatpush1.msra.mxu0 0.0
        %4736 = vmatprep.subr.mxu0 0.0
        %4737 = vmatpush1.msra.mxu0 0.0
        %4738 = vmatprep.subr.mxu0 0.0
        %4739 = vmatpush1.msra.mxu0 0.0
        %4740 = vmatprep.subr.mxu0 0.0
        %4741 = vmatpush1.msra.mxu0 0.0
        %4742 = vmatprep.subr.mxu0 0.0
        %4743 = vmatpush1.msra.mxu0 0.0
        %4744 = vmatprep.subr.mxu0 0.0
        %4745 = vmatpush1.msra.mxu0 0.0
        %4746 = vmatprep.subr.mxu0 0.0
        %4747 = vmatpush1.msra.mxu0 0.0
        %4748 = vmatprep.subr.mxu0 0.0
        %4749 = vmatpush1.msra.mxu0 0.0
        %4750 = vmatprep.subr.mxu0 0.0
        %4751 = vmatpush1.msra.mxu0 0.0
        %4752 = vmatprep.subr.mxu0 0.0
        %4753 = vmatpush1.msra.mxu0 0.0
        %4754 = vmatprep.subr.mxu0 0.0
        %4755 = vmatpush1.msra.mxu0 0.0
        %4756 = vmatprep.subr.mxu0 0.0
        %4757 = vmatpush1.msra.mxu0 0.0
        %4758 = vmatprep.subr.mxu0 0.0
        %4759 = vmatpush1.msra.mxu0 0.0
        %4760 = vmatprep.subr.mxu0 0.0
        %4761 = vmatpush1.msra.mxu0 0.0
        %4762 = vmatprep.mubr.f32.mxu0 0.0
        %4763 = vmatmul.mubr.f32.gmra.mrb[0].mxu0 %v2489
        %v4764 = vpop.f32.mrb[0].mxu0
        %v4765 = vadd.f32 %v4380, %v4764
        %v4766 = vpop.f32.mrb[0].mxu0
        %4767 = vmatprep.mubr.f32.mxu0 0.0
        %4768 = vmatmul.mubr.f32.gmra.mrb[0].mxu0 %v2492
        %v4769 = vpop.f32.mrb[0].mxu0
        %v4770 = vadd.f32 %v4385, %v4769
        %v4771 = vpop.f32.mrb[0].mxu0
        %4772 = vmatprep.mubr.f32.mxu0 0.0
        %4773 = vmatmul.mubr.f32.gmra.mrb[0].mxu0 %v2495
        %v4774 = vpop.f32.mrb[0].mxu0
        %v4775 = vadd.f32 %v4390, %v4774
        %v4776 = vpop.f32.mrb[0].mxu0
        %4777 = vmatprep.mubr.f32.mxu0 0.0
        %4778 = vmatmul.mubr.f32.gmra.mrb[0].mxu0 %v2498
        %v4779 = vpop.f32.mrb[0].mxu0
        %v4780 = vadd.f32 %v4395, %v4779
        %v4781 = vpop.f32.mrb[0].mxu0
        %4782 = vmatprep.mubr.f32.mxu0 0.0
        %4783 = vmatmul.mubr.f32.gmra.mrb[0].mxu0 %v2501
        %v4784 = vpop.f32.mrb[0].mxu0
        %v4785 = vadd.f32 %v4400, %v4784
        %v4786 = vpop.f32.mrb[0].mxu0
        %4787 = vmatprep.mubr.f32.mxu0 0.0
        %4788 = vmatmul.mubr.f32.gmra.mrb[0].mxu0 %v2504
        %v4789 = vpop.f32.mrb[0].mxu0
        %v4790 = vadd.f32 %v4405, %v4789
        %v4791 = vpop.f32.mrb[0].mxu0
        %4792 = vmatprep.mubr.f32.mxu0 0.0
        %4793 = vmatmul.mubr.f32.gmra.mrb[0].mxu0 %v2507
        %v4794 = vpop.f32.mrb[0].mxu0
        %v4795 = vadd.f32 %v4410, %v4794
        %v4796 = vpop.f32.mrb[0].mxu0
        %4797 = vmatprep.mubr.f32.mxu0 0.0
        %4798 = vmatmul.mubr.f32.gmra.mrb[0].mxu0 %v2510
        %v4799 = vpop.f32.mrb[0].mxu0
        %v4800 = vadd.f32 %v4415, %v4799
        %v4801 = vpop.f32.mrb[0].mxu0
        %4802 = vmatprep.mubr.f32.mxu0 0.0
        %4803 = vmatmul.mubr.f32.gmra.mrb[0].mxu0 %v2513
        %v4804 = vpop.f32.mrb[0].mxu0
        %v4805 = vadd.f32 %v4420, %v4804
        %v4806 = vpop.f32.mrb[0].mxu0
        %4807 = vmatprep.mubr.f32.mxu0 0.0
        %4808 = vmatmul.mubr.f32.gmra.mrb[0].mxu0 %v2516
        %v4809 = vpop.f32.mrb[0].mxu0
        %v4810 = vadd.f32 %v4425, %v4809
        %v4811 = vpop.f32.mrb[0].mxu0
        %4812 = vmatprep.mubr.f32.mxu0 0.0
        %4813 = vmatmul.mubr.f32.gmra.mrb[0].mxu0 %v2519
        %v4814 = vpop.f32.mrb[0].mxu0
        %v4815 = vadd.f32 %v4430, %v4814
        %v4816 = vpop.f32.mrb[0].mxu0
        %4817 = vmatprep.mubr.f32.mxu0 0.0
        %4818 = vmatmul.mubr.f32.gmra.mrb[0].mxu0 %v2522
        %v4819 = vpop.f32.mrb[0].mxu0
        %v4820 = vadd.f32 %v4435, %v4819
        %v4821 = vpop.f32.mrb[0].mxu0
        %4822 = vmatprep.mubr.f32.mxu0 0.0
        %4823 = vmatmul.mubr.f32.gmra.mrb[0].mxu0 %v2525
        %v4824 = vpop.f32.mrb[0].mxu0
        %v4825 = vadd.f32 %v4440, %v4824
        %v4826 = vpop.f32.mrb[0].mxu0
        %4827 = vmatprep.mubr.f32.mxu0 0.0
        %4828 = vmatmul.mubr.f32.gmra.mrb[0].mxu0 %v2528
        %v4829 = vpop.f32.mrb[0].mxu0
        %v4830 = vadd.f32 %v4445, %v4829
        %v4831 = vpop.f32.mrb[0].mxu0
        %4832 = vmatprep.mubr.f32.mxu0 0.0
        %4833 = vmatmul.mubr.f32.gmra.mrb[0].mxu0 %v2531
        %v4834 = vpop.f32.mrb[0].mxu0
        %v4835 = vadd.f32 %v4450, %v4834
        %v4836 = vpop.f32.mrb[0].mxu0
        %4837 = vmatprep.mubr.f32.mxu0 0.0
        %4838 = vmatmul.mubr.f32.gmra.mrb[0].mxu0 %v2534
        %v4839 = vpop.f32.mrb[0].mxu0
        %v4840 = vadd.f32 %v4455, %v4839
        %v4841 = vpop.f32.mrb[0].mxu0
        %4842 = vmatprep.mubr.f32.mxu0 0.0
        %4843 = vmatmul.mubr.f32.gmra.mrb[0].mxu0 %v2537
        %v4844 = vpop.f32.mrb[0].mxu0
        %v4845 = vadd.f32 %v4460, %v4844
        %v4846 = vpop.f32.mrb[0].mxu0
        %4847 = vmatprep.mubr.f32.mxu0 0.0
        %4848 = vmatmul.mubr.f32.gmra.mrb[0].mxu0 %v2540
        %v4849 = vpop.f32.mrb[0].mxu0
        %v4850 = vadd.f32 %v4465, %v4849
        %v4851 = vpop.f32.mrb[0].mxu0
        %4852 = vmatprep.mubr.f32.mxu0 0.0
        %4853 = vmatmul.mubr.f32.gmra.mrb[0].mxu0 %v2543
        %v4854 = vpop.f32.mrb[0].mxu0
        %v4855 = vadd.f32 %v4470, %v4854
        %v4856 = vpop.f32.mrb[0].mxu0
        %4857 = vmatprep.mubr.f32.mxu0 0.0
        %4858 = vmatmul.mubr.f32.gmra.mrb[0].mxu0 %v2546
        %v4859 = vpop.f32.mrb[0].mxu0
        %v4860 = vadd.f32 %v4475, %v4859
        %v4861 = vpop.f32.mrb[0].mxu0
        %4862 = vmatprep.mubr.f32.mxu0 0.0
        %4863 = vmatmul.mubr.f32.gmra.mrb[0].mxu0 %v2549
        %v4864 = vpop.f32.mrb[0].mxu0
        %v4865 = vadd.f32 %v4480, %v4864
        %v4866 = vpop.f32.mrb[0].mxu0
        %4867 = vmatprep.mubr.f32.mxu0 0.0
        %4868 = vmatmul.mubr.f32.gmra.mrb[0].mxu0 %v2552
        %v4869 = vpop.f32.mrb[0].mxu0
        %v4870 = vadd.f32 %v4485, %v4869
        %v4871 = vpop.f32.mrb[0].mxu0
        %4872 = vmatprep.mubr.f32.mxu0 0.0
        %4873 = vmatmul.mubr.f32.gmra.mrb[0].mxu0 %v2555
        %v4874 = vpop.f32.mrb[0].mxu0
        %v4875 = vadd.f32 %v4490, %v4874
        %v4876 = vpop.f32.mrb[0].mxu0
        %4877 = vmatprep.mubr.f32.mxu0 0.0
        %4878 = vmatmul.mubr.f32.gmra.mrb[0].mxu0 %v2558
        %v4879 = vpop.f32.mrb[0].mxu0
        %v4880 = vadd.f32 %v4495, %v4879
        %v4881 = vpop.f32.mrb[0].mxu0
        %4882 = vmatprep.mubr.f32.mxu0 0.0
        %4883 = vmatmul.mubr.f32.gmra.mrb[0].mxu0 %v2561
        %v4884 = vpop.f32.mrb[0].mxu0
        %v4885 = vadd.f32 %v4500, %v4884
        %v4886 = vpop.f32.mrb[0].mxu0
        %4887 = vmatprep.mubr.f32.mxu0 0.0
        %4888 = vmatmul.mubr.f32.gmra.mrb[0].mxu0 %v2564
        %v4889 = vpop.f32.mrb[0].mxu0
        %v4890 = vadd.f32 %v4505, %v4889
        %v4891 = vpop.f32.mrb[0].mxu0
        %4892 = vmatprep.mubr.f32.mxu0 0.0
        %4893 = vmatmul.mubr.f32.gmra.mrb[0].mxu0 %v2567
        %v4894 = vpop.f32.mrb[0].mxu0
        %v4895 = vadd.f32 %v4510, %v4894
        %v4896 = vpop.f32.mrb[0].mxu0
        %4897 = vmatprep.mubr.f32.mxu0 0.0
        %4898 = vmatmul.mubr.f32.gmra.mrb[0].mxu0 %v2570
        %v4899 = vpop.f32.mrb[0].mxu0
        %v4900 = vadd.f32 %v4515, %v4899
        %v4901 = vpop.f32.mrb[0].mxu0
        %4902 = vmatprep.mubr.f32.mxu0 0.0
        %4903 = vmatmul.mubr.f32.gmra.mrb[0].mxu0 %v2573
        %v4904 = vpop.f32.mrb[0].mxu0
        %v4905 = vadd.f32 %v4520, %v4904
        %v4906 = vpop.f32.mrb[0].mxu0
        %4907 = vmatprep.mubr.f32.mxu0 0.0
        %4908 = vmatmul.mubr.f32.gmra.mrb[0].mxu0 %v2576
        %v4909 = vpop.f32.mrb[0].mxu0
        %v4910 = vadd.f32 %v4525, %v4909
        %v4911 = vpop.f32.mrb[0].mxu0
        %4912 = vmatprep.mubr.f32.mxu0 0.0
        %4913 = vmatmul.mubr.f32.gmra.mrb[0].mxu0 %v2579
        %v4914 = vpop.f32.mrb[0].mxu0
        %v4915 = vadd.f32 %v4530, %v4914
        %v4916 = vpop.f32.mrb[0].mxu0
        %4917 = vmatprep.mubr.f32.mxu0 0.0
        %4918 = vmatmul.mubr.f32.gmra.mrb[0].mxu0 %v2582
        %v4919 = vpop.f32.mrb[0].mxu0
        %v4920 = vadd.f32 %v4535, %v4919
        %v4921 = vpop.f32.mrb[0].mxu0
        %4922 = vmatprep.mubr.f32.mxu0 0.0
        %4923 = vmatmul.mubr.f32.gmra.mrb[0].mxu0 %v2585
        %v4924 = vpop.f32.mrb[0].mxu0
        %v4925 = vadd.f32 %v4540, %v4924
        %v4926 = vpop.f32.mrb[0].mxu0
        %4927 = vmatprep.mubr.f32.mxu0 0.0
        %4928 = vmatmul.mubr.f32.gmra.mrb[0].mxu0 %v2588
        %v4929 = vpop.f32.mrb[0].mxu0
        %v4930 = vadd.f32 %v4545, %v4929
        %v4931 = vpop.f32.mrb[0].mxu0
        %4932 = vmatprep.mubr.f32.mxu0 0.0
        %4933 = vmatmul.mubr.f32.gmra.mrb[0].mxu0 %v2591
        %v4934 = vpop.f32.mrb[0].mxu0
        %v4935 = vadd.f32 %v4550, %v4934
        %v4936 = vpop.f32.mrb[0].mxu0
        %4937 = vmatprep.mubr.f32.mxu0 0.0
        %4938 = vmatmul.mubr.f32.gmra.mrb[0].mxu0 %v2594
        %v4939 = vpop.f32.mrb[0].mxu0
        %v4940 = vadd.f32 %v4555, %v4939
        %v4941 = vpop.f32.mrb[0].mxu0
        %4942 = vmatprep.mubr.f32.mxu0 0.0
        %4943 = vmatmul.mubr.f32.gmra.mrb[0].mxu0 %v2597
        %v4944 = vpop.f32.mrb[0].mxu0
        %v4945 = vadd.f32 %v4560, %v4944
        %v4946 = vpop.f32.mrb[0].mxu0
        %4947 = vmatprep.mubr.f32.mxu0 0.0
        %4948 = vmatmul.mubr.f32.gmra.mrb[0].mxu0 %v2600
        %v4949 = vpop.f32.mrb[0].mxu0
        %v4950 = vadd.f32 %v4565, %v4949
        %v4951 = vpop.f32.mrb[0].mxu0
        %4952 = vmatprep.mubr.f32.mxu0 0.0
        %4953 = vmatmul.mubr.f32.gmra.mrb[0].mxu0 %v2603
        %v4954 = vpop.f32.mrb[0].mxu0
        %v4955 = vadd.f32 %v4570, %v4954
        %v4956 = vpop.f32.mrb[0].mxu0
        %4957 = vmatprep.mubr.f32.mxu0 0.0
        %4958 = vmatmul.mubr.f32.gmra.mrb[0].mxu0 %v2606
        %v4959 = vpop.f32.mrb[0].mxu0
        %v4960 = vadd.f32 %v4575, %v4959
        %v4961 = vpop.f32.mrb[0].mxu0
        %4962 = vmatprep.mubr.f32.mxu0 0.0
        %4963 = vmatmul.mubr.f32.gmra.mrb[0].mxu0 %v2609
        %v4964 = vpop.f32.mrb[0].mxu0
        %v4965 = vadd.f32 %v4580, %v4964
        %v4966 = vpop.f32.mrb[0].mxu0
        %4967 = vmatprep.mubr.f32.mxu0 0.0
        %4968 = vmatmul.mubr.f32.gmra.mrb[0].mxu0 %v2612
        %v4969 = vpop.f32.mrb[0].mxu0
        %v4970 = vadd.f32 %v4585, %v4969
        %v4971 = vpop.f32.mrb[0].mxu0
        %4972 = vmatprep.mubr.f32.mxu0 0.0
        %4973 = vmatmul.mubr.f32.gmra.mrb[0].mxu0 %v2615
        %v4974 = vpop.f32.mrb[0].mxu0
        %v4975 = vadd.f32 %v4590, %v4974
        %v4976 = vpop.f32.mrb[0].mxu0
        %4977 = vmatprep.mubr.f32.mxu0 0.0
        %4978 = vmatmul.mubr.f32.gmra.mrb[0].mxu0 %v2618
        %v4979 = vpop.f32.mrb[0].mxu0
        %v4980 = vadd.f32 %v4595, %v4979
        %v4981 = vpop.f32.mrb[0].mxu0
        %4982 = vmatprep.mubr.f32.mxu0 0.0
        %4983 = vmatmul.mubr.f32.gmra.mrb[0].mxu0 %v2621
        %v4984 = vpop.f32.mrb[0].mxu0
        %v4985 = vadd.f32 %v4600, %v4984
        %v4986 = vpop.f32.mrb[0].mxu0
        %4987 = vmatprep.mubr.f32.mxu0 0.0
        %4988 = vmatmul.mubr.f32.gmra.mrb[0].mxu0 %v2624
        %v4989 = vpop.f32.mrb[0].mxu0
        %v4990 = vadd.f32 %v4605, %v4989
        %v4991 = vpop.f32.mrb[0].mxu0
        %4992 = vmatprep.mubr.f32.mxu0 0.0
        %4993 = vmatmul.mubr.f32.gmra.mrb[0].mxu0 %v2627
        %v4994 = vpop.f32.mrb[0].mxu0
        %v4995 = vadd.f32 %v4610, %v4994
        %v4996 = vpop.f32.mrb[0].mxu0
        %4997 = vmatprep.mubr.f32.mxu0 0.0
        %4998 = vmatmul.mubr.f32.gmra.mrb[0].mxu0 %v2630
        %v4999 = vpop.f32.mrb[0].mxu0
        %v5000 = vadd.f32 %v4615, %v4999
        %v5001 = vpop.f32.mrb[0].mxu0
        %5002 = vmatprep.mubr.f32.mxu0 0.0
        %5003 = vmatmul.mubr.f32.gmra.mrb[0].mxu0 %v2633
        %v5004 = vpop.f32.mrb[0].mxu0
        %v5005 = vadd.f32 %v4620, %v5004
        %v5006 = vpop.f32.mrb[0].mxu0
        %5007 = vmatprep.mubr.f32.mxu0 0.0
        %5008 = vmatmul.mubr.f32.gmra.mrb[0].mxu0 %v2636
        %v5009 = vpop.f32.mrb[0].mxu0
        %v5010 = vadd.f32 %v4625, %v5009
        %v5011 = vpop.f32.mrb[0].mxu0
        %5012 = vmatprep.mubr.f32.mxu0 0.0
        %5013 = vmatmul.mubr.f32.gmra.mrb[0].mxu0 %v2639
        %v5014 = vpop.f32.mrb[0].mxu0
        %v5015 = vadd.f32 %v4630, %v5014
        %v5016 = vpop.f32.mrb[0].mxu0
        %5017 = vmatprep.mubr.f32.mxu0 0.0
        %5018 = vmatmul.mubr.f32.gmra.mrb[0].mxu0 %v2642
        %v5019 = vpop.f32.mrb[0].mxu0
        %v5020 = vadd.f32 %v4635, %v5019
        %v5021 = vpop.f32.mrb[0].mxu0
        %5022 = vmatprep.mubr.f32.mxu0 0.0
        %5023 = vmatmul.mubr.f32.gmra.mrb[0].mxu0 %v2645
        %v5024 = vpop.f32.mrb[0].mxu0
        %v5025 = vadd.f32 %v4640, %v5024
        %v5026 = vpop.f32.mrb[0].mxu0
        %5027 = vmatprep.mubr.f32.mxu0 0.0
        %5028 = vmatmul.mubr.f32.gmra.mrb[0].mxu0 %v2648
        %v5029 = vpop.f32.mrb[0].mxu0
        %v5030 = vadd.f32 %v4645, %v5029
        %v5031 = vpop.f32.mrb[0].mxu0
        %5032 = vmatprep.mubr.f32.mxu0 0.0
        %5033 = vmatmul.mubr.f32.gmra.mrb[0].mxu0 %v2651
        %v5034 = vpop.f32.mrb[0].mxu0
        %v5035 = vadd.f32 %v4650, %v5034
        %v5036 = vpop.f32.mrb[0].mxu0
        %5037 = vmatprep.mubr.f32.mxu0 0.0
        %5038 = vmatmul.mubr.f32.gmra.mrb[0].mxu0 %v2654
        %v5039 = vpop.f32.mrb[0].mxu0
        %v5040 = vadd.f32 %v4655, %v5039
        %v5041 = vpop.f32.mrb[0].mxu0
        %5042 = vmatprep.mubr.f32.mxu0 0.0
        %5043 = vmatmul.mubr.f32.gmra.mrb[0].mxu0 %v2657
        %v5044 = vpop.f32.mrb[0].mxu0
        %v5045 = vadd.f32 %v4660, %v5044
        %v5046 = vpop.f32.mrb[0].mxu0
        %5047 = vmatprep.mubr.f32.mxu0 0.0
        %5048 = vmatmul.mubr.f32.gmra.mrb[0].mxu0 %v2660
        %v5049 = vpop.f32.mrb[0].mxu0
        %v5050 = vadd.f32 %v4665, %v5049
        %v5051 = vpop.f32.mrb[0].mxu0
        %5052 = vmatprep.mubr.f32.mxu0 0.0
        %5053 = vmatmul.mubr.f32.gmra.mrb[0].mxu0 %v2663
        %v5054 = vpop.f32.mrb[0].mxu0
        %v5055 = vadd.f32 %v4670, %v5054
        %v5056 = vpop.f32.mrb[0].mxu0
        %5057 = vmatprep.mubr.f32.mxu0 0.0
        %5058 = vmatmul.mubr.f32.gmra.mrb[0].mxu0 %v2666
        %v5059 = vpop.f32.mrb[0].mxu0
        %v5060 = vadd.f32 %v4675, %v5059
        %v5061 = vpop.f32.mrb[0].mxu0
        %5062 = vmatprep.mubr.f32.mxu0 0.0
        %5063 = vmatmul.mubr.f32.gmra.mrb[0].mxu0 %v2669
        %v5064 = vpop.f32.mrb[0].mxu0
        %v5065 = vadd.f32 %v4680, %v5064
        %v5066 = vpop.f32.mrb[0].mxu0
        %5067 = vmatprep.mubr.f32.mxu0 0.0
        %5068 = vmatmul.mubr.f32.gmra.mrb[0].mxu0 %v2672
        %v5069 = vpop.f32.mrb[0].mxu0
        %v5070 = vadd.f32 %v4685, %v5069
        %v5071 = vpop.f32.mrb[0].mxu0
        %5072 = vmatprep.mubr.f32.mxu0 0.0
        %5073 = vmatmul.mubr.f32.gmra.mrb[0].mxu0 %v2675
        %v5074 = vpop.f32.mrb[0].mxu0
        %v5075 = vadd.f32 %v4690, %v5074
        %v5076 = vpop.f32.mrb[0].mxu0
        %5077 = vmatprep.mubr.f32.mxu0 0.0
        %5078 = vmatmul.mubr.f32.gmra.mrb[0].mxu0 %v2678
        %v5079 = vpop.f32.mrb[0].mxu0
        %v5080 = vadd.f32 %v4695, %v5079
        %v5081 = vpop.f32.mrb[0].mxu0
        %5082 = vdwg.mxu0
        %v5083 = vld [vmem:[%s3] sm:$0x1]
        %v5085 = vlaneseq
        %v5086 = vshrl.u32 %v5085, 7
        %v5087 = vsub.s32 0, %v5086
        %v5088 = vrot.slane %v5083, %v5087
        %v5090 = vadd.f32 %v4765, %v5088
        %v5091 = vadd.f32 %v4770, %v5088
        %v5092 = vadd.f32 %v4775, %v5088
        %v5093 = vadd.f32 %v4780, %v5088
        %v5094 = vadd.f32 %v4785, %v5088
        %v5095 = vadd.f32 %v4790, %v5088
        %v5096 = vadd.f32 %v4795, %v5088
        %v5097 = vadd.f32 %v4800, %v5088
        %v5098 = vadd.f32 %v4805, %v5088
        %v5099 = vadd.f32 %v4810, %v5088
        %v5100 = vadd.f32 %v4815, %v5088
        %v5101 = vadd.f32 %v4820, %v5088
        %v5102 = vadd.f32 %v4825, %v5088
        %v5103 = vadd.f32 %v4830, %v5088
        %v5104 = vadd.f32 %v4835, %v5088
        %v5105 = vadd.f32 %v4840, %v5088
        %v5106 = vadd.f32 %v4845, %v5088
        %v5107 = vadd.f32 %v4850, %v5088
        %v5108 = vadd.f32 %v4855, %v5088
        %v5109 = vadd.f32 %v4860, %v5088
        %v5110 = vadd.f32 %v4865, %v5088
        %v5111 = vadd.f32 %v4870, %v5088
        %v5112 = vadd.f32 %v4875, %v5088
        %v5113 = vadd.f32 %v4880, %v5088
        %v5114 = vadd.f32 %v4885, %v5088
        %v5115 = vadd.f32 %v4890, %v5088
        %v5116 = vadd.f32 %v4895, %v5088
        %v5117 = vadd.f32 %v4900, %v5088
        %v5118 = vadd.f32 %v4905, %v5088
        %v5119 = vadd.f32 %v4910, %v5088
        %v5120 = vadd.f32 %v4915, %v5088
        %v5121 = vadd.f32 %v4920, %v5088
        %v5122 = vadd.f32 %v4925, %v5088
        %v5123 = vadd.f32 %v4930, %v5088
        %v5124 = vadd.f32 %v4935, %v5088
        %v5125 = vadd.f32 %v4940, %v5088
        %v5126 = vadd.f32 %v4945, %v5088
        %v5127 = vadd.f32 %v4950, %v5088
        %v5128 = vadd.f32 %v4955, %v5088
        %v5129 = vadd.f32 %v4960, %v5088
        %v5130 = vadd.f32 %v4965, %v5088
        %v5131 = vadd.f32 %v4970, %v5088
        %v5132 = vadd.f32 %v4975, %v5088
        %v5133 = vadd.f32 %v4980, %v5088
        %v5134 = vadd.f32 %v4985, %v5088
        %v5135 = vadd.f32 %v4990, %v5088
        %v5136 = vadd.f32 %v4995, %v5088
        %v5137 = vadd.f32 %v5000, %v5088
        %v5138 = vadd.f32 %v5005, %v5088
        %v5139 = vadd.f32 %v5010, %v5088
        %v5140 = vadd.f32 %v5015, %v5088
        %v5141 = vadd.f32 %v5020, %v5088
        %v5142 = vadd.f32 %v5025, %v5088
        %v5143 = vadd.f32 %v5030, %v5088
        %v5144 = vadd.f32 %v5035, %v5088
        %v5145 = vadd.f32 %v5040, %v5088
        %v5146 = vadd.f32 %v5045, %v5088
        %v5147 = vadd.f32 %v5050, %v5088
        %v5148 = vadd.f32 %v5055, %v5088
        %v5149 = vadd.f32 %v5060, %v5088
        %v5150 = vadd.f32 %v5065, %v5088
        %v5151 = vadd.f32 %v5070, %v5088
        %v5152 = vadd.f32 %v5075, %v5088
        %v5153 = vadd.f32 %v5080, %v5088
        %v5154 = vmax.f32 %v5090, 0.0
        %v5155 = vmax.f32 %v5091, 0.0
        %v5156 = vmax.f32 %v5092, 0.0
        %v5157 = vmax.f32 %v5093, 0.0
        %v5158 = vmax.f32 %v5094, 0.0
        %v5159 = vmax.f32 %v5095, 0.0
        %v5160 = vmax.f32 %v5096, 0.0
        %v5161 = vmax.f32 %v5097, 0.0
        %v5162 = vmax.f32 %v5098, 0.0
        %v5163 = vmax.f32 %v5099, 0.0
        %v5164 = vmax.f32 %v5100, 0.0
        %v5165 = vmax.f32 %v5101, 0.0
        %v5166 = vmax.f32 %v5102, 0.0
        %v5167 = vmax.f32 %v5103, 0.0
        %v5168 = vmax.f32 %v5104, 0.0
        %v5169 = vmax.f32 %v5105, 0.0
        %v5170 = vmax.f32 %v5106, 0.0
        %v5171 = vmax.f32 %v5107, 0.0
        %v5172 = vmax.f32 %v5108, 0.0
        %v5173 = vmax.f32 %v5109, 0.0
        %v5174 = vmax.f32 %v5110, 0.0
        %v5175 = vmax.f32 %v5111, 0.0
        %v5176 = vmax.f32 %v5112, 0.0
        %v5177 = vmax.f32 %v5113, 0.0
        %v5178 = vmax.f32 %v5114, 0.0
        %v5179 = vmax.f32 %v5115, 0.0
        %v5180 = vmax.f32 %v5116, 0.0
        %v5181 = vmax.f32 %v5117, 0.0
        %v5182 = vmax.f32 %v5118, 0.0
        %v5183 = vmax.f32 %v5119, 0.0
        %v5184 = vmax.f32 %v5120, 0.0
        %v5185 = vmax.f32 %v5121, 0.0
        %v5186 = vmax.f32 %v5122, 0.0
        %v5187 = vmax.f32 %v5123, 0.0
        %v5188 = vmax.f32 %v5124, 0.0
        %v5189 = vmax.f32 %v5125, 0.0
        %v5190 = vmax.f32 %v5126, 0.0
        %v5191 = vmax.f32 %v5127, 0.0
        %v5192 = vmax.f32 %v5128, 0.0
        %v5193 = vmax.f32 %v5129, 0.0
        %v5194 = vmax.f32 %v5130, 0.0
        %v5195 = vmax.f32 %v5131, 0.0
        %v5196 = vmax.f32 %v5132, 0.0
        %v5197 = vmax.f32 %v5133, 0.0
        %v5198 = vmax.f32 %v5134, 0.0
        %v5199 = vmax.f32 %v5135, 0.0
        %v5200 = vmax.f32 %v5136, 0.0
        %v5201 = vmax.f32 %v5137, 0.0
        %v5202 = vmax.f32 %v5138, 0.0
        %v5203 = vmax.f32 %v5139, 0.0
        %v5204 = vmax.f32 %v5140, 0.0
        %v5205 = vmax.f32 %v5141, 0.0
        %v5206 = vmax.f32 %v5142, 0.0
        %v5207 = vmax.f32 %v5143, 0.0
        %v5208 = vmax.f32 %v5144, 0.0
        %v5209 = vmax.f32 %v5145, 0.0
        %v5210 = vmax.f32 %v5146, 0.0
        %v5211 = vmax.f32 %v5147, 0.0
        %v5212 = vmax.f32 %v5148, 0.0
        %v5213 = vmax.f32 %v5149, 0.0
        %v5214 = vmax.f32 %v5150, 0.0
        %v5215 = vmax.f32 %v5151, 0.0
        %v5216 = vmax.f32 %v5152, 0.0
        %v5217 = vmax.f32 %v5153, 0.0
        %v5218 = vld [vmem:[%s4] sm:$0xff]
        %v5219 = vld [vmem:[%s4 + $0x8] sm:$0xff]
        %v5220 = vld [vmem:[%s4 + $0x10] sm:$0xff]
        %v5221 = vld [vmem:[%s4 + $0x18] sm:$0xff]
        %v5222 = vld [vmem:[%s5] sm:$0x1]
        %v5224 = vlaneseq
        %v5225 = vshrl.u32 %v5224, 7
        %v5226 = vsub.s32 0, %v5225
        %v5227 = vrot.slane %v5222, %v5226
        %vm5229 = vcmask 261120
        %v5231 = vsel %vm5229, %v5154, 0
        %v5234 = vsel %vm5229, %v5155, 0
        %v5237 = vsel %vm5229, %v5156, 0
        %v5240 = vsel %vm5229, %v5157, 0
        %v5243 = vsel %vm5229, %v5158, 0
        %v5246 = vsel %vm5229, %v5159, 0
        %v5249 = vsel %vm5229, %v5160, 0
        %v5252 = vsel %vm5229, %v5161, 0
        %v5255 = vsel %vm5229, %v5162, 0
        %v5258 = vsel %vm5229, %v5163, 0
        %v5261 = vsel %vm5229, %v5164, 0
        %v5264 = vsel %vm5229, %v5165, 0
        %v5267 = vsel %vm5229, %v5166, 0
        %v5270 = vsel %vm5229, %v5167, 0
        %v5273 = vsel %vm5229, %v5168, 0
        %v5276 = vsel %vm5229, %v5169, 0
        %v5279 = vsel %vm5229, %v5170, 0
        %v5282 = vsel %vm5229, %v5171, 0
        %v5285 = vsel %vm5229, %v5172, 0
        %v5288 = vsel %vm5229, %v5173, 0
        %v5291 = vsel %vm5229, %v5174, 0
        %v5294 = vsel %vm5229, %v5175, 0
        %v5297 = vsel %vm5229, %v5176, 0
        %v5300 = vsel %vm5229, %v5177, 0
        %v5303 = vsel %vm5229, %v5178, 0
        %v5306 = vsel %vm5229, %v5179, 0
        %v5309 = vsel %vm5229, %v5180, 0
        %v5312 = vsel %vm5229, %v5181, 0
        %v5315 = vsel %vm5229, %v5182, 0
        %v5318 = vsel %vm5229, %v5183, 0
        %v5321 = vsel %vm5229, %v5184, 0
        %v5324 = vsel %vm5229, %v5185, 0
        %v5327 = vsel %vm5229, %v5186, 0
        %v5330 = vsel %vm5229, %v5187, 0
        %v5333 = vsel %vm5229, %v5188, 0
        %v5336 = vsel %vm5229, %v5189, 0
        %v5339 = vsel %vm5229, %v5190, 0
        %v5342 = vsel %vm5229, %v5191, 0
        %v5345 = vsel %vm5229, %v5192, 0
        %v5348 = vsel %vm5229, %v5193, 0
        %v5351 = vsel %vm5229, %v5194, 0
        %v5354 = vsel %vm5229, %v5195, 0
        %v5357 = vsel %vm5229, %v5196, 0
        %v5360 = vsel %vm5229, %v5197, 0
        %v5363 = vsel %vm5229, %v5198, 0
        %v5366 = vsel %vm5229, %v5199, 0
        %v5369 = vsel %vm5229, %v5200, 0
        %v5372 = vsel %vm5229, %v5201, 0
        %v5375 = vsel %vm5229, %v5202, 0
        %v5378 = vsel %vm5229, %v5203, 0
        %v5381 = vsel %vm5229, %v5204, 0
        %v5384 = vsel %vm5229, %v5205, 0
        %v5387 = vsel %vm5229, %v5206, 0
        %v5390 = vsel %vm5229, %v5207, 0
        %v5393 = vsel %vm5229, %v5208, 0
        %v5396 = vsel %vm5229, %v5209, 0
        %v5399 = vsel %vm5229, %v5210, 0
        %v5402 = vsel %vm5229, %v5211, 0
        %v5405 = vsel %vm5229, %v5212, 0
        %v5408 = vsel %vm5229, %v5213, 0
        %v5411 = vsel %vm5229, %v5214, 0
        %v5414 = vsel %vm5229, %v5215, 0
        %v5417 = vsel %vm5229, %v5216, 0
        %v5420 = vsel %vm5229, %v5217, 0
        %5422 = vmatprep.subr.mxu0 0.0
        %5423 = vmatpush1.msra.mxu0 %v5218
        %5424 = vmatprep.subr.mxu0 0.0
        %5425 = vmatpush1.msra.mxu0 %v5219
        %5426 = vmatprep.subr.mxu0 0.0
        %5427 = vmatpush1.msra.mxu0 %v5220
        %5428 = vmatprep.subr.mxu0 0.0
        %5429 = vmatpush1.msra.mxu0 %v5221
        %5430 = vmatprep.subr.mxu0 0.0
        %5431 = vmatpush1.msra.mxu0 0.0
        %5432 = vmatprep.subr.mxu0 0.0
        %5433 = vmatpush1.msra.mxu0 0.0
        %5434 = vmatprep.subr.mxu0 0.0
        %5435 = vmatpush1.msra.mxu0 0.0
        %5436 = vmatprep.subr.mxu0 0.0
        %5437 = vmatpush1.msra.mxu0 0.0
        %5438 = vmatprep.subr.mxu0 0.0
        %5439 = vmatpush1.msra.mxu0 0.0
        %5440 = vmatprep.subr.mxu0 0.0
        %5441 = vmatpush1.msra.mxu0 0.0
        %5442 = vmatprep.subr.mxu0 0.0
        %5443 = vmatpush1.msra.mxu0 0.0
        %5444 = vmatprep.subr.mxu0 0.0
        %5445 = vmatpush1.msra.mxu0 0.0
        %5446 = vmatprep.subr.mxu0 0.0
        %5447 = vmatpush1.msra.mxu0 0.0
        %5448 = vmatprep.subr.mxu0 0.0
        %5449 = vmatpush1.msra.mxu0 0.0
        %5450 = vmatprep.subr.mxu0 0.0
        %5451 = vmatpush1.msra.mxu0 0.0
        %5452 = vmatprep.subr.mxu0 0.0
        %5453 = vmatpush1.msra.mxu0 0.0
        %5454 = vmatprep.subr.mxu0 0.0
        %5455 = vmatpush1.msra.mxu0 0.0
        %5456 = vmatprep.subr.mxu0 0.0
        %5457 = vmatpush1.msra.mxu0 0.0
        %5458 = vmatprep.subr.mxu0 0.0
        %5459 = vmatpush1.msra.mxu0 0.0
        %5460 = vmatprep.subr.mxu0 0.0
        %5461 = vmatpush1.msra.mxu0 0.0
        %5462 = vmatprep.subr.mxu0 0.0
        %5463 = vmatpush1.msra.mxu0 0.0
        %5464 = vmatprep.subr.mxu0 0.0
        %5465 = vmatpush1.msra.mxu0 0.0
        %5466 = vmatprep.subr.mxu0 0.0
        %5467 = vmatpush1.msra.mxu0 0.0
        %5468 = vmatprep.subr.mxu0 0.0
        %5469 = vmatpush1.msra.mxu0 0.0
        %5470 = vmatprep.subr.mxu0 0.0
        %5471 = vmatpush1.msra.mxu0 0.0
        %5472 = vmatprep.subr.mxu0 0.0
        %5473 = vmatpush1.msra.mxu0 0.0
        %5474 = vmatprep.subr.mxu0 0.0
        %5475 = vmatpush1.msra.mxu0 0.0
        %5476 = vmatprep.subr.mxu0 0.0
        %5477 = vmatpush1.msra.mxu0 0.0
        %5478 = vmatprep.subr.mxu0 0.0
        %5479 = vmatpush1.msra.mxu0 0.0
        %5480 = vmatprep.subr.mxu0 0.0
        %5481 = vmatpush1.msra.mxu0 0.0
        %5482 = vmatprep.subr.mxu0 0.0
        %5483 = vmatpush1.msra.mxu0 0.0
        %5484 = vmatprep.subr.mxu0 0.0
        %5485 = vmatpush1.msra.mxu0 0.0
        %5486 = vmatprep.mubr.f32.mxu0 0.0
        %5487 = vmatmul.mubr.f32.gmra.mrb[0].mxu0 %v5231
        %v5488 = vpop.f32.mrb[0].mxu0
        %v5489 = vadd.f32 %v5227, %v5488
        %v5490 = vpop.f32.mrb[0].mxu0
        %5491 = vmatprep.mubr.f32.mxu0 0.0
        %5492 = vmatmul.mubr.f32.gmra.mrb[0].mxu0 %v5234
        %v5493 = vpop.f32.mrb[0].mxu0
        %v5494 = vadd.f32 %v5227, %v5493
        %v5495 = vpop.f32.mrb[0].mxu0
        %5496 = vmatprep.mubr.f32.mxu0 0.0
        %5497 = vmatmul.mubr.f32.gmra.mrb[0].mxu0 %v5237
        %v5498 = vpop.f32.mrb[0].mxu0
        %v5499 = vadd.f32 %v5227, %v5498
        %v5500 = vpop.f32.mrb[0].mxu0
        %5501 = vmatprep.mubr.f32.mxu0 0.0
        %5502 = vmatmul.mubr.f32.gmra.mrb[0].mxu0 %v5240
        %v5503 = vpop.f32.mrb[0].mxu0
        %v5504 = vadd.f32 %v5227, %v5503
        %v5505 = vpop.f32.mrb[0].mxu0
        %5506 = vmatprep.mubr.f32.mxu0 0.0
        %5507 = vmatmul.mubr.f32.gmra.mrb[0].mxu0 %v5243
        %v5508 = vpop.f32.mrb[0].mxu0
        %v5509 = vadd.f32 %v5227, %v5508
        %v5510 = vpop.f32.mrb[0].mxu0
        %5511 = vmatprep.mubr.f32.mxu0 0.0
        %5512 = vmatmul.mubr.f32.gmra.mrb[0].mxu0 %v5246
        %v5513 = vpop.f32.mrb[0].mxu0
        %v5514 = vadd.f32 %v5227, %v5513
        %v5515 = vpop.f32.mrb[0].mxu0
        %5516 = vmatprep.mubr.f32.mxu0 0.0
        %5517 = vmatmul.mubr.f32.gmra.mrb[0].mxu0 %v5249
        %v5518 = vpop.f32.mrb[0].mxu0
        %v5519 = vadd.f32 %v5227, %v5518
        %v5520 = vpop.f32.mrb[0].mxu0
        %5521 = vmatprep.mubr.f32.mxu0 0.0
        %5522 = vmatmul.mubr.f32.gmra.mrb[0].mxu0 %v5252
        %v5523 = vpop.f32.mrb[0].mxu0
        %v5524 = vadd.f32 %v5227, %v5523
        %v5525 = vpop.f32.mrb[0].mxu0
        %5526 = vmatprep.mubr.f32.mxu0 0.0
        %5527 = vmatmul.mubr.f32.gmra.mrb[0].mxu0 %v5255
        %v5528 = vpop.f32.mrb[0].mxu0
        %v5529 = vadd.f32 %v5227, %v5528
        %v5530 = vpop.f32.mrb[0].mxu0
        %5531 = vmatprep.mubr.f32.mxu0 0.0
        %5532 = vmatmul.mubr.f32.gmra.mrb[0].mxu0 %v5258
        %v5533 = vpop.f32.mrb[0].mxu0
        %v5534 = vadd.f32 %v5227, %v5533
        %v5535 = vpop.f32.mrb[0].mxu0
        %5536 = vmatprep.mubr.f32.mxu0 0.0
        %5537 = vmatmul.mubr.f32.gmra.mrb[0].mxu0 %v5261
        %v5538 = vpop.f32.mrb[0].mxu0
        %v5539 = vadd.f32 %v5227, %v5538
        %v5540 = vpop.f32.mrb[0].mxu0
        %5541 = vmatprep.mubr.f32.mxu0 0.0
        %5542 = vmatmul.mubr.f32.gmra.mrb[0].mxu0 %v5264
        %v5543 = vpop.f32.mrb[0].mxu0
        %v5544 = vadd.f32 %v5227, %v5543
        %v5545 = vpop.f32.mrb[0].mxu0
        %5546 = vmatprep.mubr.f32.mxu0 0.0
        %5547 = vmatmul.mubr.f32.gmra.mrb[0].mxu0 %v5267
        %v5548 = vpop.f32.mrb[0].mxu0
        %v5549 = vadd.f32 %v5227, %v5548
        %v5550 = vpop.f32.mrb[0].mxu0
        %5551 = vmatprep.mubr.f32.mxu0 0.0
        %5552 = vmatmul.mubr.f32.gmra.mrb[0].mxu0 %v5270
        %v5553 = vpop.f32.mrb[0].mxu0
        %v5554 = vadd.f32 %v5227, %v5553
        %v5555 = vpop.f32.mrb[0].mxu0
        %5556 = vmatprep.mubr.f32.mxu0 0.0
        %5557 = vmatmul.mubr.f32.gmra.mrb[0].mxu0 %v5273
        %v5558 = vpop.f32.mrb[0].mxu0
        %v5559 = vadd.f32 %v5227, %v5558
        %v5560 = vpop.f32.mrb[0].mxu0
        %5561 = vmatprep.mubr.f32.mxu0 0.0
        %5562 = vmatmul.mubr.f32.gmra.mrb[0].mxu0 %v5276
        %v5563 = vpop.f32.mrb[0].mxu0
        %v5564 = vadd.f32 %v5227, %v5563
        %v5565 = vpop.f32.mrb[0].mxu0
        %5566 = vmatprep.mubr.f32.mxu0 0.0
        %5567 = vmatmul.mubr.f32.gmra.mrb[0].mxu0 %v5279
        %v5568 = vpop.f32.mrb[0].mxu0
        %v5569 = vadd.f32 %v5227, %v5568
        %v5570 = vpop.f32.mrb[0].mxu0
        %5571 = vmatprep.mubr.f32.mxu0 0.0
        %5572 = vmatmul.mubr.f32.gmra.mrb[0].mxu0 %v5282
        %v5573 = vpop.f32.mrb[0].mxu0
        %v5574 = vadd.f32 %v5227, %v5573
        %v5575 = vpop.f32.mrb[0].mxu0
        %5576 = vmatprep.mubr.f32.mxu0 0.0
        %5577 = vmatmul.mubr.f32.gmra.mrb[0].mxu0 %v5285
        %v5578 = vpop.f32.mrb[0].mxu0
        %v5579 = vadd.f32 %v5227, %v5578
        %v5580 = vpop.f32.mrb[0].mxu0
        %5581 = vmatprep.mubr.f32.mxu0 0.0
        %5582 = vmatmul.mubr.f32.gmra.mrb[0].mxu0 %v5288
        %v5583 = vpop.f32.mrb[0].mxu0
        %v5584 = vadd.f32 %v5227, %v5583
        %v5585 = vpop.f32.mrb[0].mxu0
        %5586 = vmatprep.mubr.f32.mxu0 0.0
        %5587 = vmatmul.mubr.f32.gmra.mrb[0].mxu0 %v5291
        %v5588 = vpop.f32.mrb[0].mxu0
        %v5589 = vadd.f32 %v5227, %v5588
        %v5590 = vpop.f32.mrb[0].mxu0
        %5591 = vmatprep.mubr.f32.mxu0 0.0
        %5592 = vmatmul.mubr.f32.gmra.mrb[0].mxu0 %v5294
        %v5593 = vpop.f32.mrb[0].mxu0
        %v5594 = vadd.f32 %v5227, %v5593
        %v5595 = vpop.f32.mrb[0].mxu0
        %5596 = vmatprep.mubr.f32.mxu0 0.0
        %5597 = vmatmul.mubr.f32.gmra.mrb[0].mxu0 %v5297
        %v5598 = vpop.f32.mrb[0].mxu0
        %v5599 = vadd.f32 %v5227, %v5598
        %v5600 = vpop.f32.mrb[0].mxu0
        %5601 = vmatprep.mubr.f32.mxu0 0.0
        %5602 = vmatmul.mubr.f32.gmra.mrb[0].mxu0 %v5300
        %v5603 = vpop.f32.mrb[0].mxu0
        %v5604 = vadd.f32 %v5227, %v5603
        %v5605 = vpop.f32.mrb[0].mxu0
        %5606 = vmatprep.mubr.f32.mxu0 0.0
        %5607 = vmatmul.mubr.f32.gmra.mrb[0].mxu0 %v5303
        %v5608 = vpop.f32.mrb[0].mxu0
        %v5609 = vadd.f32 %v5227, %v5608
        %v5610 = vpop.f32.mrb[0].mxu0
        %5611 = vmatprep.mubr.f32.mxu0 0.0
        %5612 = vmatmul.mubr.f32.gmra.mrb[0].mxu0 %v5306
        %v5613 = vpop.f32.mrb[0].mxu0
        %v5614 = vadd.f32 %v5227, %v5613
        %v5615 = vpop.f32.mrb[0].mxu0
        %5616 = vmatprep.mubr.f32.mxu0 0.0
        %5617 = vmatmul.mubr.f32.gmra.mrb[0].mxu0 %v5309
        %v5618 = vpop.f32.mrb[0].mxu0
        %v5619 = vadd.f32 %v5227, %v5618
        %v5620 = vpop.f32.mrb[0].mxu0
        %5621 = vmatprep.mubr.f32.mxu0 0.0
        %5622 = vmatmul.mubr.f32.gmra.mrb[0].mxu0 %v5312
        %v5623 = vpop.f32.mrb[0].mxu0
        %v5624 = vadd.f32 %v5227, %v5623
        %v5625 = vpop.f32.mrb[0].mxu0
        %5626 = vmatprep.mubr.f32.mxu0 0.0
        %5627 = vmatmul.mubr.f32.gmra.mrb[0].mxu0 %v5315
        %v5628 = vpop.f32.mrb[0].mxu0
        %v5629 = vadd.f32 %v5227, %v5628
        %v5630 = vpop.f32.mrb[0].mxu0
        %5631 = vmatprep.mubr.f32.mxu0 0.0
        %5632 = vmatmul.mubr.f32.gmra.mrb[0].mxu0 %v5318
        %v5633 = vpop.f32.mrb[0].mxu0
        %v5634 = vadd.f32 %v5227, %v5633
        %v5635 = vpop.f32.mrb[0].mxu0
        %5636 = vmatprep.mubr.f32.mxu0 0.0
        %5637 = vmatmul.mubr.f32.gmra.mrb[0].mxu0 %v5321
        %v5638 = vpop.f32.mrb[0].mxu0
        %v5639 = vadd.f32 %v5227, %v5638
        %v5640 = vpop.f32.mrb[0].mxu0
        %5641 = vmatprep.mubr.f32.mxu0 0.0
        %5642 = vmatmul.mubr.f32.gmra.mrb[0].mxu0 %v5324
        %v5643 = vpop.f32.mrb[0].mxu0
        %v5644 = vadd.f32 %v5227, %v5643
        %v5645 = vpop.f32.mrb[0].mxu0
        %5646 = vmatprep.mubr.f32.mxu0 0.0
        %5647 = vmatmul.mubr.f32.gmra.mrb[0].mxu0 %v5327
        %v5648 = vpop.f32.mrb[0].mxu0
        %v5649 = vadd.f32 %v5227, %v5648
        %v5650 = vpop.f32.mrb[0].mxu0
        %5651 = vmatprep.mubr.f32.mxu0 0.0
        %5652 = vmatmul.mubr.f32.gmra.mrb[0].mxu0 %v5330
        %v5653 = vpop.f32.mrb[0].mxu0
        %v5654 = vadd.f32 %v5227, %v5653
        %v5655 = vpop.f32.mrb[0].mxu0
        %5656 = vmatprep.mubr.f32.mxu0 0.0
        %5657 = vmatmul.mubr.f32.gmra.mrb[0].mxu0 %v5333
        %v5658 = vpop.f32.mrb[0].mxu0
        %v5659 = vadd.f32 %v5227, %v5658
        %v5660 = vpop.f32.mrb[0].mxu0
        %5661 = vmatprep.mubr.f32.mxu0 0.0
        %5662 = vmatmul.mubr.f32.gmra.mrb[0].mxu0 %v5336
        %v5663 = vpop.f32.mrb[0].mxu0
        %v5664 = vadd.f32 %v5227, %v5663
        %v5665 = vpop.f32.mrb[0].mxu0
        %5666 = vmatprep.mubr.f32.mxu0 0.0
        %5667 = vmatmul.mubr.f32.gmra.mrb[0].mxu0 %v5339
        %v5668 = vpop.f32.mrb[0].mxu0
        %v5669 = vadd.f32 %v5227, %v5668
        %v5670 = vpop.f32.mrb[0].mxu0
        %5671 = vmatprep.mubr.f32.mxu0 0.0
        %5672 = vmatmul.mubr.f32.gmra.mrb[0].mxu0 %v5342
        %v5673 = vpop.f32.mrb[0].mxu0
        %v5674 = vadd.f32 %v5227, %v5673
        %v5675 = vpop.f32.mrb[0].mxu0
        %5676 = vmatprep.mubr.f32.mxu0 0.0
        %5677 = vmatmul.mubr.f32.gmra.mrb[0].mxu0 %v5345
        %v5678 = vpop.f32.mrb[0].mxu0
        %v5679 = vadd.f32 %v5227, %v5678
        %v5680 = vpop.f32.mrb[0].mxu0
        %5681 = vmatprep.mubr.f32.mxu0 0.0
        %5682 = vmatmul.mubr.f32.gmra.mrb[0].mxu0 %v5348
        %v5683 = vpop.f32.mrb[0].mxu0
        %v5684 = vadd.f32 %v5227, %v5683
        %v5685 = vpop.f32.mrb[0].mxu0
        %5686 = vmatprep.mubr.f32.mxu0 0.0
        %5687 = vmatmul.mubr.f32.gmra.mrb[0].mxu0 %v5351
        %v5688 = vpop.f32.mrb[0].mxu0
        %v5689 = vadd.f32 %v5227, %v5688
        %v5690 = vpop.f32.mrb[0].mxu0
        %5691 = vmatprep.mubr.f32.mxu0 0.0
        %5692 = vmatmul.mubr.f32.gmra.mrb[0].mxu0 %v5354
        %v5693 = vpop.f32.mrb[0].mxu0
        %v5694 = vadd.f32 %v5227, %v5693
        %v5695 = vpop.f32.mrb[0].mxu0
        %5696 = vmatprep.mubr.f32.mxu0 0.0
        %5697 = vmatmul.mubr.f32.gmra.mrb[0].mxu0 %v5357
        %v5698 = vpop.f32.mrb[0].mxu0
        %v5699 = vadd.f32 %v5227, %v5698
        %v5700 = vpop.f32.mrb[0].mxu0
        %5701 = vmatprep.mubr.f32.mxu0 0.0
        %5702 = vmatmul.mubr.f32.gmra.mrb[0].mxu0 %v5360
        %v5703 = vpop.f32.mrb[0].mxu0
        %v5704 = vadd.f32 %v5227, %v5703
        %v5705 = vpop.f32.mrb[0].mxu0
        %5706 = vmatprep.mubr.f32.mxu0 0.0
        %5707 = vmatmul.mubr.f32.gmra.mrb[0].mxu0 %v5363
        %v5708 = vpop.f32.mrb[0].mxu0
        %v5709 = vadd.f32 %v5227, %v5708
        %v5710 = vpop.f32.mrb[0].mxu0
        %5711 = vmatprep.mubr.f32.mxu0 0.0
        %5712 = vmatmul.mubr.f32.gmra.mrb[0].mxu0 %v5366
        %v5713 = vpop.f32.mrb[0].mxu0
        %v5714 = vadd.f32 %v5227, %v5713
        %v5715 = vpop.f32.mrb[0].mxu0
        %5716 = vmatprep.mubr.f32.mxu0 0.0
        %5717 = vmatmul.mubr.f32.gmra.mrb[0].mxu0 %v5369
        %v5718 = vpop.f32.mrb[0].mxu0
        %v5719 = vadd.f32 %v5227, %v5718
        %v5720 = vpop.f32.mrb[0].mxu0
        %5721 = vmatprep.mubr.f32.mxu0 0.0
        %5722 = vmatmul.mubr.f32.gmra.mrb[0].mxu0 %v5372
        %v5723 = vpop.f32.mrb[0].mxu0
        %v5724 = vadd.f32 %v5227, %v5723
        %v5725 = vpop.f32.mrb[0].mxu0
        %5726 = vmatprep.mubr.f32.mxu0 0.0
        %5727 = vmatmul.mubr.f32.gmra.mrb[0].mxu0 %v5375
        %v5728 = vpop.f32.mrb[0].mxu0
        %v5729 = vadd.f32 %v5227, %v5728
        %v5730 = vpop.f32.mrb[0].mxu0
        %5731 = vmatprep.mubr.f32.mxu0 0.0
        %5732 = vmatmul.mubr.f32.gmra.mrb[0].mxu0 %v5378
        %v5733 = vpop.f32.mrb[0].mxu0
        %v5734 = vadd.f32 %v5227, %v5733
        %v5735 = vpop.f32.mrb[0].mxu0
        %5736 = vmatprep.mubr.f32.mxu0 0.0
        %5737 = vmatmul.mubr.f32.gmra.mrb[0].mxu0 %v5381
        %v5738 = vpop.f32.mrb[0].mxu0
        %v5739 = vadd.f32 %v5227, %v5738
        %v5740 = vpop.f32.mrb[0].mxu0
        %5741 = vmatprep.mubr.f32.mxu0 0.0
        %5742 = vmatmul.mubr.f32.gmra.mrb[0].mxu0 %v5384
        %v5743 = vpop.f32.mrb[0].mxu0
        %v5744 = vadd.f32 %v5227, %v5743
        %v5745 = vpop.f32.mrb[0].mxu0
        %5746 = vmatprep.mubr.f32.mxu0 0.0
        %5747 = vmatmul.mubr.f32.gmra.mrb[0].mxu0 %v5387
        %v5748 = vpop.f32.mrb[0].mxu0
        %v5749 = vadd.f32 %v5227, %v5748
        %v5750 = vpop.f32.mrb[0].mxu0
        %5751 = vmatprep.mubr.f32.mxu0 0.0
        %5752 = vmatmul.mubr.f32.gmra.mrb[0].mxu0 %v5390
        %v5753 = vpop.f32.mrb[0].mxu0
        %v5754 = vadd.f32 %v5227, %v5753
        %v5755 = vpop.f32.mrb[0].mxu0
        %5756 = vmatprep.mubr.f32.mxu0 0.0
        %5757 = vmatmul.mubr.f32.gmra.mrb[0].mxu0 %v5393
        %v5758 = vpop.f32.mrb[0].mxu0
        %v5759 = vadd.f32 %v5227, %v5758
        %v5760 = vpop.f32.mrb[0].mxu0
        %5761 = vmatprep.mubr.f32.mxu0 0.0
        %5762 = vmatmul.mubr.f32.gmra.mrb[0].mxu0 %v5396
        %v5763 = vpop.f32.mrb[0].mxu0
        %v5764 = vadd.f32 %v5227, %v5763
        %v5765 = vpop.f32.mrb[0].mxu0
        %5766 = vmatprep.mubr.f32.mxu0 0.0
        %5767 = vmatmul.mubr.f32.gmra.mrb[0].mxu0 %v5399
        %v5768 = vpop.f32.mrb[0].mxu0
        %v5769 = vadd.f32 %v5227, %v5768
        %v5770 = vpop.f32.mrb[0].mxu0
        %5771 = vmatprep.mubr.f32.mxu0 0.0
        %5772 = vmatmul.mubr.f32.gmra.mrb[0].mxu0 %v5402
        %v5773 = vpop.f32.mrb[0].mxu0
        %v5774 = vadd.f32 %v5227, %v5773
        %v5775 = vpop.f32.mrb[0].mxu0
        %5776 = vmatprep.mubr.f32.mxu0 0.0
        %5777 = vmatmul.mubr.f32.gmra.mrb[0].mxu0 %v5405
        %v5778 = vpop.f32.mrb[0].mxu0
        %v5779 = vadd.f32 %v5227, %v5778
        %v5780 = vpop.f32.mrb[0].mxu0
        %5781 = vmatprep.mubr.f32.mxu0 0.0
        %5782 = vmatmul.mubr.f32.gmra.mrb[0].mxu0 %v5408
        %v5783 = vpop.f32.mrb[0].mxu0
        %v5784 = vadd.f32 %v5227, %v5783
        %v5785 = vpop.f32.mrb[0].mxu0
        %5786 = vmatprep.mubr.f32.mxu0 0.0
        %5787 = vmatmul.mubr.f32.gmra.mrb[0].mxu0 %v5411
        %v5788 = vpop.f32.mrb[0].mxu0
        %v5789 = vadd.f32 %v5227, %v5788
        %v5790 = vpop.f32.mrb[0].mxu0
        %5791 = vmatprep.mubr.f32.mxu0 0.0
        %5792 = vmatmul.mubr.f32.gmra.mrb[0].mxu0 %v5414
        %v5793 = vpop.f32.mrb[0].mxu0
        %v5794 = vadd.f32 %v5227, %v5793
        %v5795 = vpop.f32.mrb[0].mxu0
        %5796 = vmatprep.mubr.f32.mxu0 0.0
        %5797 = vmatmul.mubr.f32.gmra.mrb[0].mxu0 %v5417
        %v5798 = vpop.f32.mrb[0].mxu0
        %v5799 = vadd.f32 %v5227, %v5798
        %v5800 = vpop.f32.mrb[0].mxu0
        %5801 = vmatprep.mubr.f32.mxu0 0.0
        %5802 = vmatmul.mubr.f32.gmra.mrb[0].mxu0 %v5420
        %v5803 = vpop.f32.mrb[0].mxu0
        %v5804 = vadd.f32 %v5227, %v5803
        %v5805 = vpop.f32.mrb[0].mxu0
        %5806 = vdwg.mxu0
        %v5807 = vmax.f32 %v5489, 0.0
        %v5808 = vmax.f32 %v5494, 0.0
        %v5809 = vmax.f32 %v5499, 0.0
        %v5810 = vmax.f32 %v5504, 0.0
        %v5811 = vmax.f32 %v5509, 0.0
        %v5812 = vmax.f32 %v5514, 0.0
        %v5813 = vmax.f32 %v5519, 0.0
        %v5814 = vmax.f32 %v5524, 0.0
        %v5815 = vmax.f32 %v5529, 0.0
        %v5816 = vmax.f32 %v5534, 0.0
        %v5817 = vmax.f32 %v5539, 0.0
        %v5818 = vmax.f32 %v5544, 0.0
        %v5819 = vmax.f32 %v5549, 0.0
        %v5820 = vmax.f32 %v5554, 0.0
        %v5821 = vmax.f32 %v5559, 0.0
        %v5822 = vmax.f32 %v5564, 0.0
        %v5823 = vmax.f32 %v5569, 0.0
        %v5824 = vmax.f32 %v5574, 0.0
        %v5825 = vmax.f32 %v5579, 0.0
        %v5826 = vmax.f32 %v5584, 0.0
        %v5827 = vmax.f32 %v5589, 0.0
        %v5828 = vmax.f32 %v5594, 0.0
        %v5829 = vmax.f32 %v5599, 0.0
        %v5830 = vmax.f32 %v5604, 0.0
        %v5831 = vmax.f32 %v5609, 0.0
        %v5832 = vmax.f32 %v5614, 0.0
        %v5833 = vmax.f32 %v5619, 0.0
        %v5834 = vmax.f32 %v5624, 0.0
        %v5835 = vmax.f32 %v5629, 0.0
        %v5836 = vmax.f32 %v5634, 0.0
        %v5837 = vmax.f32 %v5639, 0.0
        %v5838 = vmax.f32 %v5644, 0.0
        %v5839 = vmax.f32 %v5649, 0.0
        %v5840 = vmax.f32 %v5654, 0.0
        %v5841 = vmax.f32 %v5659, 0.0
        %v5842 = vmax.f32 %v5664, 0.0
        %v5843 = vmax.f32 %v5669, 0.0
        %v5844 = vmax.f32 %v5674, 0.0
        %v5845 = vmax.f32 %v5679, 0.0
        %v5846 = vmax.f32 %v5684, 0.0
        %v5847 = vmax.f32 %v5689, 0.0
        %v5848 = vmax.f32 %v5694, 0.0
        %v5849 = vmax.f32 %v5699, 0.0
        %v5850 = vmax.f32 %v5704, 0.0
        %v5851 = vmax.f32 %v5709, 0.0
        %v5852 = vmax.f32 %v5714, 0.0
        %v5853 = vmax.f32 %v5719, 0.0
        %v5854 = vmax.f32 %v5724, 0.0
        %v5855 = vmax.f32 %v5729, 0.0
        %v5856 = vmax.f32 %v5734, 0.0
        %v5857 = vmax.f32 %v5739, 0.0
        %v5858 = vmax.f32 %v5744, 0.0
        %v5859 = vmax.f32 %v5749, 0.0
        %v5860 = vmax.f32 %v5754, 0.0
        %v5861 = vmax.f32 %v5759, 0.0
        %v5862 = vmax.f32 %v5764, 0.0
        %v5863 = vmax.f32 %v5769, 0.0
        %v5864 = vmax.f32 %v5774, 0.0
        %v5865 = vmax.f32 %v5779, 0.0
        %v5866 = vmax.f32 %v5784, 0.0
        %v5867 = vmax.f32 %v5789, 0.0
        %v5868 = vmax.f32 %v5794, 0.0
        %v5869 = vmax.f32 %v5799, 0.0
        %v5870 = vmax.f32 %v5804, 0.0
        %v5871 = vld [vmem:[%s6] sm:$0xff]
        %v5872 = vld [vmem:[%s6 + $0x8] sm:$0xff]
        %v5873 = vld [vmem:[%s6 + $0x10] sm:$0xff]
        %v5874 = vld [vmem:[%s6 + $0x18] sm:$0xff]
        %v5875 = vld [vmem:[%s7] sm:$0x1]
        %v5877 = vlaneseq
        %v5878 = vshrl.u32 %v5877, 7
        %v5879 = vsub.s32 0, %v5878
        %v5880 = vrot.slane %v5875, %v5879
        %v5883 = vsel %vm5229, %v5807, 0
        %v5886 = vsel %vm5229, %v5808, 0
        %v5889 = vsel %vm5229, %v5809, 0
        %v5892 = vsel %vm5229, %v5810, 0
        %v5895 = vsel %vm5229, %v5811, 0
        %v5898 = vsel %vm5229, %v5812, 0
        %v5901 = vsel %vm5229, %v5813, 0
        %v5904 = vsel %vm5229, %v5814, 0
        %v5907 = vsel %vm5229, %v5815, 0
        %v5910 = vsel %vm5229, %v5816, 0
        %v5913 = vsel %vm5229, %v5817, 0
        %v5916 = vsel %vm5229, %v5818, 0
        %v5919 = vsel %vm5229, %v5819, 0
        %v5922 = vsel %vm5229, %v5820, 0
        %v5925 = vsel %vm5229, %v5821, 0
        %v5928 = vsel %vm5229, %v5822, 0
        %v5931 = vsel %vm5229, %v5823, 0
        %v5934 = vsel %vm5229, %v5824, 0
        %v5937 = vsel %vm5229, %v5825, 0
        %v5940 = vsel %vm5229, %v5826, 0
        %v5943 = vsel %vm5229, %v5827, 0
        %v5946 = vsel %vm5229, %v5828, 0
        %v5949 = vsel %vm5229, %v5829, 0
        %v5952 = vsel %vm5229, %v5830, 0
        %v5955 = vsel %vm5229, %v5831, 0
        %v5958 = vsel %vm5229, %v5832, 0
        %v5961 = vsel %vm5229, %v5833, 0
        %v5964 = vsel %vm5229, %v5834, 0
        %v5967 = vsel %vm5229, %v5835, 0
        %v5970 = vsel %vm5229, %v5836, 0
        %v5973 = vsel %vm5229, %v5837, 0
        %v5976 = vsel %vm5229, %v5838, 0
        %v5979 = vsel %vm5229, %v5839, 0
        %v5982 = vsel %vm5229, %v5840, 0
        %v5985 = vsel %vm5229, %v5841, 0
        %v5988 = vsel %vm5229, %v5842, 0
        %v5991 = vsel %vm5229, %v5843, 0
        %v5994 = vsel %vm5229, %v5844, 0
        %v5997 = vsel %vm5229, %v5845, 0
        %v6000 = vsel %vm5229, %v5846, 0
        %v6003 = vsel %vm5229, %v5847, 0
        %v6006 = vsel %vm5229, %v5848, 0
        %v6009 = vsel %vm5229, %v5849, 0
        %v6012 = vsel %vm5229, %v5850, 0
        %v6015 = vsel %vm5229, %v5851, 0
        %v6018 = vsel %vm5229, %v5852, 0
        %v6021 = vsel %vm5229, %v5853, 0
        %v6024 = vsel %vm5229, %v5854, 0
        %v6027 = vsel %vm5229, %v5855, 0
        %v6030 = vsel %vm5229, %v5856, 0
        %v6033 = vsel %vm5229, %v5857, 0
        %v6036 = vsel %vm5229, %v5858, 0
        %v6039 = vsel %vm5229, %v5859, 0
        %v6042 = vsel %vm5229, %v5860, 0
        %v6045 = vsel %vm5229, %v5861, 0
        %v6048 = vsel %vm5229, %v5862, 0
        %v6051 = vsel %vm5229, %v5863, 0
        %v6054 = vsel %vm5229, %v5864, 0
        %v6057 = vsel %vm5229, %v5865, 0
        %v6060 = vsel %vm5229, %v5866, 0
        %v6063 = vsel %vm5229, %v5867, 0
        %v6066 = vsel %vm5229, %v5868, 0
        %v6069 = vsel %vm5229, %v5869, 0
        %v6072 = vsel %vm5229, %v5870, 0
        %6074 = vmatprep.subr.mxu0 0.0
        %6075 = vmatpush1.msra.mxu0 %v5871
        %6076 = vmatprep.subr.mxu0 0.0
        %6077 = vmatpush1.msra.mxu0 %v5872
        %6078 = vmatprep.subr.mxu0 0.0
        %6079 = vmatpush1.msra.mxu0 %v5873
        %6080 = vmatprep.subr.mxu0 0.0
        %6081 = vmatpush1.msra.mxu0 %v5874
        %6082 = vmatprep.subr.mxu0 0.0
        %6083 = vmatpush1.msra.mxu0 0.0
        %6084 = vmatprep.subr.mxu0 0.0
        %6085 = vmatpush1.msra.mxu0 0.0
        %6086 = vmatprep.subr.mxu0 0.0
        %6087 = vmatpush1.msra.mxu0 0.0
        %6088 = vmatprep.subr.mxu0 0.0
        %6089 = vmatpush1.msra.mxu0 0.0
        %6090 = vmatprep.subr.mxu0 0.0
        %6091 = vmatpush1.msra.mxu0 0.0
        %6092 = vmatprep.subr.mxu0 0.0
        %6093 = vmatpush1.msra.mxu0 0.0
        %6094 = vmatprep.subr.mxu0 0.0
        %6095 = vmatpush1.msra.mxu0 0.0
        %6096 = vmatprep.subr.mxu0 0.0
        %6097 = vmatpush1.msra.mxu0 0.0
        %6098 = vmatprep.subr.mxu0 0.0
        %6099 = vmatpush1.msra.mxu0 0.0
        %6100 = vmatprep.subr.mxu0 0.0
        %6101 = vmatpush1.msra.mxu0 0.0
        %6102 = vmatprep.subr.mxu0 0.0
        %6103 = vmatpush1.msra.mxu0 0.0
        %6104 = vmatprep.subr.mxu0 0.0
        %6105 = vmatpush1.msra.mxu0 0.0
        %6106 = vmatprep.subr.mxu0 0.0
        %6107 = vmatpush1.msra.mxu0 0.0
        %6108 = vmatprep.subr.mxu0 0.0
        %6109 = vmatpush1.msra.mxu0 0.0
        %6110 = vmatprep.subr.mxu0 0.0
        %6111 = vmatpush1.msra.mxu0 0.0
        %6112 = vmatprep.subr.mxu0 0.0
        %6113 = vmatpush1.msra.mxu0 0.0
        %6114 = vmatprep.subr.mxu0 0.0
        %6115 = vmatpush1.msra.mxu0 0.0
        %6116 = vmatprep.subr.mxu0 0.0
        %6117 = vmatpush1.msra.mxu0 0.0
        %6118 = vmatprep.subr.mxu0 0.0
        %6119 = vmatpush1.msra.mxu0 0.0
        %6120 = vmatprep.subr.mxu0 0.0
        %6121 = vmatpush1.msra.mxu0 0.0
        %6122 = vmatprep.subr.mxu0 0.0
        %6123 = vmatpush1.msra.mxu0 0.0
        %6124 = vmatprep.subr.mxu0 0.0
        %6125 = vmatpush1.msra.mxu0 0.0
        %6126 = vmatprep.subr.mxu0 0.0
        %6127 = vmatpush1.msra.mxu0 0.0
        %6128 = vmatprep.subr.mxu0 0.0
        %6129 = vmatpush1.msra.mxu0 0.0
        %6130 = vmatprep.subr.mxu0 0.0
        %6131 = vmatpush1.msra.mxu0 0.0
        %6132 = vmatprep.subr.mxu0 0.0
        %6133 = vmatpush1.msra.mxu0 0.0
        %6134 = vmatprep.subr.mxu0 0.0
        %6135 = vmatpush1.msra.mxu0 0.0
        %6136 = vmatprep.subr.mxu0 0.0
        %6137 = vmatpush1.msra.mxu0 0.0
        %6138 = vmatprep.mubr.f32.mxu0 0.0
        %6139 = vmatmul.mubr.f32.gmra.mrb[0].mxu0 %v5883
        %v6140 = vpop.f32.mrb[0].mxu0
        %v6141 = vadd.f32 %v5880, %v6140
        %v6142 = vpop.f32.mrb[0].mxu0
        %6143 = vmatprep.mubr.f32.mxu0 0.0
        %6144 = vmatmul.mubr.f32.gmra.mrb[0].mxu0 %v5886
        %v6145 = vpop.f32.mrb[0].mxu0
        %v6146 = vadd.f32 %v5880, %v6145
        %v6147 = vpop.f32.mrb[0].mxu0
        %6148 = vmatprep.mubr.f32.mxu0 0.0
        %6149 = vmatmul.mubr.f32.gmra.mrb[0].mxu0 %v5889
        %v6150 = vpop.f32.mrb[0].mxu0
        %v6151 = vadd.f32 %v5880, %v6150
        %v6152 = vpop.f32.mrb[0].mxu0
        %6153 = vmatprep.mubr.f32.mxu0 0.0
        %6154 = vmatmul.mubr.f32.gmra.mrb[0].mxu0 %v5892
        %v6155 = vpop.f32.mrb[0].mxu0
        %v6156 = vadd.f32 %v5880, %v6155
        %v6157 = vpop.f32.mrb[0].mxu0
        %6158 = vmatprep.mubr.f32.mxu0 0.0
        %6159 = vmatmul.mubr.f32.gmra.mrb[0].mxu0 %v5895
        %v6160 = vpop.f32.mrb[0].mxu0
        %v6161 = vadd.f32 %v5880, %v6160
        %v6162 = vpop.f32.mrb[0].mxu0
        %6163 = vmatprep.mubr.f32.mxu0 0.0
        %6164 = vmatmul.mubr.f32.gmra.mrb[0].mxu0 %v5898
        %v6165 = vpop.f32.mrb[0].mxu0
        %v6166 = vadd.f32 %v5880, %v6165
        %v6167 = vpop.f32.mrb[0].mxu0
        %6168 = vmatprep.mubr.f32.mxu0 0.0
        %6169 = vmatmul.mubr.f32.gmra.mrb[0].mxu0 %v5901
        %v6170 = vpop.f32.mrb[0].mxu0
        %v6171 = vadd.f32 %v5880, %v6170
        %v6172 = vpop.f32.mrb[0].mxu0
        %6173 = vmatprep.mubr.f32.mxu0 0.0
        %6174 = vmatmul.mubr.f32.gmra.mrb[0].mxu0 %v5904
        %v6175 = vpop.f32.mrb[0].mxu0
        %v6176 = vadd.f32 %v5880, %v6175
        %v6177 = vpop.f32.mrb[0].mxu0
        %6178 = vmatprep.mubr.f32.mxu0 0.0
        %6179 = vmatmul.mubr.f32.gmra.mrb[0].mxu0 %v5907
        %v6180 = vpop.f32.mrb[0].mxu0
        %v6181 = vadd.f32 %v5880, %v6180
        %v6182 = vpop.f32.mrb[0].mxu0
        %6183 = vmatprep.mubr.f32.mxu0 0.0
        %6184 = vmatmul.mubr.f32.gmra.mrb[0].mxu0 %v5910
        %v6185 = vpop.f32.mrb[0].mxu0
        %v6186 = vadd.f32 %v5880, %v6185
        %v6187 = vpop.f32.mrb[0].mxu0
        %6188 = vmatprep.mubr.f32.mxu0 0.0
        %6189 = vmatmul.mubr.f32.gmra.mrb[0].mxu0 %v5913
        %v6190 = vpop.f32.mrb[0].mxu0
        %v6191 = vadd.f32 %v5880, %v6190
        %v6192 = vpop.f32.mrb[0].mxu0
        %6193 = vmatprep.mubr.f32.mxu0 0.0
        %6194 = vmatmul.mubr.f32.gmra.mrb[0].mxu0 %v5916
        %v6195 = vpop.f32.mrb[0].mxu0
        %v6196 = vadd.f32 %v5880, %v6195
        %v6197 = vpop.f32.mrb[0].mxu0
        %6198 = vmatprep.mubr.f32.mxu0 0.0
        %6199 = vmatmul.mubr.f32.gmra.mrb[0].mxu0 %v5919
        %v6200 = vpop.f32.mrb[0].mxu0
        %v6201 = vadd.f32 %v5880, %v6200
        %v6202 = vpop.f32.mrb[0].mxu0
        %6203 = vmatprep.mubr.f32.mxu0 0.0
        %6204 = vmatmul.mubr.f32.gmra.mrb[0].mxu0 %v5922
        %v6205 = vpop.f32.mrb[0].mxu0
        %v6206 = vadd.f32 %v5880, %v6205
        %v6207 = vpop.f32.mrb[0].mxu0
        %6208 = vmatprep.mubr.f32.mxu0 0.0
        %6209 = vmatmul.mubr.f32.gmra.mrb[0].mxu0 %v5925
        %v6210 = vpop.f32.mrb[0].mxu0
        %v6211 = vadd.f32 %v5880, %v6210
        %v6212 = vpop.f32.mrb[0].mxu0
        %6213 = vmatprep.mubr.f32.mxu0 0.0
        %6214 = vmatmul.mubr.f32.gmra.mrb[0].mxu0 %v5928
        %v6215 = vpop.f32.mrb[0].mxu0
        %v6216 = vadd.f32 %v5880, %v6215
        %v6217 = vpop.f32.mrb[0].mxu0
        %6218 = vmatprep.mubr.f32.mxu0 0.0
        %6219 = vmatmul.mubr.f32.gmra.mrb[0].mxu0 %v5931
        %v6220 = vpop.f32.mrb[0].mxu0
        %v6221 = vadd.f32 %v5880, %v6220
        %v6222 = vpop.f32.mrb[0].mxu0
        %6223 = vmatprep.mubr.f32.mxu0 0.0
        %6224 = vmatmul.mubr.f32.gmra.mrb[0].mxu0 %v5934
        %v6225 = vpop.f32.mrb[0].mxu0
        %v6226 = vadd.f32 %v5880, %v6225
        %v6227 = vpop.f32.mrb[0].mxu0
        %6228 = vmatprep.mubr.f32.mxu0 0.0
        %6229 = vmatmul.mubr.f32.gmra.mrb[0].mxu0 %v5937
        %v6230 = vpop.f32.mrb[0].mxu0
        %v6231 = vadd.f32 %v5880, %v6230
        %v6232 = vpop.f32.mrb[0].mxu0
        %6233 = vmatprep.mubr.f32.mxu0 0.0
        %6234 = vmatmul.mubr.f32.gmra.mrb[0].mxu0 %v5940
        %v6235 = vpop.f32.mrb[0].mxu0
        %v6236 = vadd.f32 %v5880, %v6235
        %v6237 = vpop.f32.mrb[0].mxu0
        %6238 = vmatprep.mubr.f32.mxu0 0.0
        %6239 = vmatmul.mubr.f32.gmra.mrb[0].mxu0 %v5943
        %v6240 = vpop.f32.mrb[0].mxu0
        %v6241 = vadd.f32 %v5880, %v6240
        %v6242 = vpop.f32.mrb[0].mxu0
        %6243 = vmatprep.mubr.f32.mxu0 0.0
        %6244 = vmatmul.mubr.f32.gmra.mrb[0].mxu0 %v5946
        %v6245 = vpop.f32.mrb[0].mxu0
        %v6246 = vadd.f32 %v5880, %v6245
        %v6247 = vpop.f32.mrb[0].mxu0
        %6248 = vmatprep.mubr.f32.mxu0 0.0
        %6249 = vmatmul.mubr.f32.gmra.mrb[0].mxu0 %v5949
        %v6250 = vpop.f32.mrb[0].mxu0
        %v6251 = vadd.f32 %v5880, %v6250
        %v6252 = vpop.f32.mrb[0].mxu0
        %6253 = vmatprep.mubr.f32.mxu0 0.0
        %6254 = vmatmul.mubr.f32.gmra.mrb[0].mxu0 %v5952
        %v6255 = vpop.f32.mrb[0].mxu0
        %v6256 = vadd.f32 %v5880, %v6255
        %v6257 = vpop.f32.mrb[0].mxu0
        %6258 = vmatprep.mubr.f32.mxu0 0.0
        %6259 = vmatmul.mubr.f32.gmra.mrb[0].mxu0 %v5955
        %v6260 = vpop.f32.mrb[0].mxu0
        %v6261 = vadd.f32 %v5880, %v6260
        %v6262 = vpop.f32.mrb[0].mxu0
        %6263 = vmatprep.mubr.f32.mxu0 0.0
        %6264 = vmatmul.mubr.f32.gmra.mrb[0].mxu0 %v5958
        %v6265 = vpop.f32.mrb[0].mxu0
        %v6266 = vadd.f32 %v5880, %v6265
        %v6267 = vpop.f32.mrb[0].mxu0
        %6268 = vmatprep.mubr.f32.mxu0 0.0
        %6269 = vmatmul.mubr.f32.gmra.mrb[0].mxu0 %v5961
        %v6270 = vpop.f32.mrb[0].mxu0
        %v6271 = vadd.f32 %v5880, %v6270
        %v6272 = vpop.f32.mrb[0].mxu0
        %6273 = vmatprep.mubr.f32.mxu0 0.0
        %6274 = vmatmul.mubr.f32.gmra.mrb[0].mxu0 %v5964
        %v6275 = vpop.f32.mrb[0].mxu0
        %v6276 = vadd.f32 %v5880, %v6275
        %v6277 = vpop.f32.mrb[0].mxu0
        %6278 = vmatprep.mubr.f32.mxu0 0.0
        %6279 = vmatmul.mubr.f32.gmra.mrb[0].mxu0 %v5967
        %v6280 = vpop.f32.mrb[0].mxu0
        %v6281 = vadd.f32 %v5880, %v6280
        %v6282 = vpop.f32.mrb[0].mxu0
        %6283 = vmatprep.mubr.f32.mxu0 0.0
        %6284 = vmatmul.mubr.f32.gmra.mrb[0].mxu0 %v5970
        %v6285 = vpop.f32.mrb[0].mxu0
        %v6286 = vadd.f32 %v5880, %v6285
        %v6287 = vpop.f32.mrb[0].mxu0
        %6288 = vmatprep.mubr.f32.mxu0 0.0
        %6289 = vmatmul.mubr.f32.gmra.mrb[0].mxu0 %v5973
        %v6290 = vpop.f32.mrb[0].mxu0
        %v6291 = vadd.f32 %v5880, %v6290
        %v6292 = vpop.f32.mrb[0].mxu0
        %6293 = vmatprep.mubr.f32.mxu0 0.0
        %6294 = vmatmul.mubr.f32.gmra.mrb[0].mxu0 %v5976
        %v6295 = vpop.f32.mrb[0].mxu0
        %v6296 = vadd.f32 %v5880, %v6295
        %v6297 = vpop.f32.mrb[0].mxu0
        %6298 = vmatprep.mubr.f32.mxu0 0.0
        %6299 = vmatmul.mubr.f32.gmra.mrb[0].mxu0 %v5979
        %v6300 = vpop.f32.mrb[0].mxu0
        %v6301 = vadd.f32 %v5880, %v6300
        %v6302 = vpop.f32.mrb[0].mxu0
        %6303 = vmatprep.mubr.f32.mxu0 0.0
        %6304 = vmatmul.mubr.f32.gmra.mrb[0].mxu0 %v5982
        %v6305 = vpop.f32.mrb[0].mxu0
        %v6306 = vadd.f32 %v5880, %v6305
        %v6307 = vpop.f32.mrb[0].mxu0
        %6308 = vmatprep.mubr.f32.mxu0 0.0
        %6309 = vmatmul.mubr.f32.gmra.mrb[0].mxu0 %v5985
        %v6310 = vpop.f32.mrb[0].mxu0
        %v6311 = vadd.f32 %v5880, %v6310
        %v6312 = vpop.f32.mrb[0].mxu0
        %6313 = vmatprep.mubr.f32.mxu0 0.0
        %6314 = vmatmul.mubr.f32.gmra.mrb[0].mxu0 %v5988
        %v6315 = vpop.f32.mrb[0].mxu0
        %v6316 = vadd.f32 %v5880, %v6315
        %v6317 = vpop.f32.mrb[0].mxu0
        %6318 = vmatprep.mubr.f32.mxu0 0.0
        %6319 = vmatmul.mubr.f32.gmra.mrb[0].mxu0 %v5991
        %v6320 = vpop.f32.mrb[0].mxu0
        %v6321 = vadd.f32 %v5880, %v6320
        %v6322 = vpop.f32.mrb[0].mxu0
        %6323 = vmatprep.mubr.f32.mxu0 0.0
        %6324 = vmatmul.mubr.f32.gmra.mrb[0].mxu0 %v5994
        %v6325 = vpop.f32.mrb[0].mxu0
        %v6326 = vadd.f32 %v5880, %v6325
        %v6327 = vpop.f32.mrb[0].mxu0
        %6328 = vmatprep.mubr.f32.mxu0 0.0
        %6329 = vmatmul.mubr.f32.gmra.mrb[0].mxu0 %v5997
        %v6330 = vpop.f32.mrb[0].mxu0
        %v6331 = vadd.f32 %v5880, %v6330
        %v6332 = vpop.f32.mrb[0].mxu0
        %6333 = vmatprep.mubr.f32.mxu0 0.0
        %6334 = vmatmul.mubr.f32.gmra.mrb[0].mxu0 %v6000
        %v6335 = vpop.f32.mrb[0].mxu0
        %v6336 = vadd.f32 %v5880, %v6335
        %v6337 = vpop.f32.mrb[0].mxu0
        %6338 = vmatprep.mubr.f32.mxu0 0.0
        %6339 = vmatmul.mubr.f32.gmra.mrb[0].mxu0 %v6003
        %v6340 = vpop.f32.mrb[0].mxu0
        %v6341 = vadd.f32 %v5880, %v6340
        %v6342 = vpop.f32.mrb[0].mxu0
        %6343 = vmatprep.mubr.f32.mxu0 0.0
        %6344 = vmatmul.mubr.f32.gmra.mrb[0].mxu0 %v6006
        %v6345 = vpop.f32.mrb[0].mxu0
        %v6346 = vadd.f32 %v5880, %v6345
        %v6347 = vpop.f32.mrb[0].mxu0
        %6348 = vmatprep.mubr.f32.mxu0 0.0
        %6349 = vmatmul.mubr.f32.gmra.mrb[0].mxu0 %v6009
        %v6350 = vpop.f32.mrb[0].mxu0
        %v6351 = vadd.f32 %v5880, %v6350
        %v6352 = vpop.f32.mrb[0].mxu0
        %6353 = vmatprep.mubr.f32.mxu0 0.0
        %6354 = vmatmul.mubr.f32.gmra.mrb[0].mxu0 %v6012
        %v6355 = vpop.f32.mrb[0].mxu0
        %v6356 = vadd.f32 %v5880, %v6355
        %v6357 = vpop.f32.mrb[0].mxu0
        %6358 = vmatprep.mubr.f32.mxu0 0.0
        %6359 = vmatmul.mubr.f32.gmra.mrb[0].mxu0 %v6015
        %v6360 = vpop.f32.mrb[0].mxu0
        %v6361 = vadd.f32 %v5880, %v6360
        %v6362 = vpop.f32.mrb[0].mxu0
        %6363 = vmatprep.mubr.f32.mxu0 0.0
        %6364 = vmatmul.mubr.f32.gmra.mrb[0].mxu0 %v6018
        %v6365 = vpop.f32.mrb[0].mxu0
        %v6366 = vadd.f32 %v5880, %v6365
        %v6367 = vpop.f32.mrb[0].mxu0
        %6368 = vmatprep.mubr.f32.mxu0 0.0
        %6369 = vmatmul.mubr.f32.gmra.mrb[0].mxu0 %v6021
        %v6370 = vpop.f32.mrb[0].mxu0
        %v6371 = vadd.f32 %v5880, %v6370
        %v6372 = vpop.f32.mrb[0].mxu0
        %6373 = vmatprep.mubr.f32.mxu0 0.0
        %6374 = vmatmul.mubr.f32.gmra.mrb[0].mxu0 %v6024
        %v6375 = vpop.f32.mrb[0].mxu0
        %v6376 = vadd.f32 %v5880, %v6375
        %v6377 = vpop.f32.mrb[0].mxu0
        %6378 = vmatprep.mubr.f32.mxu0 0.0
        %6379 = vmatmul.mubr.f32.gmra.mrb[0].mxu0 %v6027
        %v6380 = vpop.f32.mrb[0].mxu0
        %v6381 = vadd.f32 %v5880, %v6380
        %v6382 = vpop.f32.mrb[0].mxu0
        %6383 = vmatprep.mubr.f32.mxu0 0.0
        %6384 = vmatmul.mubr.f32.gmra.mrb[0].mxu0 %v6030
        %v6385 = vpop.f32.mrb[0].mxu0
        %v6386 = vadd.f32 %v5880, %v6385
        %v6387 = vpop.f32.mrb[0].mxu0
        %6388 = vmatprep.mubr.f32.mxu0 0.0
        %6389 = vmatmul.mubr.f32.gmra.mrb[0].mxu0 %v6033
        %v6390 = vpop.f32.mrb[0].mxu0
        %v6391 = vadd.f32 %v5880, %v6390
        %v6392 = vpop.f32.mrb[0].mxu0
        %6393 = vmatprep.mubr.f32.mxu0 0.0
        %6394 = vmatmul.mubr.f32.gmra.mrb[0].mxu0 %v6036
        %v6395 = vpop.f32.mrb[0].mxu0
        %v6396 = vadd.f32 %v5880, %v6395
        %v6397 = vpop.f32.mrb[0].mxu0
        %6398 = vmatprep.mubr.f32.mxu0 0.0
        %6399 = vmatmul.mubr.f32.gmra.mrb[0].mxu0 %v6039
        %v6400 = vpop.f32.mrb[0].mxu0
        %v6401 = vadd.f32 %v5880, %v6400
        %v6402 = vpop.f32.mrb[0].mxu0
        %6403 = vmatprep.mubr.f32.mxu0 0.0
        %6404 = vmatmul.mubr.f32.gmra.mrb[0].mxu0 %v6042
        %v6405 = vpop.f32.mrb[0].mxu0
        %v6406 = vadd.f32 %v5880, %v6405
        %v6407 = vpop.f32.mrb[0].mxu0
        %6408 = vmatprep.mubr.f32.mxu0 0.0
        %6409 = vmatmul.mubr.f32.gmra.mrb[0].mxu0 %v6045
        %v6410 = vpop.f32.mrb[0].mxu0
        %v6411 = vadd.f32 %v5880, %v6410
        %v6412 = vpop.f32.mrb[0].mxu0
        %6413 = vmatprep.mubr.f32.mxu0 0.0
        %6414 = vmatmul.mubr.f32.gmra.mrb[0].mxu0 %v6048
        %v6415 = vpop.f32.mrb[0].mxu0
        %v6416 = vadd.f32 %v5880, %v6415
        %v6417 = vpop.f32.mrb[0].mxu0
        %6418 = vmatprep.mubr.f32.mxu0 0.0
        %6419 = vmatmul.mubr.f32.gmra.mrb[0].mxu0 %v6051
        %v6420 = vpop.f32.mrb[0].mxu0
        %v6421 = vadd.f32 %v5880, %v6420
        %v6422 = vpop.f32.mrb[0].mxu0
        %6423 = vmatprep.mubr.f32.mxu0 0.0
        %6424 = vmatmul.mubr.f32.gmra.mrb[0].mxu0 %v6054
        %v6425 = vpop.f32.mrb[0].mxu0
        %v6426 = vadd.f32 %v5880, %v6425
        %v6427 = vpop.f32.mrb[0].mxu0
        %6428 = vmatprep.mubr.f32.mxu0 0.0
        %6429 = vmatmul.mubr.f32.gmra.mrb[0].mxu0 %v6057
        %v6430 = vpop.f32.mrb[0].mxu0
        %v6431 = vadd.f32 %v5880, %v6430
        %v6432 = vpop.f32.mrb[0].mxu0
        %6433 = vmatprep.mubr.f32.mxu0 0.0
        %6434 = vmatmul.mubr.f32.gmra.mrb[0].mxu0 %v6060
        %v6435 = vpop.f32.mrb[0].mxu0
        %v6436 = vadd.f32 %v5880, %v6435
        %v6437 = vpop.f32.mrb[0].mxu0
        %6438 = vmatprep.mubr.f32.mxu0 0.0
        %6439 = vmatmul.mubr.f32.gmra.mrb[0].mxu0 %v6063
        %v6440 = vpop.f32.mrb[0].mxu0
        %v6441 = vadd.f32 %v5880, %v6440
        %v6442 = vpop.f32.mrb[0].mxu0
        %6443 = vmatprep.mubr.f32.mxu0 0.0
        %6444 = vmatmul.mubr.f32.gmra.mrb[0].mxu0 %v6066
        %v6445 = vpop.f32.mrb[0].mxu0
        %v6446 = vadd.f32 %v5880, %v6445
        %v6447 = vpop.f32.mrb[0].mxu0
        %6448 = vmatprep.mubr.f32.mxu0 0.0
        %6449 = vmatmul.mubr.f32.gmra.mrb[0].mxu0 %v6069
        %v6450 = vpop.f32.mrb[0].mxu0
        %v6451 = vadd.f32 %v5880, %v6450
        %v6452 = vpop.f32.mrb[0].mxu0
        %6453 = vmatprep.mubr.f32.mxu0 0.0
        %6454 = vmatmul.mubr.f32.gmra.mrb[0].mxu0 %v6072
        %v6455 = vpop.f32.mrb[0].mxu0
        %v6456 = vadd.f32 %v5880, %v6455
        %v6457 = vpop.f32.mrb[0].mxu0
        %6458 = vdwg.mxu0
        %6459 = vst [vmem:[%s299] sm:$0xff] %v6141
        %6460 = vst [vmem:[%s299 + $0x8] sm:$0xff] %v6146
        %6461 = vst [vmem:[%s299 + $0x10] sm:$0xff] %v6151
        %6462 = vst [vmem:[%s299 + $0x18] sm:$0xff] %v6156
        %6463 = vst [vmem:[%s299 + $0x20] sm:$0xff] %v6161
        %6464 = vst [vmem:[%s299 + $0x28] sm:$0xff] %v6166
        %6465 = vst [vmem:[%s299 + $0x30] sm:$0xff] %v6171
        %6466 = vst [vmem:[%s299 + $0x38] sm:$0xff] %v6176
        %6467 = vst [vmem:[%s299 + $0x40] sm:$0xff] %v6181
        %6468 = vst [vmem:[%s299 + $0x48] sm:$0xff] %v6186
        %6469 = vst [vmem:[%s299 + $0x50] sm:$0xff] %v6191
        %6470 = vst [vmem:[%s299 + $0x58] sm:$0xff] %v6196
        %6471 = vst [vmem:[%s299 + $0x60] sm:$0xff] %v6201
        %6472 = vst [vmem:[%s299 + $0x68] sm:$0xff] %v6206
        %6473 = vst [vmem:[%s299 + $0x70] sm:$0xff] %v6211
        %6474 = vst [vmem:[%s299 + $0x78] sm:$0xff] %v6216
        %6475 = vst [vmem:[%s299 + $0x80] sm:$0xff] %v6221
        %6476 = vst [vmem:[%s299 + $0x88] sm:$0xff] %v6226
        %6477 = vst [vmem:[%s299 + $0x90] sm:$0xff] %v6231
        %6478 = vst [vmem:[%s299 + $0x98] sm:$0xff] %v6236
        %6479 = vst [vmem:[%s299 + $0xa0] sm:$0xff] %v6241
        %6480 = vst [vmem:[%s299 + $0xa8] sm:$0xff] %v6246
        %6481 = vst [vmem:[%s299 + $0xb0] sm:$0xff] %v6251
        %6482 = vst [vmem:[%s299 + $0xb8] sm:$0xff] %v6256
        %6483 = vst [vmem:[%s299 + $0xc0] sm:$0xff] %v6261
        %6484 = vst [vmem:[%s299 + $0xc8] sm:$0xff] %v6266
        %6485 = vst [vmem:[%s299 + $0xd0] sm:$0xff] %v6271
        %6486 = vst [vmem:[%s299 + $0xd8] sm:$0xff] %v6276
        %6487 = vst [vmem:[%s299 + $0xe0] sm:$0xff] %v6281
        %6488 = vst [vmem:[%s299 + $0xe8] sm:$0xff] %v6286
        %6489 = vst [vmem:[%s299 + $0xf0] sm:$0xff] %v6291
        %6490 = vst [vmem:[%s299 + $0xf8] sm:$0xff] %v6296
        %6491 = vst [vmem:[%s299 + $0x100] sm:$0xff] %v6301
        %6492 = vst [vmem:[%s299 + $0x108] sm:$0xff] %v6306
        %6493 = vst [vmem:[%s299 + $0x110] sm:$0xff] %v6311
        %6494 = vst [vmem:[%s299 + $0x118] sm:$0xff] %v6316
        %6495 = vst [vmem:[%s299 + $0x120] sm:$0xff] %v6321
        %6496 = vst [vmem:[%s299 + $0x128] sm:$0xff] %v6326
        %6497 = vst [vmem:[%s299 + $0x130] sm:$0xff] %v6331
        %6498 = vst [vmem:[%s299 + $0x138] sm:$0xff] %v6336
        %6499 = vst [vmem:[%s299 + $0x140] sm:$0xff] %v6341
        %6500 = vst [vmem:[%s299 + $0x148] sm:$0xff] %v6346
        %6501 = vst [vmem:[%s299 + $0x150] sm:$0xff] %v6351
        %6502 = vst [vmem:[%s299 + $0x158] sm:$0xff] %v6356
        %6503 = vst [vmem:[%s299 + $0x160] sm:$0xff] %v6361
        %6504 = vst [vmem:[%s299 + $0x168] sm:$0xff] %v6366
        %6505 = vst [vmem:[%s299 + $0x170] sm:$0xff] %v6371
        %6506 = vst [vmem:[%s299 + $0x178] sm:$0xff] %v6376
        %6507 = vst [vmem:[%s299 + $0x180] sm:$0xff] %v6381
        %6508 = vst [vmem:[%s299 + $0x188] sm:$0xff] %v6386
        %6509 = vst [vmem:[%s299 + $0x190] sm:$0xff] %v6391
        %6510 = vst [vmem:[%s299 + $0x198] sm:$0xff] %v6396
        %6511 = vst [vmem:[%s299 + $0x1a0] sm:$0xff] %v6401
        %6512 = vst [vmem:[%s299 + $0x1a8] sm:$0xff] %v6406
        %6513 = vst [vmem:[%s299 + $0x1b0] sm:$0xff] %v6411
        %6514 = vst [vmem:[%s299 + $0x1b8] sm:$0xff] %v6416
        %6515 = vst [vmem:[%s299 + $0x1c0] sm:$0xff] %v6421
        %6516 = vst [vmem:[%s299 + $0x1c8] sm:$0xff] %v6426
        %6517 = vst [vmem:[%s299 + $0x1d0] sm:$0xff] %v6431
        %6518 = vst [vmem:[%s299 + $0x1d8] sm:$0xff] %v6436
        %6519 = vst [vmem:[%s299 + $0x1e0] sm:$0xff] %v6441
        %6520 = vst [vmem:[%s299 + $0x1e8] sm:$0xff] %v6446
        %6521 = vst [vmem:[%s299 + $0x1f0] sm:$0xff] %v6451
        %6522 = vst [vmem:[%s299 + $0x1f8] sm:$0xff] %v6456
        %s6523 = sand.u32 %s203, 1
        %s6524 = scalar_lea.sflag [#allocation3], %s6523
        %s6525 = sand.u32 %s203, 1
        %s6526 = smul.addr %s6525, 512
        %s6527 = scalar_lea.vmem [#allocation2], %s6526
        // Predicated region
        $region53: #{tpu_custom_call.1} parent=51 // pred_check
          %p6528 = pneg %p213
        $region54: #{tpu_custom_call.1} parent=51 // pred_check_branch
          %6530 = sbr.rel (%p6528) target = $region56
        $region55: #{tpu_custom_call.1} parent=51 // pred_region
          %s6531 = smul.u32 64, %s22
          %s6533 = ssub.s32 8192, 8192
          %6534 = vsyncadd %s6524, %s6533
          %s6535 = smul.addr %s6531, 128
          %s6536 = scalar_lea.hbm %s8, %s6535
          %s6537 = sshll.u32 %s6527, 4
          %s6538 = int_to_ptr.vmem [resolvable:$true] %s6537
          %6543 = dma.vmem_to_hbm [thread:$0]  %s6538, 8192, %s6536, %s6524, 128, 128, 8
        $region56: #{tpu_custom_call.1} parent=51 // pred_fallthru
          _
      $region52: #{tpu_custom_call.1} parent=5 // pred_fallthru
        _
      %p6544 = scmp.le.s32.totalorder 2, %s17
      // Predicated region
      $region57: #{tpu_custom_call.1} parent=5 // pred_check
        %p6545 = pneg %p6544
      $region58: #{tpu_custom_call.1} parent=5 // pred_check_branch
        %6547 = sbr.rel (%p6545) target = $region60
      $region59: #{tpu_custom_call.1} parent=5 // pred_region
        %s6548 = ssub.s32 %s17, 2
        // Predicated region
        $region61: #{tpu_custom_call.1} parent=59 // pred_check
          %p6549 = pneg %p219
        $region62: #{tpu_custom_call.1} parent=59 // pred_check_branch
          %6551 = sbr.rel (%p6549) target = $region64
        $region63: #{tpu_custom_call.1} parent=59 // pred_region
          %s6552 = sand.u32 %s204, 1
          %s6553 = scalar_lea.sflag [#allocation3], %s6552
          %s6554 = sand.u32 %s204, 1
          %s6555 = smul.addr %s6554, 512
          %s6556 = scalar_lea.vmem [#allocation2], %s6555
          %6557 = dma.done %s6553, 8192
        $region64: #{tpu_custom_call.1} parent=59 // pred_fallthru
          _
      $region60: #{tpu_custom_call.1} parent=5 // pred_fallthru
        _
    $region6: #{tpu_custom_call.1} parent=1 // loop_footer
      %s21 = sadd.s32 1, %s17
    $region7: #{tpu_custom_call.1} parent=1 // loop_footer_branch
      %16 = sbr.rel target = $region3
    $region8: #{tpu_custom_call.1} parent=1 // loop_exit
      _
    %6558 = vsyncpa [#allocation3], 1
    %s6559 = scalar_lea.sflag [#allocation3], 1
    %6560 = vsyncpa %s6559, 1

</llo_original>
